<compile_context>
chip_gen: v5e
topology: v5e:2x2
jax: 0.10.0
libtpu: 0.0.40
codegen_flags: <defaults>
</compile_context>

<pallas_src>
import functools

import numpy as np
import jax
import jax.numpy as jnp
from jax.experimental import pallas as pl
from jax.experimental.pallas import tpu as pltpu

EPS = 1e-5


# ----------------------------- Pallas kernels -----------------------------

def upconv_kernel(x_ref, w_ref, b_ref, o_ref):
    # ConvTranspose2d(k=2, s=2) as one matmul: (TM, Cin) @ (Cin, 4*Cout) + bias.
    o_ref[...] = (jnp.dot(x_ref[...], w_ref[...],
                          preferred_element_type=jnp.float32) + b_ref[...])


def fused_kernel(up_c_ref, up_lo_ref, up_hi_ref,
                 sk_c_ref, sk_lo_ref, sk_hi_ref,
                 wg_ref, wx_ref, bgx_ref, wpsi_ref, bpsi_ref,
                 w1_ref, t1_ref, w2_ref, wr_ref, bout_ref,
                 o_ref,
                 cat_ref, h1_ref, acc1_ref, acc2_ref):
    """Attention + concat + conv1(+BN+ReLU) + conv2(+BN) + 1x1 residual + ReLU.

    Works on a tile of `th` output rows of one image; a 2-row halo of up/skip is
    supplied through the small lo/hi side blocks and masked to zero outside the
    image, so the 3x3 convs see correct SAME zero padding.
    """
    i = pl.program_id(1)
    nt = pl.num_programs(1)
    _, th, Wo, C = up_c_ref.shape
    hh = up_lo_ref.shape[1]
    C2 = 2 * C
    M4 = (th + 4) * Wo            # rows incl. 2-row halo each side (conv1 input)
    M1 = (th + 2) * Wo            # h1 rows incl. 1-row halo each side
    M2 = th * Wo                  # output rows

    # ---- assemble up/skip windows for rows [r0-2, r0+th+2), zero outside image ----
    def window(c_ref, lo_ref, hi_ref):
        lo = jnp.where(i > 0, lo_ref[0, hh - 2:hh], 0.0)
        hi = jnp.where(i < nt - 1, hi_ref[0, 0:2], 0.0)
        return jnp.concatenate([lo, c_ref[0], hi], axis=0)      # (th+4, Wo, C)

    win_up = window(up_c_ref, up_lo_ref, up_hi_ref)
    win_sk = window(sk_c_ref, sk_lo_ref, sk_hi_ref)
    up2 = win_up.reshape(M4, C)
    sk2 = win_sk.reshape(M4, C)

    # ---- AttentionBlock: 1x1 convs with folded eval-BN, biases pre-summed ----
    p = jnp.dot(up2, wg_ref[...], preferred_element_type=jnp.float32)
    p = p + jnp.dot(sk2, wx_ref[...], preferred_element_type=jnp.float32)
    p = jnp.maximum(p + bgx_ref[...], 0.0)
    psi = jnp.sum(p * wpsi_ref[...], axis=-1, keepdims=True) + bpsi_ref[...]
    psi = 1.0 / (1.0 + jnp.exp(-psi))                            # sigmoid (EUP exp)
    att2 = sk2 * psi                                             # gated skip (0 in halo)

    # ---- cat([skip_att, up], channels) staged in VMEM with a 1-column zero halo ----
    cat_in = jnp.concatenate([att2.reshape(th + 4, Wo, C), win_up], axis=-1)
    zcol = jnp.zeros((th + 4, 1, C2), jnp.float32)
    cat_ref[:, 0:1, :] = zcol
    cat_ref[:, Wo + 1:Wo + 2, :] = zcol
    cat_ref[:, 1:Wo + 1, :] = cat_in

    # ---- conv1 (3x3, folded BN) + ReLU -> h1 with a 1-pixel zero halo.
    # Computed for rows [r0-1, r0+th+1) so conv2 never round-trips HBM.
    taps = [(dy, dx) for dy in range(3) for dx in range(3)]
    for k, (dy, dx) in enumerate(taps):
        lhs = cat_ref[dy:dy + th + 2, dx:dx + Wo, :].reshape(M1, C2)
        part = jnp.dot(lhs, w1_ref[k], preferred_element_type=jnp.float32)
        if k == 0:
            acc1_ref[...] = part
        else:
            acc1_ref[...] += part
    h1 = jnp.maximum(acc1_ref[...] + t1_ref[...], 0.0).reshape(th + 2, Wo, C)
    zcol1 = jnp.zeros((th + 2, 1, C), jnp.float32)
    h1_ref[:, 0:1, :] = zcol1
    h1_ref[:, Wo + 1:Wo + 2, :] = zcol1
    h1_ref[:, 1:Wo + 1, :] = h1

    # h1 rows outside the image are conv2's zero padding, not conv1 outputs.
    @pl.when(i == 0)
    def _():
        h1_ref[0:1, :, :] = jnp.zeros((1, Wo + 2, C), jnp.float32)

    @pl.when(i == nt - 1)
    def _():
        h1_ref[th + 1:th + 2, :, :] = jnp.zeros((1, Wo + 2, C), jnp.float32)

    # ---- 1x1 residual conv on cat + conv2 (3x3, folded BN) + add + ReLU ----
    res_in = cat_ref[2:2 + th, 1:Wo + 1, :].reshape(M2, C2)
    acc2_ref[...] = (jnp.dot(res_in, wr_ref[...], preferred_element_type=jnp.float32)
                     + bout_ref[...])
    for k, (dy, dx) in enumerate(taps):
        lhs = h1_ref[dy:dy + th, dx:dx + Wo, :].reshape(M2, C)
        acc2_ref[...] += jnp.dot(lhs, w2_ref[k], preferred_element_type=jnp.float32)
    o_ref[0] = jnp.maximum(acc2_ref[...], 0.0).reshape(th, Wo, C)


# --------------------------- tiling / VMEM helpers ---------------------------

def _vmem_budget_bytes():
    """Generation-aware VMEM limit (leave headroom for compiler scratch)."""
    cap = 128 << 20
    try:
        info = pltpu.get_tpu_info()
        cap = int(getattr(info, "vmem_capacity_bytes", cap))
    except Exception:
        pass
    return int(max(min(cap * 0.78, 100 << 20), 32 << 20))


def _pick_tile(n, multiple=8, cap=1024):
    """Largest divisor row-tile (multiple of 8) that still gives >=2 grid steps."""
    cands = [d for d in range(multiple, min(n, cap) + 1, multiple) if n % d == 0]
    if not cands:
        return None
    multi = [d for d in cands if n // d >= 2]
    return max(multi) if multi else max(cands)


def _pick_conv_tile(Ho, Wo, C, budget_bytes):
    """Row tile for the fused kernel: multiple of 8 dividing Ho, fitting the budget."""
    def need(th):
        tile = Wo * C
        inputs = 2 * (th * tile + 2 * min(8, Ho) * tile)          # up+skip (+halos)
        scr = ((th + 4) * (Wo + 2) * 2 * C + (th + 2) * (Wo + 2) * C
               + (th + 2) * Wo * C + th * Wo * C)
        trans = 6 * (th + 4) * Wo * 2 * C                         # windows / dot operands
        out = th * tile
        return 4 * (2 * (inputs + out) + scr + trans)             # f32, double-buffered IO

    cands = [d for d in range(8, Ho + 1, 8) if Ho % d == 0 and d <= 512]
    fitting = [d for d in cands if need(d) <= budget_bytes]
    multi = [d for d in fitting if Ho // d >= 2]
    if multi:
        return max(multi)
    if fitting:
        return max(fitting)
    if cands:
        return min(cands)
    return Ho


# --------------------------- BN folding (host side) --------------------------

def fold_bn_1x1(w_oi11, bias, bn):
    gamma, beta, mean, var = bn
    s = gamma / jnp.sqrt(var + EPS)
    w_eff = w_oi11[:, :, 0, 0].T * s[None, :]          # (Cin, Cout_eff)
    b_eff = (bias - mean) * s + beta
    return w_eff, b_eff


def fold_bn_3x3(w_oihw, bias, bn):
    gamma, beta, mean, var = bn
    s = gamma / jnp.sqrt(var + EPS)
    w_eff = jnp.transpose(w_oihw, (2, 3, 1, 0)) * s     # (3, 3, Cin, Cout)
    b_eff = (bias - mean) * s + beta
    return w_eff, b_eff


# ------------------------------- forward pass -------------------------------

def upblock_forward(params, x_nchw, skip_nchw):
    B, Cin, H, W = x_nchw.shape
    Cout = params['up_w'].shape[1]
    C = Cout
    Ho, Wo = 2 * H, 2 * W
    # TODO(synk): F.pad size-mismatch branch omitted -- a k=2,s=2 upsample always
    # matches the skip spatial size here, so that branch is statically a no-op.

    x = jnp.transpose(x_nchw, (0, 2, 3, 1))             # (B, H, W, Cin)
    skip = jnp.transpose(skip_nchw, (0, 2, 3, 1))       # (B, Ho, Wo, Cout)

    budget = _vmem_budget_bytes()

    # --- self.up : ConvTranspose2d(Cin, Cout, kernel=2, stride=2) ---
    n = B * H * W
    x2d = x.reshape(n, Cin)
    w_up = jnp.transpose(params['up_w'], (0, 2, 3, 1)).reshape(Cin, 4 * Cout)
    b_up = jnp.tile(params['up_b'], (4,))[None, :]

    tm = _pick_tile(n)
    if tm is None:                                       # no nice divisor: pad rows
        tm = min(1024, max(8, ((n + 15) // 16) * 8))
        pad_rows = (-n) % tm
        x2d_in = jnp.pad(x2d, ((0, pad_rows), (0, 0))) if pad_rows else x2d
    else:
        pad_rows = 0
        x2d_in = x2d
    npad = x2d_in.shape[0]

    up2d = pl.pallas_call(
        upconv_kernel,
        out_shape=jax.ShapeDtypeStruct((npad, 4 * Cout), jnp.float32),
        grid=(npad // tm,),
        in_specs=[pl.BlockSpec((tm, Cin), lambda i: (i, 0)),
                  pl.BlockSpec((Cin, 4 * Cout), lambda i: (0, 0)),
                  pl.BlockSpec((1, 4 * Cout), lambda i: (0, 0))],
        out_specs=pl.BlockSpec((tm, 4 * Cout), lambda i: (i, 0)),
        compiler_params=pltpu.CompilerParams(
            dimension_semantics=("parallel",),
            vmem_limit_bytes=budget),
    )(x2d_in, w_up, b_up)
    if pad_rows:
        up2d = up2d[:n]
    # TODO(synk): the 2x2 spatial interleave stays in XLA (one transpose over the
    # upsampled tensor); folding it into the kernel needs strided in-kernel stores.
    up = (up2d.reshape(B, H, W, 2, 2, Cout)
               .transpose(0, 1, 3, 2, 4, 5)
               .reshape(B, Ho, Wo, Cout))

    # --- fused attention + concat + ResidualBlock (eval-BN folded host side) ---
    wg, bg = fold_bn_1x1(params['att_wg_w'], params['att_wg_b'], params['att_wg_bn'])
    wx, bx = fold_bn_1x1(params['att_wx_w'], params['att_wx_b'], params['att_wx_bn'])
    wpsi, bpsi = fold_bn_1x1(params['att_psi_w'], params['att_psi_b'], params['att_psi_bn'])
    w1, t1 = fold_bn_3x3(params['res_c1_w'], params['res_c1_b'], params['res_bn1'])
    w2, t2 = fold_bn_3x3(params['res_c2_w'], params['res_c2_b'], params['res_bn2'])
    wr = params['res_rc_w'][:, :, 0, 0].T               # (2C, C)
    br = params['res_rc_b']

    weights = [
        wg,                                   # (C, Fi)
        wx,                                   # (C, Fi)
        (bg + bx)[None, :],                   # (1, Fi)   conv biases + BN shifts
        wpsi.T,                               # (1, Fi)   psi weights as a row
        bpsi.reshape(1, 1),                   # (1, 1)
        w1.reshape(9, 2 * C, C),              # conv1 taps (dy*3+dx, 2C, C)
        t1[None, :],                          # (1, C)
        w2.reshape(9, C, C),                  # conv2 taps
        wr,                                   # (2C, C)   1x1 residual conv
        (t2 + br)[None, :],                   # (1, C)    conv2 BN shift + residual bias
    ]

    th = _pick_conv_tile(Ho, Wo, C, int(budget * 0.6))
    nt = Ho // th

    if nt > 1:                                # th % 8 == 0 and Ho % 8 == 0 here
        hh = 8
        tb = th // 8
        nlo = Ho // 8
        lo_map = lambda b, i: (b, jnp.maximum(i * tb - 1, 0), 0, 0)
        hi_map = lambda b, i: (b, jnp.minimum((i + 1) * tb, nlo - 1), 0, 0)
    else:                                     # single tile: halos fully masked
        hh = th
        lo_map = lambda b, i: (b, 0, 0, 0)
        hi_map = lambda b, i: (b, 0, 0, 0)
    c_map = lambda b, i: (b, i, 0, 0)

    def img_spec(rows, imap):
        return pl.BlockSpec((1, rows, Wo, C), imap)

    def wspec(a):
        return pl.BlockSpec(a.shape, lambda b, i, nd=a.ndim: (0,) * nd)

    out = pl.pallas_call(
        fused_kernel,
        out_shape=jax.ShapeDtypeStruct((B, Ho, Wo, C), jnp.float32),
        grid=(B, nt),
        in_specs=[img_spec(th, c_map), img_spec(hh, lo_map), img_spec(hh, hi_map),
                  img_spec(th, c_map), img_spec(hh, lo_map), img_spec(hh, hi_map)]
                 + [wspec(a) for a in weights],
        out_specs=pl.BlockSpec((1, th, Wo, C), c_map),
        scratch_shapes=[
            pltpu.VMEM((th + 4, Wo + 2, 2 * C), jnp.float32),   # padded cat([att, up])
            pltpu.VMEM((th + 2, Wo + 2, C), jnp.float32),       # padded h1
            pltpu.VMEM(((th + 2) * Wo, C), jnp.float32),        # conv1 accumulator
            pltpu.VMEM((th * Wo, C), jnp.float32),              # conv2 accumulator
        ],
        compiler_params=pltpu.CompilerParams(
            dimension_semantics=("parallel", "parallel"),
            vmem_limit_bytes=budget),
    )(up, up, up, skip, skip, skip, *weights)

    return jnp.transpose(out, (0, 3, 1, 2))              # NCHW


# ------------------------- deterministic parameters -------------------------

def init_params(key, in_channels, out_channels):
    Cin, Cout = in_channels, out_channels
    Fint = Cout // 2
    keys = iter(jax.random.split(key, 40))

    def w(shape):
        return 0.1 * jax.random.normal(next(keys), shape, jnp.float32)

    def bn(c):
        gamma = 1.0 + 0.1 * jax.random.normal(next(keys), (c,), jnp.float32)
        beta = 0.1 * jax.random.normal(next(keys), (c,), jnp.float32)
        mean = 0.1 * jax.random.normal(next(keys), (c,), jnp.float32)
        var = jax.random.uniform(next(keys), (c,), jnp.float32, 0.5, 1.5)
        return (gamma, beta, mean, var)

    return dict(
        up_w=w((Cin, Cout, 2, 2)), up_b=w((Cout,)),
        att_wg_w=w((Fint, Cout, 1, 1)), att_wg_b=w((Fint,)), att_wg_bn=bn(Fint),
        att_wx_w=w((Fint, Cout, 1, 1)), att_wx_b=w((Fint,)), att_wx_bn=bn(Fint),
        att_psi_w=w((1, Fint, 1, 1)), att_psi_b=w((1,)), att_psi_bn=bn(1),
        res_c1_w=w((Cout, 2 * Cout, 3, 3)), res_c1_b=w((Cout,)), res_bn1=bn(Cout),
        res_c2_w=w((Cout, Cout, 3, 3)), res_c2_b=w((Cout,)), res_bn2=bn(Cout),
        res_rc_w=w((Cout, 2 * Cout, 1, 1)), res_rc_b=w((Cout,)),
    )


# ------------------------------ pure-JAX reference ---------------------------

def ref_forward(params, x_nchw, skip_nchw):
    x = jnp.transpose(x_nchw, (0, 2, 3, 1))
    skip = jnp.transpose(skip_nchw, (0, 2, 3, 1))
    B, H, W, Cin = x.shape
    Cout = params['up_w'].shape[1]

    def bn(y, p):
        g, b, m, v = p
        return (y - m) / jnp.sqrt(v + EPS) * g + b

    def conv1x1(y, wt, bt):
        return jnp.einsum('bhwi,oi->bhwo', y, wt[:, :, 0, 0]) + bt

    def conv3x3(y, wt, bt):
        w_hwio = jnp.transpose(wt, (2, 3, 1, 0))
        return jax.lax.conv_general_dilated(
            y, w_hwio, window_strides=(1, 1), padding='SAME',
            dimension_numbers=('NHWC', 'HWIO', 'NHWC')) + bt

    up = jnp.einsum('bhwi,ioyx->bhywxo', x, params['up_w'])
    up = up.reshape(B, 2 * H, 2 * W, Cout) + params['up_b']

    g1 = bn(conv1x1(up, params['att_wg_w'], params['att_wg_b']), params['att_wg_bn'])
    x1 = bn(conv1x1(skip, params['att_wx_w'], params['att_wx_b']), params['att_wx_bn'])
    p = jax.nn.relu(g1 + x1)
    psi = jax.nn.sigmoid(bn(conv1x1(p, params['att_psi_w'], params['att_psi_b']),
                            params['att_psi_bn']))
    skip_att = skip * psi
    cat = jnp.concatenate([skip_att, up], axis=-1)

    h = jax.nn.relu(bn(conv3x3(cat, params['res_c1_w'], params['res_c1_b']), params['res_bn1']))
    h = bn(conv3x3(h, params['res_c2_w'], params['res_c2_b']), params['res_bn2'])
    r = conv1x1(cat, params['res_rc_w'], params['res_rc_b'])
    return jnp.transpose(jax.nn.relu(h + r), (0, 3, 1, 2))


if __name__ == "__main__":
    key = jax.random.PRNGKey(0)
    k_p, k_x, k_s = jax.random.split(key, 3)
    B, Cin, Cout, H, W = 2, 8, 4, 8, 8
    params = init_params(k_p, Cin, Cout)
    x = jax.random.normal(k_x, (B, Cin, H, W), jnp.float32)            # NCHW
    skip = jax.random.normal(k_s, (B, Cout, 2 * H, 2 * W), jnp.float32)

    fwd = jax.jit(functools.partial(upblock_forward, params))
    out = jax.block_until_ready(fwd(x, skip))

    ref = ref_forward(params, x, skip)
    np.testing.assert_allclose(np.asarray(out), np.asarray(ref), rtol=1e-4, atol=1e-4)
    print("KERNEL_OK")
</pallas_src>

<mosaic_0001>
module attributes {stable_mosaic.version = 11 : i64} {
  func.func @upconv_kernel(%arg0: i32, %arg1: memref<64x8xf32, #tpu.memory_space<vmem>>, %arg2: memref<8x16xf32, #tpu.memory_space<vmem>>, %arg3: memref<1x16xf32, #tpu.memory_space<vmem>>, %arg4: memref<64x16xf32, #tpu.memory_space<vmem>>) attributes {dimension_semantics = [#tpu.dimension_semantics<parallel>], iteration_bounds = array<i64: 2>, scalar_prefetch = 0 : i64, scratch_operands = 0 : i64, tpu.core_type = #tpu.core_type<tc>, window_params = [{transform_indices = @transform_0, window_bounds = array<i64: 64, 8>}, {pipeline_mode = #tpu.pipeline_mode<synchronous>, transform_indices = @transform_1, window_bounds = array<i64: 8, 16>}, {pipeline_mode = #tpu.pipeline_mode<synchronous>, transform_indices = @transform_2, window_bounds = array<i64: 1, 16>}, {transform_indices = @transform_3, window_bounds = array<i64: 64, 16>}]} {
    %c0 = arith.constant 0 : index
    %c0_0 = arith.constant 0 : index
    %0 = vector.load %arg1[%c0, %c0_0] : memref<64x8xf32, #tpu.memory_space<vmem>>, vector<64x8xf32>
    %c0_1 = arith.constant 0 : index
    %c0_2 = arith.constant 0 : index
    %1 = vector.load %arg2[%c0_1, %c0_2] : memref<8x16xf32, #tpu.memory_space<vmem>>, vector<8x16xf32>
    %cst = arith.constant dense<0.000000e+00> : vector<64x16xf32>
    %2 = tpu.matmul %0, %1, %cst {dimension_numbers = #tpu.dot_dimension_numbers<[1], [0], [0], [1], [0, 0, 1, 1], [], []>} : vector<64x8xf32>, vector<8x16xf32>, vector<64x16xf32> -> vector<64x16xf32>
    %c0_3 = arith.constant 0 : index
    %c0_4 = arith.constant 0 : index
    %3 = vector.load %arg3[%c0_3, %c0_4] : memref<1x16xf32, #tpu.memory_space<vmem>>, vector<1x16xf32>
    %4 = vector.broadcast %3 : vector<1x16xf32> to vector<64x16xf32>
    %5 = arith.addf %2, %4 : vector<64x16xf32>
    %c0_5 = arith.constant 0 : index
    %c0_6 = arith.constant 0 : index
    %6 = vector.load %arg4[%c0_5, %c0_6] : memref<64x16xf32, #tpu.memory_space<vmem>>, vector<64x16xf32>
    tpu.vector_store %arg4[%c0_5, %c0_6], %5 {strides = array<i32>} : memref<64x16xf32, #tpu.memory_space<vmem>>, vector<64x16xf32>,
    return
  }
  func.func @transform_0(%arg0: i32) -> (i32, i32) {
    %c0_i32 = arith.constant 0 : i32
    %c0_i32_0 = arith.constant 0 : i32
    return %arg0, %c0_i32 : i32, i32
  }
  func.func @transform_1(%arg0: i32) -> (i32, i32) {
    %c0_i32 = arith.constant 0 : i32
    %c0_i32_0 = arith.constant 0 : i32
    %c0_i32_1 = arith.constant 0 : i32
    return %c0_i32, %c0_i32_0 : i32, i32
  }
  func.func @transform_2(%arg0: i32) -> (i32, i32) {
    %c0_i32 = arith.constant 0 : i32
    %c0_i32_0 = arith.constant 0 : i32
    %c0_i32_1 = arith.constant 0 : i32
    return %c0_i32, %c0_i32_0 : i32, i32
  }
  func.func @transform_3(%arg0: i32) -> (i32, i32) {
    %c0_i32 = arith.constant 0 : i32
    %c0_i32_0 = arith.constant 0 : i32
    return %arg0, %c0_i32 : i32, i32
  }
}

module attributes {stable_mosaic.version = 11 : i64} {
  func.func @fused_kernel(%arg0: i32, %arg1: i32, %arg2: memref<1x8x16x4xf32, #tpu.memory_space<vmem>>, %arg3: memref<1x8x16x4xf32, #tpu.memory_space<vmem>>, %arg4: memref<1x8x16x4xf32, #tpu.memory_space<vmem>>, %arg5: memref<1x8x16x4xf32, #tpu.memory_space<vmem>>, %arg6: memref<1x8x16x4xf32, #tpu.memory_space<vmem>>, %arg7: memref<1x8x16x4xf32, #tpu.memory_space<vmem>>, %arg8: memref<4x2xf32, #tpu.memory_space<vmem>>, %arg9: memref<4x2xf32, #tpu.memory_space<vmem>>, %arg10: memref<1x2xf32, #tpu.memory_space<vmem>>, %arg11: memref<1x2xf32, #tpu.memory_space<vmem>>, %arg12: memref<1x1xf32, #tpu.memory_space<vmem>>, %arg13: memref<9x8x4xf32, #tpu.memory_space<vmem>>, %arg14: memref<1x4xf32, #tpu.memory_space<vmem>>, %arg15: memref<9x4x4xf32, #tpu.memory_space<vmem>>, %arg16: memref<8x4xf32, #tpu.memory_space<vmem>>, %arg17: memref<1x4xf32, #tpu.memory_space<vmem>>, %arg18: memref<1x8x16x4xf32, #tpu.memory_space<vmem>>, %arg19: memref<12x18x8xf32, #tpu.memory_space<vmem>>, %arg20: memref<10x18x4xf32, #tpu.memory_space<vmem>>, %arg21: memref<160x4xf32, #tpu.memory_space<vmem>>, %arg22: memref<128x4xf32, #tpu.memory_space<vmem>>) attributes {dimension_semantics = [#tpu.dimension_semantics<parallel>, #tpu.dimension_semantics<parallel>], iteration_bounds = array<i64: 2, 2>, scalar_prefetch = 0 : i64, scratch_operands = 4 : i64, tpu.core_type = #tpu.core_type<tc>, window_params = [{transform_indices = @transform_0, window_bounds = array<i64: 1, 8, 16, 4>}, {transform_indices = @transform_1, window_bounds = array<i64: 1, 8, 16, 4>}, {transform_indices = @transform_2, window_bounds = array<i64: 1, 8, 16, 4>}, {transform_indices = @transform_3, window_bounds = array<i64: 1, 8, 16, 4>}, {transform_indices = @transform_4, window_bounds = array<i64: 1, 8, 16, 4>}, {transform_indices = @transform_5, window_bounds = array<i64: 1, 8, 16, 4>}, {pipeline_mode = #tpu.pipeline_mode<synchronous>, transform_indices = @transform_6, window_bounds = array<i64: 4, 2>}, {pipeline_mode = #tpu.pipeline_mode<synchronous>, transform_indices = @transform_7, window_bounds = array<i64: 4, 2>}, {pipeline_mode = #tpu.pipeline_mode<synchronous>, transform_indices = @transform_8, window_bounds = array<i64: 1, 2>}, {pipeline_mode = #tpu.pipeline_mode<synchronous>, transform_indices = @transform_9, window_bounds = array<i64: 1, 2>}, {pipeline_mode = #tpu.pipeline_mode<synchronous>, transform_indices = @transform_10, window_bounds = array<i64: 1, 1>}, {pipeline_mode = #tpu.pipeline_mode<synchronous>, transform_indices = @transform_11, window_bounds = array<i64: 9, 8, 4>}, {pipeline_mode = #tpu.pipeline_mode<synchronous>, transform_indices = @transform_12, window_bounds = array<i64: 1, 4>}, {pipeline_mode = #tpu.pipeline_mode<synchronous>, transform_indices = @transform_13, window_bounds = array<i64: 9, 4, 4>}, {pipeline_mode = #tpu.pipeline_mode<synchronous>, transform_indices = @transform_14, window_bounds = array<i64: 8, 4>}, {pipeline_mode = #tpu.pipeline_mode<synchronous>, transform_indices = @transform_15, window_bounds = array<i64: 1, 4>}, {transform_indices = @transform_16, window_bounds = array<i64: 1, 8, 16, 4>}]} {
    %c0_i32 = arith.constant 0 : i32
    %0 = arith.cmpi sgt, %arg1, %c0_i32 : i32
    %c0 = arith.constant 0 : index
    %c6 = arith.constant 6 : index
    %c0_0 = arith.constant 0 : index
    %c0_1 = arith.constant 0 : index
    %1 = vector.load %arg3[%c0, %c6, %c0_0, %c0_1] : memref<1x8x16x4xf32, #tpu.memory_space<vmem>>, vector<1x2x16x4xf32>
    %2 = vector.shape_cast %1 : vector<1x2x16x4xf32> to vector<2x16x4xf32>
    %cst = arith.constant 0.000000e+00 : f32
    %3 = vector.broadcast %cst : f32 to vector<2x16x4xf32>
    %4 = arith.select %0, %2, %3 : vector<2x16x4xf32>
    %c1_i32 = arith.constant 1 : i32
    %5 = arith.cmpi slt, %arg1, %c1_i32 : i32
    %c0_2 = arith.constant 0 : index
    %c0_3 = arith.constant 0 : index
    %c0_4 = arith.constant 0 : index
    %c0_5 = arith.constant 0 : index
    %6 = vector.load %arg4[%c0_2, %c0_3, %c0_4, %c0_5] : memref<1x8x16x4xf32, #tpu.memory_space<vmem>>, vector<1x2x16x4xf32>
    %7 = vector.shape_cast %6 : vector<1x2x16x4xf32> to vector<2x16x4xf32>
    %cst_6 = arith.constant 0.000000e+00 : f32
    %8 = vector.broadcast %cst_6 : f32 to vector<2x16x4xf32>
    %9 = arith.select %5, %7, %8 : vector<2x16x4xf32>
    %c0_7 = arith.constant 0 : index
    %c0_8 = arith.constant 0 : index
    %c0_9 = arith.constant 0 : index
    %c0_10 = arith.constant 0 : index
    %10 = vector.load %arg2[%c0_7, %c0_8, %c0_9, %c0_10] : memref<1x8x16x4xf32, #tpu.memory_space<vmem>>, vector<1x8x16x4xf32>
    %11 = vector.shape_cast %10 : vector<1x8x16x4xf32> to vector<8x16x4xf32>
    %12 = tpu.concatenate %4, %11, %9 in 0 : vector<2x16x4xf32>, vector<8x16x4xf32>, vector<2x16x4xf32> -> vector<12x16x4xf32>
    %c0_i32_11 = arith.constant 0 : i32
    %13 = arith.cmpi sgt, %arg1, %c0_i32_11 : i32
    %c0_12 = arith.constant 0 : index
    %c6_13 = arith.constant 6 : index
    %c0_14 = arith.constant 0 : index
    %c0_15 = arith.constant 0 : index
    %14 = vector.load %arg6[%c0_12, %c6_13, %c0_14, %c0_15] : memref<1x8x16x4xf32, #tpu.memory_space<vmem>>, vector<1x2x16x4xf32>
    %15 = vector.shape_cast %14 : vector<1x2x16x4xf32> to vector<2x16x4xf32>
    %cst_16 = arith.constant 0.000000e+00 : f32
    %16 = vector.broadcast %cst_16 : f32 to vector<2x16x4xf32>
    %17 = arith.select %13, %15, %16 : vector<2x16x4xf32>
    %c1_i32_17 = arith.constant 1 : i32
    %18 = arith.cmpi slt, %arg1, %c1_i32_17 : i32
    %c0_18 = arith.constant 0 : index
    %c0_19 = arith.constant 0 : index
    %c0_20 = arith.constant 0 : index
    %c0_21 = arith.constant 0 : index
    %19 = vector.load %arg7[%c0_18, %c0_19, %c0_20, %c0_21] : memref<1x8x16x4xf32, #tpu.memory_space<vmem>>, vector<1x2x16x4xf32>
    %20 = vector.shape_cast %19 : vector<1x2x16x4xf32> to vector<2x16x4xf32>
    %cst_22 = arith.constant 0.000000e+00 : f32
    %21 = vector.broadcast %cst_22 : f32 to vector<2x16x4xf32>
    %22 = arith.select %18, %20, %21 : vector<2x16x4xf32>
    %c0_23 = arith.constant 0 : index
    %c0_24 = arith.constant 0 : index
    %c0_25 = arith.constant 0 : index
    %c0_26 = arith.constant 0 : index
    %23 = vector.load %arg5[%c0_23, %c0_24, %c0_25, %c0_26] : memref<1x8x16x4xf32, #tpu.memory_space<vmem>>, vector<1x8x16x4xf32>
    %24 = vector.shape_cast %23 : vector<1x8x16x4xf32> to vector<8x16x4xf32>
    %25 = tpu.concatenate %17, %24, %22 in 0 : vector<2x16x4xf32>, vector<8x16x4xf32>, vector<2x16x4xf32> -> vector<12x16x4xf32>
    %26 = vector.shape_cast %12 : vector<12x16x4xf32> to vector<192x4xf32>
    %27 = vector.shape_cast %25 : vector<12x16x4xf32> to vector<192x4xf32>
    %c0_27 = arith.constant 0 : index
    %c0_28 = arith.constant 0 : index
    %28 = vector.load %arg8[%c0_27, %c0_28] : memref<4x2xf32, #tpu.memory_space<vmem>>, vector<4x2xf32>
    %cst_29 = arith.constant dense<0.000000e+00> : vector<192x2xf32>
    %29 = tpu.matmul %26, %28, %cst_29 {dimension_numbers = #tpu.dot_dimension_numbers<[1], [0], [0], [1], [0, 0, 1, 1], [], []>} : vector<192x4xf32>, vector<4x2xf32>, vector<192x2xf32> -> vector<192x2xf32>
    %c0_30 = arith.constant 0 : index
    %c0_31 = arith.constant 0 : index
    %30 = vector.load %arg9[%c0_30, %c0_31] : memref<4x2xf32, #tpu.memory_space<vmem>>, vector<4x2xf32>
    %cst_32 = arith.constant dense<0.000000e+00> : vector<192x2xf32>
    %31 = tpu.matmul %27, %30, %cst_32 {dimension_numbers = #tpu.dot_dimension_numbers<[1], [0], [0], [1], [0, 0, 1, 1], [], []>} : vector<192x4xf32>, vector<4x2xf32>, vector<192x2xf32> -> vector<192x2xf32>
    %32 = arith.addf %29, %31 : vector<192x2xf32>
    %c0_33 = arith.constant 0 : index
    %c0_34 = arith.constant 0 : index
    %33 = vector.load %arg10[%c0_33, %c0_34] : memref<1x2xf32, #tpu.memory_space<vmem>>, vector<1x2xf32>
    %34 = vector.broadcast %33 : vector<1x2xf32> to vector<192x2xf32>
    %35 = arith.addf %32, %34 : vector<192x2xf32>
    %cst_35 = arith.constant 0.000000e+00 : f32
    %36 = vector.broadcast %cst_35 : f32 to vector<192x2xf32>
    %37 = arith.maximumf %35, %36 : vector<192x2xf32>
    %c0_36 = arith.constant 0 : index
    %c0_37 = arith.constant 0 : index
    %38 = vector.load %arg11[%c0_36, %c0_37] : memref<1x2xf32, #tpu.memory_space<vmem>>, vector<1x2xf32>
    %39 = vector.broadcast %38 : vector<1x2xf32> to vector<192x2xf32>
    %40 = arith.mulf %37, %39 : vector<192x2xf32>
    %cst_38 = arith.constant dense<0.000000e+00> : vector<192xf32>
    %41 = vector.multi_reduction <add>, %40, %cst_38 [1] : vector<192x2xf32> to vector<192xf32>
    %42 = vector.shape_cast %41 : vector<192xf32> to vector<192x1xf32>
    %c0_39 = arith.constant 0 : index
    %c0_40 = arith.constant 0 : index
    %43 = vector.load %arg12[%c0_39, %c0_40] : memref<1x1xf32, #tpu.memory_space<vmem>>, vector<1x1xf32>
    %44 = vector.broadcast %43 : vector<1x1xf32> to vector<192x1xf32>
    %45 = arith.addf %42, %44 : vector<192x1xf32>
    %cst_41 = arith.constant 0.000000e+00 : f32
    %46 = vector.broadcast %cst_41 : f32 to vector<192x1xf32>
    %47 = arith.subf %46, %45 : vector<192x1xf32>
    %48 = math.exp %47 : vector<192x1xf32>
    %cst_42 = arith.constant 1.000000e+00 : f32
    %49 = vector.broadcast %cst_42 : f32 to vector<192x1xf32>
    %50 = arith.addf %49, %48 : vector<192x1xf32>
    %cst_43 = arith.constant 1.000000e+00 : f32
    %51 = vector.broadcast %cst_43 : f32 to vector<192x1xf32>
    %52 = arith.divf %51, %50 : vector<192x1xf32>
    %53 = vector.broadcast %52 : vector<192x1xf32> to vector<192x4xf32>
    %54 = arith.mulf %27, %53 : vector<192x4xf32>
    %55 = vector.shape_cast %54 : vector<192x4xf32> to vector<12x16x4xf32>
    %56 = tpu.concatenate %55, %12 in 2 : vector<12x16x4xf32>, vector<12x16x4xf32> -> vector<12x16x8xf32>
    %cst_44 = arith.constant 0.000000e+00 : f32
    %57 = vector.broadcast %cst_44 : f32 to vector<12x1x8xf32>
    %c0_45 = arith.constant 0 : index
    %c0_46 = arith.constant 0 : index
    %c0_47 = arith.constant 0 : index
    %58 = vector.load %arg19[%c0_45, %c0_46, %c0_47] : memref<12x18x8xf32, #tpu.memory_space<vmem>>, vector<12x1x8xf32>
    tpu.vector_store %arg19[%c0_45, %c0_46, %c0_47], %57 {strides = array<i32>} : memref<12x18x8xf32, #tpu.memory_space<vmem>>, vector<12x1x8xf32>,
    %c0_48 = arith.constant 0 : index
    %c17 = arith.constant 17 : index
    %c0_49 = arith.constant 0 : index
    %59 = vector.load %arg19[%c0_48, %c17, %c0_49] : memref<12x18x8xf32, #tpu.memory_space<vmem>>, vector<12x1x8xf32>
    tpu.vector_store %arg19[%c0_48, %c17, %c0_49], %57 {strides = array<i32>} : memref<12x18x8xf32, #tpu.memory_space<vmem>>, vector<12x1x8xf32>,
    %c0_50 = arith.constant 0 : index
    %c1 = arith.constant 1 : index
    %c0_51 = arith.constant 0 : index
    %60 = vector.load %arg19[%c0_50, %c1, %c0_51] : memref<12x18x8xf32, #tpu.memory_space<vmem>>, vector<12x16x8xf32>
    tpu.vector_store %arg19[%c0_50, %c1, %c0_51], %56 {strides = array<i32>} : memref<12x18x8xf32, #tpu.memory_space<vmem>>, vector<12x16x8xf32>,
    %c0_52 = arith.constant 0 : index
    %c0_53 = arith.constant 0 : index
    %c0_54 = arith.constant 0 : index
    %61 = vector.load %arg19[%c0_52, %c0_53, %c0_54] : memref<12x18x8xf32, #tpu.memory_space<vmem>>, vector<10x16x8xf32>
    %62 = vector.shape_cast %61 : vector<10x16x8xf32> to vector<160x8xf32>
    %c0_55 = arith.constant 0 : index
    %c0_56 = arith.constant 0 : index
    %c0_57 = arith.constant 0 : index
    %63 = vector.load %arg13[%c0_55, %c0_56, %c0_57] : memref<9x8x4xf32, #tpu.memory_space<vmem>>, vector<1x8x4xf32>
    %64 = vector.shape_cast %63 : vector<1x8x4xf32> to vector<8x4xf32>
    %cst_58 = arith.constant dense<0.000000e+00> : vector<160x4xf32>
    %65 = tpu.matmul %62, %64, %cst_58 {dimension_numbers = #tpu.dot_dimension_numbers<[1], [0], [0], [1], [0, 0, 1, 1], [], []>} : vector<160x8xf32>, vector<8x4xf32>, vector<160x4xf32> -> vector<160x4xf32>
    %c0_59 = arith.constant 0 : index
    %c0_60 = arith.constant 0 : index
    %66 = vector.load %arg21[%c0_59, %c0_60] : memref<160x4xf32, #tpu.memory_space<vmem>>, vector<160x4xf32>
    tpu.vector_store %arg21[%c0_59, %c0_60], %65 {strides = array<i32>} : memref<160x4xf32, #tpu.memory_space<vmem>>, vector<160x4xf32>,
    %c0_61 = arith.constant 0 : index
    %c1_62 = arith.constant 1 : index
    %c0_63 = arith.constant 0 : index
    %67 = vector.load %arg19[%c0_61, %c1_62, %c0_63] : memref<12x18x8xf32, #tpu.memory_space<vmem>>, vector<10x16x8xf32>
    %68 = vector.shape_cast %67 : vector<10x16x8xf32> to vector<160x8xf32>
    %c1_64 = arith.constant 1 : index
    %c0_65 = arith.constant 0 : index
    %c0_66 = arith.constant 0 : index
    %69 = vector.load %arg13[%c1_64, %c0_65, %c0_66] : memref<9x8x4xf32, #tpu.memory_space<vmem>>, vector<1x8x4xf32>
    %70 = vector.shape_cast %69 : vector<1x8x4xf32> to vector<8x4xf32>
    %cst_67 = arith.constant dense<0.000000e+00> : vector<160x4xf32>
    %71 = tpu.matmul %68, %70, %cst_67 {dimension_numbers = #tpu.dot_dimension_numbers<[1], [0], [0], [1], [0, 0, 1, 1], [], []>} : vector<160x8xf32>, vector<8x4xf32>, vector<160x4xf32> -> vector<160x4xf32>
    %c0_68 = arith.constant 0 : index
    %c0_69 = arith.constant 0 : index
    %72 = vector.load %arg21[%c0_68, %c0_69] : memref<160x4xf32, #tpu.memory_space<vmem>>, vector<160x4xf32>
    %73 = arith.addf %72, %71 : vector<160x4xf32>
    %c0_70 = arith.constant 0 : index
    %c0_71 = arith.constant 0 : index
    %74 = vector.load %arg21[%c0_70, %c0_71] : memref<160x4xf32, #tpu.memory_space<vmem>>, vector<160x4xf32>
    tpu.vector_store %arg21[%c0_70, %c0_71], %73 {strides = array<i32>} : memref<160x4xf32, #tpu.memory_space<vmem>>, vector<160x4xf32>,
    %c0_72 = arith.constant 0 : index
    %c2 = arith.constant 2 : index
    %c0_73 = arith.constant 0 : index
    %75 = vector.load %arg19[%c0_72, %c2, %c0_73] : memref<12x18x8xf32, #tpu.memory_space<vmem>>, vector<10x16x8xf32>
    %76 = vector.shape_cast %75 : vector<10x16x8xf32> to vector<160x8xf32>
    %c2_74 = arith.constant 2 : index
    %c0_75 = arith.constant 0 : index
    %c0_76 = arith.constant 0 : index
    %77 = vector.load %arg13[%c2_74, %c0_75, %c0_76] : memref<9x8x4xf32, #tpu.memory_space<vmem>>, vector<1x8x4xf32>
    %78 = vector.shape_cast %77 : vector<1x8x4xf32> to vector<8x4xf32>
    %cst_77 = arith.constant dense<0.000000e+00> : vector<160x4xf32>
    %79 = tpu.matmul %76, %78, %cst_77 {dimension_numbers = #tpu.dot_dimension_numbers<[1], [0], [0], [1], [0, 0, 1, 1], [], []>} : vector<160x8xf32>, vector<8x4xf32>, vector<160x4xf32> -> vector<160x4xf32>
    %c0_78 = arith.constant 0 : index
    %c0_79 = arith.constant 0 : index
    %80 = vector.load %arg21[%c0_78, %c0_79] : memref<160x4xf32, #tpu.memory_space<vmem>>, vector<160x4xf32>
    %81 = arith.addf %80, %79 : vector<160x4xf32>
    %c0_80 = arith.constant 0 : index
    %c0_81 = arith.constant 0 : index
    %82 = vector.load %arg21[%c0_80, %c0_81] : memref<160x4xf32, #tpu.memory_space<vmem>>, vector<160x4xf32>
    tpu.vector_store %arg21[%c0_80, %c0_81], %81 {strides = array<i32>} : memref<160x4xf32, #tpu.memory_space<vmem>>, vector<160x4xf32>,
    %c1_82 = arith.constant 1 : index
    %c0_83 = arith.constant 0 : index
    %c0_84 = arith.constant 0 : index
    %83 = vector.load %arg19[%c1_82, %c0_83, %c0_84] : memref<12x18x8xf32, #tpu.memory_space<vmem>>, vector<10x16x8xf32>
    %84 = vector.shape_cast %83 : vector<10x16x8xf32> to vector<160x8xf32>
    %c3 = arith.constant 3 : index
    %c0_85 = arith.constant 0 : index
    %c0_86 = arith.constant 0 : index
    %85 = vector.load %arg13[%c3, %c0_85, %c0_86] : memref<9x8x4xf32, #tpu.memory_space<vmem>>, vector<1x8x4xf32>
    %86 = vector.shape_cast %85 : vector<1x8x4xf32> to vector<8x4xf32>
    %cst_87 = arith.constant dense<0.000000e+00> : vector<160x4xf32>
    %87 = tpu.matmul %84, %86, %cst_87 {dimension_numbers = #tpu.dot_dimension_numbers<[1], [0], [0], [1], [0, 0, 1, 1], [], []>} : vector<160x8xf32>, vector<8x4xf32>, vector<160x4xf32> -> vector<160x4xf32>
    %c0_88 = arith.constant 0 : index
    %c0_89 = arith.constant 0 : index
    %88 = vector.load %arg21[%c0_88, %c0_89] : memref<160x4xf32, #tpu.memory_space<vmem>>, vector<160x4xf32>
    %89 = arith.addf %88, %87 : vector<160x4xf32>
    %c0_90 = arith.constant 0 : index
    %c0_91 = arith.constant 0 : index
    %90 = vector.load %arg21[%c0_90, %c0_91] : memref<160x4xf32, #tpu.memory_space<vmem>>, vector<160x4xf32>
    tpu.vector_store %arg21[%c0_90, %c0_91], %89 {strides = array<i32>} : memref<160x4xf32, #tpu.memory_space<vmem>>, vector<160x4xf32>,
    %c1_92 = arith.constant 1 : index
    %c1_93 = arith.constant 1 : index
    %c0_94 = arith.constant 0 : index
    %91 = vector.load %arg19[%c1_92, %c1_93, %c0_94] : memref<12x18x8xf32, #tpu.memory_space<vmem>>, vector<10x16x8xf32>
    %92 = vector.shape_cast %91 : vector<10x16x8xf32> to vector<160x8xf32>
    %c4 = arith.constant 4 : index
    %c0_95 = arith.constant 0 : index
    %c0_96 = arith.constant 0 : index
    %93 = vector.load %arg13[%c4, %c0_95, %c0_96] : memref<9x8x4xf32, #tpu.memory_space<vmem>>, vector<1x8x4xf32>
    %94 = vector.shape_cast %93 : vector<1x8x4xf32> to vector<8x4xf32>
    %cst_97 = arith.constant dense<0.000000e+00> : vector<160x4xf32>
    %95 = tpu.matmul %92, %94, %cst_97 {dimension_numbers = #tpu.dot_dimension_numbers<[1], [0], [0], [1], [0, 0, 1, 1], [], []>} : vector<160x8xf32>, vector<8x4xf32>, vector<160x4xf32> -> vector<160x4xf32>
    %c0_98 = arith.constant 0 : index
    %c0_99 = arith.constant 0 : index
    %96 = vector.load %arg21[%c0_98, %c0_99] : memref<160x4xf32, #tpu.memory_space<vmem>>, vector<160x4xf32>
    %97 = arith.addf %96, %95 : vector<160x4xf32>
    %c0_100 = arith.constant 0 : index
    %c0_101 = arith.constant 0 : index
    %98 = vector.load %arg21[%c0_100, %c0_101] : memref<160x4xf32, #tpu.memory_space<vmem>>, vector<160x4xf32>
    tpu.vector_store %arg21[%c0_100, %c0_101], %97 {strides = array<i32>} : memref<160x4xf32, #tpu.memory_space<vmem>>, vector<160x4xf32>,
    %c1_102 = arith.constant 1 : index
    %c2_103 = arith.constant 2 : index
    %c0_104 = arith.constant 0 : index
    %99 = vector.load %arg19[%c1_102, %c2_103, %c0_104] : memref<12x18x8xf32, #tpu.memory_space<vmem>>, vector<10x16x8xf32>
    %100 = vector.shape_cast %99 : vector<10x16x8xf32> to vector<160x8xf32>
    %c5 = arith.constant 5 : index
    %c0_105 = arith.constant 0 : index
    %c0_106 = arith.constant 0 : index
    %101 = vector.load %arg13[%c5, %c0_105, %c0_106] : memref<9x8x4xf32, #tpu.memory_space<vmem>>, vector<1x8x4xf32>
    %102 = vector.shape_cast %101 : vector<1x8x4xf32> to vector<8x4xf32>
    %cst_107 = arith.constant dense<0.000000e+00> : vector<160x4xf32>
    %103 = tpu.matmul %100, %102, %cst_107 {dimension_numbers = #tpu.dot_dimension_numbers<[1], [0], [0], [1], [0, 0, 1, 1], [], []>} : vector<160x8xf32>, vector<8x4xf32>, vector<160x4xf32> -> vector<160x4xf32>
    %c0_108 = arith.constant 0 : index
    %c0_109 = arith.constant 0 : index
    %104 = vector.load %arg21[%c0_108, %c0_109] : memref<160x4xf32, #tpu.memory_space<vmem>>, vector<160x4xf32>
    %105 = arith.addf %104, %103 : vector<160x4xf32>
    %c0_110 = arith.constant 0 : index
    %c0_111 = arith.constant 0 : index
    %106 = vector.load %arg21[%c0_110, %c0_111] : memref<160x4xf32, #tpu.memory_space<vmem>>, vector<160x4xf32>
    tpu.vector_store %arg21[%c0_110, %c0_111], %105 {strides = array<i32>} : memref<160x4xf32, #tpu.memory_space<vmem>>, vector<160x4xf32>,
    %c2_112 = arith.constant 2 : index
    %c0_113 = arith.constant 0 : index
    %c0_114 = arith.constant 0 : index
    %107 = vector.load %arg19[%c2_112, %c0_113, %c0_114] : memref<12x18x8xf32, #tpu.memory_space<vmem>>, vector<10x16x8xf32>
    %108 = vector.shape_cast %107 : vector<10x16x8xf32> to vector<160x8xf32>
    %c6_115 = arith.constant 6 : index
    %c0_116 = arith.constant 0 : index
    %c0_117 = arith.constant 0 : index
    %109 = vector.load %arg13[%c6_115, %c0_116, %c0_117] : memref<9x8x4xf32, #tpu.memory_space<vmem>>, vector<1x8x4xf32>
    %110 = vector.shape_cast %109 : vector<1x8x4xf32> to vector<8x4xf32>
    %cst_118 = arith.constant dense<0.000000e+00> : vector<160x4xf32>
    %111 = tpu.matmul %108, %110, %cst_118 {dimension_numbers = #tpu.dot_dimension_numbers<[1], [0], [0], [1], [0, 0, 1, 1], [], []>} : vector<160x8xf32>, vector<8x4xf32>, vector<160x4xf32> -> vector<160x4xf32>
    %c0_119 = arith.constant 0 : index
    %c0_120 = arith.constant 0 : index
    %112 = vector.load %arg21[%c0_119, %c0_120] : memref<160x4xf32, #tpu.memory_space<vmem>>, vector<160x4xf32>
    %113 = arith.addf %112, %111 : vector<160x4xf32>
    %c0_121 = arith.constant 0 : index
    %c0_122 = arith.constant 0 : index
    %114 = vector.load %arg21[%c0_121, %c0_122] : memref<160x4xf32, #tpu.memory_space<vmem>>, vector<160x4xf32>
    tpu.vector_store %arg21[%c0_121, %c0_122], %113 {strides = array<i32>} : memref<160x4xf32, #tpu.memory_space<vmem>>, vector<160x4xf32>,
    %c2_123 = arith.constant 2 : index
    %c1_124 = arith.constant 1 : index
    %c0_125 = arith.constant 0 : index
    %115 = vector.load %arg19[%c2_123, %c1_124, %c0_125] : memref<12x18x8xf32, #tpu.memory_space<vmem>>, vector<10x16x8xf32>
    %116 = vector.shape_cast %115 : vector<10x16x8xf32> to vector<160x8xf32>
    %c7 = arith.constant 7 : index
    %c0_126 = arith.constant 0 : index
    %c0_127 = arith.constant 0 : index
    %117 = vector.load %arg13[%c7, %c0_126, %c0_127] : memref<9x8x4xf32, #tpu.memory_space<vmem>>, vector<1x8x4xf32>
    %118 = vector.shape_cast %117 : vector<1x8x4xf32> to vector<8x4xf32>
    %cst_128 = arith.constant dense<0.000000e+00> : vector<160x4xf32>
    %119 = tpu.matmul %116, %118, %cst_128 {dimension_numbers = #tpu.dot_dimension_numbers<[1], [0], [0], [1], [0, 0, 1, 1], [], []>} : vector<160x8xf32>, vector<8x4xf32>, vector<160x4xf32> -> vector<160x4xf32>
    %c0_129 = arith.constant 0 : index
    %c0_130 = arith.constant 0 : index
    %120 = vector.load %arg21[%c0_129, %c0_130] : memref<160x4xf32, #tpu.memory_space<vmem>>, vector<160x4xf32>
    %121 = arith.addf %120, %119 : vector<160x4xf32>
    %c0_131 = arith.constant 0 : index
    %c0_132 = arith.constant 0 : index
    %122 = vector.load %arg21[%c0_131, %c0_132] : memref<160x4xf32, #tpu.memory_space<vmem>>, vector<160x4xf32>
    tpu.vector_store %arg21[%c0_131, %c0_132], %121 {strides = array<i32>} : memref<160x4xf32, #tpu.memory_space<vmem>>, vector<160x4xf32>,
    %c2_133 = arith.constant 2 : index
    %c2_134 = arith.constant 2 : index
    %c0_135 = arith.constant 0 : index
    %123 = vector.load %arg19[%c2_133, %c2_134, %c0_135] : memref<12x18x8xf32, #tpu.memory_space<vmem>>, vector<10x16x8xf32>
    %124 = vector.shape_cast %123 : vector<10x16x8xf32> to vector<160x8xf32>
    %c8 = arith.constant 8 : index
    %c0_136 = arith.constant 0 : index
    %c0_137 = arith.constant 0 : index
    %125 = vector.load %arg13[%c8, %c0_136, %c0_137] : memref<9x8x4xf32, #tpu.memory_space<vmem>>, vector<1x8x4xf32>
    %126 = vector.shape_cast %125 : vector<1x8x4xf32> to vector<8x4xf32>
    %cst_138 = arith.constant dense<0.000000e+00> : vector<160x4xf32>
    %127 = tpu.matmul %124, %126, %cst_138 {dimension_numbers = #tpu.dot_dimension_numbers<[1], [0], [0], [1], [0, 0, 1, 1], [], []>} : vector<160x8xf32>, vector<8x4xf32>, vector<160x4xf32> -> vector<160x4xf32>
    %c0_139 = arith.constant 0 : index
    %c0_140 = arith.constant 0 : index
    %128 = vector.load %arg21[%c0_139, %c0_140] : memref<160x4xf32, #tpu.memory_space<vmem>>, vector<160x4xf32>
    %129 = arith.addf %128, %127 : vector<160x4xf32>
    %c0_141 = arith.constant 0 : index
    %c0_142 = arith.constant 0 : index
    %130 = vector.load %arg21[%c0_141, %c0_142] : memref<160x4xf32, #tpu.memory_space<vmem>>, vector<160x4xf32>
    tpu.vector_store %arg21[%c0_141, %c0_142], %129 {strides = array<i32>} : memref<160x4xf32, #tpu.memory_space<vmem>>, vector<160x4xf32>,
    %c0_143 = arith.constant 0 : index
    %c0_144 = arith.constant 0 : index
    %131 = vector.load %arg21[%c0_143, %c0_144] : memref<160x4xf32, #tpu.memory_space<vmem>>, vector<160x4xf32>
    %c0_145 = arith.constant 0 : index
    %c0_146 = arith.constant 0 : index
    %132 = vector.load %arg14[%c0_145, %c0_146] : memref<1x4xf32, #tpu.memory_space<vmem>>, vector<1x4xf32>
    %133 = vector.broadcast %132 : vector<1x4xf32> to vector<160x4xf32>
    %134 = arith.addf %131, %133 : vector<160x4xf32>
    %cst_147 = arith.constant 0.000000e+00 : f32
    %135 = vector.broadcast %cst_147 : f32 to vector<160x4xf32>
    %136 = arith.maximumf %134, %135 : vector<160x4xf32>
    %137 = vector.shape_cast %136 : vector<160x4xf32> to vector<10x16x4xf32>
    %cst_148 = arith.constant 0.000000e+00 : f32
    %138 = vector.broadcast %cst_148 : f32 to vector<10x1x4xf32>
    %c0_149 = arith.constant 0 : index
    %c0_150 = arith.constant 0 : index
    %c0_151 = arith.constant 0 : index
    %139 = vector.load %arg20[%c0_149, %c0_150, %c0_151] : memref<10x18x4xf32, #tpu.memory_space<vmem>>, vector<10x1x4xf32>
    tpu.vector_store %arg20[%c0_149, %c0_150, %c0_151], %138 {strides = array<i32>} : memref<10x18x4xf32, #tpu.memory_space<vmem>>, vector<10x1x4xf32>,
    %c0_152 = arith.constant 0 : index
    %c17_153 = arith.constant 17 : index
    %c0_154 = arith.constant 0 : index
    %140 = vector.load %arg20[%c0_152, %c17_153, %c0_154] : memref<10x18x4xf32, #tpu.memory_space<vmem>>, vector<10x1x4xf32>
    tpu.vector_store %arg20[%c0_152, %c17_153, %c0_154], %138 {strides = array<i32>} : memref<10x18x4xf32, #tpu.memory_space<vmem>>, vector<10x1x4xf32>,
    %c0_155 = arith.constant 0 : index
    %c1_156 = arith.constant 1 : index
    %c0_157 = arith.constant 0 : index
    %141 = vector.load %arg20[%c0_155, %c1_156, %c0_157] : memref<10x18x4xf32, #tpu.memory_space<vmem>>, vector<10x16x4xf32>
    tpu.vector_store %arg20[%c0_155, %c1_156, %c0_157], %137 {strides = array<i32>} : memref<10x18x4xf32, #tpu.memory_space<vmem>>, vector<10x16x4xf32>,
    %c0_i32_158 = arith.constant 0 : i32
    %142 = arith.cmpi eq, %arg1, %c0_i32_158 : i32
    %143 = arith.extui %142 : i1 to i32
    %c0_i32_159 = arith.constant 0 : i32
    %144 = arith.cmpi ne, %143, %c0_i32_159 : i32
    scf.if %144 {
      %cst_278 = arith.constant 0.000000e+00 : f32
      %235 = vector.broadcast %cst_278 : f32 to vector<1x18x4xf32>
      %c0_279 = arith.constant 0 : index
      %c0_280 = arith.constant 0 : index
      %c0_281 = arith.constant 0 : index
      %236 = vector.load %arg20[%c0_279, %c0_280, %c0_281] : memref<10x18x4xf32, #tpu.memory_space<vmem>>, vector<1x18x4xf32>
      tpu.vector_store %arg20[%c0_279, %c0_280, %c0_281], %235 {strides = array<i32>} : memref<10x18x4xf32, #tpu.memory_space<vmem>>, vector<1x18x4xf32>,
    } else {
    }
    %c1_i32_160 = arith.constant 1 : i32
    %145 = arith.cmpi eq, %arg1, %c1_i32_160 : i32
    %146 = arith.extui %145 : i1 to i32
    %c0_i32_161 = arith.constant 0 : i32
    %147 = arith.cmpi ne, %146, %c0_i32_161 : i32
    scf.if %147 {
      %cst_278 = arith.constant 0.000000e+00 : f32
      %235 = vector.broadcast %cst_278 : f32 to vector<1x18x4xf32>
      %c9 = arith.constant 9 : index
      %c0_279 = arith.constant 0 : index
      %c0_280 = arith.constant 0 : index
      %236 = vector.load %arg20[%c9, %c0_279, %c0_280] : memref<10x18x4xf32, #tpu.memory_space<vmem>>, vector<1x18x4xf32>
      tpu.vector_store %arg20[%c9, %c0_279, %c0_280], %235 {strides = array<i32>} : memref<10x18x4xf32, #tpu.memory_space<vmem>>, vector<1x18x4xf32>,
    } else {
    }
    %c2_162 = arith.constant 2 : index
    %c1_163 = arith.constant 1 : index
    %c0_164 = arith.constant 0 : index
    %148 = vector.load %arg19[%c2_162, %c1_163, %c0_164] : memref<12x18x8xf32, #tpu.memory_space<vmem>>, vector<8x16x8xf32>
    %149 = vector.shape_cast %148 : vector<8x16x8xf32> to vector<128x8xf32>
    %c0_165 = arith.constant 0 : index
    %c0_166 = arith.constant 0 : index
    %150 = vector.load %arg16[%c0_165, %c0_166] : memref<8x4xf32, #tpu.memory_space<vmem>>, vector<8x4xf32>
    %cst_167 = arith.constant dense<0.000000e+00> : vector<128x4xf32>
    %151 = tpu.matmul %149, %150, %cst_167 {dimension_numbers = #tpu.dot_dimension_numbers<[1], [0], [0], [1], [0, 0, 1, 1], [], []>} : vector<128x8xf32>, vector<8x4xf32>, vector<128x4xf32> -> vector<128x4xf32>
    %c0_168 = arith.constant 0 : index
    %c0_169 = arith.constant 0 : index
    %152 = vector.load %arg17[%c0_168, %c0_169] : memref<1x4xf32, #tpu.memory_space<vmem>>, vector<1x4xf32>
    %153 = vector.broadcast %152 : vector<1x4xf32> to vector<128x4xf32>
    %154 = arith.addf %151, %153 : vector<128x4xf32>
    %c0_170 = arith.constant 0 : index
    %c0_171 = arith.constant 0 : index
    %155 = vector.load %arg22[%c0_170, %c0_171] : memref<128x4xf32, #tpu.memory_space<vmem>>, vector<128x4xf32>
    tpu.vector_store %arg22[%c0_170, %c0_171], %154 {strides = array<i32>} : memref<128x4xf32, #tpu.memory_space<vmem>>, vector<128x4xf32>,
    %c0_172 = arith.constant 0 : index
    %c0_173 = arith.constant 0 : index
    %c0_174 = arith.constant 0 : index
    %156 = vector.load %arg20[%c0_172, %c0_173, %c0_174] : memref<10x18x4xf32, #tpu.memory_space<vmem>>, vector<8x16x4xf32>
    %157 = vector.shape_cast %156 : vector<8x16x4xf32> to vector<128x4xf32>
    %c0_175 = arith.constant 0 : index
    %c0_176 = arith.constant 0 : index
    %158 = vector.load %arg22[%c0_175, %c0_176] : memref<128x4xf32, #tpu.memory_space<vmem>>, vector<128x4xf32>
    %c0_177 = arith.constant 0 : index
    %c0_178 = arith.constant 0 : index
    %c0_179 = arith.constant 0 : index
    %159 = vector.load %arg15[%c0_177, %c0_178, %c0_179] : memref<9x4x4xf32, #tpu.memory_space<vmem>>, vector<1x4x4xf32>
    %160 = vector.shape_cast %159 : vector<1x4x4xf32> to vector<4x4xf32>
    %cst_180 = arith.constant dense<0.000000e+00> : vector<128x4xf32>
    %161 = tpu.matmul %157, %160, %cst_180 {dimension_numbers = #tpu.dot_dimension_numbers<[1], [0], [0], [1], [0, 0, 1, 1], [], []>} : vector<128x4xf32>, vector<4x4xf32>, vector<128x4xf32> -> vector<128x4xf32>
    %162 = arith.addf %158, %161 : vector<128x4xf32>
    %c0_181 = arith.constant 0 : index
    %c0_182 = arith.constant 0 : index
    %163 = vector.load %arg22[%c0_181, %c0_182] : memref<128x4xf32, #tpu.memory_space<vmem>>, vector<128x4xf32>
    tpu.vector_store %arg22[%c0_181, %c0_182], %162 {strides = array<i32>} : memref<128x4xf32, #tpu.memory_space<vmem>>, vector<128x4xf32>,
    %c0_183 = arith.constant 0 : index
    %c1_184 = arith.constant 1 : index
    %c0_185 = arith.constant 0 : index
    %164 = vector.load %arg20[%c0_183, %c1_184, %c0_185] : memref<10x18x4xf32, #tpu.memory_space<vmem>>, vector<8x16x4xf32>
    %165 = vector.shape_cast %164 : vector<8x16x4xf32> to vector<128x4xf32>
    %c0_186 = arith.constant 0 : index
    %c0_187 = arith.constant 0 : index
    %166 = vector.load %arg22[%c0_186, %c0_187] : memref<128x4xf32, #tpu.memory_space<vmem>>, vector<128x4xf32>
    %c1_188 = arith.constant 1 : index
    %c0_189 = arith.constant 0 : index
    %c0_190 = arith.constant 0 : index
    %167 = vector.load %arg15[%c1_188, %c0_189, %c0_190] : memref<9x4x4xf32, #tpu.memory_space<vmem>>, vector<1x4x4xf32>
    %168 = vector.shape_cast %167 : vector<1x4x4xf32> to vector<4x4xf32>
    %cst_191 = arith.constant dense<0.000000e+00> : vector<128x4xf32>
    %169 = tpu.matmul %165, %168, %cst_191 {dimension_numbers = #tpu.dot_dimension_numbers<[1], [0], [0], [1], [0, 0, 1, 1], [], []>} : vector<128x4xf32>, vector<4x4xf32>, vector<128x4xf32> -> vector<128x4xf32>
    %170 = arith.addf %166, %169 : vector<128x4xf32>
    %c0_192 = arith.constant 0 : index
    %c0_193 = arith.constant 0 : index
    %171 = vector.load %arg22[%c0_192, %c0_193] : memref<128x4xf32, #tpu.memory_space<vmem>>, vector<128x4xf32>
    tpu.vector_store %arg22[%c0_192, %c0_193], %170 {strides = array<i32>} : memref<128x4xf32, #tpu.memory_space<vmem>>, vector<128x4xf32>,
    %c0_194 = arith.constant 0 : index
    %c2_195 = arith.constant 2 : index
    %c0_196 = arith.constant 0 : index
    %172 = vector.load %arg20[%c0_194, %c2_195, %c0_196] : memref<10x18x4xf32, #tpu.memory_space<vmem>>, vector<8x16x4xf32>
    %173 = vector.shape_cast %172 : vector<8x16x4xf32> to vector<128x4xf32>
    %c0_197 = arith.constant 0 : index
    %c0_198 = arith.constant 0 : index
    %174 = vector.load %arg22[%c0_197, %c0_198] : memref<128x4xf32, #tpu.memory_space<vmem>>, vector<128x4xf32>
    %c2_199 = arith.constant 2 : index
    %c0_200 = arith.constant 0 : index
    %c0_201 = arith.constant 0 : index
    %175 = vector.load %arg15[%c2_199, %c0_200, %c0_201] : memref<9x4x4xf32, #tpu.memory_space<vmem>>, vector<1x4x4xf32>
    %176 = vector.shape_cast %175 : vector<1x4x4xf32> to vector<4x4xf32>
    %cst_202 = arith.constant dense<0.000000e+00> : vector<128x4xf32>
    %177 = tpu.matmul %173, %176, %cst_202 {dimension_numbers = #tpu.dot_dimension_numbers<[1], [0], [0], [1], [0, 0, 1, 1], [], []>} : vector<128x4xf32>, vector<4x4xf32>, vector<128x4xf32> -> vector<128x4xf32>
    %178 = arith.addf %174, %177 : vector<128x4xf32>
    %c0_203 = arith.constant 0 : index
    %c0_204 = arith.constant 0 : index
    %179 = vector.load %arg22[%c0_203, %c0_204] : memref<128x4xf32, #tpu.memory_space<vmem>>, vector<128x4xf32>
    tpu.vector_store %arg22[%c0_203, %c0_204], %178 {strides = array<i32>} : memref<128x4xf32, #tpu.memory_space<vmem>>, vector<128x4xf32>,
    %c1_205 = arith.constant 1 : index
    %c0_206 = arith.constant 0 : index
    %c0_207 = arith.constant 0 : index
    %180 = vector.load %arg20[%c1_205, %c0_206, %c0_207] : memref<10x18x4xf32, #tpu.memory_space<vmem>>, vector<8x16x4xf32>
    %181 = vector.shape_cast %180 : vector<8x16x4xf32> to vector<128x4xf32>
    %c0_208 = arith.constant 0 : index
    %c0_209 = arith.constant 0 : index
    %182 = vector.load %arg22[%c0_208, %c0_209] : memref<128x4xf32, #tpu.memory_space<vmem>>, vector<128x4xf32>
    %c3_210 = arith.constant 3 : index
    %c0_211 = arith.constant 0 : index
    %c0_212 = arith.constant 0 : index
    %183 = vector.load %arg15[%c3_210, %c0_211, %c0_212] : memref<9x4x4xf32, #tpu.memory_space<vmem>>, vector<1x4x4xf32>
    %184 = vector.shape_cast %183 : vector<1x4x4xf32> to vector<4x4xf32>
    %cst_213 = arith.constant dense<0.000000e+00> : vector<128x4xf32>
    %185 = tpu.matmul %181, %184, %cst_213 {dimension_numbers = #tpu.dot_dimension_numbers<[1], [0], [0], [1], [0, 0, 1, 1], [], []>} : vector<128x4xf32>, vector<4x4xf32>, vector<128x4xf32> -> vector<128x4xf32>
    %186 = arith.addf %182, %185 : vector<128x4xf32>
    %c0_214 = arith.constant 0 : index
    %c0_215 = arith.constant 0 : index
    %187 = vector.load %arg22[%c0_214, %c0_215] : memref<128x4xf32, #tpu.memory_space<vmem>>, vector<128x4xf32>
    tpu.vector_store %arg22[%c0_214, %c0_215], %186 {strides = array<i32>} : memref<128x4xf32, #tpu.memory_space<vmem>>, vector<128x4xf32>,
    %c1_216 = arith.constant 1 : index
    %c1_217 = arith.constant 1 : index
    %c0_218 = arith.constant 0 : index
    %188 = vector.load %arg20[%c1_216, %c1_217, %c0_218] : memref<10x18x4xf32, #tpu.memory_space<vmem>>, vector<8x16x4xf32>
    %189 = vector.shape_cast %188 : vector<8x16x4xf32> to vector<128x4xf32>
    %c0_219 = arith.constant 0 : index
    %c0_220 = arith.constant 0 : index
    %190 = vector.load %arg22[%c0_219, %c0_220] : memref<128x4xf32, #tpu.memory_space<vmem>>, vector<128x4xf32>
    %c4_221 = arith.constant 4 : index
    %c0_222 = arith.constant 0 : index
    %c0_223 = arith.constant 0 : index
    %191 = vector.load %arg15[%c4_221, %c0_222, %c0_223] : memref<9x4x4xf32, #tpu.memory_space<vmem>>, vector<1x4x4xf32>
    %192 = vector.shape_cast %191 : vector<1x4x4xf32> to vector<4x4xf32>
    %cst_224 = arith.constant dense<0.000000e+00> : vector<128x4xf32>
    %193 = tpu.matmul %189, %192, %cst_224 {dimension_numbers = #tpu.dot_dimension_numbers<[1], [0], [0], [1], [0, 0, 1, 1], [], []>} : vector<128x4xf32>, vector<4x4xf32>, vector<128x4xf32> -> vector<128x4xf32>
    %194 = arith.addf %190, %193 : vector<128x4xf32>
    %c0_225 = arith.constant 0 : index
    %c0_226 = arith.constant 0 : index
    %195 = vector.load %arg22[%c0_225, %c0_226] : memref<128x4xf32, #tpu.memory_space<vmem>>, vector<128x4xf32>
    tpu.vector_store %arg22[%c0_225, %c0_226], %194 {strides = array<i32>} : memref<128x4xf32, #tpu.memory_space<vmem>>, vector<128x4xf32>,
    %c1_227 = arith.constant 1 : index
    %c2_228 = arith.constant 2 : index
    %c0_229 = arith.constant 0 : index
    %196 = vector.load %arg20[%c1_227, %c2_228, %c0_229] : memref<10x18x4xf32, #tpu.memory_space<vmem>>, vector<8x16x4xf32>
    %197 = vector.shape_cast %196 : vector<8x16x4xf32> to vector<128x4xf32>
    %c0_230 = arith.constant 0 : index
    %c0_231 = arith.constant 0 : index
    %198 = vector.load %arg22[%c0_230, %c0_231] : memref<128x4xf32, #tpu.memory_space<vmem>>, vector<128x4xf32>
    %c5_232 = arith.constant 5 : index
    %c0_233 = arith.constant 0 : index
    %c0_234 = arith.constant 0 : index
    %199 = vector.load %arg15[%c5_232, %c0_233, %c0_234] : memref<9x4x4xf32, #tpu.memory_space<vmem>>, vector<1x4x4xf32>
    %200 = vector.shape_cast %199 : vector<1x4x4xf32> to vector<4x4xf32>
    %cst_235 = arith.constant dense<0.000000e+00> : vector<128x4xf32>
    %201 = tpu.matmul %197, %200, %cst_235 {dimension_numbers = #tpu.dot_dimension_numbers<[1], [0], [0], [1], [0, 0, 1, 1], [], []>} : vector<128x4xf32>, vector<4x4xf32>, vector<128x4xf32> -> vector<128x4xf32>
    %202 = arith.addf %198, %201 : vector<128x4xf32>
    %c0_236 = arith.constant 0 : index
    %c0_237 = arith.constant 0 : index
    %203 = vector.load %arg22[%c0_236, %c0_237] : memref<128x4xf32, #tpu.memory_space<vmem>>, vector<128x4xf32>
    tpu.vector_store %arg22[%c0_236, %c0_237], %202 {strides = array<i32>} : memref<128x4xf32, #tpu.memory_space<vmem>>, vector<128x4xf32>,
    %c2_238 = arith.constant 2 : index
    %c0_239 = arith.constant 0 : index
    %c0_240 = arith.constant 0 : index
    %204 = vector.load %arg20[%c2_238, %c0_239, %c0_240] : memref<10x18x4xf32, #tpu.memory_space<vmem>>, vector<8x16x4xf32>
    %205 = vector.shape_cast %204 : vector<8x16x4xf32> to vector<128x4xf32>
    %c0_241 = arith.constant 0 : index
    %c0_242 = arith.constant 0 : index
    %206 = vector.load %arg22[%c0_241, %c0_242] : memref<128x4xf32, #tpu.memory_space<vmem>>, vector<128x4xf32>
    %c6_243 = arith.constant 6 : index
    %c0_244 = arith.constant 0 : index
    %c0_245 = arith.constant 0 : index
    %207 = vector.load %arg15[%c6_243, %c0_244, %c0_245] : memref<9x4x4xf32, #tpu.memory_space<vmem>>, vector<1x4x4xf32>
    %208 = vector.shape_cast %207 : vector<1x4x4xf32> to vector<4x4xf32>
    %cst_246 = arith.constant dense<0.000000e+00> : vector<128x4xf32>
    %209 = tpu.matmul %205, %208, %cst_246 {dimension_numbers = #tpu.dot_dimension_numbers<[1], [0], [0], [1], [0, 0, 1, 1], [], []>} : vector<128x4xf32>, vector<4x4xf32>, vector<128x4xf32> -> vector<128x4xf32>
    %210 = arith.addf %206, %209 : vector<128x4xf32>
    %c0_247 = arith.constant 0 : index
    %c0_248 = arith.constant 0 : index
    %211 = vector.load %arg22[%c0_247, %c0_248] : memref<128x4xf32, #tpu.memory_space<vmem>>, vector<128x4xf32>
    tpu.vector_store %arg22[%c0_247, %c0_248], %210 {strides = array<i32>} : memref<128x4xf32, #tpu.memory_space<vmem>>, vector<128x4xf32>,
    %c2_249 = arith.constant 2 : index
    %c1_250 = arith.constant 1 : index
    %c0_251 = arith.constant 0 : index
    %212 = vector.load %arg20[%c2_249, %c1_250, %c0_251] : memref<10x18x4xf32, #tpu.memory_space<vmem>>, vector<8x16x4xf32>
    %213 = vector.shape_cast %212 : vector<8x16x4xf32> to vector<128x4xf32>
    %c0_252 = arith.constant 0 : index
    %c0_253 = arith.constant 0 : index
    %214 = vector.load %arg22[%c0_252, %c0_253] : memref<128x4xf32, #tpu.memory_space<vmem>>, vector<128x4xf32>
    %c7_254 = arith.constant 7 : index
    %c0_255 = arith.constant 0 : index
    %c0_256 = arith.constant 0 : index
    %215 = vector.load %arg15[%c7_254, %c0_255, %c0_256] : memref<9x4x4xf32, #tpu.memory_space<vmem>>, vector<1x4x4xf32>
    %216 = vector.shape_cast %215 : vector<1x4x4xf32> to vector<4x4xf32>
    %cst_257 = arith.constant dense<0.000000e+00> : vector<128x4xf32>
    %217 = tpu.matmul %213, %216, %cst_257 {dimension_numbers = #tpu.dot_dimension_numbers<[1], [0], [0], [1], [0, 0, 1, 1], [], []>} : vector<128x4xf32>, vector<4x4xf32>, vector<128x4xf32> -> vector<128x4xf32>
    %218 = arith.addf %214, %217 : vector<128x4xf32>
    %c0_258 = arith.constant 0 : index
    %c0_259 = arith.constant 0 : index
    %219 = vector.load %arg22[%c0_258, %c0_259] : memref<128x4xf32, #tpu.memory_space<vmem>>, vector<128x4xf32>
    tpu.vector_store %arg22[%c0_258, %c0_259], %218 {strides = array<i32>} : memref<128x4xf32, #tpu.memory_space<vmem>>, vector<128x4xf32>,
    %c2_260 = arith.constant 2 : index
    %c2_261 = arith.constant 2 : index
    %c0_262 = arith.constant 0 : index
    %220 = vector.load %arg20[%c2_260, %c2_261, %c0_262] : memref<10x18x4xf32, #tpu.memory_space<vmem>>, vector<8x16x4xf32>
    %221 = vector.shape_cast %220 : vector<8x16x4xf32> to vector<128x4xf32>
    %c0_263 = arith.constant 0 : index
    %c0_264 = arith.constant 0 : index
    %222 = vector.load %arg22[%c0_263, %c0_264] : memref<128x4xf32, #tpu.memory_space<vmem>>, vector<128x4xf32>
    %c8_265 = arith.constant 8 : index
    %c0_266 = arith.constant 0 : index
    %c0_267 = arith.constant 0 : index
    %223 = vector.load %arg15[%c8_265, %c0_266, %c0_267] : memref<9x4x4xf32, #tpu.memory_space<vmem>>, vector<1x4x4xf32>
    %224 = vector.shape_cast %223 : vector<1x4x4xf32> to vector<4x4xf32>
    %cst_268 = arith.constant dense<0.000000e+00> : vector<128x4xf32>
    %225 = tpu.matmul %221, %224, %cst_268 {dimension_numbers = #tpu.dot_dimension_numbers<[1], [0], [0], [1], [0, 0, 1, 1], [], []>} : vector<128x4xf32>, vector<4x4xf32>, vector<128x4xf32> -> vector<128x4xf32>
    %226 = arith.addf %222, %225 : vector<128x4xf32>
    %c0_269 = arith.constant 0 : index
    %c0_270 = arith.constant 0 : index
    %227 = vector.load %arg22[%c0_269, %c0_270] : memref<128x4xf32, #tpu.memory_space<vmem>>, vector<128x4xf32>
    tpu.vector_store %arg22[%c0_269, %c0_270], %226 {strides = array<i32>} : memref<128x4xf32, #tpu.memory_space<vmem>>, vector<128x4xf32>,
    %c0_271 = arith.constant 0 : index
    %c0_272 = arith.constant 0 : index
    %228 = vector.load %arg22[%c0_271, %c0_272] : memref<128x4xf32, #tpu.memory_space<vmem>>, vector<128x4xf32>
    %cst_273 = arith.constant 0.000000e+00 : f32
    %229 = vector.broadcast %cst_273 : f32 to vector<128x4xf32>
    %230 = arith.maximumf %228, %229 : vector<128x4xf32>
    %231 = vector.shape_cast %230 : vector<128x4xf32> to vector<8x16x4xf32>
    %c0_274 = arith.constant 0 : index
    %c0_275 = arith.constant 0 : index
    %c0_276 = arith.constant 0 : index
    %c0_277 = arith.constant 0 : index
    %232 = vector.load %arg18[%c0_274, %c0_275, %c0_276, %c0_277] : memref<1x8x16x4xf32, #tpu.memory_space<vmem>>, vector<1x8x16x4xf32>
    %233 = vector.shape_cast %232 : vector<1x8x16x4xf32> to vector<8x16x4xf32>
    %234 = vector.shape_cast %231 : vector<8x16x4xf32> to vector<1x8x16x4xf32>
    tpu.vector_store %arg18[%c0_274, %c0_275, %c0_276, %c0_277], %234 {strides = array<i32>} : memref<1x8x16x4xf32, #tpu.memory_space<vmem>>, vector<1x8x16x4xf32>,
    return
  }
  func.func @transform_0(%arg0: i32, %arg1: i32) -> (i32, i32, i32, i32) {
    %c0_i32 = arith.constant 0 : i32
    %c0_i32_0 = arith.constant 0 : i32
    %c0_i32_1 = arith.constant 0 : i32
    return %arg0, %arg1, %c0_i32, %c0_i32_0 : i32, i32, i32, i32
  }
  func.func @transform_1(%arg0: i32, %arg1: i32) -> (i32, i32, i32, i32) {
    %c1_i32 = arith.constant 1 : i32
    %0 = arith.muli %arg1, %c1_i32 : i32
    %c1_i32_0 = arith.constant 1 : i32
    %1 = arith.subi %0, %c1_i32_0 : i32
    %c0_i32 = arith.constant 0 : i32
    %2 = arith.maxsi %1, %c0_i32 : i32
    %c0_i32_1 = arith.constant 0 : i32
    %c0_i32_2 = arith.constant 0 : i32
    %c0_i32_3 = arith.constant 0 : i32
    return %arg0, %2, %c0_i32_1, %c0_i32_2 : i32, i32, i32, i32
  }
  func.func @transform_2(%arg0: i32, %arg1: i32) -> (i32, i32, i32, i32) {
    %c1_i32 = arith.constant 1 : i32
    %0 = arith.addi %arg1, %c1_i32 : i32
    %c1_i32_0 = arith.constant 1 : i32
    %1 = arith.muli %0, %c1_i32_0 : i32
    %c1_i32_1 = arith.constant 1 : i32
    %2 = arith.minsi %1, %c1_i32_1 : i32
    %c0_i32 = arith.constant 0 : i32
    %c0_i32_2 = arith.constant 0 : i32
    %c0_i32_3 = arith.constant 0 : i32
    return %arg0, %2, %c0_i32, %c0_i32_2 : i32, i32, i32, i32
  }
  func.func @transform_3(%arg0: i32, %arg1: i32) -> (i32, i32, i32, i32) {
    %c0_i32 = arith.constant 0 : i32
    %c0_i32_0 = arith.constant 0 : i32
    %c0_i32_1 = arith.constant 0 : i32
    return %arg0, %arg1, %c0_i32, %c0_i32_0 : i32, i32, i32, i32
  }
  func.func @transform_4(%arg0: i32, %arg1: i32) -> (i32, i32, i32, i32) {
    %c1_i32 = arith.constant 1 : i32
    %0 = arith.muli %arg1, %c1_i32 : i32
    %c1_i32_0 = arith.constant 1 : i32
    %1 = arith.subi %0, %c1_i32_0 : i32
    %c0_i32 = arith.constant 0 : i32
    %2 = arith.maxsi %1, %c0_i32 : i32
    %c0_i32_1 = arith.constant 0 : i32
    %c0_i32_2 = arith.constant 0 : i32
    %c0_i32_3 = arith.constant 0 : i32
    return %arg0, %2, %c0_i32_1, %c0_i32_2 : i32, i32, i32, i32
  }
  func.func @transform_5(%arg0: i32, %arg1: i32) -> (i32, i32, i32, i32) {
    %c1_i32 = arith.constant 1 : i32
    %0 = arith.addi %arg1, %c1_i32 : i32
    %c1_i32_0 = arith.constant 1 : i32
    %1 = arith.muli %0, %c1_i32_0 : i32
    %c1_i32_1 = arith.constant 1 : i32
    %2 = arith.minsi %1, %c1_i32_1 : i32
    %c0_i32 = arith.constant 0 : i32
    %c0_i32_2 = arith.constant 0 : i32
    %c0_i32_3 = arith.constant 0 : i32
    return %arg0, %2, %c0_i32, %c0_i32_2 : i32, i32, i32, i32
  }
  func.func @transform_6(%arg0: i32, %arg1: i32) -> (i32, i32) {
    %c0_i32 = arith.constant 0 : i32
    %c0_i32_0 = arith.constant 0 : i32
    %c0_i32_1 = arith.constant 0 : i32
    return %c0_i32, %c0_i32_0 : i32, i32
  }
  func.func @transform_7(%arg0: i32, %arg1: i32) -> (i32, i32) {
    %c0_i32 = arith.constant 0 : i32
    %c0_i32_0 = arith.constant 0 : i32
    %c0_i32_1 = arith.constant 0 : i32
    return %c0_i32, %c0_i32_0 : i32, i32
  }
  func.func @transform_8(%arg0: i32, %arg1: i32) -> (i32, i32) {
    %c0_i32 = arith.constant 0 : i32
    %c0_i32_0 = arith.constant 0 : i32
    %c0_i32_1 = arith.constant 0 : i32
    return %c0_i32, %c0_i32_0 : i32, i32
  }
  func.func @transform_9(%arg0: i32, %arg1: i32) -> (i32, i32) {
    %c0_i32 = arith.constant 0 : i32
    %c0_i32_0 = arith.constant 0 : i32
    %c0_i32_1 = arith.constant 0 : i32
    return %c0_i32, %c0_i32_0 : i32, i32
  }
  func.func @transform_10(%arg0: i32, %arg1: i32) -> (i32, i32) {
    %c0_i32 = arith.constant 0 : i32
    %c0_i32_0 = arith.constant 0 : i32
    %c0_i32_1 = arith.constant 0 : i32
    return %c0_i32, %c0_i32_0 : i32, i32
  }
  func.func @transform_11(%arg0: i32, %arg1: i32) -> (i32, i32, i32) {
    %c0_i32 = arith.constant 0 : i32
    %c0_i32_0 = arith.constant 0 : i32
    %c0_i32_1 = arith.constant 0 : i32
    %c0_i32_2 = arith.constant 0 : i32
    return %c0_i32, %c0_i32_0, %c0_i32_1 : i32, i32, i32
  }
  func.func @transform_12(%arg0: i32, %arg1: i32) -> (i32, i32) {
    %c0_i32 = arith.constant 0 : i32
    %c0_i32_0 = arith.constant 0 : i32
    %c0_i32_1 = arith.constant 0 : i32
    return %c0_i32, %c0_i32_0 : i32, i32
  }
  func.func @transform_13(%arg0: i32, %arg1: i32) -> (i32, i32, i32) {
    %c0_i32 = arith.constant 0 : i32
    %c0_i32_0 = arith.constant 0 : i32
    %c0_i32_1 = arith.constant 0 : i32
    %c0_i32_2 = arith.constant 0 : i32
    return %c0_i32, %c0_i32_0, %c0_i32_1 : i32, i32, i32
  }
  func.func @transform_14(%arg0: i32, %arg1: i32) -> (i32, i32) {
    %c0_i32 = arith.constant 0 : i32
    %c0_i32_0 = arith.constant 0 : i32
    %c0_i32_1 = arith.constant 0 : i32
    return %c0_i32, %c0_i32_0 : i32, i32
  }
  func.func @transform_15(%arg0: i32, %arg1: i32) -> (i32, i32) {
    %c0_i32 = arith.constant 0 : i32
    %c0_i32_0 = arith.constant 0 : i32
    %c0_i32_1 = arith.constant 0 : i32
    return %c0_i32, %c0_i32_0 : i32, i32
  }
  func.func @transform_16(%arg0: i32, %arg1: i32) -> (i32, i32, i32, i32) {
    %c0_i32 = arith.constant 0 : i32
    %c0_i32_0 = arith.constant 0 : i32
    %c0_i32_1 = arith.constant 0 : i32
    return %arg0, %arg1, %c0_i32, %c0_i32_0 : i32, i32, i32, i32
  }
}

</mosaic_0001>

<llo_original>
// kernel: tile.7
$region0: #{tile.7}
  %s0 = inlined_call_operand.vmem [shape: f32[4,4], index: 0, kind: input, shape index: {}]
  %s1 = inlined_call_operand.vmem [shape: f32[1,16], index: 1, kind: output, shape index: {}]
  $region1: #{tile.7} parent=0
    #allocation0 [shape = 'u8[4096]{0}', space=vmem, size = 0x1000, scoped, tag = 'scoped mem for output reshape']
    #allocation1 [shape = 'u8[4096]{0}', space=vmem, size = 0x1000, scoped, tag = 'scoped mem for input reshape']
    %s3 = ssub.s32 16, 1
    %v4 = vld [vmem:[%s0] sm:%s3]
    %5 = vst [vmem:[#allocation1] sm:%s3] %v4
    %v6 = vld [vmem:[#allocation1] sm:$0x1]
    %vm7 = vcmask 31744
    %8 = vst.msk [vmem:[#allocation0] sm:$0x1] %vm7, %v6
    %s9 = scalar_lea.vmem [#allocation1], 3
    %v10 = vld [vmem:[%s9] sm:$0x1]
    %11 = vrot.lane.b32.xlu0 %v10, 12
    %v12 = vpop.permute.xlu0 %11
    %vm13 = vcmask 130144
    %14 = vst.msk [vmem:[#allocation0] sm:$0x1] %vm13, %v12
    %s15 = scalar_lea.vmem [#allocation1], 2
    %v16 = vld [vmem:[%s15] sm:$0x1]
    %17 = vrot.lane.b32.xlu0 %v16, 8
    %v18 = vpop.permute.xlu0 %17
    %vm19 = vcmask 97344
    %20 = vst.msk [vmem:[#allocation0] sm:$0x1] %vm19, %v18
    %s21 = scalar_lea.vmem [#allocation1], 1
    %v22 = vld [vmem:[%s21] sm:$0x1]
    %23 = vrot.lane.b32.xlu0 %v22, 4
    %v24 = vpop.permute.xlu0 %23
    %vm25 = vcmask 64544
    %26 = vst.msk [vmem:[#allocation0] sm:$0x1] %vm25, %v24
    %s28 = ssub.s32 2, 1
    %v29 = vld [vmem:[#allocation0] sm:%s28]
    %s31 = ssub.s32 2, 1
    %32 = vst [vmem:[%s1] sm:%s31] %v29

// kernel: tile.6
$region0: #{tile.6}
  #allocation0 [shape = 's32[1]{0}', space=sflag, size = 0x4, scoped, tag = 'scoped memory for tile.6']
  %s0 = inlined_call_operand.vmem [shape: f32[4], index: 0, kind: input, shape index: {}]
  %s1 = inlined_call_operand.vmem [shape: f32[4,4], index: 1, kind: output, shape index: {}]
  // Predicated region
  $region2: #{tile.6} parent=0 // pred_check
    _
  $region3: #{tile.6} parent=0 // pred_check_branch
    %3 = sbr.rel (0) target = $region5
  $region4: #{tile.6} parent=0 // pred_region
    _
  $region5: #{tile.6} parent=0 // pred_fallthru
    _
  %v4 = vld [vmem:[%s0] ss:$0 sm:$0xff]
  %5 = vst [vmem:[%s1] sm:$0xf] %v4

// kernel: upblock_forward.2
$region0: #{upblock_forward.2}
  #allocation0 [shape = 'u32[]', space=smem, size = 0x4, offset = 0x4, fixed_abs, tag = 'smem constant byte address 0x4 - core index']
  #allocation1 [shape = 'u32[72,128]{1,0:T(1,128)}', space=vmem, size = 0x9000, scoped, tag = 'internal scratch']
  %s0 = inlined_call_operand.vmem [shape: f32[128,8], index: 0, kind: input, shape index: {}]
  %s1 = inlined_call_operand.vmem [shape: f32[8,16], index: 1, kind: input, shape index: {}]
  %s2 = inlined_call_operand.vmem [shape: f32[1,16], index: 2, kind: input, shape index: {}]
  %s3 = inlined_call_operand.vmem [shape: f32[128,16], index: 3, kind: output, shape index: {}]
  %s4 = sld [smem:[#allocation0]]
  $region45: #{upblock_forward.2} parent=0
    _
  %s6 = ssub.s32 1, %s4
  %s7 = scalar_select 0, %s6, %s4
  loop: start=0, step=1, limit=4
  $region2: #{upblock_forward.2} parent=0 // loop_pre_header
    _
  $region3: #{upblock_forward.2} parent=0 // loop_header
    %s9 = sphi 0, %s13
    %p10 = scmp.ge.s32.totalorder %s9, 4
    %s19 = sphi 0, %s21
    %s22 = sphi 0, %s19
    %s23 = sphi 0, %s22
    %s39 = sphi 0, %s23
    %s43 = sphi 0, %s43
    %s45 = sphi 0, %s43
    %s46 = sphi 0, %s45
    %s60 = sphi 0, %s46
    %s64 = sphi 0, %s64
    %s66 = sphi 0, %s64
    %s67 = sphi 0, %s66
    %s81 = sphi 0, %s67
    %s87 = sphi 0, %s89
    %s90 = sphi 0, %s87
    %s91 = sphi 0, %s90
    %s107 = sphi 0, %s91
  $region4: #{upblock_forward.2} parent=0 // loop_header_branch
    %12 = sbr.rel (%p10) target = $region8
  $region5: #{upblock_forward.2} parent=0 // loop_body
    %s14 = ssub.s32 %s9, 1
    %s15 = ssub.s32 %s9, 2
    %s16 = sadd.s32 %s9, 1
    %s17 = ssub.s32 %s9, %s16
    %p18 = scmp.eq.s32.totalorder %s17, 0
    %s20 = sadd.s32 %s19, 1
    %s21 = scalar_select %p18, %s19, %s20
    %p24 = pneg %p18
    %p25 = scmp.eq.s32.totalorder %s9, 1
    %p26 = por %p24, %p25
    %p27 = scmp.ne.s32.totalorder %s19, %s22
    %p28 = scmp.eq.s32.totalorder %s9, 0
    %p29 = por %p27, %p28
    %p30 = scmp.ne.s32.totalorder %s19, %s22
    %p31 = scmp.eq.s32.totalorder %s14, 1
    %p32 = por %p30, %p31
    %p33 = scmp.ne.s32.totalorder %s22, %s23
    %p34 = scmp.eq.s32.totalorder %s14, 0
    %p35 = por %p33, %p34
    %p36 = scmp.ne.s32.totalorder %s22, %s23
    %p37 = scmp.eq.s32.totalorder %s15, 1
    %p38 = por %p36, %p37
    %p40 = scmp.ne.s32.totalorder %s23, %s39
    %p41 = scmp.eq.s32.totalorder %s15, 0
    %p42 = por %p40, %p41
    %s44 = sadd.s32 %s43, 1
    %p47 = scmp.eq.s32.totalorder %s9, 1
    %p48 = scmp.ne.s32.totalorder %s43, %s45
    %p49 = scmp.eq.s32.totalorder %s9, 0
    %p50 = por %p48, %p49
    %p51 = scmp.ne.s32.totalorder %s43, %s45
    %p52 = scmp.eq.s32.totalorder %s14, 1
    %p53 = por %p51, %p52
    %p54 = scmp.ne.s32.totalorder %s45, %s46
    %p55 = scmp.eq.s32.totalorder %s14, 0
    %p56 = por %p54, %p55
    %p57 = scmp.ne.s32.totalorder %s45, %s46
    %p58 = scmp.eq.s32.totalorder %s15, 1
    %p59 = por %p57, %p58
    %p61 = scmp.ne.s32.totalorder %s46, %s60
    %p62 = scmp.eq.s32.totalorder %s15, 0
    %p63 = por %p61, %p62
    %s65 = sadd.s32 %s64, 1
    %p68 = scmp.eq.s32.totalorder %s9, 1
    %p69 = scmp.ne.s32.totalorder %s64, %s66
    %p70 = scmp.eq.s32.totalorder %s9, 0
    %p71 = por %p69, %p70
    %p72 = scmp.ne.s32.totalorder %s64, %s66
    %p73 = scmp.eq.s32.totalorder %s14, 1
    %p74 = por %p72, %p73
    %p75 = scmp.ne.s32.totalorder %s66, %s67
    %p76 = scmp.eq.s32.totalorder %s14, 0
    %p77 = por %p75, %p76
    %p78 = scmp.ne.s32.totalorder %s66, %s67
    %p79 = scmp.eq.s32.totalorder %s15, 1
    %p80 = por %p78, %p79
    %p82 = scmp.ne.s32.totalorder %s67, %s81
    %p83 = scmp.eq.s32.totalorder %s15, 0
    %p84 = por %p82, %p83
    %s85 = ssub.s32 %s9, %s16
    %p86 = scmp.eq.s32.totalorder %s85, 0
    %s88 = sadd.s32 %s87, 1
    %s89 = scalar_select %p86, %s87, %s88
    %p92 = pneg %p86
    %p93 = scmp.eq.s32.totalorder %s9, 1
    %p94 = por %p92, %p93
    %p95 = scmp.ne.s32.totalorder %s87, %s90
    %p96 = scmp.eq.s32.totalorder %s9, 0
    %p97 = por %p95, %p96
    %p98 = scmp.ne.s32.totalorder %s87, %s90
    %p99 = scmp.eq.s32.totalorder %s14, 1
    %p100 = por %p98, %p99
    %p101 = scmp.ne.s32.totalorder %s90, %s91
    %p102 = scmp.eq.s32.totalorder %s14, 0
    %p103 = por %p101, %p102
    %p104 = scmp.ne.s32.totalorder %s90, %s91
    %p105 = scmp.eq.s32.totalorder %s15, 1
    %p106 = por %p104, %p105
    %p108 = scmp.ne.s32.totalorder %s91, %s107
    %p109 = scmp.eq.s32.totalorder %s15, 0
    %p110 = por %p108, %p109
    %p111 = scmp.le.s32.totalorder 1, %s9
    %p112 = scmp.lt.s32.totalorder %s9, 3
    %p113 = pnand %p111, %p112
    %p114 = pneg %p113
    // Predicated region
    $region9: #{upblock_forward.2} parent=5 // pred_check
      _
    $region10: #{upblock_forward.2} parent=5 // pred_check_branch
      %116 = sbr.rel (%p113) target = $region12
    $region11: #{upblock_forward.2} parent=5 // pred_region
      %s117 = ssub.s32 %s9, 1
      // Predicated region
      $region13: #{upblock_forward.2} parent=11 // pred_check
        %p118 = pneg %p56
      $region14: #{upblock_forward.2} parent=11 // pred_check_branch
        %120 = sbr.rel (%p118) target = $region16
      $region15: #{upblock_forward.2} parent=11 // pred_region
        _
      $region16: #{upblock_forward.2} parent=11 // pred_fallthru
        _
      // Predicated region
      $region17: #{upblock_forward.2} parent=11 // pred_check
        %p121 = pneg %p77
      $region18: #{upblock_forward.2} parent=11 // pred_check_branch
        %123 = sbr.rel (%p121) target = $region20
      $region19: #{upblock_forward.2} parent=11 // pred_region
        _
      $region20: #{upblock_forward.2} parent=11 // pred_fallthru
        _
    $region12: #{upblock_forward.2} parent=5 // pred_fallthru
      _
    %p124 = scmp.lt.s32.totalorder %s9, 2
    // Predicated region
    $region21: #{upblock_forward.2} parent=5 // pred_check
      %p125 = pneg %p124
    $region22: #{upblock_forward.2} parent=5 // pred_check_branch
      %127 = sbr.rel (%p125) target = $region24
    $region23: #{upblock_forward.2} parent=5 // pred_region
      // Predicated region
      $region25: #{upblock_forward.2} parent=23 // pred_check
        %p128 = pneg %p29
      $region26: #{upblock_forward.2} parent=23 // pred_check_branch
        %130 = sbr.rel (%p128) target = $region28
      $region27: #{upblock_forward.2} parent=23 // pred_region
        %s131 = smul.u32 8, %s9
        %p132 = scmp.lt.s32.totalorder %s131, 15
        %s133 = scalar_select %p132, %s131, 15
        %s134 = smul.addr %s133, 8
        %s135 = scalar_lea.vmem %s0, %s134
        %s136 = smul.u32 8, %s9
      $region28: #{upblock_forward.2} parent=23 // pred_fallthru
        _
    $region24: #{upblock_forward.2} parent=5 // pred_fallthru
      _
    %p137 = scmp.le.s32.totalorder 1, %s9
    %p138 = scmp.lt.s32.totalorder %s9, 3
    %p139 = pnand %p137, %p138
    %p140 = pneg %p139
    // Predicated region
    $region29: #{upblock_forward.2} parent=5 // pred_check
      _
    $region30: #{upblock_forward.2} parent=5 // pred_check_branch
      %142 = sbr.rel (%p139) target = $region32
    $region31: #{upblock_forward.2} parent=5 // pred_region
      %s143 = ssub.s32 %s9, 1
      %s144 = smul.u32 8, %s14
      %p145 = scmp.lt.s32.totalorder %s144, 15
      %s146 = scalar_select %p145, %s144, 15
      %s147 = smul.addr %s146, 8
      %s148 = scalar_lea.vmem %s0, %s147
      %p149 = pneg %p35
      %p150 = pneg %p32
      %p151 = pneg %p56
      %p152 = pneg %p53
      %p153 = pneg %p77
      %p154 = pneg %p74
      %p155 = pneg %p103
      %p156 = pneg %p100
      %s157 = smul.u32 8, %s14
      %p158 = scmp.lt.s32.totalorder %s157, 15
      %s159 = scalar_select %p158, %s157, 15
      %s160 = smul.addr %s159, 8
      %s161 = scalar_lea.vmem %s3, %s160
      %s162 = smul.u32 8, %s14
      %p163 = scmp.lt.s32.totalorder %s162, 15
      %s164 = scalar_select %p163, %s162, 15
      %s165 = smul.addr %s164, 8
      %s166 = scalar_lea.vmem %s0, %s165
      %s167 = smul.u32 8, %s14
      %s168 = smul.u32 8, %s14
      %p169 = scmp.lt.s32.totalorder %s168, 15
      %s170 = scalar_select %p169, %s168, 15
      %s171 = smul.addr %s170, 8
      %s172 = scalar_lea.vmem %s3, %s171
      %s173 = smul.u32 8, %s14
      %v174 = vld [vmem:[%s166] sm:$0xff]
      %v175 = vld [vmem:[%s166 + $0x8] sm:$0xff]
      %v176 = vld [vmem:[%s166 + $0x10] sm:$0xff]
      %v177 = vld [vmem:[%s166 + $0x18] sm:$0xff]
      %v178 = vld [vmem:[%s166 + $0x20] sm:$0xff]
      %v179 = vld [vmem:[%s166 + $0x28] sm:$0xff]
      %v180 = vld [vmem:[%s166 + $0x30] sm:$0xff]
      %v181 = vld [vmem:[%s166 + $0x38] sm:$0xff]
      %v182 = vld [vmem:[%s1] sm:$0xff]
      %v183 = vld [vmem:[%s2] sm:$0x1]
      %v185 = vperm.slane %v183, 0
      %vm187 = vcmask 64512
      %v189 = vsel %vm187, %v174, 0
      %v192 = vsel %vm187, %v175, 0
      %v195 = vsel %vm187, %v176, 0
      %v198 = vsel %vm187, %v177, 0
      %v201 = vsel %vm187, %v178, 0
      %v204 = vsel %vm187, %v179, 0
      %v207 = vsel %vm187, %v180, 0
      %v210 = vsel %vm187, %v181, 0
      %212 = vmatpush.msra.mxu0 0.0
      %213 = vmatpush.msra.mxu0 0.0
      %214 = vmatpush.msra.mxu0 0.0
      %215 = vmatpush.msra.mxu0 0.0
      %216 = vmatpush.msra.mxu0 0.0
      %217 = vmatpush.msra.mxu0 0.0
      %218 = vmatpush.msra.mxu0 0.0
      %219 = vmatpush.msra.mxu0 0.0
      %220 = vmatpush.msra.mxu0 0.0
      %221 = vmatpush.msra.mxu0 0.0
      %222 = vmatpush.msra.mxu0 0.0
      %223 = vmatpush.msra.mxu0 0.0
      %224 = vmatpush.msra.mxu0 0.0
      %225 = vmatpush.msra.mxu0 0.0
      %226 = vmatpush.msra.mxu0 0.0
      %227 = vmatpush.msra.mxu0 %v182
      %228 = vmatmul.f32.gmra.mxu0 %v189
      %v229 = vpop.f32.mrf.mxu0
      %v230 = vadd.f32 %v185, %v229
      %231 = vmatmul.f32.gmra.mxu0 %v192
      %v232 = vpop.f32.mrf.mxu0
      %v233 = vadd.f32 %v185, %v232
      %234 = vmatmul.f32.gmra.mxu0 %v195
      %v235 = vpop.f32.mrf.mxu0
      %v236 = vadd.f32 %v185, %v235
      %237 = vmatmul.f32.gmra.mxu0 %v198
      %v238 = vpop.f32.mrf.mxu0
      %v239 = vadd.f32 %v185, %v238
      %240 = vmatmul.f32.gmra.mxu0 %v201
      %v241 = vpop.f32.mrf.mxu0
      %v242 = vadd.f32 %v185, %v241
      %243 = vmatmul.f32.gmra.mxu0 %v204
      %v244 = vpop.f32.mrf.mxu0
      %v245 = vadd.f32 %v185, %v244
      %246 = vmatmul.f32.gmra.mxu0 %v207
      %v247 = vpop.f32.mrf.mxu0
      %v248 = vadd.f32 %v185, %v247
      %249 = vmatmul.f32.gmra.mxu0 %v210
      %v250 = vpop.f32.mrf.mxu0
      %v251 = vadd.f32 %v185, %v250
      %252 = vdwg.mxu0
      %vm253 = vcmask 130048
      %254 = vst.msk [vmem:[%s172] sm:$0xff] %vm253, %v230
      %255 = vst.msk [vmem:[%s172 + $0x8] sm:$0xff] %vm253, %v233
      %256 = vst.msk [vmem:[%s172 + $0x10] sm:$0xff] %vm253, %v236
      %257 = vst.msk [vmem:[%s172 + $0x18] sm:$0xff] %vm253, %v239
      %258 = vst.msk [vmem:[%s172 + $0x20] sm:$0xff] %vm253, %v242
      %259 = vst.msk [vmem:[%s172 + $0x28] sm:$0xff] %vm253, %v245
      %260 = vst.msk [vmem:[%s172 + $0x30] sm:$0xff] %vm253, %v248
      %261 = vst.msk [vmem:[%s172 + $0x38] sm:$0xff] %vm253, %v251
      %s262 = smul.u32 8, %s14
      %p263 = scmp.lt.s32.totalorder %s262, 15
      %s264 = scalar_select %p263, %s262, 15
      %s265 = smul.addr %s264, 8
      %s266 = scalar_lea.vmem %s3, %s265
      // Predicated region
      $region33: #{upblock_forward.2} parent=31 // pred_check
        %p267 = pneg %p100
      $region34: #{upblock_forward.2} parent=31 // pred_check_branch
        %269 = sbr.rel (%p267) target = $region36
      $region35: #{upblock_forward.2} parent=31 // pred_region
        %s270 = smul.u32 8, %s14
      $region36: #{upblock_forward.2} parent=31 // pred_fallthru
        _
    $region32: #{upblock_forward.2} parent=5 // pred_fallthru
      _
    %p271 = scmp.le.s32.totalorder 2, %s9
    // Predicated region
    $region37: #{upblock_forward.2} parent=5 // pred_check
      %p272 = pneg %p271
    $region38: #{upblock_forward.2} parent=5 // pred_check_branch
      %274 = sbr.rel (%p272) target = $region40
    $region39: #{upblock_forward.2} parent=5 // pred_region
      %s275 = ssub.s32 %s9, 2
      // Predicated region
      $region41: #{upblock_forward.2} parent=39 // pred_check
        %p276 = pneg %p106
      $region42: #{upblock_forward.2} parent=39 // pred_check_branch
        %278 = sbr.rel (%p276) target = $region44
      $region43: #{upblock_forward.2} parent=39 // pred_region
        %s279 = smul.u32 8, %s15
        %p280 = scmp.lt.s32.totalorder %s279, 15
        %s281 = scalar_select %p280, %s279, 15
        %s282 = smul.addr %s281, 8
        %s283 = scalar_lea.vmem %s3, %s282
      $region44: #{upblock_forward.2} parent=39 // pred_fallthru
        _
    $region40: #{upblock_forward.2} parent=5 // pred_fallthru
      _
  $region6: #{upblock_forward.2} parent=0 // loop_footer
    %s13 = sadd.s32 1, %s9
  $region7: #{upblock_forward.2} parent=0 // loop_footer_branch
    %8 = sbr.rel target = $region3
  $region8: #{upblock_forward.2} parent=0 // loop_exit
    _

// kernel: upblock_forward.3
$region0: #{upblock_forward.3}
  #allocation0 [shape = 'u32[]', space=smem, size = 0x4, offset = 0x4, fixed_abs, tag = 'smem constant byte address 0x4 - core index']
  #allocation1 [shape = 'u32[72,128]{1,0:T(1,128)}', space=vmem, size = 0x9000, scoped, tag = 'internal scratch']
  #allocation2 [shape = 'f32[12,18,8]{2,1,0:T(8,128)}', space=vmem, size = 0x24000, scoped, tag = 'scratch operand']
  #allocation3 [shape = 'f32[10,18,4]{2,1,0:T(8,128)}', space=vmem, size = 0x1e000, scoped, tag = 'scratch operand']
  #allocation4 [shape = 'f32[160,4]{1,0:T(8,128)}', space=vmem, size = 0x14000, scoped, tag = 'scratch operand']
  #allocation5 [shape = 'f32[128,4]{1,0:T(8,128)}', space=vmem, size = 0x10000, scoped, tag = 'scratch operand']
  #allocation6 [shape = 'f32[1,1]{1,0:T(1,128)S(1)}', space=vmem, size = 0x200, scoped, tag = 'scoped memory for upblock_forward.3']
  %s0 = inlined_call_operand.vmem [shape: f32[2,16,16,4], index: 0, kind: input, shape index: {}, may-alias: {0,1,2}]
  %s1 = inlined_call_operand.vmem [shape: f32[2,16,16,4], index: 1, kind: input, shape index: {}, may-alias: {0,1,2}]
  %s2 = inlined_call_operand.vmem [shape: f32[2,16,16,4], index: 2, kind: input, shape index: {}, may-alias: {0,1,2}]
  %s3 = inlined_call_operand.vmem [shape: f32[2,16,16,4], index: 3, kind: input, shape index: {}, may-alias: {3,4,5}]
  %s4 = inlined_call_operand.vmem [shape: f32[2,16,16,4], index: 4, kind: input, shape index: {}, may-alias: {3,4,5}]
  %s5 = inlined_call_operand.vmem [shape: f32[2,16,16,4], index: 5, kind: input, shape index: {}, may-alias: {3,4,5}]
  %s6 = inlined_call_operand.vmem [shape: f32[4,2], index: 6, kind: input, shape index: {}]
  %s7 = inlined_call_operand.vmem [shape: f32[4,2], index: 7, kind: input, shape index: {}]
  %s8 = inlined_call_operand.vmem [shape: f32[1,2], index: 8, kind: input, shape index: {}]
  %s9 = inlined_call_operand.vmem [shape: f32[1,2], index: 9, kind: input, shape index: {}]
  %s10 = inlined_call_operand.<no memory space> [shape: f32[1,1], index: 10, kind: input, shape index: {}]
  %s11 = inlined_call_operand.vmem [shape: f32[9,8,4], index: 11, kind: input, shape index: {}]
  %s12 = inlined_call_operand.vmem [shape: f32[1,4], index: 12, kind: input, shape index: {}]
  %s13 = inlined_call_operand.vmem [shape: f32[9,4,4], index: 13, kind: input, shape index: {}]
  %s14 = inlined_call_operand.vmem [shape: f32[8,4], index: 14, kind: input, shape index: {}]
  %s15 = inlined_call_operand.vmem [shape: f32[1,4], index: 15, kind: input, shape index: {}]
  %s16 = inlined_call_operand.vmem [shape: f32[2,16,16,4], index: 16, kind: output, shape index: {}]
  %s17 = sld [smem:[#allocation0]]
  $region105: #{upblock_forward.3} parent=0
    _
  %s19 = ssub.s32 1, %s17
  %s20 = scalar_select 0, %s19, %s17
  %v21 = vstv %s10
  %22 = vst [vmem:[#allocation6] sm:$0x1] %v21
  loop: start=0, step=1, limit=6
  $region2: #{upblock_forward.3} parent=0 // loop_pre_header
    _
  $region3: #{upblock_forward.3} parent=0 // loop_header
    %s24 = sphi 0, %s28
    %p25 = scmp.ge.s32.totalorder %s24, 6
    %s31 = sphi 0, %s43
    %s32 = sphi 0, %s39
    %s33 = sphi 0, %s31
    %s34 = sphi 0, %s32
    %s35 = sphi 0, %s33
    %s36 = sphi 0, %s34
    %s48 = sphi 0, %s50
    %s51 = sphi 0, %s48
    %s52 = sphi 0, %s51
    %s68 = sphi 0, %s52
    %s82 = sphi 0, %s84
    %s85 = sphi 0, %s82
    %s86 = sphi 0, %s85
    %s102 = sphi 0, %s86
    %s116 = sphi 0, %s118
    %s119 = sphi 0, %s116
    %s120 = sphi 0, %s119
    %s136 = sphi 0, %s120
    %s144 = sphi 0, %s146
    %s147 = sphi 0, %s144
    %s148 = sphi 0, %s147
    %s164 = sphi 0, %s148
    %s178 = sphi 0, %s180
    %s181 = sphi 0, %s178
    %s182 = sphi 0, %s181
    %s198 = sphi 0, %s182
    %s212 = sphi 0, %s214
    %s215 = sphi 0, %s212
    %s216 = sphi 0, %s215
    %s232 = sphi 0, %s216
    %s236 = sphi 0, %s236
    %s238 = sphi 0, %s236
    %s239 = sphi 0, %s238
    %s253 = sphi 0, %s239
    %s257 = sphi 0, %s257
    %s259 = sphi 0, %s257
    %s260 = sphi 0, %s259
    %s274 = sphi 0, %s260
    %s278 = sphi 0, %s278
    %s280 = sphi 0, %s278
    %s281 = sphi 0, %s280
    %s295 = sphi 0, %s281
    %s299 = sphi 0, %s299
    %s301 = sphi 0, %s299
    %s302 = sphi 0, %s301
    %s316 = sphi 0, %s302
    %s320 = sphi 0, %s320
    %s322 = sphi 0, %s320
    %s323 = sphi 0, %s322
    %s337 = sphi 0, %s323
    %s341 = sphi 0, %s341
    %s343 = sphi 0, %s341
    %s344 = sphi 0, %s343
    %s358 = sphi 0, %s344
    %s362 = sphi 0, %s362
    %s364 = sphi 0, %s362
    %s365 = sphi 0, %s364
    %s379 = sphi 0, %s365
    %s383 = sphi 0, %s383
    %s385 = sphi 0, %s383
    %s386 = sphi 0, %s385
    %s400 = sphi 0, %s386
    %s404 = sphi 0, %s404
    %s406 = sphi 0, %s404
    %s407 = sphi 0, %s406
    %s421 = sphi 0, %s407
    %s425 = sphi 0, %s425
    %s427 = sphi 0, %s425
    %s428 = sphi 0, %s427
    %s442 = sphi 0, %s428
    %s450 = sphi 0, %s452
    %s453 = sphi 0, %s450
    %s454 = sphi 0, %s453
    %s470 = sphi 0, %s454
  $region4: #{upblock_forward.3} parent=0 // loop_header_branch
    %27 = sbr.rel (%p25) target = $region8
  $region5: #{upblock_forward.3} parent=0 // loop_body
    %s29 = ssub.s32 %s24, 1
    %s30 = ssub.s32 %s24, 2
    %s37 = sadd.s32 1, %s32
    %p38 = scmp.ge.s32.totalorder %s37, 2
    %s39 = scalar_select %p38, 0, %s37
    %s40 = sadd.s32 1, %s31
    %s41 = scalar_select %p38, %s40, %s31
    %p42 = scmp.ge.s32.totalorder %s41, 2
    %s43 = scalar_select %p42, 0, %s41
    %s44 = ssub.s32 %s31, %s43
    %s45 = ssub.s32 %s32, %s39
    %s46 = sor.u32 %s44, %s45
    %p47 = scmp.eq.s32.totalorder %s46, 0
    %s49 = sadd.s32 %s48, 1
    %s50 = scalar_select %p47, %s48, %s49
    %p53 = pneg %p47
    %p54 = scmp.eq.s32.totalorder %s24, 3
    %p55 = por %p53, %p54
    %p56 = scmp.ne.s32.totalorder %s48, %s51
    %p57 = scmp.eq.s32.totalorder %s24, 0
    %p58 = por %p56, %p57
    %p59 = scmp.ne.s32.totalorder %s48, %s51
    %p60 = scmp.eq.s32.totalorder %s29, 3
    %p61 = por %p59, %p60
    %p62 = scmp.ne.s32.totalorder %s51, %s52
    %p63 = scmp.eq.s32.totalorder %s29, 0
    %p64 = por %p62, %p63
    %p65 = scmp.ne.s32.totalorder %s51, %s52
    %p66 = scmp.eq.s32.totalorder %s30, 3
    %p67 = por %p65, %p66
    %p69 = scmp.ne.s32.totalorder %s52, %s68
    %p70 = scmp.eq.s32.totalorder %s30, 0
    %p71 = por %p69, %p70
    %s72 = ssub.s32 %s32, 1
    %p73 = scmp.gt.s32.totalorder %s72, 0
    %s74 = scalar_select %p73, %s72, 0
    %s75 = ssub.s32 %s39, 1
    %p76 = scmp.gt.s32.totalorder %s75, 0
    %s77 = scalar_select %p76, %s75, 0
    %s78 = ssub.s32 %s31, %s43
    %s79 = ssub.s32 %s74, %s77
    %s80 = sor.u32 %s78, %s79
    %p81 = scmp.eq.s32.totalorder %s80, 0
    %s83 = sadd.s32 %s82, 1
    %s84 = scalar_select %p81, %s82, %s83
    %p87 = pneg %p81
    %p88 = scmp.eq.s32.totalorder %s24, 3
    %p89 = por %p87, %p88
    %p90 = scmp.ne.s32.totalorder %s82, %s85
    %p91 = scmp.eq.s32.totalorder %s24, 0
    %p92 = por %p90, %p91
    %p93 = scmp.ne.s32.totalorder %s82, %s85
    %p94 = scmp.eq.s32.totalorder %s29, 3
    %p95 = por %p93, %p94
    %p96 = scmp.ne.s32.totalorder %s85, %s86
    %p97 = scmp.eq.s32.totalorder %s29, 0
    %p98 = por %p96, %p97
    %p99 = scmp.ne.s32.totalorder %s85, %s86
    %p100 = scmp.eq.s32.totalorder %s30, 3
    %p101 = por %p99, %p100
    %p103 = scmp.ne.s32.totalorder %s86, %s102
    %p104 = scmp.eq.s32.totalorder %s30, 0
    %p105 = por %p103, %p104
    %s106 = sadd.s32 %s32, 1
    %p107 = scmp.lt.s32.totalorder %s106, 1
    %s108 = scalar_select %p107, %s106, 1
    %s109 = sadd.s32 %s39, 1
    %p110 = scmp.lt.s32.totalorder %s109, 1
    %s111 = scalar_select %p110, %s109, 1
    %s112 = ssub.s32 %s31, %s43
    %s113 = ssub.s32 %s108, %s111
    %s114 = sor.u32 %s112, %s113
    %p115 = scmp.eq.s32.totalorder %s114, 0
    %s117 = sadd.s32 %s116, 1
    %s118 = scalar_select %p115, %s116, %s117
    %p121 = pneg %p115
    %p122 = scmp.eq.s32.totalorder %s24, 3
    %p123 = por %p121, %p122
    %p124 = scmp.ne.s32.totalorder %s116, %s119
    %p125 = scmp.eq.s32.totalorder %s24, 0
    %p126 = por %p124, %p125
    %p127 = scmp.ne.s32.totalorder %s116, %s119
    %p128 = scmp.eq.s32.totalorder %s29, 3
    %p129 = por %p127, %p128
    %p130 = scmp.ne.s32.totalorder %s119, %s120
    %p131 = scmp.eq.s32.totalorder %s29, 0
    %p132 = por %p130, %p131
    %p133 = scmp.ne.s32.totalorder %s119, %s120
    %p134 = scmp.eq.s32.totalorder %s30, 3
    %p135 = por %p133, %p134
    %p137 = scmp.ne.s32.totalorder %s120, %s136
    %p138 = scmp.eq.s32.totalorder %s30, 0
    %p139 = por %p137, %p138
    %s140 = ssub.s32 %s31, %s43
    %s141 = ssub.s32 %s32, %s39
    %s142 = sor.u32 %s140, %s141
    %p143 = scmp.eq.s32.totalorder %s142, 0
    %s145 = sadd.s32 %s144, 1
    %s146 = scalar_select %p143, %s144, %s145
    %p149 = pneg %p143
    %p150 = scmp.eq.s32.totalorder %s24, 3
    %p151 = por %p149, %p150
    %p152 = scmp.ne.s32.totalorder %s144, %s147
    %p153 = scmp.eq.s32.totalorder %s24, 0
    %p154 = por %p152, %p153
    %p155 = scmp.ne.s32.totalorder %s144, %s147
    %p156 = scmp.eq.s32.totalorder %s29, 3
    %p157 = por %p155, %p156
    %p158 = scmp.ne.s32.totalorder %s147, %s148
    %p159 = scmp.eq.s32.totalorder %s29, 0
    %p160 = por %p158, %p159
    %p161 = scmp.ne.s32.totalorder %s147, %s148
    %p162 = scmp.eq.s32.totalorder %s30, 3
    %p163 = por %p161, %p162
    %p165 = scmp.ne.s32.totalorder %s148, %s164
    %p166 = scmp.eq.s32.totalorder %s30, 0
    %p167 = por %p165, %p166
    %s168 = ssub.s32 %s32, 1
    %p169 = scmp.gt.s32.totalorder %s168, 0
    %s170 = scalar_select %p169, %s168, 0
    %s171 = ssub.s32 %s39, 1
    %p172 = scmp.gt.s32.totalorder %s171, 0
    %s173 = scalar_select %p172, %s171, 0
    %s174 = ssub.s32 %s31, %s43
    %s175 = ssub.s32 %s170, %s173
    %s176 = sor.u32 %s174, %s175
    %p177 = scmp.eq.s32.totalorder %s176, 0
    %s179 = sadd.s32 %s178, 1
    %s180 = scalar_select %p177, %s178, %s179
    %p183 = pneg %p177
    %p184 = scmp.eq.s32.totalorder %s24, 3
    %p185 = por %p183, %p184
    %p186 = scmp.ne.s32.totalorder %s178, %s181
    %p187 = scmp.eq.s32.totalorder %s24, 0
    %p188 = por %p186, %p187
    %p189 = scmp.ne.s32.totalorder %s178, %s181
    %p190 = scmp.eq.s32.totalorder %s29, 3
    %p191 = por %p189, %p190
    %p192 = scmp.ne.s32.totalorder %s181, %s182
    %p193 = scmp.eq.s32.totalorder %s29, 0
    %p194 = por %p192, %p193
    %p195 = scmp.ne.s32.totalorder %s181, %s182
    %p196 = scmp.eq.s32.totalorder %s30, 3
    %p197 = por %p195, %p196
    %p199 = scmp.ne.s32.totalorder %s182, %s198
    %p200 = scmp.eq.s32.totalorder %s30, 0
    %p201 = por %p199, %p200
    %s202 = sadd.s32 %s32, 1
    %p203 = scmp.lt.s32.totalorder %s202, 1
    %s204 = scalar_select %p203, %s202, 1
    %s205 = sadd.s32 %s39, 1
    %p206 = scmp.lt.s32.totalorder %s205, 1
    %s207 = scalar_select %p206, %s205, 1
    %s208 = ssub.s32 %s31, %s43
    %s209 = ssub.s32 %s204, %s207
    %s210 = sor.u32 %s208, %s209
    %p211 = scmp.eq.s32.totalorder %s210, 0
    %s213 = sadd.s32 %s212, 1
    %s214 = scalar_select %p211, %s212, %s213
    %p217 = pneg %p211
    %p218 = scmp.eq.s32.totalorder %s24, 3
    %p219 = por %p217, %p218
    %p220 = scmp.ne.s32.totalorder %s212, %s215
    %p221 = scmp.eq.s32.totalorder %s24, 0
    %p222 = por %p220, %p221
    %p223 = scmp.ne.s32.totalorder %s212, %s215
    %p224 = scmp.eq.s32.totalorder %s29, 3
    %p225 = por %p223, %p224
    %p226 = scmp.ne.s32.totalorder %s215, %s216
    %p227 = scmp.eq.s32.totalorder %s29, 0
    %p228 = por %p226, %p227
    %p229 = scmp.ne.s32.totalorder %s215, %s216
    %p230 = scmp.eq.s32.totalorder %s30, 3
    %p231 = por %p229, %p230
    %p233 = scmp.ne.s32.totalorder %s216, %s232
    %p234 = scmp.eq.s32.totalorder %s30, 0
    %p235 = por %p233, %p234
    %s237 = sadd.s32 %s236, 1
    %p240 = scmp.eq.s32.totalorder %s24, 3
    %p241 = scmp.ne.s32.totalorder %s236, %s238
    %p242 = scmp.eq.s32.totalorder %s24, 0
    %p243 = por %p241, %p242
    %p244 = scmp.ne.s32.totalorder %s236, %s238
    %p245 = scmp.eq.s32.totalorder %s29, 3
    %p246 = por %p244, %p245
    %p247 = scmp.ne.s32.totalorder %s238, %s239
    %p248 = scmp.eq.s32.totalorder %s29, 0
    %p249 = por %p247, %p248
    %p250 = scmp.ne.s32.totalorder %s238, %s239
    %p251 = scmp.eq.s32.totalorder %s30, 3
    %p252 = por %p250, %p251
    %p254 = scmp.ne.s32.totalorder %s239, %s253
    %p255 = scmp.eq.s32.totalorder %s30, 0
    %p256 = por %p254, %p255
    %s258 = sadd.s32 %s257, 1
    %p261 = scmp.eq.s32.totalorder %s24, 3
    %p262 = scmp.ne.s32.totalorder %s257, %s259
    %p263 = scmp.eq.s32.totalorder %s24, 0
    %p264 = por %p262, %p263
    %p265 = scmp.ne.s32.totalorder %s257, %s259
    %p266 = scmp.eq.s32.totalorder %s29, 3
    %p267 = por %p265, %p266
    %p268 = scmp.ne.s32.totalorder %s259, %s260
    %p269 = scmp.eq.s32.totalorder %s29, 0
    %p270 = por %p268, %p269
    %p271 = scmp.ne.s32.totalorder %s259, %s260
    %p272 = scmp.eq.s32.totalorder %s30, 3
    %p273 = por %p271, %p272
    %p275 = scmp.ne.s32.totalorder %s260, %s274
    %p276 = scmp.eq.s32.totalorder %s30, 0
    %p277 = por %p275, %p276
    %s279 = sadd.s32 %s278, 1
    %p282 = scmp.eq.s32.totalorder %s24, 3
    %p283 = scmp.ne.s32.totalorder %s278, %s280
    %p284 = scmp.eq.s32.totalorder %s24, 0
    %p285 = por %p283, %p284
    %p286 = scmp.ne.s32.totalorder %s278, %s280
    %p287 = scmp.eq.s32.totalorder %s29, 3
    %p288 = por %p286, %p287
    %p289 = scmp.ne.s32.totalorder %s280, %s281
    %p290 = scmp.eq.s32.totalorder %s29, 0
    %p291 = por %p289, %p290
    %p292 = scmp.ne.s32.totalorder %s280, %s281
    %p293 = scmp.eq.s32.totalorder %s30, 3
    %p294 = por %p292, %p293
    %p296 = scmp.ne.s32.totalorder %s281, %s295
    %p297 = scmp.eq.s32.totalorder %s30, 0
    %p298 = por %p296, %p297
    %s300 = sadd.s32 %s299, 1
    %p303 = scmp.eq.s32.totalorder %s24, 3
    %p304 = scmp.ne.s32.totalorder %s299, %s301
    %p305 = scmp.eq.s32.totalorder %s24, 0
    %p306 = por %p304, %p305
    %p307 = scmp.ne.s32.totalorder %s299, %s301
    %p308 = scmp.eq.s32.totalorder %s29, 3
    %p309 = por %p307, %p308
    %p310 = scmp.ne.s32.totalorder %s301, %s302
    %p311 = scmp.eq.s32.totalorder %s29, 0
    %p312 = por %p310, %p311
    %p313 = scmp.ne.s32.totalorder %s301, %s302
    %p314 = scmp.eq.s32.totalorder %s30, 3
    %p315 = por %p313, %p314
    %p317 = scmp.ne.s32.totalorder %s302, %s316
    %p318 = scmp.eq.s32.totalorder %s30, 0
    %p319 = por %p317, %p318
    %s321 = sadd.s32 %s320, 1
    %p324 = scmp.eq.s32.totalorder %s24, 3
    %p325 = scmp.ne.s32.totalorder %s320, %s322
    %p326 = scmp.eq.s32.totalorder %s24, 0
    %p327 = por %p325, %p326
    %p328 = scmp.ne.s32.totalorder %s320, %s322
    %p329 = scmp.eq.s32.totalorder %s29, 3
    %p330 = por %p328, %p329
    %p331 = scmp.ne.s32.totalorder %s322, %s323
    %p332 = scmp.eq.s32.totalorder %s29, 0
    %p333 = por %p331, %p332
    %p334 = scmp.ne.s32.totalorder %s322, %s323
    %p335 = scmp.eq.s32.totalorder %s30, 3
    %p336 = por %p334, %p335
    %p338 = scmp.ne.s32.totalorder %s323, %s337
    %p339 = scmp.eq.s32.totalorder %s30, 0
    %p340 = por %p338, %p339
    %s342 = sadd.s32 %s341, 1
    %p345 = scmp.eq.s32.totalorder %s24, 3
    %p346 = scmp.ne.s32.totalorder %s341, %s343
    %p347 = scmp.eq.s32.totalorder %s24, 0
    %p348 = por %p346, %p347
    %p349 = scmp.ne.s32.totalorder %s341, %s343
    %p350 = scmp.eq.s32.totalorder %s29, 3
    %p351 = por %p349, %p350
    %p352 = scmp.ne.s32.totalorder %s343, %s344
    %p353 = scmp.eq.s32.totalorder %s29, 0
    %p354 = por %p352, %p353
    %p355 = scmp.ne.s32.totalorder %s343, %s344
    %p356 = scmp.eq.s32.totalorder %s30, 3
    %p357 = por %p355, %p356
    %p359 = scmp.ne.s32.totalorder %s344, %s358
    %p360 = scmp.eq.s32.totalorder %s30, 0
    %p361 = por %p359, %p360
    %s363 = sadd.s32 %s362, 1
    %p366 = scmp.eq.s32.totalorder %s24, 3
    %p367 = scmp.ne.s32.totalorder %s362, %s364
    %p368 = scmp.eq.s32.totalorder %s24, 0
    %p369 = por %p367, %p368
    %p370 = scmp.ne.s32.totalorder %s362, %s364
    %p371 = scmp.eq.s32.totalorder %s29, 3
    %p372 = por %p370, %p371
    %p373 = scmp.ne.s32.totalorder %s364, %s365
    %p374 = scmp.eq.s32.totalorder %s29, 0
    %p375 = por %p373, %p374
    %p376 = scmp.ne.s32.totalorder %s364, %s365
    %p377 = scmp.eq.s32.totalorder %s30, 3
    %p378 = por %p376, %p377
    %p380 = scmp.ne.s32.totalorder %s365, %s379
    %p381 = scmp.eq.s32.totalorder %s30, 0
    %p382 = por %p380, %p381
    %s384 = sadd.s32 %s383, 1
    %p387 = scmp.eq.s32.totalorder %s24, 3
    %p388 = scmp.ne.s32.totalorder %s383, %s385
    %p389 = scmp.eq.s32.totalorder %s24, 0
    %p390 = por %p388, %p389
    %p391 = scmp.ne.s32.totalorder %s383, %s385
    %p392 = scmp.eq.s32.totalorder %s29, 3
    %p393 = por %p391, %p392
    %p394 = scmp.ne.s32.totalorder %s385, %s386
    %p395 = scmp.eq.s32.totalorder %s29, 0
    %p396 = por %p394, %p395
    %p397 = scmp.ne.s32.totalorder %s385, %s386
    %p398 = scmp.eq.s32.totalorder %s30, 3
    %p399 = por %p397, %p398
    %p401 = scmp.ne.s32.totalorder %s386, %s400
    %p402 = scmp.eq.s32.totalorder %s30, 0
    %p403 = por %p401, %p402
    %s405 = sadd.s32 %s404, 1
    %p408 = scmp.eq.s32.totalorder %s24, 3
    %p409 = scmp.ne.s32.totalorder %s404, %s406
    %p410 = scmp.eq.s32.totalorder %s24, 0
    %p411 = por %p409, %p410
    %p412 = scmp.ne.s32.totalorder %s404, %s406
    %p413 = scmp.eq.s32.totalorder %s29, 3
    %p414 = por %p412, %p413
    %p415 = scmp.ne.s32.totalorder %s406, %s407
    %p416 = scmp.eq.s32.totalorder %s29, 0
    %p417 = por %p415, %p416
    %p418 = scmp.ne.s32.totalorder %s406, %s407
    %p419 = scmp.eq.s32.totalorder %s30, 3
    %p420 = por %p418, %p419
    %p422 = scmp.ne.s32.totalorder %s407, %s421
    %p423 = scmp.eq.s32.totalorder %s30, 0
    %p424 = por %p422, %p423
    %s426 = sadd.s32 %s425, 1
    %p429 = scmp.eq.s32.totalorder %s24, 3
    %p430 = scmp.ne.s32.totalorder %s425, %s427
    %p431 = scmp.eq.s32.totalorder %s24, 0
    %p432 = por %p430, %p431
    %p433 = scmp.ne.s32.totalorder %s425, %s427
    %p434 = scmp.eq.s32.totalorder %s29, 3
    %p435 = por %p433, %p434
    %p436 = scmp.ne.s32.totalorder %s427, %s428
    %p437 = scmp.eq.s32.totalorder %s29, 0
    %p438 = por %p436, %p437
    %p439 = scmp.ne.s32.totalorder %s427, %s428
    %p440 = scmp.eq.s32.totalorder %s30, 3
    %p441 = por %p439, %p440
    %p443 = scmp.ne.s32.totalorder %s428, %s442
    %p444 = scmp.eq.s32.totalorder %s30, 0
    %p445 = por %p443, %p444
    %s446 = ssub.s32 %s31, %s43
    %s447 = ssub.s32 %s32, %s39
    %s448 = sor.u32 %s446, %s447
    %p449 = scmp.eq.s32.totalorder %s448, 0
    %s451 = sadd.s32 %s450, 1
    %s452 = scalar_select %p449, %s450, %s451
    %p455 = pneg %p449
    %p456 = scmp.eq.s32.totalorder %s24, 3
    %p457 = por %p455, %p456
    %p458 = scmp.ne.s32.totalorder %s450, %s453
    %p459 = scmp.eq.s32.totalorder %s24, 0
    %p460 = por %p458, %p459
    %p461 = scmp.ne.s32.totalorder %s450, %s453
    %p462 = scmp.eq.s32.totalorder %s29, 3
    %p463 = por %p461, %p462
    %p464 = scmp.ne.s32.totalorder %s453, %s454
    %p465 = scmp.eq.s32.totalorder %s29, 0
    %p466 = por %p464, %p465
    %p467 = scmp.ne.s32.totalorder %s453, %s454
    %p468 = scmp.eq.s32.totalorder %s30, 3
    %p469 = por %p467, %p468
    %p471 = scmp.ne.s32.totalorder %s454, %s470
    %p472 = scmp.eq.s32.totalorder %s30, 0
    %p473 = por %p471, %p472
    %p474 = scmp.le.s32.totalorder 1, %s24
    %p475 = scmp.lt.s32.totalorder %s24, 5
    %p476 = pnand %p474, %p475
    %p477 = pneg %p476
    // Predicated region
    $region9: #{upblock_forward.3} parent=5 // pred_check
      _
    $region10: #{upblock_forward.3} parent=5 // pred_check_branch
      %479 = sbr.rel (%p476) target = $region12
    $region11: #{upblock_forward.3} parent=5 // pred_region
      %s480 = ssub.s32 %s24, 1
      // Predicated region
      $region13: #{upblock_forward.3} parent=11 // pred_check
        %p481 = pneg %p249
      $region14: #{upblock_forward.3} parent=11 // pred_check_branch
        %483 = sbr.rel (%p481) target = $region16
      $region15: #{upblock_forward.3} parent=11 // pred_region
        _
      $region16: #{upblock_forward.3} parent=11 // pred_fallthru
        _
      // Predicated region
      $region17: #{upblock_forward.3} parent=11 // pred_check
        %p484 = pneg %p270
      $region18: #{upblock_forward.3} parent=11 // pred_check_branch
        %486 = sbr.rel (%p484) target = $region20
      $region19: #{upblock_forward.3} parent=11 // pred_region
        _
      $region20: #{upblock_forward.3} parent=11 // pred_fallthru
        _
      // Predicated region
      $region21: #{upblock_forward.3} parent=11 // pred_check
        %p487 = pneg %p291
      $region22: #{upblock_forward.3} parent=11 // pred_check_branch
        %489 = sbr.rel (%p487) target = $region24
      $region23: #{upblock_forward.3} parent=11 // pred_region
        _
      $region24: #{upblock_forward.3} parent=11 // pred_fallthru
        _
      // Predicated region
      $region25: #{upblock_forward.3} parent=11 // pred_check
        %p490 = pneg %p312
      $region26: #{upblock_forward.3} parent=11 // pred_check_branch
        %492 = sbr.rel (%p490) target = $region28
      $region27: #{upblock_forward.3} parent=11 // pred_region
        _
      $region28: #{upblock_forward.3} parent=11 // pred_fallthru
        _
      // Predicated region
      $region29: #{upblock_forward.3} parent=11 // pred_check
        %p493 = pneg %p333
      $region30: #{upblock_forward.3} parent=11 // pred_check_branch
        %495 = sbr.rel (%p493) target = $region32
      $region31: #{upblock_forward.3} parent=11 // pred_region
        _
      $region32: #{upblock_forward.3} parent=11 // pred_fallthru
        _
      // Predicated region
      $region33: #{upblock_forward.3} parent=11 // pred_check
        %p496 = pneg %p354
      $region34: #{upblock_forward.3} parent=11 // pred_check_branch
        %498 = sbr.rel (%p496) target = $region36
      $region35: #{upblock_forward.3} parent=11 // pred_region
        _
      $region36: #{upblock_forward.3} parent=11 // pred_fallthru
        _
      // Predicated region
      $region37: #{upblock_forward.3} parent=11 // pred_check
        %p499 = pneg %p375
      $region38: #{upblock_forward.3} parent=11 // pred_check_branch
        %501 = sbr.rel (%p499) target = $region40
      $region39: #{upblock_forward.3} parent=11 // pred_region
        _
      $region40: #{upblock_forward.3} parent=11 // pred_fallthru
        _
      // Predicated region
      $region41: #{upblock_forward.3} parent=11 // pred_check
        %p502 = pneg %p396
      $region42: #{upblock_forward.3} parent=11 // pred_check_branch
        %504 = sbr.rel (%p502) target = $region44
      $region43: #{upblock_forward.3} parent=11 // pred_region
        _
      $region44: #{upblock_forward.3} parent=11 // pred_fallthru
        _
      // Predicated region
      $region45: #{upblock_forward.3} parent=11 // pred_check
        %p505 = pneg %p417
      $region46: #{upblock_forward.3} parent=11 // pred_check_branch
        %507 = sbr.rel (%p505) target = $region48
      $region47: #{upblock_forward.3} parent=11 // pred_region
        _
      $region48: #{upblock_forward.3} parent=11 // pred_fallthru
        _
      // Predicated region
      $region49: #{upblock_forward.3} parent=11 // pred_check
        %p508 = pneg %p438
      $region50: #{upblock_forward.3} parent=11 // pred_check_branch
        %510 = sbr.rel (%p508) target = $region52
      $region51: #{upblock_forward.3} parent=11 // pred_region
        _
      $region52: #{upblock_forward.3} parent=11 // pred_fallthru
        _
    $region12: #{upblock_forward.3} parent=5 // pred_fallthru
      _
    %p511 = scmp.lt.s32.totalorder %s24, 4
    // Predicated region
    $region53: #{upblock_forward.3} parent=5 // pred_check
      %p512 = pneg %p511
    $region54: #{upblock_forward.3} parent=5 // pred_check_branch
      %514 = sbr.rel (%p512) target = $region56
    $region55: #{upblock_forward.3} parent=5 // pred_region
      // Predicated region
      $region57: #{upblock_forward.3} parent=55 // pred_check
        %p515 = pneg %p58
      $region58: #{upblock_forward.3} parent=55 // pred_check_branch
        %517 = sbr.rel (%p515) target = $region60
      $region59: #{upblock_forward.3} parent=55 // pred_region
        %s518 = smul.u32 8, %s32
        %p519 = scmp.lt.s32.totalorder %s31, 1
        %s520 = scalar_select %p519, %s31, 1
        %p521 = scmp.lt.s32.totalorder %s518, 15
        %s522 = scalar_select %p521, %s518, 15
        %s523 = smul.addr %s522, 2
        %s524 = smul.addr %s520, 32
        %s525 = sadd.s32 %s523, %s524
        %s526 = smul.addr %s525, 8
        %s527 = scalar_lea.vmem %s0, %s526
        %s528 = smul.u32 8, %s32
      $region60: #{upblock_forward.3} parent=55 // pred_fallthru
        _
      // Predicated region
      $region61: #{upblock_forward.3} parent=55 // pred_check
        %p529 = pneg %p92
      $region62: #{upblock_forward.3} parent=55 // pred_check_branch
        %531 = sbr.rel (%p529) target = $region64
      $region63: #{upblock_forward.3} parent=55 // pred_region
        %s532 = ssub.s32 %s32, 1
        %p533 = scmp.gt.s32.totalorder %s532, 0
        %s534 = scalar_select %p533, %s532, 0
        %s535 = smul.u32 8, %s534
        %p536 = scmp.lt.s32.totalorder %s31, 1
        %s537 = scalar_select %p536, %s31, 1
        %p538 = scmp.lt.s32.totalorder %s535, 15
        %s539 = scalar_select %p538, %s535, 15
        %s540 = smul.addr %s539, 2
        %s541 = smul.addr %s537, 32
        %s542 = sadd.s32 %s540, %s541
        %s543 = smul.addr %s542, 8
        %s544 = scalar_lea.vmem %s1, %s543
        %s545 = ssub.s32 %s32, 1
        %p546 = scmp.gt.s32.totalorder %s545, 0
        %s547 = scalar_select %p546, %s545, 0
        %s548 = smul.u32 8, %s547
      $region64: #{upblock_forward.3} parent=55 // pred_fallthru
        _
      // Predicated region
      $region65: #{upblock_forward.3} parent=55 // pred_check
        %p549 = pneg %p126
      $region66: #{upblock_forward.3} parent=55 // pred_check_branch
        %551 = sbr.rel (%p549) target = $region68
      $region67: #{upblock_forward.3} parent=55 // pred_region
        %s552 = sadd.s32 %s32, 1
        %p553 = scmp.lt.s32.totalorder %s552, 1
        %s554 = scalar_select %p553, %s552, 1
        %s555 = smul.u32 8, %s554
        %p556 = scmp.lt.s32.totalorder %s31, 1
        %s557 = scalar_select %p556, %s31, 1
        %p558 = scmp.lt.s32.totalorder %s555, 15
        %s559 = scalar_select %p558, %s555, 15
        %s560 = smul.addr %s559, 2
        %s561 = smul.addr %s557, 32
        %s562 = sadd.s32 %s560, %s561
        %s563 = smul.addr %s562, 8
        %s564 = scalar_lea.vmem %s2, %s563
        %s565 = sadd.s32 %s32, 1
        %p566 = scmp.lt.s32.totalorder %s565, 1
        %s567 = scalar_select %p566, %s565, 1
        %s568 = smul.u32 8, %s567
      $region68: #{upblock_forward.3} parent=55 // pred_fallthru
        _
      // Predicated region
      $region69: #{upblock_forward.3} parent=55 // pred_check
        %p569 = pneg %p154
      $region70: #{upblock_forward.3} parent=55 // pred_check_branch
        %571 = sbr.rel (%p569) target = $region72
      $region71: #{upblock_forward.3} parent=55 // pred_region
        %s572 = smul.u32 8, %s32
        %p573 = scmp.lt.s32.totalorder %s31, 1
        %s574 = scalar_select %p573, %s31, 1
        %p575 = scmp.lt.s32.totalorder %s572, 15
        %s576 = scalar_select %p575, %s572, 15
        %s577 = smul.addr %s576, 2
        %s578 = smul.addr %s574, 32
        %s579 = sadd.s32 %s577, %s578
        %s580 = smul.addr %s579, 8
        %s581 = scalar_lea.vmem %s3, %s580
        %s582 = smul.u32 8, %s32
      $region72: #{upblock_forward.3} parent=55 // pred_fallthru
        _
      // Predicated region
      $region73: #{upblock_forward.3} parent=55 // pred_check
        %p583 = pneg %p188
      $region74: #{upblock_forward.3} parent=55 // pred_check_branch
        %585 = sbr.rel (%p583) target = $region76
      $region75: #{upblock_forward.3} parent=55 // pred_region
        %s586 = ssub.s32 %s32, 1
        %p587 = scmp.gt.s32.totalorder %s586, 0
        %s588 = scalar_select %p587, %s586, 0
        %s589 = smul.u32 8, %s588
        %p590 = scmp.lt.s32.totalorder %s31, 1
        %s591 = scalar_select %p590, %s31, 1
        %p592 = scmp.lt.s32.totalorder %s589, 15
        %s593 = scalar_select %p592, %s589, 15
        %s594 = smul.addr %s593, 2
        %s595 = smul.addr %s591, 32
        %s596 = sadd.s32 %s594, %s595
        %s597 = smul.addr %s596, 8
        %s598 = scalar_lea.vmem %s4, %s597
        %s599 = ssub.s32 %s32, 1
        %p600 = scmp.gt.s32.totalorder %s599, 0
        %s601 = scalar_select %p600, %s599, 0
        %s602 = smul.u32 8, %s601
      $region76: #{upblock_forward.3} parent=55 // pred_fallthru
        _
      // Predicated region
      $region77: #{upblock_forward.3} parent=55 // pred_check
        %p603 = pneg %p222
      $region78: #{upblock_forward.3} parent=55 // pred_check_branch
        %605 = sbr.rel (%p603) target = $region80
      $region79: #{upblock_forward.3} parent=55 // pred_region
        %s606 = sadd.s32 %s32, 1
        %p607 = scmp.lt.s32.totalorder %s606, 1
        %s608 = scalar_select %p607, %s606, 1
        %s609 = smul.u32 8, %s608
        %p610 = scmp.lt.s32.totalorder %s31, 1
        %s611 = scalar_select %p610, %s31, 1
        %p612 = scmp.lt.s32.totalorder %s609, 15
        %s613 = scalar_select %p612, %s609, 15
        %s614 = smul.addr %s613, 2
        %s615 = smul.addr %s611, 32
        %s616 = sadd.s32 %s614, %s615
        %s617 = smul.addr %s616, 8
        %s618 = scalar_lea.vmem %s5, %s617
        %s619 = sadd.s32 %s32, 1
        %p620 = scmp.lt.s32.totalorder %s619, 1
        %s621 = scalar_select %p620, %s619, 1
        %s622 = smul.u32 8, %s621
      $region80: #{upblock_forward.3} parent=55 // pred_fallthru
        _
    $region56: #{upblock_forward.3} parent=5 // pred_fallthru
      _
    %p623 = scmp.le.s32.totalorder 1, %s24
    %p624 = scmp.lt.s32.totalorder %s24, 5
    %p625 = pnand %p623, %p624
    %p626 = pneg %p625
    // Predicated region
    $region81: #{upblock_forward.3} parent=5 // pred_check
      _
    $region82: #{upblock_forward.3} parent=5 // pred_check_branch
      %628 = sbr.rel (%p625) target = $region84
    $region83: #{upblock_forward.3} parent=5 // pred_region
      %s629 = ssub.s32 %s24, 1
      %s630 = smul.u32 8, %s34
      %p631 = scmp.lt.s32.totalorder %s33, 1
      %s632 = scalar_select %p631, %s33, 1
      %p633 = scmp.lt.s32.totalorder %s630, 15
      %s634 = scalar_select %p633, %s630, 15
      %s635 = smul.addr %s634, 2
      %s636 = smul.addr %s632, 32
      %s637 = sadd.s32 %s635, %s636
      %s638 = smul.addr %s637, 8
      %s639 = scalar_lea.vmem %s0, %s638
      %p640 = pneg %p64
      %p641 = pneg %p61
      %s642 = ssub.s32 %s34, 1
      %p643 = scmp.gt.s32.totalorder %s642, 0
      %s644 = scalar_select %p643, %s642, 0
      %s645 = smul.u32 8, %s644
      %p646 = scmp.lt.s32.totalorder %s33, 1
      %s647 = scalar_select %p646, %s33, 1
      %p648 = scmp.lt.s32.totalorder %s645, 15
      %s649 = scalar_select %p648, %s645, 15
      %s650 = smul.addr %s649, 2
      %s651 = smul.addr %s647, 32
      %s652 = sadd.s32 %s650, %s651
      %s653 = smul.addr %s652, 8
      %s654 = scalar_lea.vmem %s1, %s653
      %p655 = pneg %p98
      %p656 = pneg %p95
      %s657 = sadd.s32 %s34, 1
      %p658 = scmp.lt.s32.totalorder %s657, 1
      %s659 = scalar_select %p658, %s657, 1
      %s660 = smul.u32 8, %s659
      %p661 = scmp.lt.s32.totalorder %s33, 1
      %s662 = scalar_select %p661, %s33, 1
      %p663 = scmp.lt.s32.totalorder %s660, 15
      %s664 = scalar_select %p663, %s660, 15
      %s665 = smul.addr %s664, 2
      %s666 = smul.addr %s662, 32
      %s667 = sadd.s32 %s665, %s666
      %s668 = smul.addr %s667, 8
      %s669 = scalar_lea.vmem %s2, %s668
      %p670 = pneg %p132
      %p671 = pneg %p129
      %s672 = smul.u32 8, %s34
      %p673 = scmp.lt.s32.totalorder %s33, 1
      %s674 = scalar_select %p673, %s33, 1
      %p675 = scmp.lt.s32.totalorder %s672, 15
      %s676 = scalar_select %p675, %s672, 15
      %s677 = smul.addr %s676, 2
      %s678 = smul.addr %s674, 32
      %s679 = sadd.s32 %s677, %s678
      %s680 = smul.addr %s679, 8
      %s681 = scalar_lea.vmem %s3, %s680
      %p682 = pneg %p160
      %p683 = pneg %p157
      %s684 = ssub.s32 %s34, 1
      %p685 = scmp.gt.s32.totalorder %s684, 0
      %s686 = scalar_select %p685, %s684, 0
      %s687 = smul.u32 8, %s686
      %p688 = scmp.lt.s32.totalorder %s33, 1
      %s689 = scalar_select %p688, %s33, 1
      %p690 = scmp.lt.s32.totalorder %s687, 15
      %s691 = scalar_select %p690, %s687, 15
      %s692 = smul.addr %s691, 2
      %s693 = smul.addr %s689, 32
      %s694 = sadd.s32 %s692, %s693
      %s695 = smul.addr %s694, 8
      %s696 = scalar_lea.vmem %s4, %s695
      %p697 = pneg %p194
      %p698 = pneg %p191
      %s699 = sadd.s32 %s34, 1
      %p700 = scmp.lt.s32.totalorder %s699, 1
      %s701 = scalar_select %p700, %s699, 1
      %s702 = smul.u32 8, %s701
      %p703 = scmp.lt.s32.totalorder %s33, 1
      %s704 = scalar_select %p703, %s33, 1
      %p705 = scmp.lt.s32.totalorder %s702, 15
      %s706 = scalar_select %p705, %s702, 15
      %s707 = smul.addr %s706, 2
      %s708 = smul.addr %s704, 32
      %s709 = sadd.s32 %s707, %s708
      %s710 = smul.addr %s709, 8
      %s711 = scalar_lea.vmem %s5, %s710
      %p712 = pneg %p228
      %p713 = pneg %p225
      %p714 = pneg %p249
      %p715 = pneg %p246
      %p716 = pneg %p270
      %p717 = pneg %p267
      %p718 = pneg %p291
      %p719 = pneg %p288
      %p720 = pneg %p312
      %p721 = pneg %p309
      %p722 = pneg %p333
      %p723 = pneg %p330
      %p724 = pneg %p354
      %p725 = pneg %p351
      %p726 = pneg %p375
      %p727 = pneg %p372
      %p728 = pneg %p396
      %p729 = pneg %p393
      %p730 = pneg %p417
      %p731 = pneg %p414
      %p732 = pneg %p438
      %p733 = pneg %p435
      %p734 = pneg %p466
      %p735 = pneg %p463
      %s736 = smul.u32 8, %s34
      %p737 = scmp.lt.s32.totalorder %s33, 1
      %s738 = scalar_select %p737, %s33, 1
      %p739 = scmp.lt.s32.totalorder %s736, 15
      %s740 = scalar_select %p739, %s736, 15
      %s741 = smul.addr %s740, 2
      %s742 = smul.addr %s738, 32
      %s743 = sadd.s32 %s741, %s742
      %s744 = smul.addr %s743, 8
      %s745 = scalar_lea.vmem %s16, %s744
      %s746 = smul.u32 8, %s34
      %p747 = scmp.lt.s32.totalorder %s33, 1
      %s748 = scalar_select %p747, %s33, 1
      %p749 = scmp.lt.s32.totalorder %s746, 15
      %s750 = scalar_select %p749, %s746, 15
      %s751 = smul.addr %s750, 2
      %s752 = smul.addr %s748, 32
      %s753 = sadd.s32 %s751, %s752
      %s754 = smul.addr %s753, 8
      %s755 = scalar_lea.vmem %s0, %s754
      %s756 = smul.u32 8, %s34
      %s757 = ssub.s32 %s34, 1
      %p758 = scmp.gt.s32.totalorder %s757, 0
      %s759 = scalar_select %p758, %s757, 0
      %s760 = smul.u32 8, %s759
      %p761 = scmp.lt.s32.totalorder %s33, 1
      %s762 = scalar_select %p761, %s33, 1
      %p763 = scmp.lt.s32.totalorder %s760, 15
      %s764 = scalar_select %p763, %s760, 15
      %s765 = smul.addr %s764, 2
      %s766 = smul.addr %s762, 32
      %s767 = sadd.s32 %s765, %s766
      %s768 = smul.addr %s767, 8
      %s769 = scalar_lea.vmem %s1, %s768
      %s770 = ssub.s32 %s34, 1
      %p771 = scmp.gt.s32.totalorder %s770, 0
      %s772 = scalar_select %p771, %s770, 0
      %s773 = smul.u32 8, %s772
      %s774 = sadd.s32 %s34, 1
      %p775 = scmp.lt.s32.totalorder %s774, 1
      %s776 = scalar_select %p775, %s774, 1
      %s777 = smul.u32 8, %s776
      %p778 = scmp.lt.s32.totalorder %s33, 1
      %s779 = scalar_select %p778, %s33, 1
      %p780 = scmp.lt.s32.totalorder %s777, 15
      %s781 = scalar_select %p780, %s777, 15
      %s782 = smul.addr %s781, 2
      %s783 = smul.addr %s779, 32
      %s784 = sadd.s32 %s782, %s783
      %s785 = smul.addr %s784, 8
      %s786 = scalar_lea.vmem %s2, %s785
      %s787 = sadd.s32 %s34, 1
      %p788 = scmp.lt.s32.totalorder %s787, 1
      %s789 = scalar_select %p788, %s787, 1
      %s790 = smul.u32 8, %s789
      %s791 = smul.u32 8, %s34
      %p792 = scmp.lt.s32.totalorder %s33, 1
      %s793 = scalar_select %p792, %s33, 1
      %p794 = scmp.lt.s32.totalorder %s791, 15
      %s795 = scalar_select %p794, %s791, 15
      %s796 = smul.addr %s795, 2
      %s797 = smul.addr %s793, 32
      %s798 = sadd.s32 %s796, %s797
      %s799 = smul.addr %s798, 8
      %s800 = scalar_lea.vmem %s3, %s799
      %s801 = smul.u32 8, %s34
      %s802 = ssub.s32 %s34, 1
      %p803 = scmp.gt.s32.totalorder %s802, 0
      %s804 = scalar_select %p803, %s802, 0
      %s805 = smul.u32 8, %s804
      %p806 = scmp.lt.s32.totalorder %s33, 1
      %s807 = scalar_select %p806, %s33, 1
      %p808 = scmp.lt.s32.totalorder %s805, 15
      %s809 = scalar_select %p808, %s805, 15
      %s810 = smul.addr %s809, 2
      %s811 = smul.addr %s807, 32
      %s812 = sadd.s32 %s810, %s811
      %s813 = smul.addr %s812, 8
      %s814 = scalar_lea.vmem %s4, %s813
      %s815 = ssub.s32 %s34, 1
      %p816 = scmp.gt.s32.totalorder %s815, 0
      %s817 = scalar_select %p816, %s815, 0
      %s818 = smul.u32 8, %s817
      %s819 = sadd.s32 %s34, 1
      %p820 = scmp.lt.s32.totalorder %s819, 1
      %s821 = scalar_select %p820, %s819, 1
      %s822 = smul.u32 8, %s821
      %p823 = scmp.lt.s32.totalorder %s33, 1
      %s824 = scalar_select %p823, %s33, 1
      %p825 = scmp.lt.s32.totalorder %s822, 15
      %s826 = scalar_select %p825, %s822, 15
      %s827 = smul.addr %s826, 2
      %s828 = smul.addr %s824, 32
      %s829 = sadd.s32 %s827, %s828
      %s830 = smul.addr %s829, 8
      %s831 = scalar_lea.vmem %s5, %s830
      %s832 = sadd.s32 %s34, 1
      %p833 = scmp.lt.s32.totalorder %s832, 1
      %s834 = scalar_select %p833, %s832, 1
      %s835 = smul.u32 8, %s834
      %s836 = smul.u32 8, %s34
      %p837 = scmp.lt.s32.totalorder %s33, 1
      %s838 = scalar_select %p837, %s33, 1
      %p839 = scmp.lt.s32.totalorder %s836, 15
      %s840 = scalar_select %p839, %s836, 15
      %s841 = smul.addr %s840, 2
      %s842 = smul.addr %s838, 32
      %s843 = sadd.s32 %s841, %s842
      %s844 = smul.addr %s843, 8
      %s845 = scalar_lea.vmem %s16, %s844
      %s846 = smul.u32 8, %s34
      %p847 = scmp.gt.s32.totalorder %s34, 0
      %s848 = scalar_lea.vmem %s769, 96
      %v849 = vld [vmem:[%s848] sm:$0xff]
      %v850 = vld [vmem:[%s848 + $0x8] sm:$0xff]
      %v851 = vld [vmem:[%s848 + $0x10] sm:$0xff]
      %v852 = vld [vmem:[%s848 + $0x18] sm:$0xff]
      %s853 = scalar_select %p847, 1, 0
      %v854 = vstv %s853
      %vm855 = vcmp.eq.s32.totalorder %v854, 1
      %v856 = vsel %vm855, %v849, 0.0
      %v857 = vsel %vm855, %v850, 0.0
      %v858 = vsel %vm855, %v851, 0.0
      %v859 = vsel %vm855, %v852, 0.0
      %p860 = scmp.lt.s32.totalorder %s34, 1
      %v861 = vld [vmem:[%s786] sm:$0xff]
      %v862 = vld [vmem:[%s786 + $0x8] sm:$0xff]
      %v863 = vld [vmem:[%s786 + $0x10] sm:$0xff]
      %v864 = vld [vmem:[%s786 + $0x18] sm:$0xff]
      %s865 = scalar_select %p860, 1, 0
      %v866 = vstv %s865
      %vm867 = vcmp.eq.s32.totalorder %v866, 1
      %v868 = vsel %vm867, %v861, 0.0
      %v869 = vsel %vm867, %v862, 0.0
      %v870 = vsel %vm867, %v863, 0.0
      %v871 = vsel %vm867, %v864, 0.0
      %v872 = vld [vmem:[%s755] sm:$0xff]
      %v873 = vld [vmem:[%s755 + $0x8] sm:$0xff]
      %v874 = vld [vmem:[%s755 + $0x10] sm:$0xff]
      %v875 = vld [vmem:[%s755 + $0x18] sm:$0xff]
      %v876 = vld [vmem:[%s755 + $0x20] sm:$0xff]
      %v877 = vld [vmem:[%s755 + $0x28] sm:$0xff]
      %v878 = vld [vmem:[%s755 + $0x30] sm:$0xff]
      %v879 = vld [vmem:[%s755 + $0x38] sm:$0xff]
      %v880 = vld [vmem:[%s755 + $0x40] sm:$0xff]
      %v881 = vld [vmem:[%s755 + $0x48] sm:$0xff]
      %v882 = vld [vmem:[%s755 + $0x50] sm:$0xff]
      %v883 = vld [vmem:[%s755 + $0x58] sm:$0xff]
      %v884 = vld [vmem:[%s755 + $0x60] sm:$0xff]
      %v885 = vld [vmem:[%s755 + $0x68] sm:$0xff]
      %v886 = vld [vmem:[%s755 + $0x70] sm:$0xff]
      %v887 = vld [vmem:[%s755 + $0x78] sm:$0xff]
      %s888 = scalar_lea.vmem %s814, 96
      %v889 = vld [vmem:[%s888] sm:$0xff]
      %v890 = vld [vmem:[%s888 + $0x8] sm:$0xff]
      %v891 = vld [vmem:[%s888 + $0x10] sm:$0xff]
      %v892 = vld [vmem:[%s888 + $0x18] sm:$0xff]
      %v893 = vsel %vm855, %v889, 0.0
      %v894 = vsel %vm855, %v890, 0.0
      %v895 = vsel %vm855, %v891, 0.0
      %v896 = vsel %vm855, %v892, 0.0
      %v897 = vld [vmem:[%s831] sm:$0xff]
      %v898 = vld [vmem:[%s831 + $0x8] sm:$0xff]
      %v899 = vld [vmem:[%s831 + $0x10] sm:$0xff]
      %v900 = vld [vmem:[%s831 + $0x18] sm:$0xff]
      %v901 = vsel %vm867, %v897, 0.0
      %v902 = vsel %vm867, %v898, 0.0
      %v903 = vsel %vm867, %v899, 0.0
      %v904 = vsel %vm867, %v900, 0.0
      %v905 = vld [vmem:[%s800] sm:$0xff]
      %v906 = vld [vmem:[%s800 + $0x8] sm:$0xff]
      %v907 = vld [vmem:[%s800 + $0x10] sm:$0xff]
      %v908 = vld [vmem:[%s800 + $0x18] sm:$0xff]
      %v909 = vld [vmem:[%s800 + $0x20] sm:$0xff]
      %v910 = vld [vmem:[%s800 + $0x28] sm:$0xff]
      %v911 = vld [vmem:[%s800 + $0x30] sm:$0xff]
      %v912 = vld [vmem:[%s800 + $0x38] sm:$0xff]
      %v913 = vld [vmem:[%s800 + $0x40] sm:$0xff]
      %v914 = vld [vmem:[%s800 + $0x48] sm:$0xff]
      %v915 = vld [vmem:[%s800 + $0x50] sm:$0xff]
      %v916 = vld [vmem:[%s800 + $0x58] sm:$0xff]
      %v917 = vld [vmem:[%s800 + $0x60] sm:$0xff]
      %v918 = vld [vmem:[%s800 + $0x68] sm:$0xff]
      %v919 = vld [vmem:[%s800 + $0x70] sm:$0xff]
      %v920 = vld [vmem:[%s800 + $0x78] sm:$0xff]
      %v921 = vld [vmem:[%s6] sm:$0xf]
      %v922 = vld [vmem:[%s7] sm:$0xf]
      %vm923 = vcmask 31744
      %v925 = vsel %vm923, %v893, 0
      %v928 = vsel %vm923, %v894, 0
      %v931 = vsel %vm923, %v895, 0
      %v934 = vsel %vm923, %v896, 0
      %v937 = vsel %vm923, %v905, 0
      %v940 = vsel %vm923, %v906, 0
      %v943 = vsel %vm923, %v907, 0
      %v946 = vsel %vm923, %v908, 0
      %v949 = vsel %vm923, %v909, 0
      %v952 = vsel %vm923, %v910, 0
      %v955 = vsel %vm923, %v911, 0
      %v958 = vsel %vm923, %v912, 0
      %v961 = vsel %vm923, %v913, 0
      %v964 = vsel %vm923, %v914, 0
      %v967 = vsel %vm923, %v915, 0
      %v970 = vsel %vm923, %v916, 0
      %v973 = vsel %vm923, %v917, 0
      %v976 = vsel %vm923, %v918, 0
      %v979 = vsel %vm923, %v919, 0
      %v982 = vsel %vm923, %v920, 0
      %v985 = vsel %vm923, %v901, 0
      %v988 = vsel %vm923, %v902, 0
      %v991 = vsel %vm923, %v903, 0
      %v994 = vsel %vm923, %v904, 0
      %vm996 = vcmask 1043456
      %v998 = vsel %vm996, %v922, 0
      %1000 = vmatpush.msra.mxu0 0.0
      %1001 = vmatpush.msra.mxu0 0.0
      %1002 = vmatpush.msra.mxu0 0.0
      %1003 = vmatpush.msra.mxu0 0.0
      %1004 = vmatpush.msra.mxu0 0.0
      %1005 = vmatpush.msra.mxu0 0.0
      %1006 = vmatpush.msra.mxu0 0.0
      %1007 = vmatpush.msra.mxu0 0.0
      %1008 = vmatpush.msra.mxu0 0.0
      %1009 = vmatpush.msra.mxu0 0.0
      %1010 = vmatpush.msra.mxu0 0.0
      %1011 = vmatpush.msra.mxu0 0.0
      %1012 = vmatpush.msra.mxu0 0.0
      %1013 = vmatpush.msra.mxu0 0.0
      %1014 = vmatpush.msra.mxu0 0.0
      %1015 = vmatpush.msra.mxu0 %v998
      %1016 = vmatmul.f32.gmra.mxu0 %v925
      %v1017 = vpop.f32.mrf.mxu0
      %v1018 = vadd.f32 0.0, %v1017
      %1019 = vmatmul.f32.gmra.mxu0 %v928
      %v1020 = vpop.f32.mrf.mxu0
      %v1021 = vadd.f32 0.0, %v1020
      %1022 = vmatmul.f32.gmra.mxu0 %v931
      %v1023 = vpop.f32.mrf.mxu0
      %v1024 = vadd.f32 0.0, %v1023
      %1025 = vmatmul.f32.gmra.mxu0 %v934
      %v1026 = vpop.f32.mrf.mxu0
      %v1027 = vadd.f32 0.0, %v1026
      %1028 = vmatmul.f32.gmra.mxu0 %v937
      %v1029 = vpop.f32.mrf.mxu0
      %v1030 = vadd.f32 0.0, %v1029
      %1031 = vmatmul.f32.gmra.mxu0 %v940
      %v1032 = vpop.f32.mrf.mxu0
      %v1033 = vadd.f32 0.0, %v1032
      %1034 = vmatmul.f32.gmra.mxu0 %v943
      %v1035 = vpop.f32.mrf.mxu0
      %v1036 = vadd.f32 0.0, %v1035
      %1037 = vmatmul.f32.gmra.mxu0 %v946
      %v1038 = vpop.f32.mrf.mxu0
      %v1039 = vadd.f32 0.0, %v1038
      %1040 = vmatmul.f32.gmra.mxu0 %v949
      %v1041 = vpop.f32.mrf.mxu0
      %v1042 = vadd.f32 0.0, %v1041
      %1043 = vmatmul.f32.gmra.mxu0 %v952
      %v1044 = vpop.f32.mrf.mxu0
      %v1045 = vadd.f32 0.0, %v1044
      %1046 = vmatmul.f32.gmra.mxu0 %v955
      %v1047 = vpop.f32.mrf.mxu0
      %v1048 = vadd.f32 0.0, %v1047
      %1049 = vmatmul.f32.gmra.mxu0 %v958
      %v1050 = vpop.f32.mrf.mxu0
      %v1051 = vadd.f32 0.0, %v1050
      %1052 = vmatmul.f32.gmra.mxu0 %v961
      %v1053 = vpop.f32.mrf.mxu0
      %v1054 = vadd.f32 0.0, %v1053
      %1055 = vmatmul.f32.gmra.mxu0 %v964
      %v1056 = vpop.f32.mrf.mxu0
      %v1057 = vadd.f32 0.0, %v1056
      %1058 = vmatmul.f32.gmra.mxu0 %v967
      %v1059 = vpop.f32.mrf.mxu0
      %v1060 = vadd.f32 0.0, %v1059
      %1061 = vmatmul.f32.gmra.mxu0 %v970
      %v1062 = vpop.f32.mrf.mxu0
      %v1063 = vadd.f32 0.0, %v1062
      %1064 = vmatmul.f32.gmra.mxu0 %v973
      %v1065 = vpop.f32.mrf.mxu0
      %v1066 = vadd.f32 0.0, %v1065
      %1067 = vmatmul.f32.gmra.mxu0 %v976
      %v1068 = vpop.f32.mrf.mxu0
      %v1069 = vadd.f32 0.0, %v1068
      %1070 = vmatmul.f32.gmra.mxu0 %v979
      %v1071 = vpop.f32.mrf.mxu0
      %v1072 = vadd.f32 0.0, %v1071
      %1073 = vmatmul.f32.gmra.mxu0 %v982
      %v1074 = vpop.f32.mrf.mxu0
      %v1075 = vadd.f32 0.0, %v1074
      %1076 = vmatmul.f32.gmra.mxu0 %v985
      %v1077 = vpop.f32.mrf.mxu0
      %v1078 = vadd.f32 0.0, %v1077
      %1079 = vmatmul.f32.gmra.mxu0 %v988
      %v1080 = vpop.f32.mrf.mxu0
      %v1081 = vadd.f32 0.0, %v1080
      %1082 = vmatmul.f32.gmra.mxu0 %v991
      %v1083 = vpop.f32.mrf.mxu0
      %v1084 = vadd.f32 0.0, %v1083
      %1085 = vmatmul.f32.gmra.mxu0 %v994
      %v1086 = vpop.f32.mrf.mxu0
      %v1087 = vadd.f32 0.0, %v1086
      %1088 = vdwg.mxu0
      %v1090 = vsel %vm923, %v856, 0
      %v1093 = vsel %vm923, %v857, 0
      %v1096 = vsel %vm923, %v858, 0
      %v1099 = vsel %vm923, %v859, 0
      %v1102 = vsel %vm923, %v872, 0
      %v1105 = vsel %vm923, %v873, 0
      %v1108 = vsel %vm923, %v874, 0
      %v1111 = vsel %vm923, %v875, 0
      %v1114 = vsel %vm923, %v876, 0
      %v1117 = vsel %vm923, %v877, 0
      %v1120 = vsel %vm923, %v878, 0
      %v1123 = vsel %vm923, %v879, 0
      %v1126 = vsel %vm923, %v880, 0
      %v1129 = vsel %vm923, %v881, 0
      %v1132 = vsel %vm923, %v882, 0
      %v1135 = vsel %vm923, %v883, 0
      %v1138 = vsel %vm923, %v884, 0
      %v1141 = vsel %vm923, %v885, 0
      %v1144 = vsel %vm923, %v886, 0
      %v1147 = vsel %vm923, %v887, 0
      %v1150 = vsel %vm923, %v868, 0
      %v1153 = vsel %vm923, %v869, 0
      %v1156 = vsel %vm923, %v870, 0
      %v1159 = vsel %vm923, %v871, 0
      %v1162 = vsel %vm996, %v921, 0
      %1164 = vmatpush.msra.mxu0 0.0
      %1165 = vmatpush.msra.mxu0 0.0
      %1166 = vmatpush.msra.mxu0 0.0
      %1167 = vmatpush.msra.mxu0 0.0
      %1168 = vmatpush.msra.mxu0 0.0
      %1169 = vmatpush.msra.mxu0 0.0
      %1170 = vmatpush.msra.mxu0 0.0
      %1171 = vmatpush.msra.mxu0 0.0
      %1172 = vmatpush.msra.mxu0 0.0
      %1173 = vmatpush.msra.mxu0 0.0
      %1174 = vmatpush.msra.mxu0 0.0
      %1175 = vmatpush.msra.mxu0 0.0
      %1176 = vmatpush.msra.mxu0 0.0
      %1177 = vmatpush.msra.mxu0 0.0
      %1178 = vmatpush.msra.mxu0 0.0
      %1179 = vmatpush.msra.mxu0 %v1162
      %1180 = vmatmul.f32.gmra.mxu0 %v1090
      %v1181 = vpop.f32.mrf.mxu0
      %v1182 = vadd.f32 %v1018, %v1181
      %1183 = vmatmul.f32.gmra.mxu0 %v1093
      %v1184 = vpop.f32.mrf.mxu0
      %v1185 = vadd.f32 %v1021, %v1184
      %1186 = vmatmul.f32.gmra.mxu0 %v1096
      %v1187 = vpop.f32.mrf.mxu0
      %v1188 = vadd.f32 %v1024, %v1187
      %1189 = vmatmul.f32.gmra.mxu0 %v1099
      %v1190 = vpop.f32.mrf.mxu0
      %v1191 = vadd.f32 %v1027, %v1190
      %1192 = vmatmul.f32.gmra.mxu0 %v1102
      %v1193 = vpop.f32.mrf.mxu0
      %v1194 = vadd.f32 %v1030, %v1193
      %1195 = vmatmul.f32.gmra.mxu0 %v1105
      %v1196 = vpop.f32.mrf.mxu0
      %v1197 = vadd.f32 %v1033, %v1196
      %1198 = vmatmul.f32.gmra.mxu0 %v1108
      %v1199 = vpop.f32.mrf.mxu0
      %v1200 = vadd.f32 %v1036, %v1199
      %1201 = vmatmul.f32.gmra.mxu0 %v1111
      %v1202 = vpop.f32.mrf.mxu0
      %v1203 = vadd.f32 %v1039, %v1202
      %1204 = vmatmul.f32.gmra.mxu0 %v1114
      %v1205 = vpop.f32.mrf.mxu0
      %v1206 = vadd.f32 %v1042, %v1205
      %1207 = vmatmul.f32.gmra.mxu0 %v1117
      %v1208 = vpop.f32.mrf.mxu0
      %v1209 = vadd.f32 %v1045, %v1208
      %1210 = vmatmul.f32.gmra.mxu0 %v1120
      %v1211 = vpop.f32.mrf.mxu0
      %v1212 = vadd.f32 %v1048, %v1211
      %1213 = vmatmul.f32.gmra.mxu0 %v1123
      %v1214 = vpop.f32.mrf.mxu0
      %v1215 = vadd.f32 %v1051, %v1214
      %1216 = vmatmul.f32.gmra.mxu0 %v1126
      %v1217 = vpop.f32.mrf.mxu0
      %v1218 = vadd.f32 %v1054, %v1217
      %1219 = vmatmul.f32.gmra.mxu0 %v1129
      %v1220 = vpop.f32.mrf.mxu0
      %v1221 = vadd.f32 %v1057, %v1220
      %1222 = vmatmul.f32.gmra.mxu0 %v1132
      %v1223 = vpop.f32.mrf.mxu0
      %v1224 = vadd.f32 %v1060, %v1223
      %1225 = vmatmul.f32.gmra.mxu0 %v1135
      %v1226 = vpop.f32.mrf.mxu0
      %v1227 = vadd.f32 %v1063, %v1226
      %1228 = vmatmul.f32.gmra.mxu0 %v1138
      %v1229 = vpop.f32.mrf.mxu0
      %v1230 = vadd.f32 %v1066, %v1229
      %1231 = vmatmul.f32.gmra.mxu0 %v1141
      %v1232 = vpop.f32.mrf.mxu0
      %v1233 = vadd.f32 %v1069, %v1232
      %1234 = vmatmul.f32.gmra.mxu0 %v1144
      %v1235 = vpop.f32.mrf.mxu0
      %v1236 = vadd.f32 %v1072, %v1235
      %1237 = vmatmul.f32.gmra.mxu0 %v1147
      %v1238 = vpop.f32.mrf.mxu0
      %v1239 = vadd.f32 %v1075, %v1238
      %1240 = vmatmul.f32.gmra.mxu0 %v1150
      %v1241 = vpop.f32.mrf.mxu0
      %v1242 = vadd.f32 %v1078, %v1241
      %1243 = vmatmul.f32.gmra.mxu0 %v1153
      %v1244 = vpop.f32.mrf.mxu0
      %v1245 = vadd.f32 %v1081, %v1244
      %1246 = vmatmul.f32.gmra.mxu0 %v1156
      %v1247 = vpop.f32.mrf.mxu0
      %v1248 = vadd.f32 %v1084, %v1247
      %1249 = vmatmul.f32.gmra.mxu0 %v1159
      %v1250 = vpop.f32.mrf.mxu0
      %v1251 = vadd.f32 %v1087, %v1250
      %1252 = vdwg.mxu0
      %v1253 = vld [vmem:[%s8] sm:$0x1]
      %v1255 = vperm.slane %v1253, 0
      %v1257 = vadd.f32 %v1182, %v1255
      %v1258 = vadd.f32 %v1185, %v1255
      %v1259 = vadd.f32 %v1188, %v1255
      %v1260 = vadd.f32 %v1191, %v1255
      %v1261 = vadd.f32 %v1194, %v1255
      %v1262 = vadd.f32 %v1197, %v1255
      %v1263 = vadd.f32 %v1200, %v1255
      %v1264 = vadd.f32 %v1203, %v1255
      %v1265 = vadd.f32 %v1206, %v1255
      %v1266 = vadd.f32 %v1209, %v1255
      %v1267 = vadd.f32 %v1212, %v1255
      %v1268 = vadd.f32 %v1215, %v1255
      %v1269 = vadd.f32 %v1218, %v1255
      %v1270 = vadd.f32 %v1221, %v1255
      %v1271 = vadd.f32 %v1224, %v1255
      %v1272 = vadd.f32 %v1227, %v1255
      %v1273 = vadd.f32 %v1230, %v1255
      %v1274 = vadd.f32 %v1233, %v1255
      %v1275 = vadd.f32 %v1236, %v1255
      %v1276 = vadd.f32 %v1239, %v1255
      %v1277 = vadd.f32 %v1242, %v1255
      %v1278 = vadd.f32 %v1245, %v1255
      %v1279 = vadd.f32 %v1248, %v1255
      %v1280 = vadd.f32 %v1251, %v1255
      %v1281 = vmax.f32 %v1257, 0.0
      %v1282 = vmax.f32 %v1258, 0.0
      %v1283 = vmax.f32 %v1259, 0.0
      %v1284 = vmax.f32 %v1260, 0.0
      %v1285 = vmax.f32 %v1261, 0.0
      %v1286 = vmax.f32 %v1262, 0.0
      %v1287 = vmax.f32 %v1263, 0.0
      %v1288 = vmax.f32 %v1264, 0.0
      %v1289 = vmax.f32 %v1265, 0.0
      %v1290 = vmax.f32 %v1266, 0.0
      %v1291 = vmax.f32 %v1267, 0.0
      %v1292 = vmax.f32 %v1268, 0.0
      %v1293 = vmax.f32 %v1269, 0.0
      %v1294 = vmax.f32 %v1270, 0.0
      %v1295 = vmax.f32 %v1271, 0.0
      %v1296 = vmax.f32 %v1272, 0.0
      %v1297 = vmax.f32 %v1273, 0.0
      %v1298 = vmax.f32 %v1274, 0.0
      %v1299 = vmax.f32 %v1275, 0.0
      %v1300 = vmax.f32 %v1276, 0.0
      %v1301 = vmax.f32 %v1277, 0.0
      %v1302 = vmax.f32 %v1278, 0.0
      %v1303 = vmax.f32 %v1279, 0.0
      %v1304 = vmax.f32 %v1280, 0.0
      %v1305 = vld [vmem:[%s9] sm:$0x1]
      %v1307 = vperm.slane %v1305, 0
      %v1309 = vmul.f32 %v1281, %v1307
      %v1310 = vmul.f32 %v1282, %v1307
      %v1311 = vmul.f32 %v1283, %v1307
      %v1312 = vmul.f32 %v1284, %v1307
      %v1313 = vmul.f32 %v1285, %v1307
      %v1314 = vmul.f32 %v1286, %v1307
      %v1315 = vmul.f32 %v1287, %v1307
      %v1316 = vmul.f32 %v1288, %v1307
      %v1317 = vmul.f32 %v1289, %v1307
      %v1318 = vmul.f32 %v1290, %v1307
      %v1319 = vmul.f32 %v1291, %v1307
      %v1320 = vmul.f32 %v1292, %v1307
      %v1321 = vmul.f32 %v1293, %v1307
      %v1322 = vmul.f32 %v1294, %v1307
      %v1323 = vmul.f32 %v1295, %v1307
      %v1324 = vmul.f32 %v1296, %v1307
      %v1325 = vmul.f32 %v1297, %v1307
      %v1326 = vmul.f32 %v1298, %v1307
      %v1327 = vmul.f32 %v1299, %v1307
      %v1328 = vmul.f32 %v1300, %v1307
      %v1329 = vmul.f32 %v1301, %v1307
      %v1330 = vmul.f32 %v1302, %v1307
      %v1331 = vmul.f32 %v1303, %v1307
      %v1332 = vmul.f32 %v1304, %v1307
      %vm1333 = vcmask 15360
      %v1334 = vsel %vm1333, %v1309, 0.0
      %1335 = vadd.xlane.f32.xlu0 %v1334
      %v1336 = vpop.xlane.xlu0 %1335
      %v1337 = vsel %vm1333, %v1310, 0.0
      %1338 = vadd.xlane.f32.xlu0 %v1337
      %v1339 = vpop.xlane.xlu0 %1338
      %v1340 = vsel %vm1333, %v1311, 0.0
      %1341 = vadd.xlane.f32.xlu0 %v1340
      %v1342 = vpop.xlane.xlu0 %1341
      %v1343 = vsel %vm1333, %v1312, 0.0
      %1344 = vadd.xlane.f32.xlu0 %v1343
      %v1345 = vpop.xlane.xlu0 %1344
      %v1346 = vsel %vm1333, %v1313, 0.0
      %1347 = vadd.xlane.f32.xlu0 %v1346
      %v1348 = vpop.xlane.xlu0 %1347
      %v1349 = vsel %vm1333, %v1314, 0.0
      %1350 = vadd.xlane.f32.xlu0 %v1349
      %v1351 = vpop.xlane.xlu0 %1350
      %v1352 = vsel %vm1333, %v1315, 0.0
      %1353 = vadd.xlane.f32.xlu0 %v1352
      %v1354 = vpop.xlane.xlu0 %1353
      %v1355 = vsel %vm1333, %v1316, 0.0
      %1356 = vadd.xlane.f32.xlu0 %v1355
      %v1357 = vpop.xlane.xlu0 %1356
      %v1358 = vsel %vm1333, %v1317, 0.0
      %1359 = vadd.xlane.f32.xlu0 %v1358
      %v1360 = vpop.xlane.xlu0 %1359
      %v1361 = vsel %vm1333, %v1318, 0.0
      %1362 = vadd.xlane.f32.xlu0 %v1361
      %v1363 = vpop.xlane.xlu0 %1362
      %v1364 = vsel %vm1333, %v1319, 0.0
      %1365 = vadd.xlane.f32.xlu0 %v1364
      %v1366 = vpop.xlane.xlu0 %1365
      %v1367 = vsel %vm1333, %v1320, 0.0
      %1368 = vadd.xlane.f32.xlu0 %v1367
      %v1369 = vpop.xlane.xlu0 %1368
      %v1370 = vsel %vm1333, %v1321, 0.0
      %1371 = vadd.xlane.f32.xlu0 %v1370
      %v1372 = vpop.xlane.xlu0 %1371
      %v1373 = vsel %vm1333, %v1322, 0.0
      %1374 = vadd.xlane.f32.xlu0 %v1373
      %v1375 = vpop.xlane.xlu0 %1374
      %v1376 = vsel %vm1333, %v1323, 0.0
      %1377 = vadd.xlane.f32.xlu0 %v1376
      %v1378 = vpop.xlane.xlu0 %1377
      %v1379 = vsel %vm1333, %v1324, 0.0
      %1380 = vadd.xlane.f32.xlu0 %v1379
      %v1381 = vpop.xlane.xlu0 %1380
      %v1382 = vsel %vm1333, %v1325, 0.0
      %1383 = vadd.xlane.f32.xlu0 %v1382
      %v1384 = vpop.xlane.xlu0 %1383
      %v1385 = vsel %vm1333, %v1326, 0.0
      %1386 = vadd.xlane.f32.xlu0 %v1385
      %v1387 = vpop.xlane.xlu0 %1386
      %v1388 = vsel %vm1333, %v1327, 0.0
      %1389 = vadd.xlane.f32.xlu0 %v1388
      %v1390 = vpop.xlane.xlu0 %1389
      %v1391 = vsel %vm1333, %v1328, 0.0
      %1392 = vadd.xlane.f32.xlu0 %v1391
      %v1393 = vpop.xlane.xlu0 %1392
      %v1394 = vsel %vm1333, %v1329, 0.0
      %1395 = vadd.xlane.f32.xlu0 %v1394
      %v1396 = vpop.xlane.xlu0 %1395
      %v1397 = vsel %vm1333, %v1330, 0.0
      %1398 = vadd.xlane.f32.xlu0 %v1397
      %v1399 = vpop.xlane.xlu0 %1398
      %v1400 = vsel %vm1333, %v1331, 0.0
      %1401 = vadd.xlane.f32.xlu0 %v1400
      %v1402 = vpop.xlane.xlu0 %1401
      %v1403 = vsel %vm1333, %v1332, 0.0
      %1404 = vadd.xlane.f32.xlu0 %v1403
      %v1405 = vpop.xlane.xlu0 %1404
      %v1406 = vld [vmem:[#allocation6] sm:$0x1]
      %v1408 = vperm.slane %v1406, 0
      %v1410 = vadd.f32 %v1336, %v1408
      %v1411 = vadd.f32 %v1339, %v1408
      %v1412 = vadd.f32 %v1342, %v1408
      %v1413 = vadd.f32 %v1345, %v1408
      %v1414 = vadd.f32 %v1348, %v1408
      %v1415 = vadd.f32 %v1351, %v1408
      %v1416 = vadd.f32 %v1354, %v1408
      %v1417 = vadd.f32 %v1357, %v1408
      %v1418 = vadd.f32 %v1360, %v1408
      %v1419 = vadd.f32 %v1363, %v1408
      %v1420 = vadd.f32 %v1366, %v1408
      %v1421 = vadd.f32 %v1369, %v1408
      %v1422 = vadd.f32 %v1372, %v1408
      %v1423 = vadd.f32 %v1375, %v1408
      %v1424 = vadd.f32 %v1378, %v1408
      %v1425 = vadd.f32 %v1381, %v1408
      %v1426 = vadd.f32 %v1384, %v1408
      %v1427 = vadd.f32 %v1387, %v1408
      %v1428 = vadd.f32 %v1390, %v1408
      %v1429 = vadd.f32 %v1393, %v1408
      %v1430 = vadd.f32 %v1396, %v1408
      %v1431 = vadd.f32 %v1399, %v1408
      %v1432 = vadd.f32 %v1402, %v1408
      %v1433 = vadd.f32 %v1405, %v1408
      %v1434 = vsub.f32 0.0, %v1410
      %v1435 = vsub.f32 0.0, %v1411
      %v1436 = vsub.f32 0.0, %v1412
      %v1437 = vsub.f32 0.0, %v1413
      %v1438 = vsub.f32 0.0, %v1414
      %v1439 = vsub.f32 0.0, %v1415
      %v1440 = vsub.f32 0.0, %v1416
      %v1441 = vsub.f32 0.0, %v1417
      %v1442 = vsub.f32 0.0, %v1418
      %v1443 = vsub.f32 0.0, %v1419
      %v1444 = vsub.f32 0.0, %v1420
      %v1445 = vsub.f32 0.0, %v1421
      %v1446 = vsub.f32 0.0, %v1422
      %v1447 = vsub.f32 0.0, %v1423
      %v1448 = vsub.f32 0.0, %v1424
      %v1449 = vsub.f32 0.0, %v1425
      %v1450 = vsub.f32 0.0, %v1426
      %v1451 = vsub.f32 0.0, %v1427
      %v1452 = vsub.f32 0.0, %v1428
      %v1453 = vsub.f32 0.0, %v1429
      %v1454 = vsub.f32 0.0, %v1430
      %v1455 = vsub.f32 0.0, %v1431
      %v1456 = vsub.f32 0.0, %v1432
      %v1457 = vsub.f32 0.0, %v1433
      %v1458 = vmul.f32 %v1434, 1.442695
      %v1459 = vpow.pop %v1458
      %v1460 = vmul.f32 %v1435, 1.442695
      %v1461 = vpow.pop %v1460
      %v1462 = vmul.f32 %v1436, 1.442695
      %v1463 = vpow.pop %v1462
      %v1464 = vmul.f32 %v1437, 1.442695
      %v1465 = vpow.pop %v1464
      %v1466 = vmul.f32 %v1438, 1.442695
      %v1467 = vpow.pop %v1466
      %v1468 = vmul.f32 %v1439, 1.442695
      %v1469 = vpow.pop %v1468
      %v1470 = vmul.f32 %v1440, 1.442695
      %v1471 = vpow.pop %v1470
      %v1472 = vmul.f32 %v1441, 1.442695
      %v1473 = vpow.pop %v1472
      %v1474 = vmul.f32 %v1442, 1.442695
      %v1475 = vpow.pop %v1474
      %v1476 = vmul.f32 %v1443, 1.442695
      %v1477 = vpow.pop %v1476
      %v1478 = vmul.f32 %v1444, 1.442695
      %v1479 = vpow.pop %v1478
      %v1480 = vmul.f32 %v1445, 1.442695
      %v1481 = vpow.pop %v1480
      %v1482 = vmul.f32 %v1446, 1.442695
      %v1483 = vpow.pop %v1482
      %v1484 = vmul.f32 %v1447, 1.442695
      %v1485 = vpow.pop %v1484
      %v1486 = vmul.f32 %v1448, 1.442695
      %v1487 = vpow.pop %v1486
      %v1488 = vmul.f32 %v1449, 1.442695
      %v1489 = vpow.pop %v1488
      %v1490 = vmul.f32 %v1450, 1.442695
      %v1491 = vpow.pop %v1490
      %v1492 = vmul.f32 %v1451, 1.442695
      %v1493 = vpow.pop %v1492
      %v1494 = vmul.f32 %v1452, 1.442695
      %v1495 = vpow.pop %v1494
      %v1496 = vmul.f32 %v1453, 1.442695
      %v1497 = vpow.pop %v1496
      %v1498 = vmul.f32 %v1454, 1.442695
      %v1499 = vpow.pop %v1498
      %v1500 = vmul.f32 %v1455, 1.442695
      %v1501 = vpow.pop %v1500
      %v1502 = vmul.f32 %v1456, 1.442695
      %v1503 = vpow.pop %v1502
      %v1504 = vmul.f32 %v1457, 1.442695
      %v1505 = vpow.pop %v1504
      %v1506 = vadd.f32 %v1459, 1.0
      %v1507 = vadd.f32 %v1461, 1.0
      %v1508 = vadd.f32 %v1463, 1.0
      %v1509 = vadd.f32 %v1465, 1.0
      %v1510 = vadd.f32 %v1467, 1.0
      %v1511 = vadd.f32 %v1469, 1.0
      %v1512 = vadd.f32 %v1471, 1.0
      %v1513 = vadd.f32 %v1473, 1.0
      %v1514 = vadd.f32 %v1475, 1.0
      %v1515 = vadd.f32 %v1477, 1.0
      %v1516 = vadd.f32 %v1479, 1.0
      %v1517 = vadd.f32 %v1481, 1.0
      %v1518 = vadd.f32 %v1483, 1.0
      %v1519 = vadd.f32 %v1485, 1.0
      %v1520 = vadd.f32 %v1487, 1.0
      %v1521 = vadd.f32 %v1489, 1.0
      %v1522 = vadd.f32 %v1491, 1.0
      %v1523 = vadd.f32 %v1493, 1.0
      %v1524 = vadd.f32 %v1495, 1.0
      %v1525 = vadd.f32 %v1497, 1.0
      %v1526 = vadd.f32 %v1499, 1.0
      %v1527 = vadd.f32 %v1501, 1.0
      %v1528 = vadd.f32 %v1503, 1.0
      %v1529 = vadd.f32 %v1505, 1.0
      %v1530 = vrcp.pop %v1506
      %v1531 = vmul.f32 %v1506, %v1530
      %v1532 = vsub.f32 1.0, %v1531
      %v1533 = vmul.f32 %v1530, %v1532
      %v1534 = vadd.f32 %v1530, %v1533
      %vm1535 = vweird.f32 %v1506
      %vm1536 = vweird.f32 %v1530
      %vm1537 = vmor %vm1535, %vm1536
      %v1538 = vsel %vm1537, %v1530, %v1534
      %v1539 = vand.u32 2147483647, %v1506
      %vm1540 = vcmp.eq.f32.partialorder %v1539, 8.507059e+37
      %v1541 = vand.u32 %v1506, 2147483648
      %v1542 = vor.u32 1.1754944e-38, %v1541
      %v1543 = vsel %vm1540, %v1542, %v1538
      %v1544 = vmul.f32 1.0, %v1543
      %v1545 = vrcp.pop %v1507
      %v1546 = vmul.f32 %v1507, %v1545
      %v1547 = vsub.f32 1.0, %v1546
      %v1548 = vmul.f32 %v1545, %v1547
      %v1549 = vadd.f32 %v1545, %v1548
      %vm1550 = vweird.f32 %v1507
      %vm1551 = vweird.f32 %v1545
      %vm1552 = vmor %vm1550, %vm1551
      %v1553 = vsel %vm1552, %v1545, %v1549
      %v1554 = vand.u32 2147483647, %v1507
      %vm1555 = vcmp.eq.f32.partialorder %v1554, 8.507059e+37
      %v1556 = vand.u32 %v1507, 2147483648
      %v1557 = vor.u32 1.1754944e-38, %v1556
      %v1558 = vsel %vm1555, %v1557, %v1553
      %v1559 = vmul.f32 1.0, %v1558
      %v1560 = vrcp.pop %v1508
      %v1561 = vmul.f32 %v1508, %v1560
      %v1562 = vsub.f32 1.0, %v1561
      %v1563 = vmul.f32 %v1560, %v1562
      %v1564 = vadd.f32 %v1560, %v1563
      %vm1565 = vweird.f32 %v1508
      %vm1566 = vweird.f32 %v1560
      %vm1567 = vmor %vm1565, %vm1566
      %v1568 = vsel %vm1567, %v1560, %v1564
      %v1569 = vand.u32 2147483647, %v1508
      %vm1570 = vcmp.eq.f32.partialorder %v1569, 8.507059e+37
      %v1571 = vand.u32 %v1508, 2147483648
      %v1572 = vor.u32 1.1754944e-38, %v1571
      %v1573 = vsel %vm1570, %v1572, %v1568
      %v1574 = vmul.f32 1.0, %v1573
      %v1575 = vrcp.pop %v1509
      %v1576 = vmul.f32 %v1509, %v1575
      %v1577 = vsub.f32 1.0, %v1576
      %v1578 = vmul.f32 %v1575, %v1577
      %v1579 = vadd.f32 %v1575, %v1578
      %vm1580 = vweird.f32 %v1509
      %vm1581 = vweird.f32 %v1575
      %vm1582 = vmor %vm1580, %vm1581
      %v1583 = vsel %vm1582, %v1575, %v1579
      %v1584 = vand.u32 2147483647, %v1509
      %vm1585 = vcmp.eq.f32.partialorder %v1584, 8.507059e+37
      %v1586 = vand.u32 %v1509, 2147483648
      %v1587 = vor.u32 1.1754944e-38, %v1586
      %v1588 = vsel %vm1585, %v1587, %v1583
      %v1589 = vmul.f32 1.0, %v1588
      %v1590 = vrcp.pop %v1510
      %v1591 = vmul.f32 %v1510, %v1590
      %v1592 = vsub.f32 1.0, %v1591
      %v1593 = vmul.f32 %v1590, %v1592
      %v1594 = vadd.f32 %v1590, %v1593
      %vm1595 = vweird.f32 %v1510
      %vm1596 = vweird.f32 %v1590
      %vm1597 = vmor %vm1595, %vm1596
      %v1598 = vsel %vm1597, %v1590, %v1594
      %v1599 = vand.u32 2147483647, %v1510
      %vm1600 = vcmp.eq.f32.partialorder %v1599, 8.507059e+37
      %v1601 = vand.u32 %v1510, 2147483648
      %v1602 = vor.u32 1.1754944e-38, %v1601
      %v1603 = vsel %vm1600, %v1602, %v1598
      %v1604 = vmul.f32 1.0, %v1603
      %v1605 = vrcp.pop %v1511
      %v1606 = vmul.f32 %v1511, %v1605
      %v1607 = vsub.f32 1.0, %v1606
      %v1608 = vmul.f32 %v1605, %v1607
      %v1609 = vadd.f32 %v1605, %v1608
      %vm1610 = vweird.f32 %v1511
      %vm1611 = vweird.f32 %v1605
      %vm1612 = vmor %vm1610, %vm1611
      %v1613 = vsel %vm1612, %v1605, %v1609
      %v1614 = vand.u32 2147483647, %v1511
      %vm1615 = vcmp.eq.f32.partialorder %v1614, 8.507059e+37
      %v1616 = vand.u32 %v1511, 2147483648
      %v1617 = vor.u32 1.1754944e-38, %v1616
      %v1618 = vsel %vm1615, %v1617, %v1613
      %v1619 = vmul.f32 1.0, %v1618
      %v1620 = vrcp.pop %v1512
      %v1621 = vmul.f32 %v1512, %v1620
      %v1622 = vsub.f32 1.0, %v1621
      %v1623 = vmul.f32 %v1620, %v1622
      %v1624 = vadd.f32 %v1620, %v1623
      %vm1625 = vweird.f32 %v1512
      %vm1626 = vweird.f32 %v1620
      %vm1627 = vmor %vm1625, %vm1626
      %v1628 = vsel %vm1627, %v1620, %v1624
      %v1629 = vand.u32 2147483647, %v1512
      %vm1630 = vcmp.eq.f32.partialorder %v1629, 8.507059e+37
      %v1631 = vand.u32 %v1512, 2147483648
      %v1632 = vor.u32 1.1754944e-38, %v1631
      %v1633 = vsel %vm1630, %v1632, %v1628
      %v1634 = vmul.f32 1.0, %v1633
      %v1635 = vrcp.pop %v1513
      %v1636 = vmul.f32 %v1513, %v1635
      %v1637 = vsub.f32 1.0, %v1636
      %v1638 = vmul.f32 %v1635, %v1637
      %v1639 = vadd.f32 %v1635, %v1638
      %vm1640 = vweird.f32 %v1513
      %vm1641 = vweird.f32 %v1635
      %vm1642 = vmor %vm1640, %vm1641
      %v1643 = vsel %vm1642, %v1635, %v1639
      %v1644 = vand.u32 2147483647, %v1513
      %vm1645 = vcmp.eq.f32.partialorder %v1644, 8.507059e+37
      %v1646 = vand.u32 %v1513, 2147483648
      %v1647 = vor.u32 1.1754944e-38, %v1646
      %v1648 = vsel %vm1645, %v1647, %v1643
      %v1649 = vmul.f32 1.0, %v1648
      %v1650 = vrcp.pop %v1514
      %v1651 = vmul.f32 %v1514, %v1650
      %v1652 = vsub.f32 1.0, %v1651
      %v1653 = vmul.f32 %v1650, %v1652
      %v1654 = vadd.f32 %v1650, %v1653
      %vm1655 = vweird.f32 %v1514
      %vm1656 = vweird.f32 %v1650
      %vm1657 = vmor %vm1655, %vm1656
      %v1658 = vsel %vm1657, %v1650, %v1654
      %v1659 = vand.u32 2147483647, %v1514
      %vm1660 = vcmp.eq.f32.partialorder %v1659, 8.507059e+37
      %v1661 = vand.u32 %v1514, 2147483648
      %v1662 = vor.u32 1.1754944e-38, %v1661
      %v1663 = vsel %vm1660, %v1662, %v1658
      %v1664 = vmul.f32 1.0, %v1663
      %v1665 = vrcp.pop %v1515
      %v1666 = vmul.f32 %v1515, %v1665
      %v1667 = vsub.f32 1.0, %v1666
      %v1668 = vmul.f32 %v1665, %v1667
      %v1669 = vadd.f32 %v1665, %v1668
      %vm1670 = vweird.f32 %v1515
      %vm1671 = vweird.f32 %v1665
      %vm1672 = vmor %vm1670, %vm1671
      %v1673 = vsel %vm1672, %v1665, %v1669
      %v1674 = vand.u32 2147483647, %v1515
      %vm1675 = vcmp.eq.f32.partialorder %v1674, 8.507059e+37
      %v1676 = vand.u32 %v1515, 2147483648
      %v1677 = vor.u32 1.1754944e-38, %v1676
      %v1678 = vsel %vm1675, %v1677, %v1673
      %v1679 = vmul.f32 1.0, %v1678
      %v1680 = vrcp.pop %v1516
      %v1681 = vmul.f32 %v1516, %v1680
      %v1682 = vsub.f32 1.0, %v1681
      %v1683 = vmul.f32 %v1680, %v1682
      %v1684 = vadd.f32 %v1680, %v1683
      %vm1685 = vweird.f32 %v1516
      %vm1686 = vweird.f32 %v1680
      %vm1687 = vmor %vm1685, %vm1686
      %v1688 = vsel %vm1687, %v1680, %v1684
      %v1689 = vand.u32 2147483647, %v1516
      %vm1690 = vcmp.eq.f32.partialorder %v1689, 8.507059e+37
      %v1691 = vand.u32 %v1516, 2147483648
      %v1692 = vor.u32 1.1754944e-38, %v1691
      %v1693 = vsel %vm1690, %v1692, %v1688
      %v1694 = vmul.f32 1.0, %v1693
      %v1695 = vrcp.pop %v1517
      %v1696 = vmul.f32 %v1517, %v1695
      %v1697 = vsub.f32 1.0, %v1696
      %v1698 = vmul.f32 %v1695, %v1697
      %v1699 = vadd.f32 %v1695, %v1698
      %vm1700 = vweird.f32 %v1517
      %vm1701 = vweird.f32 %v1695
      %vm1702 = vmor %vm1700, %vm1701
      %v1703 = vsel %vm1702, %v1695, %v1699
      %v1704 = vand.u32 2147483647, %v1517
      %vm1705 = vcmp.eq.f32.partialorder %v1704, 8.507059e+37
      %v1706 = vand.u32 %v1517, 2147483648
      %v1707 = vor.u32 1.1754944e-38, %v1706
      %v1708 = vsel %vm1705, %v1707, %v1703
      %v1709 = vmul.f32 1.0, %v1708
      %v1710 = vrcp.pop %v1518
      %v1711 = vmul.f32 %v1518, %v1710
      %v1712 = vsub.f32 1.0, %v1711
      %v1713 = vmul.f32 %v1710, %v1712
      %v1714 = vadd.f32 %v1710, %v1713
      %vm1715 = vweird.f32 %v1518
      %vm1716 = vweird.f32 %v1710
      %vm1717 = vmor %vm1715, %vm1716
      %v1718 = vsel %vm1717, %v1710, %v1714
      %v1719 = vand.u32 2147483647, %v1518
      %vm1720 = vcmp.eq.f32.partialorder %v1719, 8.507059e+37
      %v1721 = vand.u32 %v1518, 2147483648
      %v1722 = vor.u32 1.1754944e-38, %v1721
      %v1723 = vsel %vm1720, %v1722, %v1718
      %v1724 = vmul.f32 1.0, %v1723
      %v1725 = vrcp.pop %v1519
      %v1726 = vmul.f32 %v1519, %v1725
      %v1727 = vsub.f32 1.0, %v1726
      %v1728 = vmul.f32 %v1725, %v1727
      %v1729 = vadd.f32 %v1725, %v1728
      %vm1730 = vweird.f32 %v1519
      %vm1731 = vweird.f32 %v1725
      %vm1732 = vmor %vm1730, %vm1731
      %v1733 = vsel %vm1732, %v1725, %v1729
      %v1734 = vand.u32 2147483647, %v1519
      %vm1735 = vcmp.eq.f32.partialorder %v1734, 8.507059e+37
      %v1736 = vand.u32 %v1519, 2147483648
      %v1737 = vor.u32 1.1754944e-38, %v1736
      %v1738 = vsel %vm1735, %v1737, %v1733
      %v1739 = vmul.f32 1.0, %v1738
      %v1740 = vrcp.pop %v1520
      %v1741 = vmul.f32 %v1520, %v1740
      %v1742 = vsub.f32 1.0, %v1741
      %v1743 = vmul.f32 %v1740, %v1742
      %v1744 = vadd.f32 %v1740, %v1743
      %vm1745 = vweird.f32 %v1520
      %vm1746 = vweird.f32 %v1740
      %vm1747 = vmor %vm1745, %vm1746
      %v1748 = vsel %vm1747, %v1740, %v1744
      %v1749 = vand.u32 2147483647, %v1520
      %vm1750 = vcmp.eq.f32.partialorder %v1749, 8.507059e+37
      %v1751 = vand.u32 %v1520, 2147483648
      %v1752 = vor.u32 1.1754944e-38, %v1751
      %v1753 = vsel %vm1750, %v1752, %v1748
      %v1754 = vmul.f32 1.0, %v1753
      %v1755 = vrcp.pop %v1521
      %v1756 = vmul.f32 %v1521, %v1755
      %v1757 = vsub.f32 1.0, %v1756
      %v1758 = vmul.f32 %v1755, %v1757
      %v1759 = vadd.f32 %v1755, %v1758
      %vm1760 = vweird.f32 %v1521
      %vm1761 = vweird.f32 %v1755
      %vm1762 = vmor %vm1760, %vm1761
      %v1763 = vsel %vm1762, %v1755, %v1759
      %v1764 = vand.u32 2147483647, %v1521
      %vm1765 = vcmp.eq.f32.partialorder %v1764, 8.507059e+37
      %v1766 = vand.u32 %v1521, 2147483648
      %v1767 = vor.u32 1.1754944e-38, %v1766
      %v1768 = vsel %vm1765, %v1767, %v1763
      %v1769 = vmul.f32 1.0, %v1768
      %v1770 = vrcp.pop %v1522
      %v1771 = vmul.f32 %v1522, %v1770
      %v1772 = vsub.f32 1.0, %v1771
      %v1773 = vmul.f32 %v1770, %v1772
      %v1774 = vadd.f32 %v1770, %v1773
      %vm1775 = vweird.f32 %v1522
      %vm1776 = vweird.f32 %v1770
      %vm1777 = vmor %vm1775, %vm1776
      %v1778 = vsel %vm1777, %v1770, %v1774
      %v1779 = vand.u32 2147483647, %v1522
      %vm1780 = vcmp.eq.f32.partialorder %v1779, 8.507059e+37
      %v1781 = vand.u32 %v1522, 2147483648
      %v1782 = vor.u32 1.1754944e-38, %v1781
      %v1783 = vsel %vm1780, %v1782, %v1778
      %v1784 = vmul.f32 1.0, %v1783
      %v1785 = vrcp.pop %v1523
      %v1786 = vmul.f32 %v1523, %v1785
      %v1787 = vsub.f32 1.0, %v1786
      %v1788 = vmul.f32 %v1785, %v1787
      %v1789 = vadd.f32 %v1785, %v1788
      %vm1790 = vweird.f32 %v1523
      %vm1791 = vweird.f32 %v1785
      %vm1792 = vmor %vm1790, %vm1791
      %v1793 = vsel %vm1792, %v1785, %v1789
      %v1794 = vand.u32 2147483647, %v1523
      %vm1795 = vcmp.eq.f32.partialorder %v1794, 8.507059e+37
      %v1796 = vand.u32 %v1523, 2147483648
      %v1797 = vor.u32 1.1754944e-38, %v1796
      %v1798 = vsel %vm1795, %v1797, %v1793
      %v1799 = vmul.f32 1.0, %v1798
      %v1800 = vrcp.pop %v1524
      %v1801 = vmul.f32 %v1524, %v1800
      %v1802 = vsub.f32 1.0, %v1801
      %v1803 = vmul.f32 %v1800, %v1802
      %v1804 = vadd.f32 %v1800, %v1803
      %vm1805 = vweird.f32 %v1524
      %vm1806 = vweird.f32 %v1800
      %vm1807 = vmor %vm1805, %vm1806
      %v1808 = vsel %vm1807, %v1800, %v1804
      %v1809 = vand.u32 2147483647, %v1524
      %vm1810 = vcmp.eq.f32.partialorder %v1809, 8.507059e+37
      %v1811 = vand.u32 %v1524, 2147483648
      %v1812 = vor.u32 1.1754944e-38, %v1811
      %v1813 = vsel %vm1810, %v1812, %v1808
      %v1814 = vmul.f32 1.0, %v1813
      %v1815 = vrcp.pop %v1525
      %v1816 = vmul.f32 %v1525, %v1815
      %v1817 = vsub.f32 1.0, %v1816
      %v1818 = vmul.f32 %v1815, %v1817
      %v1819 = vadd.f32 %v1815, %v1818
      %vm1820 = vweird.f32 %v1525
      %vm1821 = vweird.f32 %v1815
      %vm1822 = vmor %vm1820, %vm1821
      %v1823 = vsel %vm1822, %v1815, %v1819
      %v1824 = vand.u32 2147483647, %v1525
      %vm1825 = vcmp.eq.f32.partialorder %v1824, 8.507059e+37
      %v1826 = vand.u32 %v1525, 2147483648
      %v1827 = vor.u32 1.1754944e-38, %v1826
      %v1828 = vsel %vm1825, %v1827, %v1823
      %v1829 = vmul.f32 1.0, %v1828
      %v1830 = vrcp.pop %v1526
      %v1831 = vmul.f32 %v1526, %v1830
      %v1832 = vsub.f32 1.0, %v1831
      %v1833 = vmul.f32 %v1830, %v1832
      %v1834 = vadd.f32 %v1830, %v1833
      %vm1835 = vweird.f32 %v1526
      %vm1836 = vweird.f32 %v1830
      %vm1837 = vmor %vm1835, %vm1836
      %v1838 = vsel %vm1837, %v1830, %v1834
      %v1839 = vand.u32 2147483647, %v1526
      %vm1840 = vcmp.eq.f32.partialorder %v1839, 8.507059e+37
      %v1841 = vand.u32 %v1526, 2147483648
      %v1842 = vor.u32 1.1754944e-38, %v1841
      %v1843 = vsel %vm1840, %v1842, %v1838
      %v1844 = vmul.f32 1.0, %v1843
      %v1845 = vrcp.pop %v1527
      %v1846 = vmul.f32 %v1527, %v1845
      %v1847 = vsub.f32 1.0, %v1846
      %v1848 = vmul.f32 %v1845, %v1847
      %v1849 = vadd.f32 %v1845, %v1848
      %vm1850 = vweird.f32 %v1527
      %vm1851 = vweird.f32 %v1845
      %vm1852 = vmor %vm1850, %vm1851
      %v1853 = vsel %vm1852, %v1845, %v1849
      %v1854 = vand.u32 2147483647, %v1527
      %vm1855 = vcmp.eq.f32.partialorder %v1854, 8.507059e+37
      %v1856 = vand.u32 %v1527, 2147483648
      %v1857 = vor.u32 1.1754944e-38, %v1856
      %v1858 = vsel %vm1855, %v1857, %v1853
      %v1859 = vmul.f32 1.0, %v1858
      %v1860 = vrcp.pop %v1528
      %v1861 = vmul.f32 %v1528, %v1860
      %v1862 = vsub.f32 1.0, %v1861
      %v1863 = vmul.f32 %v1860, %v1862
      %v1864 = vadd.f32 %v1860, %v1863
      %vm1865 = vweird.f32 %v1528
      %vm1866 = vweird.f32 %v1860
      %vm1867 = vmor %vm1865, %vm1866
      %v1868 = vsel %vm1867, %v1860, %v1864
      %v1869 = vand.u32 2147483647, %v1528
      %vm1870 = vcmp.eq.f32.partialorder %v1869, 8.507059e+37
      %v1871 = vand.u32 %v1528, 2147483648
      %v1872 = vor.u32 1.1754944e-38, %v1871
      %v1873 = vsel %vm1870, %v1872, %v1868
      %v1874 = vmul.f32 1.0, %v1873
      %v1875 = vrcp.pop %v1529
      %v1876 = vmul.f32 %v1529, %v1875
      %v1877 = vsub.f32 1.0, %v1876
      %v1878 = vmul.f32 %v1875, %v1877
      %v1879 = vadd.f32 %v1875, %v1878
      %vm1880 = vweird.f32 %v1529
      %vm1881 = vweird.f32 %v1875
      %vm1882 = vmor %vm1880, %vm1881
      %v1883 = vsel %vm1882, %v1875, %v1879
      %v1884 = vand.u32 2147483647, %v1529
      %vm1885 = vcmp.eq.f32.partialorder %v1884, 8.507059e+37
      %v1886 = vand.u32 %v1529, 2147483648
      %v1887 = vor.u32 1.1754944e-38, %v1886
      %v1888 = vsel %vm1885, %v1887, %v1883
      %v1889 = vmul.f32 1.0, %v1888
      %1891 = vset.pattern.permute.xlu0 0
      %1892 = vperm.xlu0 %1891, %v1544
      %v1893 = vpop.permute.xlu0 %1892
      %1896 = vset.pattern.permute.xlu0 0
      %1897 = vperm.xlu0 %1896, %v1559
      %v1898 = vpop.permute.xlu0 %1897
      %1901 = vset.pattern.permute.xlu0 0
      %1902 = vperm.xlu0 %1901, %v1574
      %v1903 = vpop.permute.xlu0 %1902
      %1906 = vset.pattern.permute.xlu0 0
      %1907 = vperm.xlu0 %1906, %v1589
      %v1908 = vpop.permute.xlu0 %1907
      %1911 = vset.pattern.permute.xlu0 0
      %1912 = vperm.xlu0 %1911, %v1604
      %v1913 = vpop.permute.xlu0 %1912
      %1916 = vset.pattern.permute.xlu0 0
      %1917 = vperm.xlu0 %1916, %v1619
      %v1918 = vpop.permute.xlu0 %1917
      %1921 = vset.pattern.permute.xlu0 0
      %1922 = vperm.xlu0 %1921, %v1634
      %v1923 = vpop.permute.xlu0 %1922
      %1926 = vset.pattern.permute.xlu0 0
      %1927 = vperm.xlu0 %1926, %v1649
      %v1928 = vpop.permute.xlu0 %1927
      %1931 = vset.pattern.permute.xlu0 0
      %1932 = vperm.xlu0 %1931, %v1664
      %v1933 = vpop.permute.xlu0 %1932
      %1936 = vset.pattern.permute.xlu0 0
      %1937 = vperm.xlu0 %1936, %v1679
      %v1938 = vpop.permute.xlu0 %1937
      %1941 = vset.pattern.permute.xlu0 0
      %1942 = vperm.xlu0 %1941, %v1694
      %v1943 = vpop.permute.xlu0 %1942
      %1946 = vset.pattern.permute.xlu0 0
      %1947 = vperm.xlu0 %1946, %v1709
      %v1948 = vpop.permute.xlu0 %1947
      %1951 = vset.pattern.permute.xlu0 0
      %1952 = vperm.xlu0 %1951, %v1724
      %v1953 = vpop.permute.xlu0 %1952
      %1956 = vset.pattern.permute.xlu0 0
      %1957 = vperm.xlu0 %1956, %v1739
      %v1958 = vpop.permute.xlu0 %1957
      %1961 = vset.pattern.permute.xlu0 0
      %1962 = vperm.xlu0 %1961, %v1754
      %v1963 = vpop.permute.xlu0 %1962
      %1966 = vset.pattern.permute.xlu0 0
      %1967 = vperm.xlu0 %1966, %v1769
      %v1968 = vpop.permute.xlu0 %1967
      %1971 = vset.pattern.permute.xlu0 0
      %1972 = vperm.xlu0 %1971, %v1784
      %v1973 = vpop.permute.xlu0 %1972
      %1976 = vset.pattern.permute.xlu0 0
      %1977 = vperm.xlu0 %1976, %v1799
      %v1978 = vpop.permute.xlu0 %1977
      %1981 = vset.pattern.permute.xlu0 0
      %1982 = vperm.xlu0 %1981, %v1814
      %v1983 = vpop.permute.xlu0 %1982
      %1986 = vset.pattern.permute.xlu0 0
      %1987 = vperm.xlu0 %1986, %v1829
      %v1988 = vpop.permute.xlu0 %1987
      %1991 = vset.pattern.permute.xlu0 0
      %1992 = vperm.xlu0 %1991, %v1844
      %v1993 = vpop.permute.xlu0 %1992
      %1996 = vset.pattern.permute.xlu0 0
      %1997 = vperm.xlu0 %1996, %v1859
      %v1998 = vpop.permute.xlu0 %1997
      %2001 = vset.pattern.permute.xlu0 0
      %2002 = vperm.xlu0 %2001, %v1874
      %v2003 = vpop.permute.xlu0 %2002
      %2006 = vset.pattern.permute.xlu0 0
      %2007 = vperm.xlu0 %2006, %v1889
      %v2008 = vpop.permute.xlu0 %2007
      %v2010 = vmul.f32 %v893, %v1893
      %v2011 = vmul.f32 %v894, %v1898
      %v2012 = vmul.f32 %v895, %v1903
      %v2013 = vmul.f32 %v896, %v1908
      %v2014 = vmul.f32 %v905, %v1913
      %v2015 = vmul.f32 %v906, %v1918
      %v2016 = vmul.f32 %v907, %v1923
      %v2017 = vmul.f32 %v908, %v1928
      %v2018 = vmul.f32 %v909, %v1933
      %v2019 = vmul.f32 %v910, %v1938
      %v2020 = vmul.f32 %v911, %v1943
      %v2021 = vmul.f32 %v912, %v1948
      %v2022 = vmul.f32 %v913, %v1953
      %v2023 = vmul.f32 %v914, %v1958
      %v2024 = vmul.f32 %v915, %v1963
      %v2025 = vmul.f32 %v916, %v1968
      %v2026 = vmul.f32 %v917, %v1973
      %v2027 = vmul.f32 %v918, %v1978
      %v2028 = vmul.f32 %v919, %v1983
      %v2029 = vmul.f32 %v920, %v1988
      %v2030 = vmul.f32 %v901, %v1993
      %v2031 = vmul.f32 %v902, %v1998
      %v2032 = vmul.f32 %v903, %v2003
      %v2033 = vmul.f32 %v904, %v2008
      %2034 = vrot.lane.b32.xlu0 %v856, 4
      %v2035 = vpop.permute.xlu0 %2034
      %2036 = vrot.lane.b32.xlu0 %v857, 4
      %v2037 = vpop.permute.xlu0 %2036
      %2038 = vrot.lane.b32.xlu0 %v858, 4
      %v2039 = vpop.permute.xlu0 %2038
      %2040 = vrot.lane.b32.xlu0 %v859, 4
      %v2041 = vpop.permute.xlu0 %2040
      %2042 = vrot.lane.b32.xlu0 %v872, 4
      %v2043 = vpop.permute.xlu0 %2042
      %2044 = vrot.lane.b32.xlu0 %v873, 4
      %v2045 = vpop.permute.xlu0 %2044
      %2046 = vrot.lane.b32.xlu0 %v874, 4
      %v2047 = vpop.permute.xlu0 %2046
      %2048 = vrot.lane.b32.xlu0 %v875, 4
      %v2049 = vpop.permute.xlu0 %2048
      %2050 = vrot.lane.b32.xlu0 %v876, 4
      %v2051 = vpop.permute.xlu0 %2050
      %2052 = vrot.lane.b32.xlu0 %v877, 4
      %v2053 = vpop.permute.xlu0 %2052
      %2054 = vrot.lane.b32.xlu0 %v878, 4
      %v2055 = vpop.permute.xlu0 %2054
      %2056 = vrot.lane.b32.xlu0 %v879, 4
      %v2057 = vpop.permute.xlu0 %2056
      %2058 = vrot.lane.b32.xlu0 %v880, 4
      %v2059 = vpop.permute.xlu0 %2058
      %2060 = vrot.lane.b32.xlu0 %v881, 4
      %v2061 = vpop.permute.xlu0 %2060
      %2062 = vrot.lane.b32.xlu0 %v882, 4
      %v2063 = vpop.permute.xlu0 %2062
      %2064 = vrot.lane.b32.xlu0 %v883, 4
      %v2065 = vpop.permute.xlu0 %2064
      %2066 = vrot.lane.b32.xlu0 %v884, 4
      %v2067 = vpop.permute.xlu0 %2066
      %2068 = vrot.lane.b32.xlu0 %v885, 4
      %v2069 = vpop.permute.xlu0 %2068
      %2070 = vrot.lane.b32.xlu0 %v886, 4
      %v2071 = vpop.permute.xlu0 %2070
      %2072 = vrot.lane.b32.xlu0 %v887, 4
      %v2073 = vpop.permute.xlu0 %2072
      %2074 = vrot.lane.b32.xlu0 %v868, 4
      %v2075 = vpop.permute.xlu0 %2074
      %2076 = vrot.lane.b32.xlu0 %v869, 4
      %v2077 = vpop.permute.xlu0 %2076
      %2078 = vrot.lane.b32.xlu0 %v870, 4
      %v2079 = vpop.permute.xlu0 %2078
      %2080 = vrot.lane.b32.xlu0 %v871, 4
      %v2081 = vpop.permute.xlu0 %2080
      %v2106 = vsel %vm923, %v2010, %v2035
      %v2107 = vsel %vm923, %v2011, %v2037
      %v2108 = vsel %vm923, %v2012, %v2039
      %v2109 = vsel %vm923, %v2013, %v2041
      %v2110 = vsel %vm923, %v2014, %v2043
      %v2111 = vsel %vm923, %v2015, %v2045
      %v2112 = vsel %vm923, %v2016, %v2047
      %v2113 = vsel %vm923, %v2017, %v2049
      %v2114 = vsel %vm923, %v2018, %v2051
      %v2115 = vsel %vm923, %v2019, %v2053
      %v2116 = vsel %vm923, %v2020, %v2055
      %v2117 = vsel %vm923, %v2021, %v2057
      %v2118 = vsel %vm923, %v2022, %v2059
      %v2119 = vsel %vm923, %v2023, %v2061
      %v2120 = vsel %vm923, %v2024, %v2063
      %v2121 = vsel %vm923, %v2025, %v2065
      %v2122 = vsel %vm923, %v2026, %v2067
      %v2123 = vsel %vm923, %v2027, %v2069
      %v2124 = vsel %vm923, %v2028, %v2071
      %v2125 = vsel %vm923, %v2029, %v2073
      %v2126 = vsel %vm923, %v2030, %v2075
      %v2127 = vsel %vm923, %v2031, %v2077
      %v2128 = vsel %vm923, %v2032, %v2079
      %v2129 = vsel %vm923, %v2033, %v2081
      %vm2130 = vcmask 57344
      %2131 = vst.msk [vmem:[#allocation2] sm:$0x1] %vm2130, 0.0
      %2132 = vst.msk [vmem:[#allocation2 + $0x18] sm:$0x1] %vm2130, 0.0
      %2133 = vst.msk [vmem:[#allocation2 + $0x30] sm:$0x1] %vm2130, 0.0
      %2134 = vst.msk [vmem:[#allocation2 + $0x48] sm:$0x1] %vm2130, 0.0
      %2135 = vst.msk [vmem:[#allocation2 + $0x60] sm:$0x1] %vm2130, 0.0
      %2136 = vst.msk [vmem:[#allocation2 + $0x78] sm:$0x1] %vm2130, 0.0
      %2137 = vst.msk [vmem:[#allocation2 + $0x90] sm:$0x1] %vm2130, 0.0
      %2138 = vst.msk [vmem:[#allocation2 + $0xa8] sm:$0x1] %vm2130, 0.0
      %2139 = vst.msk [vmem:[#allocation2 + $0xc0] sm:$0x1] %vm2130, 0.0
      %2140 = vst.msk [vmem:[#allocation2 + $0xd8] sm:$0x1] %vm2130, 0.0
      %2141 = vst.msk [vmem:[#allocation2 + $0xf0] sm:$0x1] %vm2130, 0.0
      %2142 = vst.msk [vmem:[#allocation2 + $0x108] sm:$0x1] %vm2130, 0.0
      %2143 = vst.msk [vmem:[#allocation2 + $0x11] sm:$0x1] %vm2130, 0.0
      %2144 = vst.msk [vmem:[#allocation2 + $0x29] sm:$0x1] %vm2130, 0.0
      %2145 = vst.msk [vmem:[#allocation2 + $0x41] sm:$0x1] %vm2130, 0.0
      %2146 = vst.msk [vmem:[#allocation2 + $0x59] sm:$0x1] %vm2130, 0.0
      %2147 = vst.msk [vmem:[#allocation2 + $0x71] sm:$0x1] %vm2130, 0.0
      %2148 = vst.msk [vmem:[#allocation2 + $0x89] sm:$0x1] %vm2130, 0.0
      %2149 = vst.msk [vmem:[#allocation2 + $0xa1] sm:$0x1] %vm2130, 0.0
      %2150 = vst.msk [vmem:[#allocation2 + $0xb9] sm:$0x1] %vm2130, 0.0
      %2151 = vst.msk [vmem:[#allocation2 + $0xd1] sm:$0x1] %vm2130, 0.0
      %2152 = vst.msk [vmem:[#allocation2 + $0xe9] sm:$0x1] %vm2130, 0.0
      %2153 = vst.msk [vmem:[#allocation2 + $0x101] sm:$0x1] %vm2130, 0.0
      %2154 = vst.msk [vmem:[#allocation2 + $0x119] sm:$0x1] %vm2130, 0.0
      %vm2155 = vcmask 64512
      %2156 = vst.msk [vmem:[#allocation2 + $0x1] sm:$0xff] %vm2155, %v2106
      %2157 = vst.msk [vmem:[#allocation2 + $0x9] sm:$0xff] %vm2155, %v2107
      %2158 = vst.msk [vmem:[#allocation2 + $0x19] sm:$0xff] %vm2155, %v2108
      %2159 = vst.msk [vmem:[#allocation2 + $0x21] sm:$0xff] %vm2155, %v2109
      %2160 = vst.msk [vmem:[#allocation2 + $0x31] sm:$0xff] %vm2155, %v2110
      %2161 = vst.msk [vmem:[#allocation2 + $0x39] sm:$0xff] %vm2155, %v2111
      %2162 = vst.msk [vmem:[#allocation2 + $0x49] sm:$0xff] %vm2155, %v2112
      %2163 = vst.msk [vmem:[#allocation2 + $0x51] sm:$0xff] %vm2155, %v2113
      %2164 = vst.msk [vmem:[#allocation2 + $0x61] sm:$0xff] %vm2155, %v2114
      %2165 = vst.msk [vmem:[#allocation2 + $0x69] sm:$0xff] %vm2155, %v2115
      %2166 = vst.msk [vmem:[#allocation2 + $0x79] sm:$0xff] %vm2155, %v2116
      %2167 = vst.msk [vmem:[#allocation2 + $0x81] sm:$0xff] %vm2155, %v2117
      %2168 = vst.msk [vmem:[#allocation2 + $0x91] sm:$0xff] %vm2155, %v2118
      %2169 = vst.msk [vmem:[#allocation2 + $0x99] sm:$0xff] %vm2155, %v2119
      %2170 = vst.msk [vmem:[#allocation2 + $0xa9] sm:$0xff] %vm2155, %v2120
      %2171 = vst.msk [vmem:[#allocation2 + $0xb1] sm:$0xff] %vm2155, %v2121
      %2172 = vst.msk [vmem:[#allocation2 + $0xc1] sm:$0xff] %vm2155, %v2122
      %2173 = vst.msk [vmem:[#allocation2 + $0xc9] sm:$0xff] %vm2155, %v2123
      %2174 = vst.msk [vmem:[#allocation2 + $0xd9] sm:$0xff] %vm2155, %v2124
      %2175 = vst.msk [vmem:[#allocation2 + $0xe1] sm:$0xff] %vm2155, %v2125
      %2176 = vst.msk [vmem:[#allocation2 + $0xf1] sm:$0xff] %vm2155, %v2126
      %2177 = vst.msk [vmem:[#allocation2 + $0xf9] sm:$0xff] %vm2155, %v2127
      %2178 = vst.msk [vmem:[#allocation2 + $0x109] sm:$0xff] %vm2155, %v2128
      %2179 = vst.msk [vmem:[#allocation2 + $0x111] sm:$0xff] %vm2155, %v2129
      %v2180 = vld [vmem:[#allocation2] sm:$0xff]
      %v2181 = vld [vmem:[#allocation2 + $0x8] sm:$0xff]
      %v2182 = vld [vmem:[#allocation2 + $0x18] sm:$0xff]
      %v2183 = vld [vmem:[#allocation2 + $0x20] sm:$0xff]
      %v2184 = vld [vmem:[#allocation2 + $0x30] sm:$0xff]
      %v2185 = vld [vmem:[#allocation2 + $0x38] sm:$0xff]
      %v2186 = vld [vmem:[#allocation2 + $0x48] sm:$0xff]
      %v2187 = vld [vmem:[#allocation2 + $0x50] sm:$0xff]
      %v2188 = vld [vmem:[#allocation2 + $0x60] sm:$0xff]
      %v2189 = vld [vmem:[#allocation2 + $0x68] sm:$0xff]
      %v2190 = vld [vmem:[#allocation2 + $0x78] sm:$0xff]
      %v2191 = vld [vmem:[#allocation2 + $0x80] sm:$0xff]
      %v2192 = vld [vmem:[#allocation2 + $0x90] sm:$0xff]
      %v2193 = vld [vmem:[#allocation2 + $0x98] sm:$0xff]
      %v2194 = vld [vmem:[#allocation2 + $0xa8] sm:$0xff]
      %v2195 = vld [vmem:[#allocation2 + $0xb0] sm:$0xff]
      %v2196 = vld [vmem:[#allocation2 + $0xc0] sm:$0xff]
      %v2197 = vld [vmem:[#allocation2 + $0xc8] sm:$0xff]
      %v2198 = vld [vmem:[#allocation2 + $0xd8] sm:$0xff]
      %v2199 = vld [vmem:[#allocation2 + $0xe0] sm:$0xff]
      %v2200 = vld [vmem:[%s11] sm:$0xff]
      %v2202 = vsel %vm2155, %v2180, 0
      %v2205 = vsel %vm2155, %v2181, 0
      %v2208 = vsel %vm2155, %v2182, 0
      %v2211 = vsel %vm2155, %v2183, 0
      %v2214 = vsel %vm2155, %v2184, 0
      %v2217 = vsel %vm2155, %v2185, 0
      %v2220 = vsel %vm2155, %v2186, 0
      %v2223 = vsel %vm2155, %v2187, 0
      %v2226 = vsel %vm2155, %v2188, 0
      %v2229 = vsel %vm2155, %v2189, 0
      %v2232 = vsel %vm2155, %v2190, 0
      %v2235 = vsel %vm2155, %v2191, 0
      %v2238 = vsel %vm2155, %v2192, 0
      %v2241 = vsel %vm2155, %v2193, 0
      %v2244 = vsel %vm2155, %v2194, 0
      %v2247 = vsel %vm2155, %v2195, 0
      %v2250 = vsel %vm2155, %v2196, 0
      %v2253 = vsel %vm2155, %v2197, 0
      %v2256 = vsel %vm2155, %v2198, 0
      %v2259 = vsel %vm2155, %v2199, 0
      %2261 = vmatpush.msra.mxu0 0.0
      %2262 = vmatpush.msra.mxu0 0.0
      %2263 = vmatpush.msra.mxu0 0.0
      %2264 = vmatpush.msra.mxu0 0.0
      %2265 = vmatpush.msra.mxu0 0.0
      %2266 = vmatpush.msra.mxu0 0.0
      %2267 = vmatpush.msra.mxu0 0.0
      %2268 = vmatpush.msra.mxu0 0.0
      %2269 = vmatpush.msra.mxu0 0.0
      %2270 = vmatpush.msra.mxu0 0.0
      %2271 = vmatpush.msra.mxu0 0.0
      %2272 = vmatpush.msra.mxu0 0.0
      %2273 = vmatpush.msra.mxu0 0.0
      %2274 = vmatpush.msra.mxu0 0.0
      %2275 = vmatpush.msra.mxu0 0.0
      %2276 = vmatpush.msra.mxu0 %v2200
      %2277 = vmatmul.f32.gmra.mxu0 %v2202
      %v2278 = vpop.f32.mrf.mxu0
      %v2279 = vadd.f32 0.0, %v2278
      %2280 = vmatmul.f32.gmra.mxu0 %v2205
      %v2281 = vpop.f32.mrf.mxu0
      %v2282 = vadd.f32 0.0, %v2281
      %2283 = vmatmul.f32.gmra.mxu0 %v2208
      %v2284 = vpop.f32.mrf.mxu0
      %v2285 = vadd.f32 0.0, %v2284
      %2286 = vmatmul.f32.gmra.mxu0 %v2211
      %v2287 = vpop.f32.mrf.mxu0
      %v2288 = vadd.f32 0.0, %v2287
      %2289 = vmatmul.f32.gmra.mxu0 %v2214
      %v2290 = vpop.f32.mrf.mxu0
      %v2291 = vadd.f32 0.0, %v2290
      %2292 = vmatmul.f32.gmra.mxu0 %v2217
      %v2293 = vpop.f32.mrf.mxu0
      %v2294 = vadd.f32 0.0, %v2293
      %2295 = vmatmul.f32.gmra.mxu0 %v2220
      %v2296 = vpop.f32.mrf.mxu0
      %v2297 = vadd.f32 0.0, %v2296
      %2298 = vmatmul.f32.gmra.mxu0 %v2223
      %v2299 = vpop.f32.mrf.mxu0
      %v2300 = vadd.f32 0.0, %v2299
      %2301 = vmatmul.f32.gmra.mxu0 %v2226
      %v2302 = vpop.f32.mrf.mxu0
      %v2303 = vadd.f32 0.0, %v2302
      %2304 = vmatmul.f32.gmra.mxu0 %v2229
      %v2305 = vpop.f32.mrf.mxu0
      %v2306 = vadd.f32 0.0, %v2305
      %2307 = vmatmul.f32.gmra.mxu0 %v2232
      %v2308 = vpop.f32.mrf.mxu0
      %v2309 = vadd.f32 0.0, %v2308
      %2310 = vmatmul.f32.gmra.mxu0 %v2235
      %v2311 = vpop.f32.mrf.mxu0
      %v2312 = vadd.f32 0.0, %v2311
      %2313 = vmatmul.f32.gmra.mxu0 %v2238
      %v2314 = vpop.f32.mrf.mxu0
      %v2315 = vadd.f32 0.0, %v2314
      %2316 = vmatmul.f32.gmra.mxu0 %v2241
      %v2317 = vpop.f32.mrf.mxu0
      %v2318 = vadd.f32 0.0, %v2317
      %2319 = vmatmul.f32.gmra.mxu0 %v2244
      %v2320 = vpop.f32.mrf.mxu0
      %v2321 = vadd.f32 0.0, %v2320
      %2322 = vmatmul.f32.gmra.mxu0 %v2247
      %v2323 = vpop.f32.mrf.mxu0
      %v2324 = vadd.f32 0.0, %v2323
      %2325 = vmatmul.f32.gmra.mxu0 %v2250
      %v2326 = vpop.f32.mrf.mxu0
      %v2327 = vadd.f32 0.0, %v2326
      %2328 = vmatmul.f32.gmra.mxu0 %v2253
      %v2329 = vpop.f32.mrf.mxu0
      %v2330 = vadd.f32 0.0, %v2329
      %2331 = vmatmul.f32.gmra.mxu0 %v2256
      %v2332 = vpop.f32.mrf.mxu0
      %v2333 = vadd.f32 0.0, %v2332
      %2334 = vmatmul.f32.gmra.mxu0 %v2259
      %v2335 = vpop.f32.mrf.mxu0
      %v2336 = vadd.f32 0.0, %v2335
      %2337 = vdwg.mxu0
      %2338 = vst.msk [vmem:[#allocation4] sm:$0xff] %vm923, %v2279
      %2339 = vst.msk [vmem:[#allocation4 + $0x8] sm:$0xff] %vm923, %v2282
      %2340 = vst.msk [vmem:[#allocation4 + $0x10] sm:$0xff] %vm923, %v2285
      %2341 = vst.msk [vmem:[#allocation4 + $0x18] sm:$0xff] %vm923, %v2288
      %2342 = vst.msk [vmem:[#allocation4 + $0x20] sm:$0xff] %vm923, %v2291
      %2343 = vst.msk [vmem:[#allocation4 + $0x28] sm:$0xff] %vm923, %v2294
      %2344 = vst.msk [vmem:[#allocation4 + $0x30] sm:$0xff] %vm923, %v2297
      %2345 = vst.msk [vmem:[#allocation4 + $0x38] sm:$0xff] %vm923, %v2300
      %2346 = vst.msk [vmem:[#allocation4 + $0x40] sm:$0xff] %vm923, %v2303
      %2347 = vst.msk [vmem:[#allocation4 + $0x48] sm:$0xff] %vm923, %v2306
      %2348 = vst.msk [vmem:[#allocation4 + $0x50] sm:$0xff] %vm923, %v2309
      %2349 = vst.msk [vmem:[#allocation4 + $0x58] sm:$0xff] %vm923, %v2312
      %2350 = vst.msk [vmem:[#allocation4 + $0x60] sm:$0xff] %vm923, %v2315
      %2351 = vst.msk [vmem:[#allocation4 + $0x68] sm:$0xff] %vm923, %v2318
      %2352 = vst.msk [vmem:[#allocation4 + $0x70] sm:$0xff] %vm923, %v2321
      %2353 = vst.msk [vmem:[#allocation4 + $0x78] sm:$0xff] %vm923, %v2324
      %2354 = vst.msk [vmem:[#allocation4 + $0x80] sm:$0xff] %vm923, %v2327
      %2355 = vst.msk [vmem:[#allocation4 + $0x88] sm:$0xff] %vm923, %v2330
      %2356 = vst.msk [vmem:[#allocation4 + $0x90] sm:$0xff] %vm923, %v2333
      %2357 = vst.msk [vmem:[#allocation4 + $0x98] sm:$0xff] %vm923, %v2336
      %v2358 = vld [vmem:[#allocation2 + $0x1] sm:$0xff]
      %v2359 = vld [vmem:[#allocation2 + $0x9] sm:$0xff]
      %v2360 = vld [vmem:[#allocation2 + $0x19] sm:$0xff]
      %v2361 = vld [vmem:[#allocation2 + $0x21] sm:$0xff]
      %v2362 = vld [vmem:[#allocation2 + $0x31] sm:$0xff]
      %v2363 = vld [vmem:[#allocation2 + $0x39] sm:$0xff]
      %v2364 = vld [vmem:[#allocation2 + $0x49] sm:$0xff]
      %v2365 = vld [vmem:[#allocation2 + $0x51] sm:$0xff]
      %v2366 = vld [vmem:[#allocation2 + $0x61] sm:$0xff]
      %v2367 = vld [vmem:[#allocation2 + $0x69] sm:$0xff]
      %v2368 = vld [vmem:[#allocation2 + $0x79] sm:$0xff]
      %v2369 = vld [vmem:[#allocation2 + $0x81] sm:$0xff]
      %v2370 = vld [vmem:[#allocation2 + $0x91] sm:$0xff]
      %v2371 = vld [vmem:[#allocation2 + $0x99] sm:$0xff]
      %v2372 = vld [vmem:[#allocation2 + $0xa9] sm:$0xff]
      %v2373 = vld [vmem:[#allocation2 + $0xb1] sm:$0xff]
      %v2374 = vld [vmem:[#allocation2 + $0xc1] sm:$0xff]
      %v2375 = vld [vmem:[#allocation2 + $0xc9] sm:$0xff]
      %v2376 = vld [vmem:[#allocation2 + $0xd9] sm:$0xff]
      %v2377 = vld [vmem:[#allocation2 + $0xe1] sm:$0xff]
      %s2378 = scalar_lea.vmem %s11, 8
      %v2379 = vld [vmem:[%s2378] sm:$0xff]
      %v2381 = vsel %vm2155, %v2358, 0
      %v2384 = vsel %vm2155, %v2359, 0
      %v2387 = vsel %vm2155, %v2360, 0
      %v2390 = vsel %vm2155, %v2361, 0
      %v2393 = vsel %vm2155, %v2362, 0
      %v2396 = vsel %vm2155, %v2363, 0
      %v2399 = vsel %vm2155, %v2364, 0
      %v2402 = vsel %vm2155, %v2365, 0
      %v2405 = vsel %vm2155, %v2366, 0
      %v2408 = vsel %vm2155, %v2367, 0
      %v2411 = vsel %vm2155, %v2368, 0
      %v2414 = vsel %vm2155, %v2369, 0
      %v2417 = vsel %vm2155, %v2370, 0
      %v2420 = vsel %vm2155, %v2371, 0
      %v2423 = vsel %vm2155, %v2372, 0
      %v2426 = vsel %vm2155, %v2373, 0
      %v2429 = vsel %vm2155, %v2374, 0
      %v2432 = vsel %vm2155, %v2375, 0
      %v2435 = vsel %vm2155, %v2376, 0
      %v2438 = vsel %vm2155, %v2377, 0
      %2440 = vmatpush.msra.mxu0 0.0
      %2441 = vmatpush.msra.mxu0 0.0
      %2442 = vmatpush.msra.mxu0 0.0
      %2443 = vmatpush.msra.mxu0 0.0
      %2444 = vmatpush.msra.mxu0 0.0
      %2445 = vmatpush.msra.mxu0 0.0
      %2446 = vmatpush.msra.mxu0 0.0
      %2447 = vmatpush.msra.mxu0 0.0
      %2448 = vmatpush.msra.mxu0 0.0
      %2449 = vmatpush.msra.mxu0 0.0
      %2450 = vmatpush.msra.mxu0 0.0
      %2451 = vmatpush.msra.mxu0 0.0
      %2452 = vmatpush.msra.mxu0 0.0
      %2453 = vmatpush.msra.mxu0 0.0
      %2454 = vmatpush.msra.mxu0 0.0
      %2455 = vmatpush.msra.mxu0 %v2379
      %2456 = vmatmul.f32.gmra.mxu0 %v2381
      %v2457 = vpop.f32.mrf.mxu0
      %v2458 = vadd.f32 0.0, %v2457
      %2459 = vmatmul.f32.gmra.mxu0 %v2384
      %v2460 = vpop.f32.mrf.mxu0
      %v2461 = vadd.f32 0.0, %v2460
      %2462 = vmatmul.f32.gmra.mxu0 %v2387
      %v2463 = vpop.f32.mrf.mxu0
      %v2464 = vadd.f32 0.0, %v2463
      %2465 = vmatmul.f32.gmra.mxu0 %v2390
      %v2466 = vpop.f32.mrf.mxu0
      %v2467 = vadd.f32 0.0, %v2466
      %2468 = vmatmul.f32.gmra.mxu0 %v2393
      %v2469 = vpop.f32.mrf.mxu0
      %v2470 = vadd.f32 0.0, %v2469
      %2471 = vmatmul.f32.gmra.mxu0 %v2396
      %v2472 = vpop.f32.mrf.mxu0
      %v2473 = vadd.f32 0.0, %v2472
      %2474 = vmatmul.f32.gmra.mxu0 %v2399
      %v2475 = vpop.f32.mrf.mxu0
      %v2476 = vadd.f32 0.0, %v2475
      %2477 = vmatmul.f32.gmra.mxu0 %v2402
      %v2478 = vpop.f32.mrf.mxu0
      %v2479 = vadd.f32 0.0, %v2478
      %2480 = vmatmul.f32.gmra.mxu0 %v2405
      %v2481 = vpop.f32.mrf.mxu0
      %v2482 = vadd.f32 0.0, %v2481
      %2483 = vmatmul.f32.gmra.mxu0 %v2408
      %v2484 = vpop.f32.mrf.mxu0
      %v2485 = vadd.f32 0.0, %v2484
      %2486 = vmatmul.f32.gmra.mxu0 %v2411
      %v2487 = vpop.f32.mrf.mxu0
      %v2488 = vadd.f32 0.0, %v2487
      %2489 = vmatmul.f32.gmra.mxu0 %v2414
      %v2490 = vpop.f32.mrf.mxu0
      %v2491 = vadd.f32 0.0, %v2490
      %2492 = vmatmul.f32.gmra.mxu0 %v2417
      %v2493 = vpop.f32.mrf.mxu0
      %v2494 = vadd.f32 0.0, %v2493
      %2495 = vmatmul.f32.gmra.mxu0 %v2420
      %v2496 = vpop.f32.mrf.mxu0
      %v2497 = vadd.f32 0.0, %v2496
      %2498 = vmatmul.f32.gmra.mxu0 %v2423
      %v2499 = vpop.f32.mrf.mxu0
      %v2500 = vadd.f32 0.0, %v2499
      %2501 = vmatmul.f32.gmra.mxu0 %v2426
      %v2502 = vpop.f32.mrf.mxu0
      %v2503 = vadd.f32 0.0, %v2502
      %2504 = vmatmul.f32.gmra.mxu0 %v2429
      %v2505 = vpop.f32.mrf.mxu0
      %v2506 = vadd.f32 0.0, %v2505
      %2507 = vmatmul.f32.gmra.mxu0 %v2432
      %v2508 = vpop.f32.mrf.mxu0
      %v2509 = vadd.f32 0.0, %v2508
      %2510 = vmatmul.f32.gmra.mxu0 %v2435
      %v2511 = vpop.f32.mrf.mxu0
      %v2512 = vadd.f32 0.0, %v2511
      %2513 = vmatmul.f32.gmra.mxu0 %v2438
      %v2514 = vpop.f32.mrf.mxu0
      %v2515 = vadd.f32 0.0, %v2514
      %2516 = vdwg.mxu0
      %v2517 = vld [vmem:[#allocation4] sm:$0xff]
      %v2518 = vld [vmem:[#allocation4 + $0x8] sm:$0xff]
      %v2519 = vld [vmem:[#allocation4 + $0x10] sm:$0xff]
      %v2520 = vld [vmem:[#allocation4 + $0x18] sm:$0xff]
      %v2521 = vld [vmem:[#allocation4 + $0x20] sm:$0xff]
      %v2522 = vld [vmem:[#allocation4 + $0x28] sm:$0xff]
      %v2523 = vld [vmem:[#allocation4 + $0x30] sm:$0xff]
      %v2524 = vld [vmem:[#allocation4 + $0x38] sm:$0xff]
      %v2525 = vld [vmem:[#allocation4 + $0x40] sm:$0xff]
      %v2526 = vld [vmem:[#allocation4 + $0x48] sm:$0xff]
      %v2527 = vld [vmem:[#allocation4 + $0x50] sm:$0xff]
      %v2528 = vld [vmem:[#allocation4 + $0x58] sm:$0xff]
      %v2529 = vld [vmem:[#allocation4 + $0x60] sm:$0xff]
      %v2530 = vld [vmem:[#allocation4 + $0x68] sm:$0xff]
      %v2531 = vld [vmem:[#allocation4 + $0x70] sm:$0xff]
      %v2532 = vld [vmem:[#allocation4 + $0x78] sm:$0xff]
      %v2533 = vld [vmem:[#allocation4 + $0x80] sm:$0xff]
      %v2534 = vld [vmem:[#allocation4 + $0x88] sm:$0xff]
      %v2535 = vld [vmem:[#allocation4 + $0x90] sm:$0xff]
      %v2536 = vld [vmem:[#allocation4 + $0x98] sm:$0xff]
      %v2537 = vadd.f32 %v2517, %v2458
      %v2538 = vadd.f32 %v2518, %v2461
      %v2539 = vadd.f32 %v2519, %v2464
      %v2540 = vadd.f32 %v2520, %v2467
      %v2541 = vadd.f32 %v2521, %v2470
      %v2542 = vadd.f32 %v2522, %v2473
      %v2543 = vadd.f32 %v2523, %v2476
      %v2544 = vadd.f32 %v2524, %v2479
      %v2545 = vadd.f32 %v2525, %v2482
      %v2546 = vadd.f32 %v2526, %v2485
      %v2547 = vadd.f32 %v2527, %v2488
      %v2548 = vadd.f32 %v2528, %v2491
      %v2549 = vadd.f32 %v2529, %v2494
      %v2550 = vadd.f32 %v2530, %v2497
      %v2551 = vadd.f32 %v2531, %v2500
      %v2552 = vadd.f32 %v2532, %v2503
      %v2553 = vadd.f32 %v2533, %v2506
      %v2554 = vadd.f32 %v2534, %v2509
      %v2555 = vadd.f32 %v2535, %v2512
      %v2556 = vadd.f32 %v2536, %v2515
      %2557 = vst.msk [vmem:[#allocation4] sm:$0xff] %vm923, %v2537
      %2558 = vst.msk [vmem:[#allocation4 + $0x8] sm:$0xff] %vm923, %v2538
      %2559 = vst.msk [vmem:[#allocation4 + $0x10] sm:$0xff] %vm923, %v2539
      %2560 = vst.msk [vmem:[#allocation4 + $0x18] sm:$0xff] %vm923, %v2540
      %2561 = vst.msk [vmem:[#allocation4 + $0x20] sm:$0xff] %vm923, %v2541
      %2562 = vst.msk [vmem:[#allocation4 + $0x28] sm:$0xff] %vm923, %v2542
      %2563 = vst.msk [vmem:[#allocation4 + $0x30] sm:$0xff] %vm923, %v2543
      %2564 = vst.msk [vmem:[#allocation4 + $0x38] sm:$0xff] %vm923, %v2544
      %2565 = vst.msk [vmem:[#allocation4 + $0x40] sm:$0xff] %vm923, %v2545
      %2566 = vst.msk [vmem:[#allocation4 + $0x48] sm:$0xff] %vm923, %v2546
      %2567 = vst.msk [vmem:[#allocation4 + $0x50] sm:$0xff] %vm923, %v2547
      %2568 = vst.msk [vmem:[#allocation4 + $0x58] sm:$0xff] %vm923, %v2548
      %2569 = vst.msk [vmem:[#allocation4 + $0x60] sm:$0xff] %vm923, %v2549
      %2570 = vst.msk [vmem:[#allocation4 + $0x68] sm:$0xff] %vm923, %v2550
      %2571 = vst.msk [vmem:[#allocation4 + $0x70] sm:$0xff] %vm923, %v2551
      %2572 = vst.msk [vmem:[#allocation4 + $0x78] sm:$0xff] %vm923, %v2552
      %2573 = vst.msk [vmem:[#allocation4 + $0x80] sm:$0xff] %vm923, %v2553
      %2574 = vst.msk [vmem:[#allocation4 + $0x88] sm:$0xff] %vm923, %v2554
      %2575 = vst.msk [vmem:[#allocation4 + $0x90] sm:$0xff] %vm923, %v2555
      %2576 = vst.msk [vmem:[#allocation4 + $0x98] sm:$0xff] %vm923, %v2556
      %v2577 = vld [vmem:[#allocation2 + $0x2] sm:$0xff]
      %v2578 = vld [vmem:[#allocation2 + $0xa] sm:$0xff]
      %v2579 = vld [vmem:[#allocation2 + $0x1a] sm:$0xff]
      %v2580 = vld [vmem:[#allocation2 + $0x22] sm:$0xff]
      %v2581 = vld [vmem:[#allocation2 + $0x32] sm:$0xff]
      %v2582 = vld [vmem:[#allocation2 + $0x3a] sm:$0xff]
      %v2583 = vld [vmem:[#allocation2 + $0x4a] sm:$0xff]
      %v2584 = vld [vmem:[#allocation2 + $0x52] sm:$0xff]
      %v2585 = vld [vmem:[#allocation2 + $0x62] sm:$0xff]
      %v2586 = vld [vmem:[#allocation2 + $0x6a] sm:$0xff]
      %v2587 = vld [vmem:[#allocation2 + $0x7a] sm:$0xff]
      %v2588 = vld [vmem:[#allocation2 + $0x82] sm:$0xff]
      %v2589 = vld [vmem:[#allocation2 + $0x92] sm:$0xff]
      %v2590 = vld [vmem:[#allocation2 + $0x9a] sm:$0xff]
      %v2591 = vld [vmem:[#allocation2 + $0xaa] sm:$0xff]
      %v2592 = vld [vmem:[#allocation2 + $0xb2] sm:$0xff]
      %v2593 = vld [vmem:[#allocation2 + $0xc2] sm:$0xff]
      %v2594 = vld [vmem:[#allocation2 + $0xca] sm:$0xff]
      %v2595 = vld [vmem:[#allocation2 + $0xda] sm:$0xff]
      %v2596 = vld [vmem:[#allocation2 + $0xe2] sm:$0xff]
      %s2597 = scalar_lea.vmem %s11, 16
      %v2598 = vld [vmem:[%s2597] sm:$0xff]
      %v2600 = vsel %vm2155, %v2577, 0
      %v2603 = vsel %vm2155, %v2578, 0
      %v2606 = vsel %vm2155, %v2579, 0
      %v2609 = vsel %vm2155, %v2580, 0
      %v2612 = vsel %vm2155, %v2581, 0
      %v2615 = vsel %vm2155, %v2582, 0
      %v2618 = vsel %vm2155, %v2583, 0
      %v2621 = vsel %vm2155, %v2584, 0
      %v2624 = vsel %vm2155, %v2585, 0
      %v2627 = vsel %vm2155, %v2586, 0
      %v2630 = vsel %vm2155, %v2587, 0
      %v2633 = vsel %vm2155, %v2588, 0
      %v2636 = vsel %vm2155, %v2589, 0
      %v2639 = vsel %vm2155, %v2590, 0
      %v2642 = vsel %vm2155, %v2591, 0
      %v2645 = vsel %vm2155, %v2592, 0
      %v2648 = vsel %vm2155, %v2593, 0
      %v2651 = vsel %vm2155, %v2594, 0
      %v2654 = vsel %vm2155, %v2595, 0
      %v2657 = vsel %vm2155, %v2596, 0
      %2659 = vmatpush.msra.mxu0 0.0
      %2660 = vmatpush.msra.mxu0 0.0
      %2661 = vmatpush.msra.mxu0 0.0
      %2662 = vmatpush.msra.mxu0 0.0
      %2663 = vmatpush.msra.mxu0 0.0
      %2664 = vmatpush.msra.mxu0 0.0
      %2665 = vmatpush.msra.mxu0 0.0
      %2666 = vmatpush.msra.mxu0 0.0
      %2667 = vmatpush.msra.mxu0 0.0
      %2668 = vmatpush.msra.mxu0 0.0
      %2669 = vmatpush.msra.mxu0 0.0
      %2670 = vmatpush.msra.mxu0 0.0
      %2671 = vmatpush.msra.mxu0 0.0
      %2672 = vmatpush.msra.mxu0 0.0
      %2673 = vmatpush.msra.mxu0 0.0
      %2674 = vmatpush.msra.mxu0 %v2598
      %2675 = vmatmul.f32.gmra.mxu0 %v2600
      %v2676 = vpop.f32.mrf.mxu0
      %v2677 = vadd.f32 0.0, %v2676
      %2678 = vmatmul.f32.gmra.mxu0 %v2603
      %v2679 = vpop.f32.mrf.mxu0
      %v2680 = vadd.f32 0.0, %v2679
      %2681 = vmatmul.f32.gmra.mxu0 %v2606
      %v2682 = vpop.f32.mrf.mxu0
      %v2683 = vadd.f32 0.0, %v2682
      %2684 = vmatmul.f32.gmra.mxu0 %v2609
      %v2685 = vpop.f32.mrf.mxu0
      %v2686 = vadd.f32 0.0, %v2685
      %2687 = vmatmul.f32.gmra.mxu0 %v2612
      %v2688 = vpop.f32.mrf.mxu0
      %v2689 = vadd.f32 0.0, %v2688
      %2690 = vmatmul.f32.gmra.mxu0 %v2615
      %v2691 = vpop.f32.mrf.mxu0
      %v2692 = vadd.f32 0.0, %v2691
      %2693 = vmatmul.f32.gmra.mxu0 %v2618
      %v2694 = vpop.f32.mrf.mxu0
      %v2695 = vadd.f32 0.0, %v2694
      %2696 = vmatmul.f32.gmra.mxu0 %v2621
      %v2697 = vpop.f32.mrf.mxu0
      %v2698 = vadd.f32 0.0, %v2697
      %2699 = vmatmul.f32.gmra.mxu0 %v2624
      %v2700 = vpop.f32.mrf.mxu0
      %v2701 = vadd.f32 0.0, %v2700
      %2702 = vmatmul.f32.gmra.mxu0 %v2627
      %v2703 = vpop.f32.mrf.mxu0
      %v2704 = vadd.f32 0.0, %v2703
      %2705 = vmatmul.f32.gmra.mxu0 %v2630
      %v2706 = vpop.f32.mrf.mxu0
      %v2707 = vadd.f32 0.0, %v2706
      %2708 = vmatmul.f32.gmra.mxu0 %v2633
      %v2709 = vpop.f32.mrf.mxu0
      %v2710 = vadd.f32 0.0, %v2709
      %2711 = vmatmul.f32.gmra.mxu0 %v2636
      %v2712 = vpop.f32.mrf.mxu0
      %v2713 = vadd.f32 0.0, %v2712
      %2714 = vmatmul.f32.gmra.mxu0 %v2639
      %v2715 = vpop.f32.mrf.mxu0
      %v2716 = vadd.f32 0.0, %v2715
      %2717 = vmatmul.f32.gmra.mxu0 %v2642
      %v2718 = vpop.f32.mrf.mxu0
      %v2719 = vadd.f32 0.0, %v2718
      %2720 = vmatmul.f32.gmra.mxu0 %v2645
      %v2721 = vpop.f32.mrf.mxu0
      %v2722 = vadd.f32 0.0, %v2721
      %2723 = vmatmul.f32.gmra.mxu0 %v2648
      %v2724 = vpop.f32.mrf.mxu0
      %v2725 = vadd.f32 0.0, %v2724
      %2726 = vmatmul.f32.gmra.mxu0 %v2651
      %v2727 = vpop.f32.mrf.mxu0
      %v2728 = vadd.f32 0.0, %v2727
      %2729 = vmatmul.f32.gmra.mxu0 %v2654
      %v2730 = vpop.f32.mrf.mxu0
      %v2731 = vadd.f32 0.0, %v2730
      %2732 = vmatmul.f32.gmra.mxu0 %v2657
      %v2733 = vpop.f32.mrf.mxu0
      %v2734 = vadd.f32 0.0, %v2733
      %2735 = vdwg.mxu0
      %v2736 = vld [vmem:[#allocation4] sm:$0xff]
      %v2737 = vld [vmem:[#allocation4 + $0x8] sm:$0xff]
      %v2738 = vld [vmem:[#allocation4 + $0x10] sm:$0xff]
      %v2739 = vld [vmem:[#allocation4 + $0x18] sm:$0xff]
      %v2740 = vld [vmem:[#allocation4 + $0x20] sm:$0xff]
      %v2741 = vld [vmem:[#allocation4 + $0x28] sm:$0xff]
      %v2742 = vld [vmem:[#allocation4 + $0x30] sm:$0xff]
      %v2743 = vld [vmem:[#allocation4 + $0x38] sm:$0xff]
      %v2744 = vld [vmem:[#allocation4 + $0x40] sm:$0xff]
      %v2745 = vld [vmem:[#allocation4 + $0x48] sm:$0xff]
      %v2746 = vld [vmem:[#allocation4 + $0x50] sm:$0xff]
      %v2747 = vld [vmem:[#allocation4 + $0x58] sm:$0xff]
      %v2748 = vld [vmem:[#allocation4 + $0x60] sm:$0xff]
      %v2749 = vld [vmem:[#allocation4 + $0x68] sm:$0xff]
      %v2750 = vld [vmem:[#allocation4 + $0x70] sm:$0xff]
      %v2751 = vld [vmem:[#allocation4 + $0x78] sm:$0xff]
      %v2752 = vld [vmem:[#allocation4 + $0x80] sm:$0xff]
      %v2753 = vld [vmem:[#allocation4 + $0x88] sm:$0xff]
      %v2754 = vld [vmem:[#allocation4 + $0x90] sm:$0xff]
      %v2755 = vld [vmem:[#allocation4 + $0x98] sm:$0xff]
      %v2756 = vadd.f32 %v2736, %v2677
      %v2757 = vadd.f32 %v2737, %v2680
      %v2758 = vadd.f32 %v2738, %v2683
      %v2759 = vadd.f32 %v2739, %v2686
      %v2760 = vadd.f32 %v2740, %v2689
      %v2761 = vadd.f32 %v2741, %v2692
      %v2762 = vadd.f32 %v2742, %v2695
      %v2763 = vadd.f32 %v2743, %v2698
      %v2764 = vadd.f32 %v2744, %v2701
      %v2765 = vadd.f32 %v2745, %v2704
      %v2766 = vadd.f32 %v2746, %v2707
      %v2767 = vadd.f32 %v2747, %v2710
      %v2768 = vadd.f32 %v2748, %v2713
      %v2769 = vadd.f32 %v2749, %v2716
      %v2770 = vadd.f32 %v2750, %v2719
      %v2771 = vadd.f32 %v2751, %v2722
      %v2772 = vadd.f32 %v2752, %v2725
      %v2773 = vadd.f32 %v2753, %v2728
      %v2774 = vadd.f32 %v2754, %v2731
      %v2775 = vadd.f32 %v2755, %v2734
      %2776 = vst.msk [vmem:[#allocation4] sm:$0xff] %vm923, %v2756
      %2777 = vst.msk [vmem:[#allocation4 + $0x8] sm:$0xff] %vm923, %v2757
      %2778 = vst.msk [vmem:[#allocation4 + $0x10] sm:$0xff] %vm923, %v2758
      %2779 = vst.msk [vmem:[#allocation4 + $0x18] sm:$0xff] %vm923, %v2759
      %2780 = vst.msk [vmem:[#allocation4 + $0x20] sm:$0xff] %vm923, %v2760
      %2781 = vst.msk [vmem:[#allocation4 + $0x28] sm:$0xff] %vm923, %v2761
      %2782 = vst.msk [vmem:[#allocation4 + $0x30] sm:$0xff] %vm923, %v2762
      %2783 = vst.msk [vmem:[#allocation4 + $0x38] sm:$0xff] %vm923, %v2763
      %2784 = vst.msk [vmem:[#allocation4 + $0x40] sm:$0xff] %vm923, %v2764
      %2785 = vst.msk [vmem:[#allocation4 + $0x48] sm:$0xff] %vm923, %v2765
      %2786 = vst.msk [vmem:[#allocation4 + $0x50] sm:$0xff] %vm923, %v2766
      %2787 = vst.msk [vmem:[#allocation4 + $0x58] sm:$0xff] %vm923, %v2767
      %2788 = vst.msk [vmem:[#allocation4 + $0x60] sm:$0xff] %vm923, %v2768
      %2789 = vst.msk [vmem:[#allocation4 + $0x68] sm:$0xff] %vm923, %v2769
      %2790 = vst.msk [vmem:[#allocation4 + $0x70] sm:$0xff] %vm923, %v2770
      %2791 = vst.msk [vmem:[#allocation4 + $0x78] sm:$0xff] %vm923, %v2771
      %2792 = vst.msk [vmem:[#allocation4 + $0x80] sm:$0xff] %vm923, %v2772
      %2793 = vst.msk [vmem:[#allocation4 + $0x88] sm:$0xff] %vm923, %v2773
      %2794 = vst.msk [vmem:[#allocation4 + $0x90] sm:$0xff] %vm923, %v2774
      %2795 = vst.msk [vmem:[#allocation4 + $0x98] sm:$0xff] %vm923, %v2775
      %s2796 = scalar_lea.vmem [#allocation2], 24
      %v2797 = vld [vmem:[%s2796] sm:$0xff]
      %v2798 = vld [vmem:[%s2796 + $0x8] sm:$0xff]
      %v2799 = vld [vmem:[%s2796 + $0x18] sm:$0xff]
      %v2800 = vld [vmem:[%s2796 + $0x20] sm:$0xff]
      %v2801 = vld [vmem:[%s2796 + $0x30] sm:$0xff]
      %v2802 = vld [vmem:[%s2796 + $0x38] sm:$0xff]
      %v2803 = vld [vmem:[%s2796 + $0x48] sm:$0xff]
      %v2804 = vld [vmem:[%s2796 + $0x50] sm:$0xff]
      %v2805 = vld [vmem:[%s2796 + $0x60] sm:$0xff]
      %v2806 = vld [vmem:[%s2796 + $0x68] sm:$0xff]
      %v2807 = vld [vmem:[%s2796 + $0x78] sm:$0xff]
      %v2808 = vld [vmem:[%s2796 + $0x80] sm:$0xff]
      %v2809 = vld [vmem:[%s2796 + $0x90] sm:$0xff]
      %v2810 = vld [vmem:[%s2796 + $0x98] sm:$0xff]
      %v2811 = vld [vmem:[%s2796 + $0xa8] sm:$0xff]
      %v2812 = vld [vmem:[%s2796 + $0xb0] sm:$0xff]
      %v2813 = vld [vmem:[%s2796 + $0xc0] sm:$0xff]
      %v2814 = vld [vmem:[%s2796 + $0xc8] sm:$0xff]
      %v2815 = vld [vmem:[%s2796 + $0xd8] sm:$0xff]
      %v2816 = vld [vmem:[%s2796 + $0xe0] sm:$0xff]
      %s2817 = scalar_lea.vmem %s11, 24
      %v2818 = vld [vmem:[%s2817] sm:$0xff]
      %v2820 = vsel %vm2155, %v2797, 0
      %v2823 = vsel %vm2155, %v2798, 0
      %v2826 = vsel %vm2155, %v2799, 0
      %v2829 = vsel %vm2155, %v2800, 0
      %v2832 = vsel %vm2155, %v2801, 0
      %v2835 = vsel %vm2155, %v2802, 0
      %v2838 = vsel %vm2155, %v2803, 0
      %v2841 = vsel %vm2155, %v2804, 0
      %v2844 = vsel %vm2155, %v2805, 0
      %v2847 = vsel %vm2155, %v2806, 0
      %v2850 = vsel %vm2155, %v2807, 0
      %v2853 = vsel %vm2155, %v2808, 0
      %v2856 = vsel %vm2155, %v2809, 0
      %v2859 = vsel %vm2155, %v2810, 0
      %v2862 = vsel %vm2155, %v2811, 0
      %v2865 = vsel %vm2155, %v2812, 0
      %v2868 = vsel %vm2155, %v2813, 0
      %v2871 = vsel %vm2155, %v2814, 0
      %v2874 = vsel %vm2155, %v2815, 0
      %v2877 = vsel %vm2155, %v2816, 0
      %2879 = vmatpush.msra.mxu0 0.0
      %2880 = vmatpush.msra.mxu0 0.0
      %2881 = vmatpush.msra.mxu0 0.0
      %2882 = vmatpush.msra.mxu0 0.0
      %2883 = vmatpush.msra.mxu0 0.0
      %2884 = vmatpush.msra.mxu0 0.0
      %2885 = vmatpush.msra.mxu0 0.0
      %2886 = vmatpush.msra.mxu0 0.0
      %2887 = vmatpush.msra.mxu0 0.0
      %2888 = vmatpush.msra.mxu0 0.0
      %2889 = vmatpush.msra.mxu0 0.0
      %2890 = vmatpush.msra.mxu0 0.0
      %2891 = vmatpush.msra.mxu0 0.0
      %2892 = vmatpush.msra.mxu0 0.0
      %2893 = vmatpush.msra.mxu0 0.0
      %2894 = vmatpush.msra.mxu0 %v2818
      %2895 = vmatmul.f32.gmra.mxu0 %v2820
      %v2896 = vpop.f32.mrf.mxu0
      %v2897 = vadd.f32 0.0, %v2896
      %2898 = vmatmul.f32.gmra.mxu0 %v2823
      %v2899 = vpop.f32.mrf.mxu0
      %v2900 = vadd.f32 0.0, %v2899
      %2901 = vmatmul.f32.gmra.mxu0 %v2826
      %v2902 = vpop.f32.mrf.mxu0
      %v2903 = vadd.f32 0.0, %v2902
      %2904 = vmatmul.f32.gmra.mxu0 %v2829
      %v2905 = vpop.f32.mrf.mxu0
      %v2906 = vadd.f32 0.0, %v2905
      %2907 = vmatmul.f32.gmra.mxu0 %v2832
      %v2908 = vpop.f32.mrf.mxu0
      %v2909 = vadd.f32 0.0, %v2908
      %2910 = vmatmul.f32.gmra.mxu0 %v2835
      %v2911 = vpop.f32.mrf.mxu0
      %v2912 = vadd.f32 0.0, %v2911
      %2913 = vmatmul.f32.gmra.mxu0 %v2838
      %v2914 = vpop.f32.mrf.mxu0
      %v2915 = vadd.f32 0.0, %v2914
      %2916 = vmatmul.f32.gmra.mxu0 %v2841
      %v2917 = vpop.f32.mrf.mxu0
      %v2918 = vadd.f32 0.0, %v2917
      %2919 = vmatmul.f32.gmra.mxu0 %v2844
      %v2920 = vpop.f32.mrf.mxu0
      %v2921 = vadd.f32 0.0, %v2920
      %2922 = vmatmul.f32.gmra.mxu0 %v2847
      %v2923 = vpop.f32.mrf.mxu0
      %v2924 = vadd.f32 0.0, %v2923
      %2925 = vmatmul.f32.gmra.mxu0 %v2850
      %v2926 = vpop.f32.mrf.mxu0
      %v2927 = vadd.f32 0.0, %v2926
      %2928 = vmatmul.f32.gmra.mxu0 %v2853
      %v2929 = vpop.f32.mrf.mxu0
      %v2930 = vadd.f32 0.0, %v2929
      %2931 = vmatmul.f32.gmra.mxu0 %v2856
      %v2932 = vpop.f32.mrf.mxu0
      %v2933 = vadd.f32 0.0, %v2932
      %2934 = vmatmul.f32.gmra.mxu0 %v2859
      %v2935 = vpop.f32.mrf.mxu0
      %v2936 = vadd.f32 0.0, %v2935
      %2937 = vmatmul.f32.gmra.mxu0 %v2862
      %v2938 = vpop.f32.mrf.mxu0
      %v2939 = vadd.f32 0.0, %v2938
      %2940 = vmatmul.f32.gmra.mxu0 %v2865
      %v2941 = vpop.f32.mrf.mxu0
      %v2942 = vadd.f32 0.0, %v2941
      %2943 = vmatmul.f32.gmra.mxu0 %v2868
      %v2944 = vpop.f32.mrf.mxu0
      %v2945 = vadd.f32 0.0, %v2944
      %2946 = vmatmul.f32.gmra.mxu0 %v2871
      %v2947 = vpop.f32.mrf.mxu0
      %v2948 = vadd.f32 0.0, %v2947
      %2949 = vmatmul.f32.gmra.mxu0 %v2874
      %v2950 = vpop.f32.mrf.mxu0
      %v2951 = vadd.f32 0.0, %v2950
      %2952 = vmatmul.f32.gmra.mxu0 %v2877
      %v2953 = vpop.f32.mrf.mxu0
      %v2954 = vadd.f32 0.0, %v2953
      %2955 = vdwg.mxu0
      %v2956 = vld [vmem:[#allocation4] sm:$0xff]
      %v2957 = vld [vmem:[#allocation4 + $0x8] sm:$0xff]
      %v2958 = vld [vmem:[#allocation4 + $0x10] sm:$0xff]
      %v2959 = vld [vmem:[#allocation4 + $0x18] sm:$0xff]
      %v2960 = vld [vmem:[#allocation4 + $0x20] sm:$0xff]
      %v2961 = vld [vmem:[#allocation4 + $0x28] sm:$0xff]
      %v2962 = vld [vmem:[#allocation4 + $0x30] sm:$0xff]
      %v2963 = vld [vmem:[#allocation4 + $0x38] sm:$0xff]
      %v2964 = vld [vmem:[#allocation4 + $0x40] sm:$0xff]
      %v2965 = vld [vmem:[#allocation4 + $0x48] sm:$0xff]
      %v2966 = vld [vmem:[#allocation4 + $0x50] sm:$0xff]
      %v2967 = vld [vmem:[#allocation4 + $0x58] sm:$0xff]
      %v2968 = vld [vmem:[#allocation4 + $0x60] sm:$0xff]
      %v2969 = vld [vmem:[#allocation4 + $0x68] sm:$0xff]
      %v2970 = vld [vmem:[#allocation4 + $0x70] sm:$0xff]
      %v2971 = vld [vmem:[#allocation4 + $0x78] sm:$0xff]
      %v2972 = vld [vmem:[#allocation4 + $0x80] sm:$0xff]
      %v2973 = vld [vmem:[#allocation4 + $0x88] sm:$0xff]
      %v2974 = vld [vmem:[#allocation4 + $0x90] sm:$0xff]
      %v2975 = vld [vmem:[#allocation4 + $0x98] sm:$0xff]
      %v2976 = vadd.f32 %v2956, %v2897
      %v2977 = vadd.f32 %v2957, %v2900
      %v2978 = vadd.f32 %v2958, %v2903
      %v2979 = vadd.f32 %v2959, %v2906
      %v2980 = vadd.f32 %v2960, %v2909
      %v2981 = vadd.f32 %v2961, %v2912
      %v2982 = vadd.f32 %v2962, %v2915
      %v2983 = vadd.f32 %v2963, %v2918
      %v2984 = vadd.f32 %v2964, %v2921
      %v2985 = vadd.f32 %v2965, %v2924
      %v2986 = vadd.f32 %v2966, %v2927
      %v2987 = vadd.f32 %v2967, %v2930
      %v2988 = vadd.f32 %v2968, %v2933
      %v2989 = vadd.f32 %v2969, %v2936
      %v2990 = vadd.f32 %v2970, %v2939
      %v2991 = vadd.f32 %v2971, %v2942
      %v2992 = vadd.f32 %v2972, %v2945
      %v2993 = vadd.f32 %v2973, %v2948
      %v2994 = vadd.f32 %v2974, %v2951
      %v2995 = vadd.f32 %v2975, %v2954
      %2996 = vst.msk [vmem:[#allocation4] sm:$0xff] %vm923, %v2976
      %2997 = vst.msk [vmem:[#allocation4 + $0x8] sm:$0xff] %vm923, %v2977
      %2998 = vst.msk [vmem:[#allocation4 + $0x10] sm:$0xff] %vm923, %v2978
      %2999 = vst.msk [vmem:[#allocation4 + $0x18] sm:$0xff] %vm923, %v2979
      %3000 = vst.msk [vmem:[#allocation4 + $0x20] sm:$0xff] %vm923, %v2980
      %3001 = vst.msk [vmem:[#allocation4 + $0x28] sm:$0xff] %vm923, %v2981
      %3002 = vst.msk [vmem:[#allocation4 + $0x30] sm:$0xff] %vm923, %v2982
      %3003 = vst.msk [vmem:[#allocation4 + $0x38] sm:$0xff] %vm923, %v2983
      %3004 = vst.msk [vmem:[#allocation4 + $0x40] sm:$0xff] %vm923, %v2984
      %3005 = vst.msk [vmem:[#allocation4 + $0x48] sm:$0xff] %vm923, %v2985
      %3006 = vst.msk [vmem:[#allocation4 + $0x50] sm:$0xff] %vm923, %v2986
      %3007 = vst.msk [vmem:[#allocation4 + $0x58] sm:$0xff] %vm923, %v2987
      %3008 = vst.msk [vmem:[#allocation4 + $0x60] sm:$0xff] %vm923, %v2988
      %3009 = vst.msk [vmem:[#allocation4 + $0x68] sm:$0xff] %vm923, %v2989
      %3010 = vst.msk [vmem:[#allocation4 + $0x70] sm:$0xff] %vm923, %v2990
      %3011 = vst.msk [vmem:[#allocation4 + $0x78] sm:$0xff] %vm923, %v2991
      %3012 = vst.msk [vmem:[#allocation4 + $0x80] sm:$0xff] %vm923, %v2992
      %3013 = vst.msk [vmem:[#allocation4 + $0x88] sm:$0xff] %vm923, %v2993
      %3014 = vst.msk [vmem:[#allocation4 + $0x90] sm:$0xff] %vm923, %v2994
      %3015 = vst.msk [vmem:[#allocation4 + $0x98] sm:$0xff] %vm923, %v2995
      %v3016 = vld [vmem:[%s2796 + $0x1] sm:$0xff]
      %v3017 = vld [vmem:[%s2796 + $0x9] sm:$0xff]
      %v3018 = vld [vmem:[%s2796 + $0x19] sm:$0xff]
      %v3019 = vld [vmem:[%s2796 + $0x21] sm:$0xff]
      %v3020 = vld [vmem:[%s2796 + $0x31] sm:$0xff]
      %v3021 = vld [vmem:[%s2796 + $0x39] sm:$0xff]
      %v3022 = vld [vmem:[%s2796 + $0x49] sm:$0xff]
      %v3023 = vld [vmem:[%s2796 + $0x51] sm:$0xff]
      %v3024 = vld [vmem:[%s2796 + $0x61] sm:$0xff]
      %v3025 = vld [vmem:[%s2796 + $0x69] sm:$0xff]
      %v3026 = vld [vmem:[%s2796 + $0x79] sm:$0xff]
      %v3027 = vld [vmem:[%s2796 + $0x81] sm:$0xff]
      %v3028 = vld [vmem:[%s2796 + $0x91] sm:$0xff]
      %v3029 = vld [vmem:[%s2796 + $0x99] sm:$0xff]
      %v3030 = vld [vmem:[%s2796 + $0xa9] sm:$0xff]
      %v3031 = vld [vmem:[%s2796 + $0xb1] sm:$0xff]
      %v3032 = vld [vmem:[%s2796 + $0xc1] sm:$0xff]
      %v3033 = vld [vmem:[%s2796 + $0xc9] sm:$0xff]
      %v3034 = vld [vmem:[%s2796 + $0xd9] sm:$0xff]
      %v3035 = vld [vmem:[%s2796 + $0xe1] sm:$0xff]
      %s3036 = scalar_lea.vmem %s11, 32
      %v3037 = vld [vmem:[%s3036] sm:$0xff]
      %v3039 = vsel %vm2155, %v3016, 0
      %v3042 = vsel %vm2155, %v3017, 0
      %v3045 = vsel %vm2155, %v3018, 0
      %v3048 = vsel %vm2155, %v3019, 0
      %v3051 = vsel %vm2155, %v3020, 0
      %v3054 = vsel %vm2155, %v3021, 0
      %v3057 = vsel %vm2155, %v3022, 0
      %v3060 = vsel %vm2155, %v3023, 0
      %v3063 = vsel %vm2155, %v3024, 0
      %v3066 = vsel %vm2155, %v3025, 0
      %v3069 = vsel %vm2155, %v3026, 0
      %v3072 = vsel %vm2155, %v3027, 0
      %v3075 = vsel %vm2155, %v3028, 0
      %v3078 = vsel %vm2155, %v3029, 0
      %v3081 = vsel %vm2155, %v3030, 0
      %v3084 = vsel %vm2155, %v3031, 0
      %v3087 = vsel %vm2155, %v3032, 0
      %v3090 = vsel %vm2155, %v3033, 0
      %v3093 = vsel %vm2155, %v3034, 0
      %v3096 = vsel %vm2155, %v3035, 0
      %3098 = vmatpush.msra.mxu0 0.0
      %3099 = vmatpush.msra.mxu0 0.0
      %3100 = vmatpush.msra.mxu0 0.0
      %3101 = vmatpush.msra.mxu0 0.0
      %3102 = vmatpush.msra.mxu0 0.0
      %3103 = vmatpush.msra.mxu0 0.0
      %3104 = vmatpush.msra.mxu0 0.0
      %3105 = vmatpush.msra.mxu0 0.0
      %3106 = vmatpush.msra.mxu0 0.0
      %3107 = vmatpush.msra.mxu0 0.0
      %3108 = vmatpush.msra.mxu0 0.0
      %3109 = vmatpush.msra.mxu0 0.0
      %3110 = vmatpush.msra.mxu0 0.0
      %3111 = vmatpush.msra.mxu0 0.0
      %3112 = vmatpush.msra.mxu0 0.0
      %3113 = vmatpush.msra.mxu0 %v3037
      %3114 = vmatmul.f32.gmra.mxu0 %v3039
      %v3115 = vpop.f32.mrf.mxu0
      %v3116 = vadd.f32 0.0, %v3115
      %3117 = vmatmul.f32.gmra.mxu0 %v3042
      %v3118 = vpop.f32.mrf.mxu0
      %v3119 = vadd.f32 0.0, %v3118
      %3120 = vmatmul.f32.gmra.mxu0 %v3045
      %v3121 = vpop.f32.mrf.mxu0
      %v3122 = vadd.f32 0.0, %v3121
      %3123 = vmatmul.f32.gmra.mxu0 %v3048
      %v3124 = vpop.f32.mrf.mxu0
      %v3125 = vadd.f32 0.0, %v3124
      %3126 = vmatmul.f32.gmra.mxu0 %v3051
      %v3127 = vpop.f32.mrf.mxu0
      %v3128 = vadd.f32 0.0, %v3127
      %3129 = vmatmul.f32.gmra.mxu0 %v3054
      %v3130 = vpop.f32.mrf.mxu0
      %v3131 = vadd.f32 0.0, %v3130
      %3132 = vmatmul.f32.gmra.mxu0 %v3057
      %v3133 = vpop.f32.mrf.mxu0
      %v3134 = vadd.f32 0.0, %v3133
      %3135 = vmatmul.f32.gmra.mxu0 %v3060
      %v3136 = vpop.f32.mrf.mxu0
      %v3137 = vadd.f32 0.0, %v3136
      %3138 = vmatmul.f32.gmra.mxu0 %v3063
      %v3139 = vpop.f32.mrf.mxu0
      %v3140 = vadd.f32 0.0, %v3139
      %3141 = vmatmul.f32.gmra.mxu0 %v3066
      %v3142 = vpop.f32.mrf.mxu0
      %v3143 = vadd.f32 0.0, %v3142
      %3144 = vmatmul.f32.gmra.mxu0 %v3069
      %v3145 = vpop.f32.mrf.mxu0
      %v3146 = vadd.f32 0.0, %v3145
      %3147 = vmatmul.f32.gmra.mxu0 %v3072
      %v3148 = vpop.f32.mrf.mxu0
      %v3149 = vadd.f32 0.0, %v3148
      %3150 = vmatmul.f32.gmra.mxu0 %v3075
      %v3151 = vpop.f32.mrf.mxu0
      %v3152 = vadd.f32 0.0, %v3151
      %3153 = vmatmul.f32.gmra.mxu0 %v3078
      %v3154 = vpop.f32.mrf.mxu0
      %v3155 = vadd.f32 0.0, %v3154
      %3156 = vmatmul.f32.gmra.mxu0 %v3081
      %v3157 = vpop.f32.mrf.mxu0
      %v3158 = vadd.f32 0.0, %v3157
      %3159 = vmatmul.f32.gmra.mxu0 %v3084
      %v3160 = vpop.f32.mrf.mxu0
      %v3161 = vadd.f32 0.0, %v3160
      %3162 = vmatmul.f32.gmra.mxu0 %v3087
      %v3163 = vpop.f32.mrf.mxu0
      %v3164 = vadd.f32 0.0, %v3163
      %3165 = vmatmul.f32.gmra.mxu0 %v3090
      %v3166 = vpop.f32.mrf.mxu0
      %v3167 = vadd.f32 0.0, %v3166
      %3168 = vmatmul.f32.gmra.mxu0 %v3093
      %v3169 = vpop.f32.mrf.mxu0
      %v3170 = vadd.f32 0.0, %v3169
      %3171 = vmatmul.f32.gmra.mxu0 %v3096
      %v3172 = vpop.f32.mrf.mxu0
      %v3173 = vadd.f32 0.0, %v3172
      %3174 = vdwg.mxu0
      %v3175 = vld [vmem:[#allocation4] sm:$0xff]
      %v3176 = vld [vmem:[#allocation4 + $0x8] sm:$0xff]
      %v3177 = vld [vmem:[#allocation4 + $0x10] sm:$0xff]
      %v3178 = vld [vmem:[#allocation4 + $0x18] sm:$0xff]
      %v3179 = vld [vmem:[#allocation4 + $0x20] sm:$0xff]
      %v3180 = vld [vmem:[#allocation4 + $0x28] sm:$0xff]
      %v3181 = vld [vmem:[#allocation4 + $0x30] sm:$0xff]
      %v3182 = vld [vmem:[#allocation4 + $0x38] sm:$0xff]
      %v3183 = vld [vmem:[#allocation4 + $0x40] sm:$0xff]
      %v3184 = vld [vmem:[#allocation4 + $0x48] sm:$0xff]
      %v3185 = vld [vmem:[#allocation4 + $0x50] sm:$0xff]
      %v3186 = vld [vmem:[#allocation4 + $0x58] sm:$0xff]
      %v3187 = vld [vmem:[#allocation4 + $0x60] sm:$0xff]
      %v3188 = vld [vmem:[#allocation4 + $0x68] sm:$0xff]
      %v3189 = vld [vmem:[#allocation4 + $0x70] sm:$0xff]
      %v3190 = vld [vmem:[#allocation4 + $0x78] sm:$0xff]
      %v3191 = vld [vmem:[#allocation4 + $0x80] sm:$0xff]
      %v3192 = vld [vmem:[#allocation4 + $0x88] sm:$0xff]
      %v3193 = vld [vmem:[#allocation4 + $0x90] sm:$0xff]
      %v3194 = vld [vmem:[#allocation4 + $0x98] sm:$0xff]
      %v3195 = vadd.f32 %v3175, %v3116
      %v3196 = vadd.f32 %v3176, %v3119
      %v3197 = vadd.f32 %v3177, %v3122
      %v3198 = vadd.f32 %v3178, %v3125
      %v3199 = vadd.f32 %v3179, %v3128
      %v3200 = vadd.f32 %v3180, %v3131
      %v3201 = vadd.f32 %v3181, %v3134
      %v3202 = vadd.f32 %v3182, %v3137
      %v3203 = vadd.f32 %v3183, %v3140
      %v3204 = vadd.f32 %v3184, %v3143
      %v3205 = vadd.f32 %v3185, %v3146
      %v3206 = vadd.f32 %v3186, %v3149
      %v3207 = vadd.f32 %v3187, %v3152
      %v3208 = vadd.f32 %v3188, %v3155
      %v3209 = vadd.f32 %v3189, %v3158
      %v3210 = vadd.f32 %v3190, %v3161
      %v3211 = vadd.f32 %v3191, %v3164
      %v3212 = vadd.f32 %v3192, %v3167
      %v3213 = vadd.f32 %v3193, %v3170
      %v3214 = vadd.f32 %v3194, %v3173
      %3215 = vst.msk [vmem:[#allocation4] sm:$0xff] %vm923, %v3195
      %3216 = vst.msk [vmem:[#allocation4 + $0x8] sm:$0xff] %vm923, %v3196
      %3217 = vst.msk [vmem:[#allocation4 + $0x10] sm:$0xff] %vm923, %v3197
      %3218 = vst.msk [vmem:[#allocation4 + $0x18] sm:$0xff] %vm923, %v3198
      %3219 = vst.msk [vmem:[#allocation4 + $0x20] sm:$0xff] %vm923, %v3199
      %3220 = vst.msk [vmem:[#allocation4 + $0x28] sm:$0xff] %vm923, %v3200
      %3221 = vst.msk [vmem:[#allocation4 + $0x30] sm:$0xff] %vm923, %v3201
      %3222 = vst.msk [vmem:[#allocation4 + $0x38] sm:$0xff] %vm923, %v3202
      %3223 = vst.msk [vmem:[#allocation4 + $0x40] sm:$0xff] %vm923, %v3203
      %3224 = vst.msk [vmem:[#allocation4 + $0x48] sm:$0xff] %vm923, %v3204
      %3225 = vst.msk [vmem:[#allocation4 + $0x50] sm:$0xff] %vm923, %v3205
      %3226 = vst.msk [vmem:[#allocation4 + $0x58] sm:$0xff] %vm923, %v3206
      %3227 = vst.msk [vmem:[#allocation4 + $0x60] sm:$0xff] %vm923, %v3207
      %3228 = vst.msk [vmem:[#allocation4 + $0x68] sm:$0xff] %vm923, %v3208
      %3229 = vst.msk [vmem:[#allocation4 + $0x70] sm:$0xff] %vm923, %v3209
      %3230 = vst.msk [vmem:[#allocation4 + $0x78] sm:$0xff] %vm923, %v3210
      %3231 = vst.msk [vmem:[#allocation4 + $0x80] sm:$0xff] %vm923, %v3211
      %3232 = vst.msk [vmem:[#allocation4 + $0x88] sm:$0xff] %vm923, %v3212
      %3233 = vst.msk [vmem:[#allocation4 + $0x90] sm:$0xff] %vm923, %v3213
      %3234 = vst.msk [vmem:[#allocation4 + $0x98] sm:$0xff] %vm923, %v3214
      %v3235 = vld [vmem:[%s2796 + $0x2] sm:$0xff]
      %v3236 = vld [vmem:[%s2796 + $0xa] sm:$0xff]
      %v3237 = vld [vmem:[%s2796 + $0x1a] sm:$0xff]
      %v3238 = vld [vmem:[%s2796 + $0x22] sm:$0xff]
      %v3239 = vld [vmem:[%s2796 + $0x32] sm:$0xff]
      %v3240 = vld [vmem:[%s2796 + $0x3a] sm:$0xff]
      %v3241 = vld [vmem:[%s2796 + $0x4a] sm:$0xff]
      %v3242 = vld [vmem:[%s2796 + $0x52] sm:$0xff]
      %v3243 = vld [vmem:[%s2796 + $0x62] sm:$0xff]
      %v3244 = vld [vmem:[%s2796 + $0x6a] sm:$0xff]
      %v3245 = vld [vmem:[%s2796 + $0x7a] sm:$0xff]
      %v3246 = vld [vmem:[%s2796 + $0x82] sm:$0xff]
      %v3247 = vld [vmem:[%s2796 + $0x92] sm:$0xff]
      %v3248 = vld [vmem:[%s2796 + $0x9a] sm:$0xff]
      %v3249 = vld [vmem:[%s2796 + $0xaa] sm:$0xff]
      %v3250 = vld [vmem:[%s2796 + $0xb2] sm:$0xff]
      %v3251 = vld [vmem:[%s2796 + $0xc2] sm:$0xff]
      %v3252 = vld [vmem:[%s2796 + $0xca] sm:$0xff]
      %v3253 = vld [vmem:[%s2796 + $0xda] sm:$0xff]
      %v3254 = vld [vmem:[%s2796 + $0xe2] sm:$0xff]
      %s3255 = scalar_lea.vmem %s11, 40
      %v3256 = vld [vmem:[%s3255] sm:$0xff]
      %v3258 = vsel %vm2155, %v3235, 0
      %v3261 = vsel %vm2155, %v3236, 0
      %v3264 = vsel %vm2155, %v3237, 0
      %v3267 = vsel %vm2155, %v3238, 0
      %v3270 = vsel %vm2155, %v3239, 0
      %v3273 = vsel %vm2155, %v3240, 0
      %v3276 = vsel %vm2155, %v3241, 0
      %v3279 = vsel %vm2155, %v3242, 0
      %v3282 = vsel %vm2155, %v3243, 0
      %v3285 = vsel %vm2155, %v3244, 0
      %v3288 = vsel %vm2155, %v3245, 0
      %v3291 = vsel %vm2155, %v3246, 0
      %v3294 = vsel %vm2155, %v3247, 0
      %v3297 = vsel %vm2155, %v3248, 0
      %v3300 = vsel %vm2155, %v3249, 0
      %v3303 = vsel %vm2155, %v3250, 0
      %v3306 = vsel %vm2155, %v3251, 0
      %v3309 = vsel %vm2155, %v3252, 0
      %v3312 = vsel %vm2155, %v3253, 0
      %v3315 = vsel %vm2155, %v3254, 0
      %3317 = vmatpush.msra.mxu0 0.0
      %3318 = vmatpush.msra.mxu0 0.0
      %3319 = vmatpush.msra.mxu0 0.0
      %3320 = vmatpush.msra.mxu0 0.0
      %3321 = vmatpush.msra.mxu0 0.0
      %3322 = vmatpush.msra.mxu0 0.0
      %3323 = vmatpush.msra.mxu0 0.0
      %3324 = vmatpush.msra.mxu0 0.0
      %3325 = vmatpush.msra.mxu0 0.0
      %3326 = vmatpush.msra.mxu0 0.0
      %3327 = vmatpush.msra.mxu0 0.0
      %3328 = vmatpush.msra.mxu0 0.0
      %3329 = vmatpush.msra.mxu0 0.0
      %3330 = vmatpush.msra.mxu0 0.0
      %3331 = vmatpush.msra.mxu0 0.0
      %3332 = vmatpush.msra.mxu0 %v3256
      %3333 = vmatmul.f32.gmra.mxu0 %v3258
      %v3334 = vpop.f32.mrf.mxu0
      %v3335 = vadd.f32 0.0, %v3334
      %3336 = vmatmul.f32.gmra.mxu0 %v3261
      %v3337 = vpop.f32.mrf.mxu0
      %v3338 = vadd.f32 0.0, %v3337
      %3339 = vmatmul.f32.gmra.mxu0 %v3264
      %v3340 = vpop.f32.mrf.mxu0
      %v3341 = vadd.f32 0.0, %v3340
      %3342 = vmatmul.f32.gmra.mxu0 %v3267
      %v3343 = vpop.f32.mrf.mxu0
      %v3344 = vadd.f32 0.0, %v3343
      %3345 = vmatmul.f32.gmra.mxu0 %v3270
      %v3346 = vpop.f32.mrf.mxu0
      %v3347 = vadd.f32 0.0, %v3346
      %3348 = vmatmul.f32.gmra.mxu0 %v3273
      %v3349 = vpop.f32.mrf.mxu0
      %v3350 = vadd.f32 0.0, %v3349
      %3351 = vmatmul.f32.gmra.mxu0 %v3276
      %v3352 = vpop.f32.mrf.mxu0
      %v3353 = vadd.f32 0.0, %v3352
      %3354 = vmatmul.f32.gmra.mxu0 %v3279
      %v3355 = vpop.f32.mrf.mxu0
      %v3356 = vadd.f32 0.0, %v3355
      %3357 = vmatmul.f32.gmra.mxu0 %v3282
      %v3358 = vpop.f32.mrf.mxu0
      %v3359 = vadd.f32 0.0, %v3358
      %3360 = vmatmul.f32.gmra.mxu0 %v3285
      %v3361 = vpop.f32.mrf.mxu0
      %v3362 = vadd.f32 0.0, %v3361
      %3363 = vmatmul.f32.gmra.mxu0 %v3288
      %v3364 = vpop.f32.mrf.mxu0
      %v3365 = vadd.f32 0.0, %v3364
      %3366 = vmatmul.f32.gmra.mxu0 %v3291
      %v3367 = vpop.f32.mrf.mxu0
      %v3368 = vadd.f32 0.0, %v3367
      %3369 = vmatmul.f32.gmra.mxu0 %v3294
      %v3370 = vpop.f32.mrf.mxu0
      %v3371 = vadd.f32 0.0, %v3370
      %3372 = vmatmul.f32.gmra.mxu0 %v3297
      %v3373 = vpop.f32.mrf.mxu0
      %v3374 = vadd.f32 0.0, %v3373
      %3375 = vmatmul.f32.gmra.mxu0 %v3300
      %v3376 = vpop.f32.mrf.mxu0
      %v3377 = vadd.f32 0.0, %v3376
      %3378 = vmatmul.f32.gmra.mxu0 %v3303
      %v3379 = vpop.f32.mrf.mxu0
      %v3380 = vadd.f32 0.0, %v3379
      %3381 = vmatmul.f32.gmra.mxu0 %v3306
      %v3382 = vpop.f32.mrf.mxu0
      %v3383 = vadd.f32 0.0, %v3382
      %3384 = vmatmul.f32.gmra.mxu0 %v3309
      %v3385 = vpop.f32.mrf.mxu0
      %v3386 = vadd.f32 0.0, %v3385
      %3387 = vmatmul.f32.gmra.mxu0 %v3312
      %v3388 = vpop.f32.mrf.mxu0
      %v3389 = vadd.f32 0.0, %v3388
      %3390 = vmatmul.f32.gmra.mxu0 %v3315
      %v3391 = vpop.f32.mrf.mxu0
      %v3392 = vadd.f32 0.0, %v3391
      %3393 = vdwg.mxu0
      %v3394 = vld [vmem:[#allocation4] sm:$0xff]
      %v3395 = vld [vmem:[#allocation4 + $0x8] sm:$0xff]
      %v3396 = vld [vmem:[#allocation4 + $0x10] sm:$0xff]
      %v3397 = vld [vmem:[#allocation4 + $0x18] sm:$0xff]
      %v3398 = vld [vmem:[#allocation4 + $0x20] sm:$0xff]
      %v3399 = vld [vmem:[#allocation4 + $0x28] sm:$0xff]
      %v3400 = vld [vmem:[#allocation4 + $0x30] sm:$0xff]
      %v3401 = vld [vmem:[#allocation4 + $0x38] sm:$0xff]
      %v3402 = vld [vmem:[#allocation4 + $0x40] sm:$0xff]
      %v3403 = vld [vmem:[#allocation4 + $0x48] sm:$0xff]
      %v3404 = vld [vmem:[#allocation4 + $0x50] sm:$0xff]
      %v3405 = vld [vmem:[#allocation4 + $0x58] sm:$0xff]
      %v3406 = vld [vmem:[#allocation4 + $0x60] sm:$0xff]
      %v3407 = vld [vmem:[#allocation4 + $0x68] sm:$0xff]
      %v3408 = vld [vmem:[#allocation4 + $0x70] sm:$0xff]
      %v3409 = vld [vmem:[#allocation4 + $0x78] sm:$0xff]
      %v3410 = vld [vmem:[#allocation4 + $0x80] sm:$0xff]
      %v3411 = vld [vmem:[#allocation4 + $0x88] sm:$0xff]
      %v3412 = vld [vmem:[#allocation4 + $0x90] sm:$0xff]
      %v3413 = vld [vmem:[#allocation4 + $0x98] sm:$0xff]
      %v3414 = vadd.f32 %v3394, %v3335
      %v3415 = vadd.f32 %v3395, %v3338
      %v3416 = vadd.f32 %v3396, %v3341
      %v3417 = vadd.f32 %v3397, %v3344
      %v3418 = vadd.f32 %v3398, %v3347
      %v3419 = vadd.f32 %v3399, %v3350
      %v3420 = vadd.f32 %v3400, %v3353
      %v3421 = vadd.f32 %v3401, %v3356
      %v3422 = vadd.f32 %v3402, %v3359
      %v3423 = vadd.f32 %v3403, %v3362
      %v3424 = vadd.f32 %v3404, %v3365
      %v3425 = vadd.f32 %v3405, %v3368
      %v3426 = vadd.f32 %v3406, %v3371
      %v3427 = vadd.f32 %v3407, %v3374
      %v3428 = vadd.f32 %v3408, %v3377
      %v3429 = vadd.f32 %v3409, %v3380
      %v3430 = vadd.f32 %v3410, %v3383
      %v3431 = vadd.f32 %v3411, %v3386
      %v3432 = vadd.f32 %v3412, %v3389
      %v3433 = vadd.f32 %v3413, %v3392
      %3434 = vst.msk [vmem:[#allocation4] sm:$0xff] %vm923, %v3414
      %3435 = vst.msk [vmem:[#allocation4 + $0x8] sm:$0xff] %vm923, %v3415
      %3436 = vst.msk [vmem:[#allocation4 + $0x10] sm:$0xff] %vm923, %v3416
      %3437 = vst.msk [vmem:[#allocation4 + $0x18] sm:$0xff] %vm923, %v3417
      %3438 = vst.msk [vmem:[#allocation4 + $0x20] sm:$0xff] %vm923, %v3418
      %3439 = vst.msk [vmem:[#allocation4 + $0x28] sm:$0xff] %vm923, %v3419
      %3440 = vst.msk [vmem:[#allocation4 + $0x30] sm:$0xff] %vm923, %v3420
      %3441 = vst.msk [vmem:[#allocation4 + $0x38] sm:$0xff] %vm923, %v3421
      %3442 = vst.msk [vmem:[#allocation4 + $0x40] sm:$0xff] %vm923, %v3422
      %3443 = vst.msk [vmem:[#allocation4 + $0x48] sm:$0xff] %vm923, %v3423
      %3444 = vst.msk [vmem:[#allocation4 + $0x50] sm:$0xff] %vm923, %v3424
      %3445 = vst.msk [vmem:[#allocation4 + $0x58] sm:$0xff] %vm923, %v3425
      %3446 = vst.msk [vmem:[#allocation4 + $0x60] sm:$0xff] %vm923, %v3426
      %3447 = vst.msk [vmem:[#allocation4 + $0x68] sm:$0xff] %vm923, %v3427
      %3448 = vst.msk [vmem:[#allocation4 + $0x70] sm:$0xff] %vm923, %v3428
      %3449 = vst.msk [vmem:[#allocation4 + $0x78] sm:$0xff] %vm923, %v3429
      %3450 = vst.msk [vmem:[#allocation4 + $0x80] sm:$0xff] %vm923, %v3430
      %3451 = vst.msk [vmem:[#allocation4 + $0x88] sm:$0xff] %vm923, %v3431
      %3452 = vst.msk [vmem:[#allocation4 + $0x90] sm:$0xff] %vm923, %v3432
      %3453 = vst.msk [vmem:[#allocation4 + $0x98] sm:$0xff] %vm923, %v3433
      %s3454 = scalar_lea.vmem [#allocation2], 48
      %v3455 = vld [vmem:[%s3454] sm:$0xff]
      %v3456 = vld [vmem:[%s3454 + $0x8] sm:$0xff]
      %v3457 = vld [vmem:[%s3454 + $0x18] sm:$0xff]
      %v3458 = vld [vmem:[%s3454 + $0x20] sm:$0xff]
      %v3459 = vld [vmem:[%s3454 + $0x30] sm:$0xff]
      %v3460 = vld [vmem:[%s3454 + $0x38] sm:$0xff]
      %v3461 = vld [vmem:[%s3454 + $0x48] sm:$0xff]
      %v3462 = vld [vmem:[%s3454 + $0x50] sm:$0xff]
      %v3463 = vld [vmem:[%s3454 + $0x60] sm:$0xff]
      %v3464 = vld [vmem:[%s3454 + $0x68] sm:$0xff]
      %v3465 = vld [vmem:[%s3454 + $0x78] sm:$0xff]
      %v3466 = vld [vmem:[%s3454 + $0x80] sm:$0xff]
      %v3467 = vld [vmem:[%s3454 + $0x90] sm:$0xff]
      %v3468 = vld [vmem:[%s3454 + $0x98] sm:$0xff]
      %v3469 = vld [vmem:[%s3454 + $0xa8] sm:$0xff]
      %v3470 = vld [vmem:[%s3454 + $0xb0] sm:$0xff]
      %v3471 = vld [vmem:[%s3454 + $0xc0] sm:$0xff]
      %v3472 = vld [vmem:[%s3454 + $0xc8] sm:$0xff]
      %v3473 = vld [vmem:[%s3454 + $0xd8] sm:$0xff]
      %v3474 = vld [vmem:[%s3454 + $0xe0] sm:$0xff]
      %s3475 = scalar_lea.vmem %s11, 48
      %v3476 = vld [vmem:[%s3475] sm:$0xff]
      %v3478 = vsel %vm2155, %v3455, 0
      %v3481 = vsel %vm2155, %v3456, 0
      %v3484 = vsel %vm2155, %v3457, 0
      %v3487 = vsel %vm2155, %v3458, 0
      %v3490 = vsel %vm2155, %v3459, 0
      %v3493 = vsel %vm2155, %v3460, 0
      %v3496 = vsel %vm2155, %v3461, 0
      %v3499 = vsel %vm2155, %v3462, 0
      %v3502 = vsel %vm2155, %v3463, 0
      %v3505 = vsel %vm2155, %v3464, 0
      %v3508 = vsel %vm2155, %v3465, 0
      %v3511 = vsel %vm2155, %v3466, 0
      %v3514 = vsel %vm2155, %v3467, 0
      %v3517 = vsel %vm2155, %v3468, 0
      %v3520 = vsel %vm2155, %v3469, 0
      %v3523 = vsel %vm2155, %v3470, 0
      %v3526 = vsel %vm2155, %v3471, 0
      %v3529 = vsel %vm2155, %v3472, 0
      %v3532 = vsel %vm2155, %v3473, 0
      %v3535 = vsel %vm2155, %v3474, 0
      %3537 = vmatpush.msra.mxu0 0.0
      %3538 = vmatpush.msra.mxu0 0.0
      %3539 = vmatpush.msra.mxu0 0.0
      %3540 = vmatpush.msra.mxu0 0.0
      %3541 = vmatpush.msra.mxu0 0.0
      %3542 = vmatpush.msra.mxu0 0.0
      %3543 = vmatpush.msra.mxu0 0.0
      %3544 = vmatpush.msra.mxu0 0.0
      %3545 = vmatpush.msra.mxu0 0.0
      %3546 = vmatpush.msra.mxu0 0.0
      %3547 = vmatpush.msra.mxu0 0.0
      %3548 = vmatpush.msra.mxu0 0.0
      %3549 = vmatpush.msra.mxu0 0.0
      %3550 = vmatpush.msra.mxu0 0.0
      %3551 = vmatpush.msra.mxu0 0.0
      %3552 = vmatpush.msra.mxu0 %v3476
      %3553 = vmatmul.f32.gmra.mxu0 %v3478
      %v3554 = vpop.f32.mrf.mxu0
      %v3555 = vadd.f32 0.0, %v3554
      %3556 = vmatmul.f32.gmra.mxu0 %v3481
      %v3557 = vpop.f32.mrf.mxu0
      %v3558 = vadd.f32 0.0, %v3557
      %3559 = vmatmul.f32.gmra.mxu0 %v3484
      %v3560 = vpop.f32.mrf.mxu0
      %v3561 = vadd.f32 0.0, %v3560
      %3562 = vmatmul.f32.gmra.mxu0 %v3487
      %v3563 = vpop.f32.mrf.mxu0
      %v3564 = vadd.f32 0.0, %v3563
      %3565 = vmatmul.f32.gmra.mxu0 %v3490
      %v3566 = vpop.f32.mrf.mxu0
      %v3567 = vadd.f32 0.0, %v3566
      %3568 = vmatmul.f32.gmra.mxu0 %v3493
      %v3569 = vpop.f32.mrf.mxu0
      %v3570 = vadd.f32 0.0, %v3569
      %3571 = vmatmul.f32.gmra.mxu0 %v3496
      %v3572 = vpop.f32.mrf.mxu0
      %v3573 = vadd.f32 0.0, %v3572
      %3574 = vmatmul.f32.gmra.mxu0 %v3499
      %v3575 = vpop.f32.mrf.mxu0
      %v3576 = vadd.f32 0.0, %v3575
      %3577 = vmatmul.f32.gmra.mxu0 %v3502
      %v3578 = vpop.f32.mrf.mxu0
      %v3579 = vadd.f32 0.0, %v3578
      %3580 = vmatmul.f32.gmra.mxu0 %v3505
      %v3581 = vpop.f32.mrf.mxu0
      %v3582 = vadd.f32 0.0, %v3581
      %3583 = vmatmul.f32.gmra.mxu0 %v3508
      %v3584 = vpop.f32.mrf.mxu0
      %v3585 = vadd.f32 0.0, %v3584
      %3586 = vmatmul.f32.gmra.mxu0 %v3511
      %v3587 = vpop.f32.mrf.mxu0
      %v3588 = vadd.f32 0.0, %v3587
      %3589 = vmatmul.f32.gmra.mxu0 %v3514
      %v3590 = vpop.f32.mrf.mxu0
      %v3591 = vadd.f32 0.0, %v3590
      %3592 = vmatmul.f32.gmra.mxu0 %v3517
      %v3593 = vpop.f32.mrf.mxu0
      %v3594 = vadd.f32 0.0, %v3593
      %3595 = vmatmul.f32.gmra.mxu0 %v3520
      %v3596 = vpop.f32.mrf.mxu0
      %v3597 = vadd.f32 0.0, %v3596
      %3598 = vmatmul.f32.gmra.mxu0 %v3523
      %v3599 = vpop.f32.mrf.mxu0
      %v3600 = vadd.f32 0.0, %v3599
      %3601 = vmatmul.f32.gmra.mxu0 %v3526
      %v3602 = vpop.f32.mrf.mxu0
      %v3603 = vadd.f32 0.0, %v3602
      %3604 = vmatmul.f32.gmra.mxu0 %v3529
      %v3605 = vpop.f32.mrf.mxu0
      %v3606 = vadd.f32 0.0, %v3605
      %3607 = vmatmul.f32.gmra.mxu0 %v3532
      %v3608 = vpop.f32.mrf.mxu0
      %v3609 = vadd.f32 0.0, %v3608
      %3610 = vmatmul.f32.gmra.mxu0 %v3535
      %v3611 = vpop.f32.mrf.mxu0
      %v3612 = vadd.f32 0.0, %v3611
      %3613 = vdwg.mxu0
      %v3614 = vld [vmem:[#allocation4] sm:$0xff]
      %v3615 = vld [vmem:[#allocation4 + $0x8] sm:$0xff]
      %v3616 = vld [vmem:[#allocation4 + $0x10] sm:$0xff]
      %v3617 = vld [vmem:[#allocation4 + $0x18] sm:$0xff]
      %v3618 = vld [vmem:[#allocation4 + $0x20] sm:$0xff]
      %v3619 = vld [vmem:[#allocation4 + $0x28] sm:$0xff]
      %v3620 = vld [vmem:[#allocation4 + $0x30] sm:$0xff]
      %v3621 = vld [vmem:[#allocation4 + $0x38] sm:$0xff]
      %v3622 = vld [vmem:[#allocation4 + $0x40] sm:$0xff]
      %v3623 = vld [vmem:[#allocation4 + $0x48] sm:$0xff]
      %v3624 = vld [vmem:[#allocation4 + $0x50] sm:$0xff]
      %v3625 = vld [vmem:[#allocation4 + $0x58] sm:$0xff]
      %v3626 = vld [vmem:[#allocation4 + $0x60] sm:$0xff]
      %v3627 = vld [vmem:[#allocation4 + $0x68] sm:$0xff]
      %v3628 = vld [vmem:[#allocation4 + $0x70] sm:$0xff]
      %v3629 = vld [vmem:[#allocation4 + $0x78] sm:$0xff]
      %v3630 = vld [vmem:[#allocation4 + $0x80] sm:$0xff]
      %v3631 = vld [vmem:[#allocation4 + $0x88] sm:$0xff]
      %v3632 = vld [vmem:[#allocation4 + $0x90] sm:$0xff]
      %v3633 = vld [vmem:[#allocation4 + $0x98] sm:$0xff]
      %v3634 = vadd.f32 %v3614, %v3555
      %v3635 = vadd.f32 %v3615, %v3558
      %v3636 = vadd.f32 %v3616, %v3561
      %v3637 = vadd.f32 %v3617, %v3564
      %v3638 = vadd.f32 %v3618, %v3567
      %v3639 = vadd.f32 %v3619, %v3570
      %v3640 = vadd.f32 %v3620, %v3573
      %v3641 = vadd.f32 %v3621, %v3576
      %v3642 = vadd.f32 %v3622, %v3579
      %v3643 = vadd.f32 %v3623, %v3582
      %v3644 = vadd.f32 %v3624, %v3585
      %v3645 = vadd.f32 %v3625, %v3588
      %v3646 = vadd.f32 %v3626, %v3591
      %v3647 = vadd.f32 %v3627, %v3594
      %v3648 = vadd.f32 %v3628, %v3597
      %v3649 = vadd.f32 %v3629, %v3600
      %v3650 = vadd.f32 %v3630, %v3603
      %v3651 = vadd.f32 %v3631, %v3606
      %v3652 = vadd.f32 %v3632, %v3609
      %v3653 = vadd.f32 %v3633, %v3612
      %3654 = vst.msk [vmem:[#allocation4] sm:$0xff] %vm923, %v3634
      %3655 = vst.msk [vmem:[#allocation4 + $0x8] sm:$0xff] %vm923, %v3635
      %3656 = vst.msk [vmem:[#allocation4 + $0x10] sm:$0xff] %vm923, %v3636
      %3657 = vst.msk [vmem:[#allocation4 + $0x18] sm:$0xff] %vm923, %v3637
      %3658 = vst.msk [vmem:[#allocation4 + $0x20] sm:$0xff] %vm923, %v3638
      %3659 = vst.msk [vmem:[#allocation4 + $0x28] sm:$0xff] %vm923, %v3639
      %3660 = vst.msk [vmem:[#allocation4 + $0x30] sm:$0xff] %vm923, %v3640
      %3661 = vst.msk [vmem:[#allocation4 + $0x38] sm:$0xff] %vm923, %v3641
      %3662 = vst.msk [vmem:[#allocation4 + $0x40] sm:$0xff] %vm923, %v3642
      %3663 = vst.msk [vmem:[#allocation4 + $0x48] sm:$0xff] %vm923, %v3643
      %3664 = vst.msk [vmem:[#allocation4 + $0x50] sm:$0xff] %vm923, %v3644
      %3665 = vst.msk [vmem:[#allocation4 + $0x58] sm:$0xff] %vm923, %v3645
      %3666 = vst.msk [vmem:[#allocation4 + $0x60] sm:$0xff] %vm923, %v3646
      %3667 = vst.msk [vmem:[#allocation4 + $0x68] sm:$0xff] %vm923, %v3647
      %3668 = vst.msk [vmem:[#allocation4 + $0x70] sm:$0xff] %vm923, %v3648
      %3669 = vst.msk [vmem:[#allocation4 + $0x78] sm:$0xff] %vm923, %v3649
      %3670 = vst.msk [vmem:[#allocation4 + $0x80] sm:$0xff] %vm923, %v3650
      %3671 = vst.msk [vmem:[#allocation4 + $0x88] sm:$0xff] %vm923, %v3651
      %3672 = vst.msk [vmem:[#allocation4 + $0x90] sm:$0xff] %vm923, %v3652
      %3673 = vst.msk [vmem:[#allocation4 + $0x98] sm:$0xff] %vm923, %v3653
      %v3674 = vld [vmem:[%s3454 + $0x1] sm:$0xff]
      %v3675 = vld [vmem:[%s3454 + $0x9] sm:$0xff]
      %v3676 = vld [vmem:[%s3454 + $0x19] sm:$0xff]
      %v3677 = vld [vmem:[%s3454 + $0x21] sm:$0xff]
      %v3678 = vld [vmem:[%s3454 + $0x31] sm:$0xff]
      %v3679 = vld [vmem:[%s3454 + $0x39] sm:$0xff]
      %v3680 = vld [vmem:[%s3454 + $0x49] sm:$0xff]
      %v3681 = vld [vmem:[%s3454 + $0x51] sm:$0xff]
      %v3682 = vld [vmem:[%s3454 + $0x61] sm:$0xff]
      %v3683 = vld [vmem:[%s3454 + $0x69] sm:$0xff]
      %v3684 = vld [vmem:[%s3454 + $0x79] sm:$0xff]
      %v3685 = vld [vmem:[%s3454 + $0x81] sm:$0xff]
      %v3686 = vld [vmem:[%s3454 + $0x91] sm:$0xff]
      %v3687 = vld [vmem:[%s3454 + $0x99] sm:$0xff]
      %v3688 = vld [vmem:[%s3454 + $0xa9] sm:$0xff]
      %v3689 = vld [vmem:[%s3454 + $0xb1] sm:$0xff]
      %v3690 = vld [vmem:[%s3454 + $0xc1] sm:$0xff]
      %v3691 = vld [vmem:[%s3454 + $0xc9] sm:$0xff]
      %v3692 = vld [vmem:[%s3454 + $0xd9] sm:$0xff]
      %v3693 = vld [vmem:[%s3454 + $0xe1] sm:$0xff]
      %s3694 = scalar_lea.vmem %s11, 56
      %v3695 = vld [vmem:[%s3694] sm:$0xff]
      %v3697 = vsel %vm2155, %v3674, 0
      %v3700 = vsel %vm2155, %v3675, 0
      %v3703 = vsel %vm2155, %v3676, 0
      %v3706 = vsel %vm2155, %v3677, 0
      %v3709 = vsel %vm2155, %v3678, 0
      %v3712 = vsel %vm2155, %v3679, 0
      %v3715 = vsel %vm2155, %v3680, 0
      %v3718 = vsel %vm2155, %v3681, 0
      %v3721 = vsel %vm2155, %v3682, 0
      %v3724 = vsel %vm2155, %v3683, 0
      %v3727 = vsel %vm2155, %v3684, 0
      %v3730 = vsel %vm2155, %v3685, 0
      %v3733 = vsel %vm2155, %v3686, 0
      %v3736 = vsel %vm2155, %v3687, 0
      %v3739 = vsel %vm2155, %v3688, 0
      %v3742 = vsel %vm2155, %v3689, 0
      %v3745 = vsel %vm2155, %v3690, 0
      %v3748 = vsel %vm2155, %v3691, 0
      %v3751 = vsel %vm2155, %v3692, 0
      %v3754 = vsel %vm2155, %v3693, 0
      %3756 = vmatpush.msra.mxu0 0.0
      %3757 = vmatpush.msra.mxu0 0.0
      %3758 = vmatpush.msra.mxu0 0.0
      %3759 = vmatpush.msra.mxu0 0.0
      %3760 = vmatpush.msra.mxu0 0.0
      %3761 = vmatpush.msra.mxu0 0.0
      %3762 = vmatpush.msra.mxu0 0.0
      %3763 = vmatpush.msra.mxu0 0.0
      %3764 = vmatpush.msra.mxu0 0.0
      %3765 = vmatpush.msra.mxu0 0.0
      %3766 = vmatpush.msra.mxu0 0.0
      %3767 = vmatpush.msra.mxu0 0.0
      %3768 = vmatpush.msra.mxu0 0.0
      %3769 = vmatpush.msra.mxu0 0.0
      %3770 = vmatpush.msra.mxu0 0.0
      %3771 = vmatpush.msra.mxu0 %v3695
      %3772 = vmatmul.f32.gmra.mxu0 %v3697
      %v3773 = vpop.f32.mrf.mxu0
      %v3774 = vadd.f32 0.0, %v3773
      %3775 = vmatmul.f32.gmra.mxu0 %v3700
      %v3776 = vpop.f32.mrf.mxu0
      %v3777 = vadd.f32 0.0, %v3776
      %3778 = vmatmul.f32.gmra.mxu0 %v3703
      %v3779 = vpop.f32.mrf.mxu0
      %v3780 = vadd.f32 0.0, %v3779
      %3781 = vmatmul.f32.gmra.mxu0 %v3706
      %v3782 = vpop.f32.mrf.mxu0
      %v3783 = vadd.f32 0.0, %v3782
      %3784 = vmatmul.f32.gmra.mxu0 %v3709
      %v3785 = vpop.f32.mrf.mxu0
      %v3786 = vadd.f32 0.0, %v3785
      %3787 = vmatmul.f32.gmra.mxu0 %v3712
      %v3788 = vpop.f32.mrf.mxu0
      %v3789 = vadd.f32 0.0, %v3788
      %3790 = vmatmul.f32.gmra.mxu0 %v3715
      %v3791 = vpop.f32.mrf.mxu0
      %v3792 = vadd.f32 0.0, %v3791
      %3793 = vmatmul.f32.gmra.mxu0 %v3718
      %v3794 = vpop.f32.mrf.mxu0
      %v3795 = vadd.f32 0.0, %v3794
      %3796 = vmatmul.f32.gmra.mxu0 %v3721
      %v3797 = vpop.f32.mrf.mxu0
      %v3798 = vadd.f32 0.0, %v3797
      %3799 = vmatmul.f32.gmra.mxu0 %v3724
      %v3800 = vpop.f32.mrf.mxu0
      %v3801 = vadd.f32 0.0, %v3800
      %3802 = vmatmul.f32.gmra.mxu0 %v3727
      %v3803 = vpop.f32.mrf.mxu0
      %v3804 = vadd.f32 0.0, %v3803
      %3805 = vmatmul.f32.gmra.mxu0 %v3730
      %v3806 = vpop.f32.mrf.mxu0
      %v3807 = vadd.f32 0.0, %v3806
      %3808 = vmatmul.f32.gmra.mxu0 %v3733
      %v3809 = vpop.f32.mrf.mxu0
      %v3810 = vadd.f32 0.0, %v3809
      %3811 = vmatmul.f32.gmra.mxu0 %v3736
      %v3812 = vpop.f32.mrf.mxu0
      %v3813 = vadd.f32 0.0, %v3812
      %3814 = vmatmul.f32.gmra.mxu0 %v3739
      %v3815 = vpop.f32.mrf.mxu0
      %v3816 = vadd.f32 0.0, %v3815
      %3817 = vmatmul.f32.gmra.mxu0 %v3742
      %v3818 = vpop.f32.mrf.mxu0
      %v3819 = vadd.f32 0.0, %v3818
      %3820 = vmatmul.f32.gmra.mxu0 %v3745
      %v3821 = vpop.f32.mrf.mxu0
      %v3822 = vadd.f32 0.0, %v3821
      %3823 = vmatmul.f32.gmra.mxu0 %v3748
      %v3824 = vpop.f32.mrf.mxu0
      %v3825 = vadd.f32 0.0, %v3824
      %3826 = vmatmul.f32.gmra.mxu0 %v3751
      %v3827 = vpop.f32.mrf.mxu0
      %v3828 = vadd.f32 0.0, %v3827
      %3829 = vmatmul.f32.gmra.mxu0 %v3754
      %v3830 = vpop.f32.mrf.mxu0
      %v3831 = vadd.f32 0.0, %v3830
      %3832 = vdwg.mxu0
      %v3833 = vld [vmem:[#allocation4] sm:$0xff]
      %v3834 = vld [vmem:[#allocation4 + $0x8] sm:$0xff]
      %v3835 = vld [vmem:[#allocation4 + $0x10] sm:$0xff]
      %v3836 = vld [vmem:[#allocation4 + $0x18] sm:$0xff]
      %v3837 = vld [vmem:[#allocation4 + $0x20] sm:$0xff]
      %v3838 = vld [vmem:[#allocation4 + $0x28] sm:$0xff]
      %v3839 = vld [vmem:[#allocation4 + $0x30] sm:$0xff]
      %v3840 = vld [vmem:[#allocation4 + $0x38] sm:$0xff]
      %v3841 = vld [vmem:[#allocation4 + $0x40] sm:$0xff]
      %v3842 = vld [vmem:[#allocation4 + $0x48] sm:$0xff]
      %v3843 = vld [vmem:[#allocation4 + $0x50] sm:$0xff]
      %v3844 = vld [vmem:[#allocation4 + $0x58] sm:$0xff]
      %v3845 = vld [vmem:[#allocation4 + $0x60] sm:$0xff]
      %v3846 = vld [vmem:[#allocation4 + $0x68] sm:$0xff]
      %v3847 = vld [vmem:[#allocation4 + $0x70] sm:$0xff]
      %v3848 = vld [vmem:[#allocation4 + $0x78] sm:$0xff]
      %v3849 = vld [vmem:[#allocation4 + $0x80] sm:$0xff]
      %v3850 = vld [vmem:[#allocation4 + $0x88] sm:$0xff]
      %v3851 = vld [vmem:[#allocation4 + $0x90] sm:$0xff]
      %v3852 = vld [vmem:[#allocation4 + $0x98] sm:$0xff]
      %v3853 = vadd.f32 %v3833, %v3774
      %v3854 = vadd.f32 %v3834, %v3777
      %v3855 = vadd.f32 %v3835, %v3780
      %v3856 = vadd.f32 %v3836, %v3783
      %v3857 = vadd.f32 %v3837, %v3786
      %v3858 = vadd.f32 %v3838, %v3789
      %v3859 = vadd.f32 %v3839, %v3792
      %v3860 = vadd.f32 %v3840, %v3795
      %v3861 = vadd.f32 %v3841, %v3798
      %v3862 = vadd.f32 %v3842, %v3801
      %v3863 = vadd.f32 %v3843, %v3804
      %v3864 = vadd.f32 %v3844, %v3807
      %v3865 = vadd.f32 %v3845, %v3810
      %v3866 = vadd.f32 %v3846, %v3813
      %v3867 = vadd.f32 %v3847, %v3816
      %v3868 = vadd.f32 %v3848, %v3819
      %v3869 = vadd.f32 %v3849, %v3822
      %v3870 = vadd.f32 %v3850, %v3825
      %v3871 = vadd.f32 %v3851, %v3828
      %v3872 = vadd.f32 %v3852, %v3831
      %3873 = vst.msk [vmem:[#allocation4] sm:$0xff] %vm923, %v3853
      %3874 = vst.msk [vmem:[#allocation4 + $0x8] sm:$0xff] %vm923, %v3854
      %3875 = vst.msk [vmem:[#allocation4 + $0x10] sm:$0xff] %vm923, %v3855
      %3876 = vst.msk [vmem:[#allocation4 + $0x18] sm:$0xff] %vm923, %v3856
      %3877 = vst.msk [vmem:[#allocation4 + $0x20] sm:$0xff] %vm923, %v3857
      %3878 = vst.msk [vmem:[#allocation4 + $0x28] sm:$0xff] %vm923, %v3858
      %3879 = vst.msk [vmem:[#allocation4 + $0x30] sm:$0xff] %vm923, %v3859
      %3880 = vst.msk [vmem:[#allocation4 + $0x38] sm:$0xff] %vm923, %v3860
      %3881 = vst.msk [vmem:[#allocation4 + $0x40] sm:$0xff] %vm923, %v3861
      %3882 = vst.msk [vmem:[#allocation4 + $0x48] sm:$0xff] %vm923, %v3862
      %3883 = vst.msk [vmem:[#allocation4 + $0x50] sm:$0xff] %vm923, %v3863
      %3884 = vst.msk [vmem:[#allocation4 + $0x58] sm:$0xff] %vm923, %v3864
      %3885 = vst.msk [vmem:[#allocation4 + $0x60] sm:$0xff] %vm923, %v3865
      %3886 = vst.msk [vmem:[#allocation4 + $0x68] sm:$0xff] %vm923, %v3866
      %3887 = vst.msk [vmem:[#allocation4 + $0x70] sm:$0xff] %vm923, %v3867
      %3888 = vst.msk [vmem:[#allocation4 + $0x78] sm:$0xff] %vm923, %v3868
      %3889 = vst.msk [vmem:[#allocation4 + $0x80] sm:$0xff] %vm923, %v3869
      %3890 = vst.msk [vmem:[#allocation4 + $0x88] sm:$0xff] %vm923, %v3870
      %3891 = vst.msk [vmem:[#allocation4 + $0x90] sm:$0xff] %vm923, %v3871
      %3892 = vst.msk [vmem:[#allocation4 + $0x98] sm:$0xff] %vm923, %v3872
      %v3893 = vld [vmem:[%s3454 + $0x2] sm:$0xff]
      %v3894 = vld [vmem:[%s3454 + $0xa] sm:$0xff]
      %v3895 = vld [vmem:[%s3454 + $0x1a] sm:$0xff]
      %v3896 = vld [vmem:[%s3454 + $0x22] sm:$0xff]
      %v3897 = vld [vmem:[%s3454 + $0x32] sm:$0xff]
      %v3898 = vld [vmem:[%s3454 + $0x3a] sm:$0xff]
      %v3899 = vld [vmem:[%s3454 + $0x4a] sm:$0xff]
      %v3900 = vld [vmem:[%s3454 + $0x52] sm:$0xff]
      %v3901 = vld [vmem:[%s3454 + $0x62] sm:$0xff]
      %v3902 = vld [vmem:[%s3454 + $0x6a] sm:$0xff]
      %v3903 = vld [vmem:[%s3454 + $0x7a] sm:$0xff]
      %v3904 = vld [vmem:[%s3454 + $0x82] sm:$0xff]
      %v3905 = vld [vmem:[%s3454 + $0x92] sm:$0xff]
      %v3906 = vld [vmem:[%s3454 + $0x9a] sm:$0xff]
      %v3907 = vld [vmem:[%s3454 + $0xaa] sm:$0xff]
      %v3908 = vld [vmem:[%s3454 + $0xb2] sm:$0xff]
      %v3909 = vld [vmem:[%s3454 + $0xc2] sm:$0xff]
      %v3910 = vld [vmem:[%s3454 + $0xca] sm:$0xff]
      %v3911 = vld [vmem:[%s3454 + $0xda] sm:$0xff]
      %v3912 = vld [vmem:[%s3454 + $0xe2] sm:$0xff]
      %s3913 = scalar_lea.vmem %s11, 64
      %v3914 = vld [vmem:[%s3913] sm:$0xff]
      %v3916 = vsel %vm2155, %v3893, 0
      %v3919 = vsel %vm2155, %v3894, 0
      %v3922 = vsel %vm2155, %v3895, 0
      %v3925 = vsel %vm2155, %v3896, 0
      %v3928 = vsel %vm2155, %v3897, 0
      %v3931 = vsel %vm2155, %v3898, 0
      %v3934 = vsel %vm2155, %v3899, 0
      %v3937 = vsel %vm2155, %v3900, 0
      %v3940 = vsel %vm2155, %v3901, 0
      %v3943 = vsel %vm2155, %v3902, 0
      %v3946 = vsel %vm2155, %v3903, 0
      %v3949 = vsel %vm2155, %v3904, 0
      %v3952 = vsel %vm2155, %v3905, 0
      %v3955 = vsel %vm2155, %v3906, 0
      %v3958 = vsel %vm2155, %v3907, 0
      %v3961 = vsel %vm2155, %v3908, 0
      %v3964 = vsel %vm2155, %v3909, 0
      %v3967 = vsel %vm2155, %v3910, 0
      %v3970 = vsel %vm2155, %v3911, 0
      %v3973 = vsel %vm2155, %v3912, 0
      %3975 = vmatpush.msra.mxu0 0.0
      %3976 = vmatpush.msra.mxu0 0.0
      %3977 = vmatpush.msra.mxu0 0.0
      %3978 = vmatpush.msra.mxu0 0.0
      %3979 = vmatpush.msra.mxu0 0.0
      %3980 = vmatpush.msra.mxu0 0.0
      %3981 = vmatpush.msra.mxu0 0.0
      %3982 = vmatpush.msra.mxu0 0.0
      %3983 = vmatpush.msra.mxu0 0.0
      %3984 = vmatpush.msra.mxu0 0.0
      %3985 = vmatpush.msra.mxu0 0.0
      %3986 = vmatpush.msra.mxu0 0.0
      %3987 = vmatpush.msra.mxu0 0.0
      %3988 = vmatpush.msra.mxu0 0.0
      %3989 = vmatpush.msra.mxu0 0.0
      %3990 = vmatpush.msra.mxu0 %v3914
      %3991 = vmatmul.f32.gmra.mxu0 %v3916
      %v3992 = vpop.f32.mrf.mxu0
      %v3993 = vadd.f32 0.0, %v3992
      %3994 = vmatmul.f32.gmra.mxu0 %v3919
      %v3995 = vpop.f32.mrf.mxu0
      %v3996 = vadd.f32 0.0, %v3995
      %3997 = vmatmul.f32.gmra.mxu0 %v3922
      %v3998 = vpop.f32.mrf.mxu0
      %v3999 = vadd.f32 0.0, %v3998
      %4000 = vmatmul.f32.gmra.mxu0 %v3925
      %v4001 = vpop.f32.mrf.mxu0
      %v4002 = vadd.f32 0.0, %v4001
      %4003 = vmatmul.f32.gmra.mxu0 %v3928
      %v4004 = vpop.f32.mrf.mxu0
      %v4005 = vadd.f32 0.0, %v4004
      %4006 = vmatmul.f32.gmra.mxu0 %v3931
      %v4007 = vpop.f32.mrf.mxu0
      %v4008 = vadd.f32 0.0, %v4007
      %4009 = vmatmul.f32.gmra.mxu0 %v3934
      %v4010 = vpop.f32.mrf.mxu0
      %v4011 = vadd.f32 0.0, %v4010
      %4012 = vmatmul.f32.gmra.mxu0 %v3937
      %v4013 = vpop.f32.mrf.mxu0
      %v4014 = vadd.f32 0.0, %v4013
      %4015 = vmatmul.f32.gmra.mxu0 %v3940
      %v4016 = vpop.f32.mrf.mxu0
      %v4017 = vadd.f32 0.0, %v4016
      %4018 = vmatmul.f32.gmra.mxu0 %v3943
      %v4019 = vpop.f32.mrf.mxu0
      %v4020 = vadd.f32 0.0, %v4019
      %4021 = vmatmul.f32.gmra.mxu0 %v3946
      %v4022 = vpop.f32.mrf.mxu0
      %v4023 = vadd.f32 0.0, %v4022
      %4024 = vmatmul.f32.gmra.mxu0 %v3949
      %v4025 = vpop.f32.mrf.mxu0
      %v4026 = vadd.f32 0.0, %v4025
      %4027 = vmatmul.f32.gmra.mxu0 %v3952
      %v4028 = vpop.f32.mrf.mxu0
      %v4029 = vadd.f32 0.0, %v4028
      %4030 = vmatmul.f32.gmra.mxu0 %v3955
      %v4031 = vpop.f32.mrf.mxu0
      %v4032 = vadd.f32 0.0, %v4031
      %4033 = vmatmul.f32.gmra.mxu0 %v3958
      %v4034 = vpop.f32.mrf.mxu0
      %v4035 = vadd.f32 0.0, %v4034
      %4036 = vmatmul.f32.gmra.mxu0 %v3961
      %v4037 = vpop.f32.mrf.mxu0
      %v4038 = vadd.f32 0.0, %v4037
      %4039 = vmatmul.f32.gmra.mxu0 %v3964
      %v4040 = vpop.f32.mrf.mxu0
      %v4041 = vadd.f32 0.0, %v4040
      %4042 = vmatmul.f32.gmra.mxu0 %v3967
      %v4043 = vpop.f32.mrf.mxu0
      %v4044 = vadd.f32 0.0, %v4043
      %4045 = vmatmul.f32.gmra.mxu0 %v3970
      %v4046 = vpop.f32.mrf.mxu0
      %v4047 = vadd.f32 0.0, %v4046
      %4048 = vmatmul.f32.gmra.mxu0 %v3973
      %v4049 = vpop.f32.mrf.mxu0
      %v4050 = vadd.f32 0.0, %v4049
      %4051 = vdwg.mxu0
      %v4052 = vld [vmem:[#allocation4] sm:$0xff]
      %v4053 = vld [vmem:[#allocation4 + $0x8] sm:$0xff]
      %v4054 = vld [vmem:[#allocation4 + $0x10] sm:$0xff]
      %v4055 = vld [vmem:[#allocation4 + $0x18] sm:$0xff]
      %v4056 = vld [vmem:[#allocation4 + $0x20] sm:$0xff]
      %v4057 = vld [vmem:[#allocation4 + $0x28] sm:$0xff]
      %v4058 = vld [vmem:[#allocation4 + $0x30] sm:$0xff]
      %v4059 = vld [vmem:[#allocation4 + $0x38] sm:$0xff]
      %v4060 = vld [vmem:[#allocation4 + $0x40] sm:$0xff]
      %v4061 = vld [vmem:[#allocation4 + $0x48] sm:$0xff]
      %v4062 = vld [vmem:[#allocation4 + $0x50] sm:$0xff]
      %v4063 = vld [vmem:[#allocation4 + $0x58] sm:$0xff]
      %v4064 = vld [vmem:[#allocation4 + $0x60] sm:$0xff]
      %v4065 = vld [vmem:[#allocation4 + $0x68] sm:$0xff]
      %v4066 = vld [vmem:[#allocation4 + $0x70] sm:$0xff]
      %v4067 = vld [vmem:[#allocation4 + $0x78] sm:$0xff]
      %v4068 = vld [vmem:[#allocation4 + $0x80] sm:$0xff]
      %v4069 = vld [vmem:[#allocation4 + $0x88] sm:$0xff]
      %v4070 = vld [vmem:[#allocation4 + $0x90] sm:$0xff]
      %v4071 = vld [vmem:[#allocation4 + $0x98] sm:$0xff]
      %v4072 = vadd.f32 %v4052, %v3993
      %v4073 = vadd.f32 %v4053, %v3996
      %v4074 = vadd.f32 %v4054, %v3999
      %v4075 = vadd.f32 %v4055, %v4002
      %v4076 = vadd.f32 %v4056, %v4005
      %v4077 = vadd.f32 %v4057, %v4008
      %v4078 = vadd.f32 %v4058, %v4011
      %v4079 = vadd.f32 %v4059, %v4014
      %v4080 = vadd.f32 %v4060, %v4017
      %v4081 = vadd.f32 %v4061, %v4020
      %v4082 = vadd.f32 %v4062, %v4023
      %v4083 = vadd.f32 %v4063, %v4026
      %v4084 = vadd.f32 %v4064, %v4029
      %v4085 = vadd.f32 %v4065, %v4032
      %v4086 = vadd.f32 %v4066, %v4035
      %v4087 = vadd.f32 %v4067, %v4038
      %v4088 = vadd.f32 %v4068, %v4041
      %v4089 = vadd.f32 %v4069, %v4044
      %v4090 = vadd.f32 %v4070, %v4047
      %v4091 = vadd.f32 %v4071, %v4050
      %4092 = vst.msk [vmem:[#allocation4] sm:$0xff] %vm923, %v4072
      %4093 = vst.msk [vmem:[#allocation4 + $0x8] sm:$0xff] %vm923, %v4073
      %4094 = vst.msk [vmem:[#allocation4 + $0x10] sm:$0xff] %vm923, %v4074
      %4095 = vst.msk [vmem:[#allocation4 + $0x18] sm:$0xff] %vm923, %v4075
      %4096 = vst.msk [vmem:[#allocation4 + $0x20] sm:$0xff] %vm923, %v4076
      %4097 = vst.msk [vmem:[#allocation4 + $0x28] sm:$0xff] %vm923, %v4077
      %4098 = vst.msk [vmem:[#allocation4 + $0x30] sm:$0xff] %vm923, %v4078
      %4099 = vst.msk [vmem:[#allocation4 + $0x38] sm:$0xff] %vm923, %v4079
      %4100 = vst.msk [vmem:[#allocation4 + $0x40] sm:$0xff] %vm923, %v4080
      %4101 = vst.msk [vmem:[#allocation4 + $0x48] sm:$0xff] %vm923, %v4081
      %4102 = vst.msk [vmem:[#allocation4 + $0x50] sm:$0xff] %vm923, %v4082
      %4103 = vst.msk [vmem:[#allocation4 + $0x58] sm:$0xff] %vm923, %v4083
      %4104 = vst.msk [vmem:[#allocation4 + $0x60] sm:$0xff] %vm923, %v4084
      %4105 = vst.msk [vmem:[#allocation4 + $0x68] sm:$0xff] %vm923, %v4085
      %4106 = vst.msk [vmem:[#allocation4 + $0x70] sm:$0xff] %vm923, %v4086
      %4107 = vst.msk [vmem:[#allocation4 + $0x78] sm:$0xff] %vm923, %v4087
      %4108 = vst.msk [vmem:[#allocation4 + $0x80] sm:$0xff] %vm923, %v4088
      %4109 = vst.msk [vmem:[#allocation4 + $0x88] sm:$0xff] %vm923, %v4089
      %4110 = vst.msk [vmem:[#allocation4 + $0x90] sm:$0xff] %vm923, %v4090
      %4111 = vst.msk [vmem:[#allocation4 + $0x98] sm:$0xff] %vm923, %v4091
      %v4112 = vld [vmem:[#allocation4] sm:$0xff]
      %v4113 = vld [vmem:[#allocation4 + $0x8] sm:$0xff]
      %v4114 = vld [vmem:[#allocation4 + $0x10] sm:$0xff]
      %v4115 = vld [vmem:[#allocation4 + $0x18] sm:$0xff]
      %v4116 = vld [vmem:[#allocation4 + $0x20] sm:$0xff]
      %v4117 = vld [vmem:[#allocation4 + $0x28] sm:$0xff]
      %v4118 = vld [vmem:[#allocation4 + $0x30] sm:$0xff]
      %v4119 = vld [vmem:[#allocation4 + $0x38] sm:$0xff]
      %v4120 = vld [vmem:[#allocation4 + $0x40] sm:$0xff]
      %v4121 = vld [vmem:[#allocation4 + $0x48] sm:$0xff]
      %v4122 = vld [vmem:[#allocation4 + $0x50] sm:$0xff]
      %v4123 = vld [vmem:[#allocation4 + $0x58] sm:$0xff]
      %v4124 = vld [vmem:[#allocation4 + $0x60] sm:$0xff]
      %v4125 = vld [vmem:[#allocation4 + $0x68] sm:$0xff]
      %v4126 = vld [vmem:[#allocation4 + $0x70] sm:$0xff]
      %v4127 = vld [vmem:[#allocation4 + $0x78] sm:$0xff]
      %v4128 = vld [vmem:[#allocation4 + $0x80] sm:$0xff]
      %v4129 = vld [vmem:[#allocation4 + $0x88] sm:$0xff]
      %v4130 = vld [vmem:[#allocation4 + $0x90] sm:$0xff]
      %v4131 = vld [vmem:[#allocation4 + $0x98] sm:$0xff]
      %v4132 = vld [vmem:[%s12] sm:$0x1]
      %v4134 = vperm.slane %v4132, 0
      %v4136 = vadd.f32 %v4112, %v4134
      %v4137 = vadd.f32 %v4113, %v4134
      %v4138 = vadd.f32 %v4114, %v4134
      %v4139 = vadd.f32 %v4115, %v4134
      %v4140 = vadd.f32 %v4116, %v4134
      %v4141 = vadd.f32 %v4117, %v4134
      %v4142 = vadd.f32 %v4118, %v4134
      %v4143 = vadd.f32 %v4119, %v4134
      %v4144 = vadd.f32 %v4120, %v4134
      %v4145 = vadd.f32 %v4121, %v4134
      %v4146 = vadd.f32 %v4122, %v4134
      %v4147 = vadd.f32 %v4123, %v4134
      %v4148 = vadd.f32 %v4124, %v4134
      %v4149 = vadd.f32 %v4125, %v4134
      %v4150 = vadd.f32 %v4126, %v4134
      %v4151 = vadd.f32 %v4127, %v4134
      %v4152 = vadd.f32 %v4128, %v4134
      %v4153 = vadd.f32 %v4129, %v4134
      %v4154 = vadd.f32 %v4130, %v4134
      %v4155 = vadd.f32 %v4131, %v4134
      %v4156 = vmax.f32 %v4136, 0.0
      %v4157 = vmax.f32 %v4137, 0.0
      %v4158 = vmax.f32 %v4138, 0.0
      %v4159 = vmax.f32 %v4139, 0.0
      %v4160 = vmax.f32 %v4140, 0.0
      %v4161 = vmax.f32 %v4141, 0.0
      %v4162 = vmax.f32 %v4142, 0.0
      %v4163 = vmax.f32 %v4143, 0.0
      %v4164 = vmax.f32 %v4144, 0.0
      %v4165 = vmax.f32 %v4145, 0.0
      %v4166 = vmax.f32 %v4146, 0.0
      %v4167 = vmax.f32 %v4147, 0.0
      %v4168 = vmax.f32 %v4148, 0.0
      %v4169 = vmax.f32 %v4149, 0.0
      %v4170 = vmax.f32 %v4150, 0.0
      %v4171 = vmax.f32 %v4151, 0.0
      %v4172 = vmax.f32 %v4152, 0.0
      %v4173 = vmax.f32 %v4153, 0.0
      %v4174 = vmax.f32 %v4154, 0.0
      %v4175 = vmax.f32 %v4155, 0.0
      %vm4176 = vcmask 24576
      %4177 = vst.msk [vmem:[#allocation3] sm:$0x1] %vm4176, 0.0
      %4178 = vst.msk [vmem:[#allocation3 + $0x18] sm:$0x1] %vm4176, 0.0
      %4179 = vst.msk [vmem:[#allocation3 + $0x30] sm:$0x1] %vm4176, 0.0
      %4180 = vst.msk [vmem:[#allocation3 + $0x48] sm:$0x1] %vm4176, 0.0
      %4181 = vst.msk [vmem:[#allocation3 + $0x60] sm:$0x1] %vm4176, 0.0
      %4182 = vst.msk [vmem:[#allocation3 + $0x78] sm:$0x1] %vm4176, 0.0
      %4183 = vst.msk [vmem:[#allocation3 + $0x90] sm:$0x1] %vm4176, 0.0
      %4184 = vst.msk [vmem:[#allocation3 + $0xa8] sm:$0x1] %vm4176, 0.0
      %4185 = vst.msk [vmem:[#allocation3 + $0xc0] sm:$0x1] %vm4176, 0.0
      %4186 = vst.msk [vmem:[#allocation3 + $0xd8] sm:$0x1] %vm4176, 0.0
      %4187 = vst.msk [vmem:[#allocation3 + $0x11] sm:$0x1] %vm4176, 0.0
      %4188 = vst.msk [vmem:[#allocation3 + $0x29] sm:$0x1] %vm4176, 0.0
      %4189 = vst.msk [vmem:[#allocation3 + $0x41] sm:$0x1] %vm4176, 0.0
      %4190 = vst.msk [vmem:[#allocation3 + $0x59] sm:$0x1] %vm4176, 0.0
      %4191 = vst.msk [vmem:[#allocation3 + $0x71] sm:$0x1] %vm4176, 0.0
      %4192 = vst.msk [vmem:[#allocation3 + $0x89] sm:$0x1] %vm4176, 0.0
      %4193 = vst.msk [vmem:[#allocation3 + $0xa1] sm:$0x1] %vm4176, 0.0
      %4194 = vst.msk [vmem:[#allocation3 + $0xb9] sm:$0x1] %vm4176, 0.0
      %4195 = vst.msk [vmem:[#allocation3 + $0xd1] sm:$0x1] %vm4176, 0.0
      %4196 = vst.msk [vmem:[#allocation3 + $0xe9] sm:$0x1] %vm4176, 0.0
      %4197 = vst.msk [vmem:[#allocation3 + $0x1] sm:$0xff] %vm923, %v4156
      %4198 = vst.msk [vmem:[#allocation3 + $0x9] sm:$0xff] %vm923, %v4157
      %4199 = vst.msk [vmem:[#allocation3 + $0x19] sm:$0xff] %vm923, %v4158
      %4200 = vst.msk [vmem:[#allocation3 + $0x21] sm:$0xff] %vm923, %v4159
      %4201 = vst.msk [vmem:[#allocation3 + $0x31] sm:$0xff] %vm923, %v4160
      %4202 = vst.msk [vmem:[#allocation3 + $0x39] sm:$0xff] %vm923, %v4161
      %4203 = vst.msk [vmem:[#allocation3 + $0x49] sm:$0xff] %vm923, %v4162
      %4204 = vst.msk [vmem:[#allocation3 + $0x51] sm:$0xff] %vm923, %v4163
      %4205 = vst.msk [vmem:[#allocation3 + $0x61] sm:$0xff] %vm923, %v4164
      %4206 = vst.msk [vmem:[#allocation3 + $0x69] sm:$0xff] %vm923, %v4165
      %4207 = vst.msk [vmem:[#allocation3 + $0x79] sm:$0xff] %vm923, %v4166
      %4208 = vst.msk [vmem:[#allocation3 + $0x81] sm:$0xff] %vm923, %v4167
      %4209 = vst.msk [vmem:[#allocation3 + $0x91] sm:$0xff] %vm923, %v4168
      %4210 = vst.msk [vmem:[#allocation3 + $0x99] sm:$0xff] %vm923, %v4169
      %4211 = vst.msk [vmem:[#allocation3 + $0xa9] sm:$0xff] %vm923, %v4170
      %4212 = vst.msk [vmem:[#allocation3 + $0xb1] sm:$0xff] %vm923, %v4171
      %4213 = vst.msk [vmem:[#allocation3 + $0xc1] sm:$0xff] %vm923, %v4172
      %4214 = vst.msk [vmem:[#allocation3 + $0xc9] sm:$0xff] %vm923, %v4173
      %4215 = vst.msk [vmem:[#allocation3 + $0xd9] sm:$0xff] %vm923, %v4174
      %4216 = vst.msk [vmem:[#allocation3 + $0xe1] sm:$0xff] %vm923, %v4175
      %p4217 = scmp.eq.s32.totalorder %s34, 0
      // Predicated region
      $region85: #{upblock_forward.3} parent=83 // pred_check
        %p4218 = pneg %p4217
      $region86: #{upblock_forward.3} parent=83 // pred_check_branch
        %4220 = sbr.rel (%p4218) target = $region88
      $region87: #{upblock_forward.3} parent=83 // pred_region
        %4221 = vst.msk [vmem:[#allocation3] sm:$0xff] %vm923, 0.0
        %4222 = vst.msk [vmem:[#allocation3 + $0x8] sm:$0xff] %vm923, 0.0
        %vm4223 = vcmask 25600
        %4224 = vst.msk [vmem:[#allocation3 + $0x10] sm:$0x3] %vm4223, 0.0
      $region88: #{upblock_forward.3} parent=83 // pred_fallthru
        _
      %p4225 = scmp.eq.s32.totalorder %s34, 1
      // Predicated region
      $region89: #{upblock_forward.3} parent=83 // pred_check
        %p4226 = pneg %p4225
      $region90: #{upblock_forward.3} parent=83 // pred_check_branch
        %4228 = sbr.rel (%p4226) target = $region92
      $region91: #{upblock_forward.3} parent=83 // pred_region
        %s4229 = scalar_lea.vmem [#allocation3], 216
        %4230 = vst.msk [vmem:[%s4229] sm:$0xff] %vm923, 0.0
        %4231 = vst.msk [vmem:[%s4229 + $0x8] sm:$0xff] %vm923, 0.0
        %vm4232 = vcmask 25600
        %4233 = vst.msk [vmem:[%s4229 + $0x10] sm:$0x3] %vm4232, 0.0
      $region92: #{upblock_forward.3} parent=83 // pred_fallthru
        _
      %v4234 = vld [vmem:[%s3454 + $0x1] sm:$0xff]
      %v4235 = vld [vmem:[%s3454 + $0x9] sm:$0xff]
      %v4236 = vld [vmem:[%s3454 + $0x19] sm:$0xff]
      %v4237 = vld [vmem:[%s3454 + $0x21] sm:$0xff]
      %v4238 = vld [vmem:[%s3454 + $0x31] sm:$0xff]
      %v4239 = vld [vmem:[%s3454 + $0x39] sm:$0xff]
      %v4240 = vld [vmem:[%s3454 + $0x49] sm:$0xff]
      %v4241 = vld [vmem:[%s3454 + $0x51] sm:$0xff]
      %v4242 = vld [vmem:[%s3454 + $0x61] sm:$0xff]
      %v4243 = vld [vmem:[%s3454 + $0x69] sm:$0xff]
      %v4244 = vld [vmem:[%s3454 + $0x79] sm:$0xff]
      %v4245 = vld [vmem:[%s3454 + $0x81] sm:$0xff]
      %v4246 = vld [vmem:[%s3454 + $0x91] sm:$0xff]
      %v4247 = vld [vmem:[%s3454 + $0x99] sm:$0xff]
      %v4248 = vld [vmem:[%s3454 + $0xa9] sm:$0xff]
      %v4249 = vld [vmem:[%s3454 + $0xb1] sm:$0xff]
      %v4250 = vld [vmem:[%s14] sm:$0xff]
      %v4251 = vld [vmem:[%s15] sm:$0x1]
      %v4253 = vperm.slane %v4251, 0
      %v4256 = vsel %vm2155, %v4234, 0
      %v4259 = vsel %vm2155, %v4235, 0
      %v4262 = vsel %vm2155, %v4236, 0
      %v4265 = vsel %vm2155, %v4237, 0
      %v4268 = vsel %vm2155, %v4238, 0
      %v4271 = vsel %vm2155, %v4239, 0
      %v4274 = vsel %vm2155, %v4240, 0
      %v4277 = vsel %vm2155, %v4241, 0
      %v4280 = vsel %vm2155, %v4242, 0
      %v4283 = vsel %vm2155, %v4243, 0
      %v4286 = vsel %vm2155, %v4244, 0
      %v4289 = vsel %vm2155, %v4245, 0
      %v4292 = vsel %vm2155, %v4246, 0
      %v4295 = vsel %vm2155, %v4247, 0
      %v4298 = vsel %vm2155, %v4248, 0
      %v4301 = vsel %vm2155, %v4249, 0
      %4303 = vmatpush.msra.mxu0 0.0
      %4304 = vmatpush.msra.mxu0 0.0
      %4305 = vmatpush.msra.mxu0 0.0
      %4306 = vmatpush.msra.mxu0 0.0
      %4307 = vmatpush.msra.mxu0 0.0
      %4308 = vmatpush.msra.mxu0 0.0
      %4309 = vmatpush.msra.mxu0 0.0
      %4310 = vmatpush.msra.mxu0 0.0
      %4311 = vmatpush.msra.mxu0 0.0
      %4312 = vmatpush.msra.mxu0 0.0
      %4313 = vmatpush.msra.mxu0 0.0
      %4314 = vmatpush.msra.mxu0 0.0
      %4315 = vmatpush.msra.mxu0 0.0
      %4316 = vmatpush.msra.mxu0 0.0
      %4317 = vmatpush.msra.mxu0 0.0
      %4318 = vmatpush.msra.mxu0 %v4250
      %4319 = vmatmul.f32.gmra.mxu0 %v4256
      %v4320 = vpop.f32.mrf.mxu0
      %v4321 = vadd.f32 %v4253, %v4320
      %4322 = vmatmul.f32.gmra.mxu0 %v4259
      %v4323 = vpop.f32.mrf.mxu0
      %v4324 = vadd.f32 %v4253, %v4323
      %4325 = vmatmul.f32.gmra.mxu0 %v4262
      %v4326 = vpop.f32.mrf.mxu0
      %v4327 = vadd.f32 %v4253, %v4326
      %4328 = vmatmul.f32.gmra.mxu0 %v4265
      %v4329 = vpop.f32.mrf.mxu0
      %v4330 = vadd.f32 %v4253, %v4329
      %4331 = vmatmul.f32.gmra.mxu0 %v4268
      %v4332 = vpop.f32.mrf.mxu0
      %v4333 = vadd.f32 %v4253, %v4332
      %4334 = vmatmul.f32.gmra.mxu0 %v4271
      %v4335 = vpop.f32.mrf.mxu0
      %v4336 = vadd.f32 %v4253, %v4335
      %4337 = vmatmul.f32.gmra.mxu0 %v4274
      %v4338 = vpop.f32.mrf.mxu0
      %v4339 = vadd.f32 %v4253, %v4338
      %4340 = vmatmul.f32.gmra.mxu0 %v4277
      %v4341 = vpop.f32.mrf.mxu0
      %v4342 = vadd.f32 %v4253, %v4341
      %4343 = vmatmul.f32.gmra.mxu0 %v4280
      %v4344 = vpop.f32.mrf.mxu0
      %v4345 = vadd.f32 %v4253, %v4344
      %4346 = vmatmul.f32.gmra.mxu0 %v4283
      %v4347 = vpop.f32.mrf.mxu0
      %v4348 = vadd.f32 %v4253, %v4347
      %4349 = vmatmul.f32.gmra.mxu0 %v4286
      %v4350 = vpop.f32.mrf.mxu0
      %v4351 = vadd.f32 %v4253, %v4350
      %4352 = vmatmul.f32.gmra.mxu0 %v4289
      %v4353 = vpop.f32.mrf.mxu0
      %v4354 = vadd.f32 %v4253, %v4353
      %4355 = vmatmul.f32.gmra.mxu0 %v4292
      %v4356 = vpop.f32.mrf.mxu0
      %v4357 = vadd.f32 %v4253, %v4356
      %4358 = vmatmul.f32.gmra.mxu0 %v4295
      %v4359 = vpop.f32.mrf.mxu0
      %v4360 = vadd.f32 %v4253, %v4359
      %4361 = vmatmul.f32.gmra.mxu0 %v4298
      %v4362 = vpop.f32.mrf.mxu0
      %v4363 = vadd.f32 %v4253, %v4362
      %4364 = vmatmul.f32.gmra.mxu0 %v4301
      %v4365 = vpop.f32.mrf.mxu0
      %v4366 = vadd.f32 %v4253, %v4365
      %4367 = vdwg.mxu0
      %4368 = vst.msk [vmem:[#allocation5] sm:$0xff] %vm923, %v4321
      %4369 = vst.msk [vmem:[#allocation5 + $0x8] sm:$0xff] %vm923, %v4324
      %4370 = vst.msk [vmem:[#allocation5 + $0x10] sm:$0xff] %vm923, %v4327
      %4371 = vst.msk [vmem:[#allocation5 + $0x18] sm:$0xff] %vm923, %v4330
      %4372 = vst.msk [vmem:[#allocation5 + $0x20] sm:$0xff] %vm923, %v4333
      %4373 = vst.msk [vmem:[#allocation5 + $0x28] sm:$0xff] %vm923, %v4336
      %4374 = vst.msk [vmem:[#allocation5 + $0x30] sm:$0xff] %vm923, %v4339
      %4375 = vst.msk [vmem:[#allocation5 + $0x38] sm:$0xff] %vm923, %v4342
      %4376 = vst.msk [vmem:[#allocation5 + $0x40] sm:$0xff] %vm923, %v4345
      %4377 = vst.msk [vmem:[#allocation5 + $0x48] sm:$0xff] %vm923, %v4348
      %4378 = vst.msk [vmem:[#allocation5 + $0x50] sm:$0xff] %vm923, %v4351
      %4379 = vst.msk [vmem:[#allocation5 + $0x58] sm:$0xff] %vm923, %v4354
      %4380 = vst.msk [vmem:[#allocation5 + $0x60] sm:$0xff] %vm923, %v4357
      %4381 = vst.msk [vmem:[#allocation5 + $0x68] sm:$0xff] %vm923, %v4360
      %4382 = vst.msk [vmem:[#allocation5 + $0x70] sm:$0xff] %vm923, %v4363
      %4383 = vst.msk [vmem:[#allocation5 + $0x78] sm:$0xff] %vm923, %v4366
      %v4384 = vld [vmem:[#allocation3] sm:$0xff]
      %v4385 = vld [vmem:[#allocation3 + $0x8] sm:$0xff]
      %v4386 = vld [vmem:[#allocation3 + $0x18] sm:$0xff]
      %v4387 = vld [vmem:[#allocation3 + $0x20] sm:$0xff]
      %v4388 = vld [vmem:[#allocation3 + $0x30] sm:$0xff]
      %v4389 = vld [vmem:[#allocation3 + $0x38] sm:$0xff]
      %v4390 = vld [vmem:[#allocation3 + $0x48] sm:$0xff]
      %v4391 = vld [vmem:[#allocation3 + $0x50] sm:$0xff]
      %v4392 = vld [vmem:[#allocation3 + $0x60] sm:$0xff]
      %v4393 = vld [vmem:[#allocation3 + $0x68] sm:$0xff]
      %v4394 = vld [vmem:[#allocation3 + $0x78] sm:$0xff]
      %v4395 = vld [vmem:[#allocation3 + $0x80] sm:$0xff]
      %v4396 = vld [vmem:[#allocation3 + $0x90] sm:$0xff]
      %v4397 = vld [vmem:[#allocation3 + $0x98] sm:$0xff]
      %v4398 = vld [vmem:[#allocation3 + $0xa8] sm:$0xff]
      %v4399 = vld [vmem:[#allocation3 + $0xb0] sm:$0xff]
      %v4400 = vld [vmem:[#allocation5] sm:$0xff]
      %v4401 = vld [vmem:[#allocation5 + $0x8] sm:$0xff]
      %v4402 = vld [vmem:[#allocation5 + $0x10] sm:$0xff]
      %v4403 = vld [vmem:[#allocation5 + $0x18] sm:$0xff]
      %v4404 = vld [vmem:[#allocation5 + $0x20] sm:$0xff]
      %v4405 = vld [vmem:[#allocation5 + $0x28] sm:$0xff]
      %v4406 = vld [vmem:[#allocation5 + $0x30] sm:$0xff]
      %v4407 = vld [vmem:[#allocation5 + $0x38] sm:$0xff]
      %v4408 = vld [vmem:[#allocation5 + $0x40] sm:$0xff]
      %v4409 = vld [vmem:[#allocation5 + $0x48] sm:$0xff]
      %v4410 = vld [vmem:[#allocation5 + $0x50] sm:$0xff]
      %v4411 = vld [vmem:[#allocation5 + $0x58] sm:$0xff]
      %v4412 = vld [vmem:[#allocation5 + $0x60] sm:$0xff]
      %v4413 = vld [vmem:[#allocation5 + $0x68] sm:$0xff]
      %v4414 = vld [vmem:[#allocation5 + $0x70] sm:$0xff]
      %v4415 = vld [vmem:[#allocation5 + $0x78] sm:$0xff]
      %v4416 = vld [vmem:[%s13] sm:$0xf]
      %v4418 = vsel %vm923, %v4384, 0
      %v4421 = vsel %vm923, %v4385, 0
      %v4424 = vsel %vm923, %v4386, 0
      %v4427 = vsel %vm923, %v4387, 0
      %v4430 = vsel %vm923, %v4388, 0
      %v4433 = vsel %vm923, %v4389, 0
      %v4436 = vsel %vm923, %v4390, 0
      %v4439 = vsel %vm923, %v4391, 0
      %v4442 = vsel %vm923, %v4392, 0
      %v4445 = vsel %vm923, %v4393, 0
      %v4448 = vsel %vm923, %v4394, 0
      %v4451 = vsel %vm923, %v4395, 0
      %v4454 = vsel %vm923, %v4396, 0
      %v4457 = vsel %vm923, %v4397, 0
      %v4460 = vsel %vm923, %v4398, 0
      %v4463 = vsel %vm923, %v4399, 0
      %v4466 = vsel %vm996, %v4416, 0
      %4468 = vmatpush.msra.mxu0 0.0
      %4469 = vmatpush.msra.mxu0 0.0
      %4470 = vmatpush.msra.mxu0 0.0
      %4471 = vmatpush.msra.mxu0 0.0
      %4472 = vmatpush.msra.mxu0 0.0
      %4473 = vmatpush.msra.mxu0 0.0
      %4474 = vmatpush.msra.mxu0 0.0
      %4475 = vmatpush.msra.mxu0 0.0
      %4476 = vmatpush.msra.mxu0 0.0
      %4477 = vmatpush.msra.mxu0 0.0
      %4478 = vmatpush.msra.mxu0 0.0
      %4479 = vmatpush.msra.mxu0 0.0
      %4480 = vmatpush.msra.mxu0 0.0
      %4481 = vmatpush.msra.mxu0 0.0
      %4482 = vmatpush.msra.mxu0 0.0
      %4483 = vmatpush.msra.mxu0 %v4466
      %4484 = vmatmul.f32.gmra.mxu0 %v4418
      %v4485 = vpop.f32.mrf.mxu0
      %v4486 = vadd.f32 0.0, %v4485
      %4487 = vmatmul.f32.gmra.mxu0 %v4421
      %v4488 = vpop.f32.mrf.mxu0
      %v4489 = vadd.f32 0.0, %v4488
      %4490 = vmatmul.f32.gmra.mxu0 %v4424
      %v4491 = vpop.f32.mrf.mxu0
      %v4492 = vadd.f32 0.0, %v4491
      %4493 = vmatmul.f32.gmra.mxu0 %v4427
      %v4494 = vpop.f32.mrf.mxu0
      %v4495 = vadd.f32 0.0, %v4494
      %4496 = vmatmul.f32.gmra.mxu0 %v4430
      %v4497 = vpop.f32.mrf.mxu0
      %v4498 = vadd.f32 0.0, %v4497
      %4499 = vmatmul.f32.gmra.mxu0 %v4433
      %v4500 = vpop.f32.mrf.mxu0
      %v4501 = vadd.f32 0.0, %v4500
      %4502 = vmatmul.f32.gmra.mxu0 %v4436
      %v4503 = vpop.f32.mrf.mxu0
      %v4504 = vadd.f32 0.0, %v4503
      %4505 = vmatmul.f32.gmra.mxu0 %v4439
      %v4506 = vpop.f32.mrf.mxu0
      %v4507 = vadd.f32 0.0, %v4506
      %4508 = vmatmul.f32.gmra.mxu0 %v4442
      %v4509 = vpop.f32.mrf.mxu0
      %v4510 = vadd.f32 0.0, %v4509
      %4511 = vmatmul.f32.gmra.mxu0 %v4445
      %v4512 = vpop.f32.mrf.mxu0
      %v4513 = vadd.f32 0.0, %v4512
      %4514 = vmatmul.f32.gmra.mxu0 %v4448
      %v4515 = vpop.f32.mrf.mxu0
      %v4516 = vadd.f32 0.0, %v4515
      %4517 = vmatmul.f32.gmra.mxu0 %v4451
      %v4518 = vpop.f32.mrf.mxu0
      %v4519 = vadd.f32 0.0, %v4518
      %4520 = vmatmul.f32.gmra.mxu0 %v4454
      %v4521 = vpop.f32.mrf.mxu0
      %v4522 = vadd.f32 0.0, %v4521
      %4523 = vmatmul.f32.gmra.mxu0 %v4457
      %v4524 = vpop.f32.mrf.mxu0
      %v4525 = vadd.f32 0.0, %v4524
      %4526 = vmatmul.f32.gmra.mxu0 %v4460
      %v4527 = vpop.f32.mrf.mxu0
      %v4528 = vadd.f32 0.0, %v4527
      %4529 = vmatmul.f32.gmra.mxu0 %v4463
      %v4530 = vpop.f32.mrf.mxu0
      %v4531 = vadd.f32 0.0, %v4530
      %4532 = vdwg.mxu0
      %v4533 = vadd.f32 %v4400, %v4486
      %v4534 = vadd.f32 %v4401, %v4489
      %v4535 = vadd.f32 %v4402, %v4492
      %v4536 = vadd.f32 %v4403, %v4495
      %v4537 = vadd.f32 %v4404, %v4498
      %v4538 = vadd.f32 %v4405, %v4501
      %v4539 = vadd.f32 %v4406, %v4504
      %v4540 = vadd.f32 %v4407, %v4507
      %v4541 = vadd.f32 %v4408, %v4510
      %v4542 = vadd.f32 %v4409, %v4513
      %v4543 = vadd.f32 %v4410, %v4516
      %v4544 = vadd.f32 %v4411, %v4519
      %v4545 = vadd.f32 %v4412, %v4522
      %v4546 = vadd.f32 %v4413, %v4525
      %v4547 = vadd.f32 %v4414, %v4528
      %v4548 = vadd.f32 %v4415, %v4531
      %4549 = vst.msk [vmem:[#allocation5] sm:$0xff] %vm923, %v4533
      %4550 = vst.msk [vmem:[#allocation5 + $0x8] sm:$0xff] %vm923, %v4534
      %4551 = vst.msk [vmem:[#allocation5 + $0x10] sm:$0xff] %vm923, %v4535
      %4552 = vst.msk [vmem:[#allocation5 + $0x18] sm:$0xff] %vm923, %v4536
      %4553 = vst.msk [vmem:[#allocation5 + $0x20] sm:$0xff] %vm923, %v4537
      %4554 = vst.msk [vmem:[#allocation5 + $0x28] sm:$0xff] %vm923, %v4538
      %4555 = vst.msk [vmem:[#allocation5 + $0x30] sm:$0xff] %vm923, %v4539
      %4556 = vst.msk [vmem:[#allocation5 + $0x38] sm:$0xff] %vm923, %v4540
      %4557 = vst.msk [vmem:[#allocation5 + $0x40] sm:$0xff] %vm923, %v4541
      %4558 = vst.msk [vmem:[#allocation5 + $0x48] sm:$0xff] %vm923, %v4542
      %4559 = vst.msk [vmem:[#allocation5 + $0x50] sm:$0xff] %vm923, %v4543
      %4560 = vst.msk [vmem:[#allocation5 + $0x58] sm:$0xff] %vm923, %v4544
      %4561 = vst.msk [vmem:[#allocation5 + $0x60] sm:$0xff] %vm923, %v4545
      %4562 = vst.msk [vmem:[#allocation5 + $0x68] sm:$0xff] %vm923, %v4546
      %4563 = vst.msk [vmem:[#allocation5 + $0x70] sm:$0xff] %vm923, %v4547
      %4564 = vst.msk [vmem:[#allocation5 + $0x78] sm:$0xff] %vm923, %v4548
      %v4565 = vld [vmem:[#allocation3 + $0x1] sm:$0xff]
      %v4566 = vld [vmem:[#allocation3 + $0x9] sm:$0xff]
      %v4567 = vld [vmem:[#allocation3 + $0x19] sm:$0xff]
      %v4568 = vld [vmem:[#allocation3 + $0x21] sm:$0xff]
      %v4569 = vld [vmem:[#allocation3 + $0x31] sm:$0xff]
      %v4570 = vld [vmem:[#allocation3 + $0x39] sm:$0xff]
      %v4571 = vld [vmem:[#allocation3 + $0x49] sm:$0xff]
      %v4572 = vld [vmem:[#allocation3 + $0x51] sm:$0xff]
      %v4573 = vld [vmem:[#allocation3 + $0x61] sm:$0xff]
      %v4574 = vld [vmem:[#allocation3 + $0x69] sm:$0xff]
      %v4575 = vld [vmem:[#allocation3 + $0x79] sm:$0xff]
      %v4576 = vld [vmem:[#allocation3 + $0x81] sm:$0xff]
      %v4577 = vld [vmem:[#allocation3 + $0x91] sm:$0xff]
      %v4578 = vld [vmem:[#allocation3 + $0x99] sm:$0xff]
      %v4579 = vld [vmem:[#allocation3 + $0xa9] sm:$0xff]
      %v4580 = vld [vmem:[#allocation3 + $0xb1] sm:$0xff]
      %v4581 = vld [vmem:[#allocation5] sm:$0xff]
      %v4582 = vld [vmem:[#allocation5 + $0x8] sm:$0xff]
      %v4583 = vld [vmem:[#allocation5 + $0x10] sm:$0xff]
      %v4584 = vld [vmem:[#allocation5 + $0x18] sm:$0xff]
      %v4585 = vld [vmem:[#allocation5 + $0x20] sm:$0xff]
      %v4586 = vld [vmem:[#allocation5 + $0x28] sm:$0xff]
      %v4587 = vld [vmem:[#allocation5 + $0x30] sm:$0xff]
      %v4588 = vld [vmem:[#allocation5 + $0x38] sm:$0xff]
      %v4589 = vld [vmem:[#allocation5 + $0x40] sm:$0xff]
      %v4590 = vld [vmem:[#allocation5 + $0x48] sm:$0xff]
      %v4591 = vld [vmem:[#allocation5 + $0x50] sm:$0xff]
      %v4592 = vld [vmem:[#allocation5 + $0x58] sm:$0xff]
      %v4593 = vld [vmem:[#allocation5 + $0x60] sm:$0xff]
      %v4594 = vld [vmem:[#allocation5 + $0x68] sm:$0xff]
      %v4595 = vld [vmem:[#allocation5 + $0x70] sm:$0xff]
      %v4596 = vld [vmem:[#allocation5 + $0x78] sm:$0xff]
      %s4597 = scalar_lea.vmem %s13, 4
      %v4598 = vld [vmem:[%s4597] sm:$0xf]
      %v4600 = vsel %vm923, %v4565, 0
      %v4603 = vsel %vm923, %v4566, 0
      %v4606 = vsel %vm923, %v4567, 0
      %v4609 = vsel %vm923, %v4568, 0
      %v4612 = vsel %vm923, %v4569, 0
      %v4615 = vsel %vm923, %v4570, 0
      %v4618 = vsel %vm923, %v4571, 0
      %v4621 = vsel %vm923, %v4572, 0
      %v4624 = vsel %vm923, %v4573, 0
      %v4627 = vsel %vm923, %v4574, 0
      %v4630 = vsel %vm923, %v4575, 0
      %v4633 = vsel %vm923, %v4576, 0
      %v4636 = vsel %vm923, %v4577, 0
      %v4639 = vsel %vm923, %v4578, 0
      %v4642 = vsel %vm923, %v4579, 0
      %v4645 = vsel %vm923, %v4580, 0
      %v4648 = vsel %vm996, %v4598, 0
      %4650 = vmatpush.msra.mxu0 0.0
      %4651 = vmatpush.msra.mxu0 0.0
      %4652 = vmatpush.msra.mxu0 0.0
      %4653 = vmatpush.msra.mxu0 0.0
      %4654 = vmatpush.msra.mxu0 0.0
      %4655 = vmatpush.msra.mxu0 0.0
      %4656 = vmatpush.msra.mxu0 0.0
      %4657 = vmatpush.msra.mxu0 0.0
      %4658 = vmatpush.msra.mxu0 0.0
      %4659 = vmatpush.msra.mxu0 0.0
      %4660 = vmatpush.msra.mxu0 0.0
      %4661 = vmatpush.msra.mxu0 0.0
      %4662 = vmatpush.msra.mxu0 0.0
      %4663 = vmatpush.msra.mxu0 0.0
      %4664 = vmatpush.msra.mxu0 0.0
      %4665 = vmatpush.msra.mxu0 %v4648
      %4666 = vmatmul.f32.gmra.mxu0 %v4600
      %v4667 = vpop.f32.mrf.mxu0
      %v4668 = vadd.f32 0.0, %v4667
      %4669 = vmatmul.f32.gmra.mxu0 %v4603
      %v4670 = vpop.f32.mrf.mxu0
      %v4671 = vadd.f32 0.0, %v4670
      %4672 = vmatmul.f32.gmra.mxu0 %v4606
      %v4673 = vpop.f32.mrf.mxu0
      %v4674 = vadd.f32 0.0, %v4673
      %4675 = vmatmul.f32.gmra.mxu0 %v4609
      %v4676 = vpop.f32.mrf.mxu0
      %v4677 = vadd.f32 0.0, %v4676
      %4678 = vmatmul.f32.gmra.mxu0 %v4612
      %v4679 = vpop.f32.mrf.mxu0
      %v4680 = vadd.f32 0.0, %v4679
      %4681 = vmatmul.f32.gmra.mxu0 %v4615
      %v4682 = vpop.f32.mrf.mxu0
      %v4683 = vadd.f32 0.0, %v4682
      %4684 = vmatmul.f32.gmra.mxu0 %v4618
      %v4685 = vpop.f32.mrf.mxu0
      %v4686 = vadd.f32 0.0, %v4685
      %4687 = vmatmul.f32.gmra.mxu0 %v4621
      %v4688 = vpop.f32.mrf.mxu0
      %v4689 = vadd.f32 0.0, %v4688
      %4690 = vmatmul.f32.gmra.mxu0 %v4624
      %v4691 = vpop.f32.mrf.mxu0
      %v4692 = vadd.f32 0.0, %v4691
      %4693 = vmatmul.f32.gmra.mxu0 %v4627
      %v4694 = vpop.f32.mrf.mxu0
      %v4695 = vadd.f32 0.0, %v4694
      %4696 = vmatmul.f32.gmra.mxu0 %v4630
      %v4697 = vpop.f32.mrf.mxu0
      %v4698 = vadd.f32 0.0, %v4697
      %4699 = vmatmul.f32.gmra.mxu0 %v4633
      %v4700 = vpop.f32.mrf.mxu0
      %v4701 = vadd.f32 0.0, %v4700
      %4702 = vmatmul.f32.gmra.mxu0 %v4636
      %v4703 = vpop.f32.mrf.mxu0
      %v4704 = vadd.f32 0.0, %v4703
      %4705 = vmatmul.f32.gmra.mxu0 %v4639
      %v4706 = vpop.f32.mrf.mxu0
      %v4707 = vadd.f32 0.0, %v4706
      %4708 = vmatmul.f32.gmra.mxu0 %v4642
      %v4709 = vpop.f32.mrf.mxu0
      %v4710 = vadd.f32 0.0, %v4709
      %4711 = vmatmul.f32.gmra.mxu0 %v4645
      %v4712 = vpop.f32.mrf.mxu0
      %v4713 = vadd.f32 0.0, %v4712
      %4714 = vdwg.mxu0
      %v4715 = vadd.f32 %v4581, %v4668
      %v4716 = vadd.f32 %v4582, %v4671
      %v4717 = vadd.f32 %v4583, %v4674
      %v4718 = vadd.f32 %v4584, %v4677
      %v4719 = vadd.f32 %v4585, %v4680
      %v4720 = vadd.f32 %v4586, %v4683
      %v4721 = vadd.f32 %v4587, %v4686
      %v4722 = vadd.f32 %v4588, %v4689
      %v4723 = vadd.f32 %v4589, %v4692
      %v4724 = vadd.f32 %v4590, %v4695
      %v4725 = vadd.f32 %v4591, %v4698
      %v4726 = vadd.f32 %v4592, %v4701
      %v4727 = vadd.f32 %v4593, %v4704
      %v4728 = vadd.f32 %v4594, %v4707
      %v4729 = vadd.f32 %v4595, %v4710
      %v4730 = vadd.f32 %v4596, %v4713
      %4731 = vst.msk [vmem:[#allocation5] sm:$0xff] %vm923, %v4715
      %4732 = vst.msk [vmem:[#allocation5 + $0x8] sm:$0xff] %vm923, %v4716
      %4733 = vst.msk [vmem:[#allocation5 + $0x10] sm:$0xff] %vm923, %v4717
      %4734 = vst.msk [vmem:[#allocation5 + $0x18] sm:$0xff] %vm923, %v4718
      %4735 = vst.msk [vmem:[#allocation5 + $0x20] sm:$0xff] %vm923, %v4719
      %4736 = vst.msk [vmem:[#allocation5 + $0x28] sm:$0xff] %vm923, %v4720
      %4737 = vst.msk [vmem:[#allocation5 + $0x30] sm:$0xff] %vm923, %v4721
      %4738 = vst.msk [vmem:[#allocation5 + $0x38] sm:$0xff] %vm923, %v4722
      %4739 = vst.msk [vmem:[#allocation5 + $0x40] sm:$0xff] %vm923, %v4723
      %4740 = vst.msk [vmem:[#allocation5 + $0x48] sm:$0xff] %vm923, %v4724
      %4741 = vst.msk [vmem:[#allocation5 + $0x50] sm:$0xff] %vm923, %v4725
      %4742 = vst.msk [vmem:[#allocation5 + $0x58] sm:$0xff] %vm923, %v4726
      %4743 = vst.msk [vmem:[#allocation5 + $0x60] sm:$0xff] %vm923, %v4727
      %4744 = vst.msk [vmem:[#allocation5 + $0x68] sm:$0xff] %vm923, %v4728
      %4745 = vst.msk [vmem:[#allocation5 + $0x70] sm:$0xff] %vm923, %v4729
      %4746 = vst.msk [vmem:[#allocation5 + $0x78] sm:$0xff] %vm923, %v4730
      %v4747 = vld [vmem:[#allocation3 + $0x2] sm:$0xff]
      %v4748 = vld [vmem:[#allocation3 + $0xa] sm:$0xff]
      %v4749 = vld [vmem:[#allocation3 + $0x1a] sm:$0xff]
      %v4750 = vld [vmem:[#allocation3 + $0x22] sm:$0xff]
      %v4751 = vld [vmem:[#allocation3 + $0x32] sm:$0xff]
      %v4752 = vld [vmem:[#allocation3 + $0x3a] sm:$0xff]
      %v4753 = vld [vmem:[#allocation3 + $0x4a] sm:$0xff]
      %v4754 = vld [vmem:[#allocation3 + $0x52] sm:$0xff]
      %v4755 = vld [vmem:[#allocation3 + $0x62] sm:$0xff]
      %v4756 = vld [vmem:[#allocation3 + $0x6a] sm:$0xff]
      %v4757 = vld [vmem:[#allocation3 + $0x7a] sm:$0xff]
      %v4758 = vld [vmem:[#allocation3 + $0x82] sm:$0xff]
      %v4759 = vld [vmem:[#allocation3 + $0x92] sm:$0xff]
      %v4760 = vld [vmem:[#allocation3 + $0x9a] sm:$0xff]
      %v4761 = vld [vmem:[#allocation3 + $0xaa] sm:$0xff]
      %v4762 = vld [vmem:[#allocation3 + $0xb2] sm:$0xff]
      %v4763 = vld [vmem:[#allocation5] sm:$0xff]
      %v4764 = vld [vmem:[#allocation5 + $0x8] sm:$0xff]
      %v4765 = vld [vmem:[#allocation5 + $0x10] sm:$0xff]
      %v4766 = vld [vmem:[#allocation5 + $0x18] sm:$0xff]
      %v4767 = vld [vmem:[#allocation5 + $0x20] sm:$0xff]
      %v4768 = vld [vmem:[#allocation5 + $0x28] sm:$0xff]
      %v4769 = vld [vmem:[#allocation5 + $0x30] sm:$0xff]
      %v4770 = vld [vmem:[#allocation5 + $0x38] sm:$0xff]
      %v4771 = vld [vmem:[#allocation5 + $0x40] sm:$0xff]
      %v4772 = vld [vmem:[#allocation5 + $0x48] sm:$0xff]
      %v4773 = vld [vmem:[#allocation5 + $0x50] sm:$0xff]
      %v4774 = vld [vmem:[#allocation5 + $0x58] sm:$0xff]
      %v4775 = vld [vmem:[#allocation5 + $0x60] sm:$0xff]
      %v4776 = vld [vmem:[#allocation5 + $0x68] sm:$0xff]
      %v4777 = vld [vmem:[#allocation5 + $0x70] sm:$0xff]
      %v4778 = vld [vmem:[#allocation5 + $0x78] sm:$0xff]
      %s4779 = scalar_lea.vmem %s13, 8
      %v4780 = vld [vmem:[%s4779] sm:$0xf]
      %v4782 = vsel %vm923, %v4747, 0
      %v4785 = vsel %vm923, %v4748, 0
      %v4788 = vsel %vm923, %v4749, 0
      %v4791 = vsel %vm923, %v4750, 0
      %v4794 = vsel %vm923, %v4751, 0
      %v4797 = vsel %vm923, %v4752, 0
      %v4800 = vsel %vm923, %v4753, 0
      %v4803 = vsel %vm923, %v4754, 0
      %v4806 = vsel %vm923, %v4755, 0
      %v4809 = vsel %vm923, %v4756, 0
      %v4812 = vsel %vm923, %v4757, 0
      %v4815 = vsel %vm923, %v4758, 0
      %v4818 = vsel %vm923, %v4759, 0
      %v4821 = vsel %vm923, %v4760, 0
      %v4824 = vsel %vm923, %v4761, 0
      %v4827 = vsel %vm923, %v4762, 0
      %v4830 = vsel %vm996, %v4780, 0
      %4832 = vmatpush.msra.mxu0 0.0
      %4833 = vmatpush.msra.mxu0 0.0
      %4834 = vmatpush.msra.mxu0 0.0
      %4835 = vmatpush.msra.mxu0 0.0
      %4836 = vmatpush.msra.mxu0 0.0
      %4837 = vmatpush.msra.mxu0 0.0
      %4838 = vmatpush.msra.mxu0 0.0
      %4839 = vmatpush.msra.mxu0 0.0
      %4840 = vmatpush.msra.mxu0 0.0
      %4841 = vmatpush.msra.mxu0 0.0
      %4842 = vmatpush.msra.mxu0 0.0
      %4843 = vmatpush.msra.mxu0 0.0
      %4844 = vmatpush.msra.mxu0 0.0
      %4845 = vmatpush.msra.mxu0 0.0
      %4846 = vmatpush.msra.mxu0 0.0
      %4847 = vmatpush.msra.mxu0 %v4830
      %4848 = vmatmul.f32.gmra.mxu0 %v4782
      %v4849 = vpop.f32.mrf.mxu0
      %v4850 = vadd.f32 0.0, %v4849
      %4851 = vmatmul.f32.gmra.mxu0 %v4785
      %v4852 = vpop.f32.mrf.mxu0
      %v4853 = vadd.f32 0.0, %v4852
      %4854 = vmatmul.f32.gmra.mxu0 %v4788
      %v4855 = vpop.f32.mrf.mxu0
      %v4856 = vadd.f32 0.0, %v4855
      %4857 = vmatmul.f32.gmra.mxu0 %v4791
      %v4858 = vpop.f32.mrf.mxu0
      %v4859 = vadd.f32 0.0, %v4858
      %4860 = vmatmul.f32.gmra.mxu0 %v4794
      %v4861 = vpop.f32.mrf.mxu0
      %v4862 = vadd.f32 0.0, %v4861
      %4863 = vmatmul.f32.gmra.mxu0 %v4797
      %v4864 = vpop.f32.mrf.mxu0
      %v4865 = vadd.f32 0.0, %v4864
      %4866 = vmatmul.f32.gmra.mxu0 %v4800
      %v4867 = vpop.f32.mrf.mxu0
      %v4868 = vadd.f32 0.0, %v4867
      %4869 = vmatmul.f32.gmra.mxu0 %v4803
      %v4870 = vpop.f32.mrf.mxu0
      %v4871 = vadd.f32 0.0, %v4870
      %4872 = vmatmul.f32.gmra.mxu0 %v4806
      %v4873 = vpop.f32.mrf.mxu0
      %v4874 = vadd.f32 0.0, %v4873
      %4875 = vmatmul.f32.gmra.mxu0 %v4809
      %v4876 = vpop.f32.mrf.mxu0
      %v4877 = vadd.f32 0.0, %v4876
      %4878 = vmatmul.f32.gmra.mxu0 %v4812
      %v4879 = vpop.f32.mrf.mxu0
      %v4880 = vadd.f32 0.0, %v4879
      %4881 = vmatmul.f32.gmra.mxu0 %v4815
      %v4882 = vpop.f32.mrf.mxu0
      %v4883 = vadd.f32 0.0, %v4882
      %4884 = vmatmul.f32.gmra.mxu0 %v4818
      %v4885 = vpop.f32.mrf.mxu0
      %v4886 = vadd.f32 0.0, %v4885
      %4887 = vmatmul.f32.gmra.mxu0 %v4821
      %v4888 = vpop.f32.mrf.mxu0
      %v4889 = vadd.f32 0.0, %v4888
      %4890 = vmatmul.f32.gmra.mxu0 %v4824
      %v4891 = vpop.f32.mrf.mxu0
      %v4892 = vadd.f32 0.0, %v4891
      %4893 = vmatmul.f32.gmra.mxu0 %v4827
      %v4894 = vpop.f32.mrf.mxu0
      %v4895 = vadd.f32 0.0, %v4894
      %4896 = vdwg.mxu0
      %v4897 = vadd.f32 %v4763, %v4850
      %v4898 = vadd.f32 %v4764, %v4853
      %v4899 = vadd.f32 %v4765, %v4856
      %v4900 = vadd.f32 %v4766, %v4859
      %v4901 = vadd.f32 %v4767, %v4862
      %v4902 = vadd.f32 %v4768, %v4865
      %v4903 = vadd.f32 %v4769, %v4868
      %v4904 = vadd.f32 %v4770, %v4871
      %v4905 = vadd.f32 %v4771, %v4874
      %v4906 = vadd.f32 %v4772, %v4877
      %v4907 = vadd.f32 %v4773, %v4880
      %v4908 = vadd.f32 %v4774, %v4883
      %v4909 = vadd.f32 %v4775, %v4886
      %v4910 = vadd.f32 %v4776, %v4889
      %v4911 = vadd.f32 %v4777, %v4892
      %v4912 = vadd.f32 %v4778, %v4895
      %4913 = vst.msk [vmem:[#allocation5] sm:$0xff] %vm923, %v4897
      %4914 = vst.msk [vmem:[#allocation5 + $0x8] sm:$0xff] %vm923, %v4898
      %4915 = vst.msk [vmem:[#allocation5 + $0x10] sm:$0xff] %vm923, %v4899
      %4916 = vst.msk [vmem:[#allocation5 + $0x18] sm:$0xff] %vm923, %v4900
      %4917 = vst.msk [vmem:[#allocation5 + $0x20] sm:$0xff] %vm923, %v4901
      %4918 = vst.msk [vmem:[#allocation5 + $0x28] sm:$0xff] %vm923, %v4902
      %4919 = vst.msk [vmem:[#allocation5 + $0x30] sm:$0xff] %vm923, %v4903
      %4920 = vst.msk [vmem:[#allocation5 + $0x38] sm:$0xff] %vm923, %v4904
      %4921 = vst.msk [vmem:[#allocation5 + $0x40] sm:$0xff] %vm923, %v4905
      %4922 = vst.msk [vmem:[#allocation5 + $0x48] sm:$0xff] %vm923, %v4906
      %4923 = vst.msk [vmem:[#allocation5 + $0x50] sm:$0xff] %vm923, %v4907
      %4924 = vst.msk [vmem:[#allocation5 + $0x58] sm:$0xff] %vm923, %v4908
      %4925 = vst.msk [vmem:[#allocation5 + $0x60] sm:$0xff] %vm923, %v4909
      %4926 = vst.msk [vmem:[#allocation5 + $0x68] sm:$0xff] %vm923, %v4910
      %4927 = vst.msk [vmem:[#allocation5 + $0x70] sm:$0xff] %vm923, %v4911
      %4928 = vst.msk [vmem:[#allocation5 + $0x78] sm:$0xff] %vm923, %v4912
      %s4929 = scalar_lea.vmem [#allocation3], 24
      %v4930 = vld [vmem:[%s4929] sm:$0xff]
      %v4931 = vld [vmem:[%s4929 + $0x8] sm:$0xff]
      %v4932 = vld [vmem:[%s4929 + $0x18] sm:$0xff]
      %v4933 = vld [vmem:[%s4929 + $0x20] sm:$0xff]
      %v4934 = vld [vmem:[%s4929 + $0x30] sm:$0xff]
      %v4935 = vld [vmem:[%s4929 + $0x38] sm:$0xff]
      %v4936 = vld [vmem:[%s4929 + $0x48] sm:$0xff]
      %v4937 = vld [vmem:[%s4929 + $0x50] sm:$0xff]
      %v4938 = vld [vmem:[%s4929 + $0x60] sm:$0xff]
      %v4939 = vld [vmem:[%s4929 + $0x68] sm:$0xff]
      %v4940 = vld [vmem:[%s4929 + $0x78] sm:$0xff]
      %v4941 = vld [vmem:[%s4929 + $0x80] sm:$0xff]
      %v4942 = vld [vmem:[%s4929 + $0x90] sm:$0xff]
      %v4943 = vld [vmem:[%s4929 + $0x98] sm:$0xff]
      %v4944 = vld [vmem:[%s4929 + $0xa8] sm:$0xff]
      %v4945 = vld [vmem:[%s4929 + $0xb0] sm:$0xff]
      %v4946 = vld [vmem:[#allocation5] sm:$0xff]
      %v4947 = vld [vmem:[#allocation5 + $0x8] sm:$0xff]
      %v4948 = vld [vmem:[#allocation5 + $0x10] sm:$0xff]
      %v4949 = vld [vmem:[#allocation5 + $0x18] sm:$0xff]
      %v4950 = vld [vmem:[#allocation5 + $0x20] sm:$0xff]
      %v4951 = vld [vmem:[#allocation5 + $0x28] sm:$0xff]
      %v4952 = vld [vmem:[#allocation5 + $0x30] sm:$0xff]
      %v4953 = vld [vmem:[#allocation5 + $0x38] sm:$0xff]
      %v4954 = vld [vmem:[#allocation5 + $0x40] sm:$0xff]
      %v4955 = vld [vmem:[#allocation5 + $0x48] sm:$0xff]
      %v4956 = vld [vmem:[#allocation5 + $0x50] sm:$0xff]
      %v4957 = vld [vmem:[#allocation5 + $0x58] sm:$0xff]
      %v4958 = vld [vmem:[#allocation5 + $0x60] sm:$0xff]
      %v4959 = vld [vmem:[#allocation5 + $0x68] sm:$0xff]
      %v4960 = vld [vmem:[#allocation5 + $0x70] sm:$0xff]
      %v4961 = vld [vmem:[#allocation5 + $0x78] sm:$0xff]
      %s4962 = scalar_lea.vmem %s13, 12
      %v4963 = vld [vmem:[%s4962] sm:$0xf]
      %v4965 = vsel %vm923, %v4930, 0
      %v4968 = vsel %vm923, %v4931, 0
      %v4971 = vsel %vm923, %v4932, 0
      %v4974 = vsel %vm923, %v4933, 0
      %v4977 = vsel %vm923, %v4934, 0
      %v4980 = vsel %vm923, %v4935, 0
      %v4983 = vsel %vm923, %v4936, 0
      %v4986 = vsel %vm923, %v4937, 0
      %v4989 = vsel %vm923, %v4938, 0
      %v4992 = vsel %vm923, %v4939, 0
      %v4995 = vsel %vm923, %v4940, 0
      %v4998 = vsel %vm923, %v4941, 0
      %v5001 = vsel %vm923, %v4942, 0
      %v5004 = vsel %vm923, %v4943, 0
      %v5007 = vsel %vm923, %v4944, 0
      %v5010 = vsel %vm923, %v4945, 0
      %v5013 = vsel %vm996, %v4963, 0
      %5015 = vmatpush.msra.mxu0 0.0
      %5016 = vmatpush.msra.mxu0 0.0
      %5017 = vmatpush.msra.mxu0 0.0
      %5018 = vmatpush.msra.mxu0 0.0
      %5019 = vmatpush.msra.mxu0 0.0
      %5020 = vmatpush.msra.mxu0 0.0
      %5021 = vmatpush.msra.mxu0 0.0
      %5022 = vmatpush.msra.mxu0 0.0
      %5023 = vmatpush.msra.mxu0 0.0
      %5024 = vmatpush.msra.mxu0 0.0
      %5025 = vmatpush.msra.mxu0 0.0
      %5026 = vmatpush.msra.mxu0 0.0
      %5027 = vmatpush.msra.mxu0 0.0
      %5028 = vmatpush.msra.mxu0 0.0
      %5029 = vmatpush.msra.mxu0 0.0
      %5030 = vmatpush.msra.mxu0 %v5013
      %5031 = vmatmul.f32.gmra.mxu0 %v4965
      %v5032 = vpop.f32.mrf.mxu0
      %v5033 = vadd.f32 0.0, %v5032
      %5034 = vmatmul.f32.gmra.mxu0 %v4968
      %v5035 = vpop.f32.mrf.mxu0
      %v5036 = vadd.f32 0.0, %v5035
      %5037 = vmatmul.f32.gmra.mxu0 %v4971
      %v5038 = vpop.f32.mrf.mxu0
      %v5039 = vadd.f32 0.0, %v5038
      %5040 = vmatmul.f32.gmra.mxu0 %v4974
      %v5041 = vpop.f32.mrf.mxu0
      %v5042 = vadd.f32 0.0, %v5041
      %5043 = vmatmul.f32.gmra.mxu0 %v4977
      %v5044 = vpop.f32.mrf.mxu0
      %v5045 = vadd.f32 0.0, %v5044
      %5046 = vmatmul.f32.gmra.mxu0 %v4980
      %v5047 = vpop.f32.mrf.mxu0
      %v5048 = vadd.f32 0.0, %v5047
      %5049 = vmatmul.f32.gmra.mxu0 %v4983
      %v5050 = vpop.f32.mrf.mxu0
      %v5051 = vadd.f32 0.0, %v5050
      %5052 = vmatmul.f32.gmra.mxu0 %v4986
      %v5053 = vpop.f32.mrf.mxu0
      %v5054 = vadd.f32 0.0, %v5053
      %5055 = vmatmul.f32.gmra.mxu0 %v4989
      %v5056 = vpop.f32.mrf.mxu0
      %v5057 = vadd.f32 0.0, %v5056
      %5058 = vmatmul.f32.gmra.mxu0 %v4992
      %v5059 = vpop.f32.mrf.mxu0
      %v5060 = vadd.f32 0.0, %v5059
      %5061 = vmatmul.f32.gmra.mxu0 %v4995
      %v5062 = vpop.f32.mrf.mxu0
      %v5063 = vadd.f32 0.0, %v5062
      %5064 = vmatmul.f32.gmra.mxu0 %v4998
      %v5065 = vpop.f32.mrf.mxu0
      %v5066 = vadd.f32 0.0, %v5065
      %5067 = vmatmul.f32.gmra.mxu0 %v5001
      %v5068 = vpop.f32.mrf.mxu0
      %v5069 = vadd.f32 0.0, %v5068
      %5070 = vmatmul.f32.gmra.mxu0 %v5004
      %v5071 = vpop.f32.mrf.mxu0
      %v5072 = vadd.f32 0.0, %v5071
      %5073 = vmatmul.f32.gmra.mxu0 %v5007
      %v5074 = vpop.f32.mrf.mxu0
      %v5075 = vadd.f32 0.0, %v5074
      %5076 = vmatmul.f32.gmra.mxu0 %v5010
      %v5077 = vpop.f32.mrf.mxu0
      %v5078 = vadd.f32 0.0, %v5077
      %5079 = vdwg.mxu0
      %v5080 = vadd.f32 %v4946, %v5033
      %v5081 = vadd.f32 %v4947, %v5036
      %v5082 = vadd.f32 %v4948, %v5039
      %v5083 = vadd.f32 %v4949, %v5042
      %v5084 = vadd.f32 %v4950, %v5045
      %v5085 = vadd.f32 %v4951, %v5048
      %v5086 = vadd.f32 %v4952, %v5051
      %v5087 = vadd.f32 %v4953, %v5054
      %v5088 = vadd.f32 %v4954, %v5057
      %v5089 = vadd.f32 %v4955, %v5060
      %v5090 = vadd.f32 %v4956, %v5063
      %v5091 = vadd.f32 %v4957, %v5066
      %v5092 = vadd.f32 %v4958, %v5069
      %v5093 = vadd.f32 %v4959, %v5072
      %v5094 = vadd.f32 %v4960, %v5075
      %v5095 = vadd.f32 %v4961, %v5078
      %5096 = vst.msk [vmem:[#allocation5] sm:$0xff] %vm923, %v5080
      %5097 = vst.msk [vmem:[#allocation5 + $0x8] sm:$0xff] %vm923, %v5081
      %5098 = vst.msk [vmem:[#allocation5 + $0x10] sm:$0xff] %vm923, %v5082
      %5099 = vst.msk [vmem:[#allocation5 + $0x18] sm:$0xff] %vm923, %v5083
      %5100 = vst.msk [vmem:[#allocation5 + $0x20] sm:$0xff] %vm923, %v5084
      %5101 = vst.msk [vmem:[#allocation5 + $0x28] sm:$0xff] %vm923, %v5085
      %5102 = vst.msk [vmem:[#allocation5 + $0x30] sm:$0xff] %vm923, %v5086
      %5103 = vst.msk [vmem:[#allocation5 + $0x38] sm:$0xff] %vm923, %v5087
      %5104 = vst.msk [vmem:[#allocation5 + $0x40] sm:$0xff] %vm923, %v5088
      %5105 = vst.msk [vmem:[#allocation5 + $0x48] sm:$0xff] %vm923, %v5089
      %5106 = vst.msk [vmem:[#allocation5 + $0x50] sm:$0xff] %vm923, %v5090
      %5107 = vst.msk [vmem:[#allocation5 + $0x58] sm:$0xff] %vm923, %v5091
      %5108 = vst.msk [vmem:[#allocation5 + $0x60] sm:$0xff] %vm923, %v5092
      %5109 = vst.msk [vmem:[#allocation5 + $0x68] sm:$0xff] %vm923, %v5093
      %5110 = vst.msk [vmem:[#allocation5 + $0x70] sm:$0xff] %vm923, %v5094
      %5111 = vst.msk [vmem:[#allocation5 + $0x78] sm:$0xff] %vm923, %v5095
      %v5112 = vld [vmem:[%s4929 + $0x1] sm:$0xff]
      %v5113 = vld [vmem:[%s4929 + $0x9] sm:$0xff]
      %v5114 = vld [vmem:[%s4929 + $0x19] sm:$0xff]
      %v5115 = vld [vmem:[%s4929 + $0x21] sm:$0xff]
      %v5116 = vld [vmem:[%s4929 + $0x31] sm:$0xff]
      %v5117 = vld [vmem:[%s4929 + $0x39] sm:$0xff]
      %v5118 = vld [vmem:[%s4929 + $0x49] sm:$0xff]
      %v5119 = vld [vmem:[%s4929 + $0x51] sm:$0xff]
      %v5120 = vld [vmem:[%s4929 + $0x61] sm:$0xff]
      %v5121 = vld [vmem:[%s4929 + $0x69] sm:$0xff]
      %v5122 = vld [vmem:[%s4929 + $0x79] sm:$0xff]
      %v5123 = vld [vmem:[%s4929 + $0x81] sm:$0xff]
      %v5124 = vld [vmem:[%s4929 + $0x91] sm:$0xff]
      %v5125 = vld [vmem:[%s4929 + $0x99] sm:$0xff]
      %v5126 = vld [vmem:[%s4929 + $0xa9] sm:$0xff]
      %v5127 = vld [vmem:[%s4929 + $0xb1] sm:$0xff]
      %v5128 = vld [vmem:[#allocation5] sm:$0xff]
      %v5129 = vld [vmem:[#allocation5 + $0x8] sm:$0xff]
      %v5130 = vld [vmem:[#allocation5 + $0x10] sm:$0xff]
      %v5131 = vld [vmem:[#allocation5 + $0x18] sm:$0xff]
      %v5132 = vld [vmem:[#allocation5 + $0x20] sm:$0xff]
      %v5133 = vld [vmem:[#allocation5 + $0x28] sm:$0xff]
      %v5134 = vld [vmem:[#allocation5 + $0x30] sm:$0xff]
      %v5135 = vld [vmem:[#allocation5 + $0x38] sm:$0xff]
      %v5136 = vld [vmem:[#allocation5 + $0x40] sm:$0xff]
      %v5137 = vld [vmem:[#allocation5 + $0x48] sm:$0xff]
      %v5138 = vld [vmem:[#allocation5 + $0x50] sm:$0xff]
      %v5139 = vld [vmem:[#allocation5 + $0x58] sm:$0xff]
      %v5140 = vld [vmem:[#allocation5 + $0x60] sm:$0xff]
      %v5141 = vld [vmem:[#allocation5 + $0x68] sm:$0xff]
      %v5142 = vld [vmem:[#allocation5 + $0x70] sm:$0xff]
      %v5143 = vld [vmem:[#allocation5 + $0x78] sm:$0xff]
      %s5144 = scalar_lea.vmem %s13, 16
      %v5145 = vld [vmem:[%s5144] sm:$0xf]
      %v5147 = vsel %vm923, %v5112, 0
      %v5150 = vsel %vm923, %v5113, 0
      %v5153 = vsel %vm923, %v5114, 0
      %v5156 = vsel %vm923, %v5115, 0
      %v5159 = vsel %vm923, %v5116, 0
      %v5162 = vsel %vm923, %v5117, 0
      %v5165 = vsel %vm923, %v5118, 0
      %v5168 = vsel %vm923, %v5119, 0
      %v5171 = vsel %vm923, %v5120, 0
      %v5174 = vsel %vm923, %v5121, 0
      %v5177 = vsel %vm923, %v5122, 0
      %v5180 = vsel %vm923, %v5123, 0
      %v5183 = vsel %vm923, %v5124, 0
      %v5186 = vsel %vm923, %v5125, 0
      %v5189 = vsel %vm923, %v5126, 0
      %v5192 = vsel %vm923, %v5127, 0
      %v5195 = vsel %vm996, %v5145, 0
      %5197 = vmatpush.msra.mxu0 0.0
      %5198 = vmatpush.msra.mxu0 0.0
      %5199 = vmatpush.msra.mxu0 0.0
      %5200 = vmatpush.msra.mxu0 0.0
      %5201 = vmatpush.msra.mxu0 0.0
      %5202 = vmatpush.msra.mxu0 0.0
      %5203 = vmatpush.msra.mxu0 0.0
      %5204 = vmatpush.msra.mxu0 0.0
      %5205 = vmatpush.msra.mxu0 0.0
      %5206 = vmatpush.msra.mxu0 0.0
      %5207 = vmatpush.msra.mxu0 0.0
      %5208 = vmatpush.msra.mxu0 0.0
      %5209 = vmatpush.msra.mxu0 0.0
      %5210 = vmatpush.msra.mxu0 0.0
      %5211 = vmatpush.msra.mxu0 0.0
      %5212 = vmatpush.msra.mxu0 %v5195
      %5213 = vmatmul.f32.gmra.mxu0 %v5147
      %v5214 = vpop.f32.mrf.mxu0
      %v5215 = vadd.f32 0.0, %v5214
      %5216 = vmatmul.f32.gmra.mxu0 %v5150
      %v5217 = vpop.f32.mrf.mxu0
      %v5218 = vadd.f32 0.0, %v5217
      %5219 = vmatmul.f32.gmra.mxu0 %v5153
      %v5220 = vpop.f32.mrf.mxu0
      %v5221 = vadd.f32 0.0, %v5220
      %5222 = vmatmul.f32.gmra.mxu0 %v5156
      %v5223 = vpop.f32.mrf.mxu0
      %v5224 = vadd.f32 0.0, %v5223
      %5225 = vmatmul.f32.gmra.mxu0 %v5159
      %v5226 = vpop.f32.mrf.mxu0
      %v5227 = vadd.f32 0.0, %v5226
      %5228 = vmatmul.f32.gmra.mxu0 %v5162
      %v5229 = vpop.f32.mrf.mxu0
      %v5230 = vadd.f32 0.0, %v5229
      %5231 = vmatmul.f32.gmra.mxu0 %v5165
      %v5232 = vpop.f32.mrf.mxu0
      %v5233 = vadd.f32 0.0, %v5232
      %5234 = vmatmul.f32.gmra.mxu0 %v5168
      %v5235 = vpop.f32.mrf.mxu0
      %v5236 = vadd.f32 0.0, %v5235
      %5237 = vmatmul.f32.gmra.mxu0 %v5171
      %v5238 = vpop.f32.mrf.mxu0
      %v5239 = vadd.f32 0.0, %v5238
      %5240 = vmatmul.f32.gmra.mxu0 %v5174
      %v5241 = vpop.f32.mrf.mxu0
      %v5242 = vadd.f32 0.0, %v5241
      %5243 = vmatmul.f32.gmra.mxu0 %v5177
      %v5244 = vpop.f32.mrf.mxu0
      %v5245 = vadd.f32 0.0, %v5244
      %5246 = vmatmul.f32.gmra.mxu0 %v5180
      %v5247 = vpop.f32.mrf.mxu0
      %v5248 = vadd.f32 0.0, %v5247
      %5249 = vmatmul.f32.gmra.mxu0 %v5183
      %v5250 = vpop.f32.mrf.mxu0
      %v5251 = vadd.f32 0.0, %v5250
      %5252 = vmatmul.f32.gmra.mxu0 %v5186
      %v5253 = vpop.f32.mrf.mxu0
      %v5254 = vadd.f32 0.0, %v5253
      %5255 = vmatmul.f32.gmra.mxu0 %v5189
      %v5256 = vpop.f32.mrf.mxu0
      %v5257 = vadd.f32 0.0, %v5256
      %5258 = vmatmul.f32.gmra.mxu0 %v5192
      %v5259 = vpop.f32.mrf.mxu0
      %v5260 = vadd.f32 0.0, %v5259
      %5261 = vdwg.mxu0
      %v5262 = vadd.f32 %v5128, %v5215
      %v5263 = vadd.f32 %v5129, %v5218
      %v5264 = vadd.f32 %v5130, %v5221
      %v5265 = vadd.f32 %v5131, %v5224
      %v5266 = vadd.f32 %v5132, %v5227
      %v5267 = vadd.f32 %v5133, %v5230
      %v5268 = vadd.f32 %v5134, %v5233
      %v5269 = vadd.f32 %v5135, %v5236
      %v5270 = vadd.f32 %v5136, %v5239
      %v5271 = vadd.f32 %v5137, %v5242
      %v5272 = vadd.f32 %v5138, %v5245
      %v5273 = vadd.f32 %v5139, %v5248
      %v5274 = vadd.f32 %v5140, %v5251
      %v5275 = vadd.f32 %v5141, %v5254
      %v5276 = vadd.f32 %v5142, %v5257
      %v5277 = vadd.f32 %v5143, %v5260
      %5278 = vst.msk [vmem:[#allocation5] sm:$0xff] %vm923, %v5262
      %5279 = vst.msk [vmem:[#allocation5 + $0x8] sm:$0xff] %vm923, %v5263
      %5280 = vst.msk [vmem:[#allocation5 + $0x10] sm:$0xff] %vm923, %v5264
      %5281 = vst.msk [vmem:[#allocation5 + $0x18] sm:$0xff] %vm923, %v5265
      %5282 = vst.msk [vmem:[#allocation5 + $0x20] sm:$0xff] %vm923, %v5266
      %5283 = vst.msk [vmem:[#allocation5 + $0x28] sm:$0xff] %vm923, %v5267
      %5284 = vst.msk [vmem:[#allocation5 + $0x30] sm:$0xff] %vm923, %v5268
      %5285 = vst.msk [vmem:[#allocation5 + $0x38] sm:$0xff] %vm923, %v5269
      %5286 = vst.msk [vmem:[#allocation5 + $0x40] sm:$0xff] %vm923, %v5270
      %5287 = vst.msk [vmem:[#allocation5 + $0x48] sm:$0xff] %vm923, %v5271
      %5288 = vst.msk [vmem:[#allocation5 + $0x50] sm:$0xff] %vm923, %v5272
      %5289 = vst.msk [vmem:[#allocation5 + $0x58] sm:$0xff] %vm923, %v5273
      %5290 = vst.msk [vmem:[#allocation5 + $0x60] sm:$0xff] %vm923, %v5274
      %5291 = vst.msk [vmem:[#allocation5 + $0x68] sm:$0xff] %vm923, %v5275
      %5292 = vst.msk [vmem:[#allocation5 + $0x70] sm:$0xff] %vm923, %v5276
      %5293 = vst.msk [vmem:[#allocation5 + $0x78] sm:$0xff] %vm923, %v5277
      %v5294 = vld [vmem:[%s4929 + $0x2] sm:$0xff]
      %v5295 = vld [vmem:[%s4929 + $0xa] sm:$0xff]
      %v5296 = vld [vmem:[%s4929 + $0x1a] sm:$0xff]
      %v5297 = vld [vmem:[%s4929 + $0x22] sm:$0xff]
      %v5298 = vld [vmem:[%s4929 + $0x32] sm:$0xff]
      %v5299 = vld [vmem:[%s4929 + $0x3a] sm:$0xff]
      %v5300 = vld [vmem:[%s4929 + $0x4a] sm:$0xff]
      %v5301 = vld [vmem:[%s4929 + $0x52] sm:$0xff]
      %v5302 = vld [vmem:[%s4929 + $0x62] sm:$0xff]
      %v5303 = vld [vmem:[%s4929 + $0x6a] sm:$0xff]
      %v5304 = vld [vmem:[%s4929 + $0x7a] sm:$0xff]
      %v5305 = vld [vmem:[%s4929 + $0x82] sm:$0xff]
      %v5306 = vld [vmem:[%s4929 + $0x92] sm:$0xff]
      %v5307 = vld [vmem:[%s4929 + $0x9a] sm:$0xff]
      %v5308 = vld [vmem:[%s4929 + $0xaa] sm:$0xff]
      %v5309 = vld [vmem:[%s4929 + $0xb2] sm:$0xff]
      %v5310 = vld [vmem:[#allocation5] sm:$0xff]
      %v5311 = vld [vmem:[#allocation5 + $0x8] sm:$0xff]
      %v5312 = vld [vmem:[#allocation5 + $0x10] sm:$0xff]
      %v5313 = vld [vmem:[#allocation5 + $0x18] sm:$0xff]
      %v5314 = vld [vmem:[#allocation5 + $0x20] sm:$0xff]
      %v5315 = vld [vmem:[#allocation5 + $0x28] sm:$0xff]
      %v5316 = vld [vmem:[#allocation5 + $0x30] sm:$0xff]
      %v5317 = vld [vmem:[#allocation5 + $0x38] sm:$0xff]
      %v5318 = vld [vmem:[#allocation5 + $0x40] sm:$0xff]
      %v5319 = vld [vmem:[#allocation5 + $0x48] sm:$0xff]
      %v5320 = vld [vmem:[#allocation5 + $0x50] sm:$0xff]
      %v5321 = vld [vmem:[#allocation5 + $0x58] sm:$0xff]
      %v5322 = vld [vmem:[#allocation5 + $0x60] sm:$0xff]
      %v5323 = vld [vmem:[#allocation5 + $0x68] sm:$0xff]
      %v5324 = vld [vmem:[#allocation5 + $0x70] sm:$0xff]
      %v5325 = vld [vmem:[#allocation5 + $0x78] sm:$0xff]
      %s5326 = scalar_lea.vmem %s13, 20
      %v5327 = vld [vmem:[%s5326] sm:$0xf]
      %v5329 = vsel %vm923, %v5294, 0
      %v5332 = vsel %vm923, %v5295, 0
      %v5335 = vsel %vm923, %v5296, 0
      %v5338 = vsel %vm923, %v5297, 0
      %v5341 = vsel %vm923, %v5298, 0
      %v5344 = vsel %vm923, %v5299, 0
      %v5347 = vsel %vm923, %v5300, 0
      %v5350 = vsel %vm923, %v5301, 0
      %v5353 = vsel %vm923, %v5302, 0
      %v5356 = vsel %vm923, %v5303, 0
      %v5359 = vsel %vm923, %v5304, 0
      %v5362 = vsel %vm923, %v5305, 0
      %v5365 = vsel %vm923, %v5306, 0
      %v5368 = vsel %vm923, %v5307, 0
      %v5371 = vsel %vm923, %v5308, 0
      %v5374 = vsel %vm923, %v5309, 0
      %v5377 = vsel %vm996, %v5327, 0
      %5379 = vmatpush.msra.mxu0 0.0
      %5380 = vmatpush.msra.mxu0 0.0
      %5381 = vmatpush.msra.mxu0 0.0
      %5382 = vmatpush.msra.mxu0 0.0
      %5383 = vmatpush.msra.mxu0 0.0
      %5384 = vmatpush.msra.mxu0 0.0
      %5385 = vmatpush.msra.mxu0 0.0
      %5386 = vmatpush.msra.mxu0 0.0
      %5387 = vmatpush.msra.mxu0 0.0
      %5388 = vmatpush.msra.mxu0 0.0
      %5389 = vmatpush.msra.mxu0 0.0
      %5390 = vmatpush.msra.mxu0 0.0
      %5391 = vmatpush.msra.mxu0 0.0
      %5392 = vmatpush.msra.mxu0 0.0
      %5393 = vmatpush.msra.mxu0 0.0
      %5394 = vmatpush.msra.mxu0 %v5377
      %5395 = vmatmul.f32.gmra.mxu0 %v5329
      %v5396 = vpop.f32.mrf.mxu0
      %v5397 = vadd.f32 0.0, %v5396
      %5398 = vmatmul.f32.gmra.mxu0 %v5332
      %v5399 = vpop.f32.mrf.mxu0
      %v5400 = vadd.f32 0.0, %v5399
      %5401 = vmatmul.f32.gmra.mxu0 %v5335
      %v5402 = vpop.f32.mrf.mxu0
      %v5403 = vadd.f32 0.0, %v5402
      %5404 = vmatmul.f32.gmra.mxu0 %v5338
      %v5405 = vpop.f32.mrf.mxu0
      %v5406 = vadd.f32 0.0, %v5405
      %5407 = vmatmul.f32.gmra.mxu0 %v5341
      %v5408 = vpop.f32.mrf.mxu0
      %v5409 = vadd.f32 0.0, %v5408
      %5410 = vmatmul.f32.gmra.mxu0 %v5344
      %v5411 = vpop.f32.mrf.mxu0
      %v5412 = vadd.f32 0.0, %v5411
      %5413 = vmatmul.f32.gmra.mxu0 %v5347
      %v5414 = vpop.f32.mrf.mxu0
      %v5415 = vadd.f32 0.0, %v5414
      %5416 = vmatmul.f32.gmra.mxu0 %v5350
      %v5417 = vpop.f32.mrf.mxu0
      %v5418 = vadd.f32 0.0, %v5417
      %5419 = vmatmul.f32.gmra.mxu0 %v5353
      %v5420 = vpop.f32.mrf.mxu0
      %v5421 = vadd.f32 0.0, %v5420
      %5422 = vmatmul.f32.gmra.mxu0 %v5356
      %v5423 = vpop.f32.mrf.mxu0
      %v5424 = vadd.f32 0.0, %v5423
      %5425 = vmatmul.f32.gmra.mxu0 %v5359
      %v5426 = vpop.f32.mrf.mxu0
      %v5427 = vadd.f32 0.0, %v5426
      %5428 = vmatmul.f32.gmra.mxu0 %v5362
      %v5429 = vpop.f32.mrf.mxu0
      %v5430 = vadd.f32 0.0, %v5429
      %5431 = vmatmul.f32.gmra.mxu0 %v5365
      %v5432 = vpop.f32.mrf.mxu0
      %v5433 = vadd.f32 0.0, %v5432
      %5434 = vmatmul.f32.gmra.mxu0 %v5368
      %v5435 = vpop.f32.mrf.mxu0
      %v5436 = vadd.f32 0.0, %v5435
      %5437 = vmatmul.f32.gmra.mxu0 %v5371
      %v5438 = vpop.f32.mrf.mxu0
      %v5439 = vadd.f32 0.0, %v5438
      %5440 = vmatmul.f32.gmra.mxu0 %v5374
      %v5441 = vpop.f32.mrf.mxu0
      %v5442 = vadd.f32 0.0, %v5441
      %5443 = vdwg.mxu0
      %v5444 = vadd.f32 %v5310, %v5397
      %v5445 = vadd.f32 %v5311, %v5400
      %v5446 = vadd.f32 %v5312, %v5403
      %v5447 = vadd.f32 %v5313, %v5406
      %v5448 = vadd.f32 %v5314, %v5409
      %v5449 = vadd.f32 %v5315, %v5412
      %v5450 = vadd.f32 %v5316, %v5415
      %v5451 = vadd.f32 %v5317, %v5418
      %v5452 = vadd.f32 %v5318, %v5421
      %v5453 = vadd.f32 %v5319, %v5424
      %v5454 = vadd.f32 %v5320, %v5427
      %v5455 = vadd.f32 %v5321, %v5430
      %v5456 = vadd.f32 %v5322, %v5433
      %v5457 = vadd.f32 %v5323, %v5436
      %v5458 = vadd.f32 %v5324, %v5439
      %v5459 = vadd.f32 %v5325, %v5442
      %5460 = vst.msk [vmem:[#allocation5] sm:$0xff] %vm923, %v5444
      %5461 = vst.msk [vmem:[#allocation5 + $0x8] sm:$0xff] %vm923, %v5445
      %5462 = vst.msk [vmem:[#allocation5 + $0x10] sm:$0xff] %vm923, %v5446
      %5463 = vst.msk [vmem:[#allocation5 + $0x18] sm:$0xff] %vm923, %v5447
      %5464 = vst.msk [vmem:[#allocation5 + $0x20] sm:$0xff] %vm923, %v5448
      %5465 = vst.msk [vmem:[#allocation5 + $0x28] sm:$0xff] %vm923, %v5449
      %5466 = vst.msk [vmem:[#allocation5 + $0x30] sm:$0xff] %vm923, %v5450
      %5467 = vst.msk [vmem:[#allocation5 + $0x38] sm:$0xff] %vm923, %v5451
      %5468 = vst.msk [vmem:[#allocation5 + $0x40] sm:$0xff] %vm923, %v5452
      %5469 = vst.msk [vmem:[#allocation5 + $0x48] sm:$0xff] %vm923, %v5453
      %5470 = vst.msk [vmem:[#allocation5 + $0x50] sm:$0xff] %vm923, %v5454
      %5471 = vst.msk [vmem:[#allocation5 + $0x58] sm:$0xff] %vm923, %v5455
      %5472 = vst.msk [vmem:[#allocation5 + $0x60] sm:$0xff] %vm923, %v5456
      %5473 = vst.msk [vmem:[#allocation5 + $0x68] sm:$0xff] %vm923, %v5457
      %5474 = vst.msk [vmem:[#allocation5 + $0x70] sm:$0xff] %vm923, %v5458
      %5475 = vst.msk [vmem:[#allocation5 + $0x78] sm:$0xff] %vm923, %v5459
      %s5476 = scalar_lea.vmem [#allocation3], 48
      %v5477 = vld [vmem:[%s5476] sm:$0xff]
      %v5478 = vld [vmem:[%s5476 + $0x8] sm:$0xff]
      %v5479 = vld [vmem:[%s5476 + $0x18] sm:$0xff]
      %v5480 = vld [vmem:[%s5476 + $0x20] sm:$0xff]
      %v5481 = vld [vmem:[%s5476 + $0x30] sm:$0xff]
      %v5482 = vld [vmem:[%s5476 + $0x38] sm:$0xff]
      %v5483 = vld [vmem:[%s5476 + $0x48] sm:$0xff]
      %v5484 = vld [vmem:[%s5476 + $0x50] sm:$0xff]
      %v5485 = vld [vmem:[%s5476 + $0x60] sm:$0xff]
      %v5486 = vld [vmem:[%s5476 + $0x68] sm:$0xff]
      %v5487 = vld [vmem:[%s5476 + $0x78] sm:$0xff]
      %v5488 = vld [vmem:[%s5476 + $0x80] sm:$0xff]
      %v5489 = vld [vmem:[%s5476 + $0x90] sm:$0xff]
      %v5490 = vld [vmem:[%s5476 + $0x98] sm:$0xff]
      %v5491 = vld [vmem:[%s5476 + $0xa8] sm:$0xff]
      %v5492 = vld [vmem:[%s5476 + $0xb0] sm:$0xff]
      %v5493 = vld [vmem:[#allocation5] sm:$0xff]
      %v5494 = vld [vmem:[#allocation5 + $0x8] sm:$0xff]
      %v5495 = vld [vmem:[#allocation5 + $0x10] sm:$0xff]
      %v5496 = vld [vmem:[#allocation5 + $0x18] sm:$0xff]
      %v5497 = vld [vmem:[#allocation5 + $0x20] sm:$0xff]
      %v5498 = vld [vmem:[#allocation5 + $0x28] sm:$0xff]
      %v5499 = vld [vmem:[#allocation5 + $0x30] sm:$0xff]
      %v5500 = vld [vmem:[#allocation5 + $0x38] sm:$0xff]
      %v5501 = vld [vmem:[#allocation5 + $0x40] sm:$0xff]
      %v5502 = vld [vmem:[#allocation5 + $0x48] sm:$0xff]
      %v5503 = vld [vmem:[#allocation5 + $0x50] sm:$0xff]
      %v5504 = vld [vmem:[#allocation5 + $0x58] sm:$0xff]
      %v5505 = vld [vmem:[#allocation5 + $0x60] sm:$0xff]
      %v5506 = vld [vmem:[#allocation5 + $0x68] sm:$0xff]
      %v5507 = vld [vmem:[#allocation5 + $0x70] sm:$0xff]
      %v5508 = vld [vmem:[#allocation5 + $0x78] sm:$0xff]
      %s5509 = scalar_lea.vmem %s13, 24
      %v5510 = vld [vmem:[%s5509] sm:$0xf]
      %v5512 = vsel %vm923, %v5477, 0
      %v5515 = vsel %vm923, %v5478, 0
      %v5518 = vsel %vm923, %v5479, 0
      %v5521 = vsel %vm923, %v5480, 0
      %v5524 = vsel %vm923, %v5481, 0
      %v5527 = vsel %vm923, %v5482, 0
      %v5530 = vsel %vm923, %v5483, 0
      %v5533 = vsel %vm923, %v5484, 0
      %v5536 = vsel %vm923, %v5485, 0
      %v5539 = vsel %vm923, %v5486, 0
      %v5542 = vsel %vm923, %v5487, 0
      %v5545 = vsel %vm923, %v5488, 0
      %v5548 = vsel %vm923, %v5489, 0
      %v5551 = vsel %vm923, %v5490, 0
      %v5554 = vsel %vm923, %v5491, 0
      %v5557 = vsel %vm923, %v5492, 0
      %v5560 = vsel %vm996, %v5510, 0
      %5562 = vmatpush.msra.mxu0 0.0
      %5563 = vmatpush.msra.mxu0 0.0
      %5564 = vmatpush.msra.mxu0 0.0
      %5565 = vmatpush.msra.mxu0 0.0
      %5566 = vmatpush.msra.mxu0 0.0
      %5567 = vmatpush.msra.mxu0 0.0
      %5568 = vmatpush.msra.mxu0 0.0
      %5569 = vmatpush.msra.mxu0 0.0
      %5570 = vmatpush.msra.mxu0 0.0
      %5571 = vmatpush.msra.mxu0 0.0
      %5572 = vmatpush.msra.mxu0 0.0
      %5573 = vmatpush.msra.mxu0 0.0
      %5574 = vmatpush.msra.mxu0 0.0
      %5575 = vmatpush.msra.mxu0 0.0
      %5576 = vmatpush.msra.mxu0 0.0
      %5577 = vmatpush.msra.mxu0 %v5560
      %5578 = vmatmul.f32.gmra.mxu0 %v5512
      %v5579 = vpop.f32.mrf.mxu0
      %v5580 = vadd.f32 0.0, %v5579
      %5581 = vmatmul.f32.gmra.mxu0 %v5515
      %v5582 = vpop.f32.mrf.mxu0
      %v5583 = vadd.f32 0.0, %v5582
      %5584 = vmatmul.f32.gmra.mxu0 %v5518
      %v5585 = vpop.f32.mrf.mxu0
      %v5586 = vadd.f32 0.0, %v5585
      %5587 = vmatmul.f32.gmra.mxu0 %v5521
      %v5588 = vpop.f32.mrf.mxu0
      %v5589 = vadd.f32 0.0, %v5588
      %5590 = vmatmul.f32.gmra.mxu0 %v5524
      %v5591 = vpop.f32.mrf.mxu0
      %v5592 = vadd.f32 0.0, %v5591
      %5593 = vmatmul.f32.gmra.mxu0 %v5527
      %v5594 = vpop.f32.mrf.mxu0
      %v5595 = vadd.f32 0.0, %v5594
      %5596 = vmatmul.f32.gmra.mxu0 %v5530
      %v5597 = vpop.f32.mrf.mxu0
      %v5598 = vadd.f32 0.0, %v5597
      %5599 = vmatmul.f32.gmra.mxu0 %v5533
      %v5600 = vpop.f32.mrf.mxu0
      %v5601 = vadd.f32 0.0, %v5600
      %5602 = vmatmul.f32.gmra.mxu0 %v5536
      %v5603 = vpop.f32.mrf.mxu0
      %v5604 = vadd.f32 0.0, %v5603
      %5605 = vmatmul.f32.gmra.mxu0 %v5539
      %v5606 = vpop.f32.mrf.mxu0
      %v5607 = vadd.f32 0.0, %v5606
      %5608 = vmatmul.f32.gmra.mxu0 %v5542
      %v5609 = vpop.f32.mrf.mxu0
      %v5610 = vadd.f32 0.0, %v5609
      %5611 = vmatmul.f32.gmra.mxu0 %v5545
      %v5612 = vpop.f32.mrf.mxu0
      %v5613 = vadd.f32 0.0, %v5612
      %5614 = vmatmul.f32.gmra.mxu0 %v5548
      %v5615 = vpop.f32.mrf.mxu0
      %v5616 = vadd.f32 0.0, %v5615
      %5617 = vmatmul.f32.gmra.mxu0 %v5551
      %v5618 = vpop.f32.mrf.mxu0
      %v5619 = vadd.f32 0.0, %v5618
      %5620 = vmatmul.f32.gmra.mxu0 %v5554
      %v5621 = vpop.f32.mrf.mxu0
      %v5622 = vadd.f32 0.0, %v5621
      %5623 = vmatmul.f32.gmra.mxu0 %v5557
      %v5624 = vpop.f32.mrf.mxu0
      %v5625 = vadd.f32 0.0, %v5624
      %5626 = vdwg.mxu0
      %v5627 = vadd.f32 %v5493, %v5580
      %v5628 = vadd.f32 %v5494, %v5583
      %v5629 = vadd.f32 %v5495, %v5586
      %v5630 = vadd.f32 %v5496, %v5589
      %v5631 = vadd.f32 %v5497, %v5592
      %v5632 = vadd.f32 %v5498, %v5595
      %v5633 = vadd.f32 %v5499, %v5598
      %v5634 = vadd.f32 %v5500, %v5601
      %v5635 = vadd.f32 %v5501, %v5604
      %v5636 = vadd.f32 %v5502, %v5607
      %v5637 = vadd.f32 %v5503, %v5610
      %v5638 = vadd.f32 %v5504, %v5613
      %v5639 = vadd.f32 %v5505, %v5616
      %v5640 = vadd.f32 %v5506, %v5619
      %v5641 = vadd.f32 %v5507, %v5622
      %v5642 = vadd.f32 %v5508, %v5625
      %5643 = vst.msk [vmem:[#allocation5] sm:$0xff] %vm923, %v5627
      %5644 = vst.msk [vmem:[#allocation5 + $0x8] sm:$0xff] %vm923, %v5628
      %5645 = vst.msk [vmem:[#allocation5 + $0x10] sm:$0xff] %vm923, %v5629
      %5646 = vst.msk [vmem:[#allocation5 + $0x18] sm:$0xff] %vm923, %v5630
      %5647 = vst.msk [vmem:[#allocation5 + $0x20] sm:$0xff] %vm923, %v5631
      %5648 = vst.msk [vmem:[#allocation5 + $0x28] sm:$0xff] %vm923, %v5632
      %5649 = vst.msk [vmem:[#allocation5 + $0x30] sm:$0xff] %vm923, %v5633
      %5650 = vst.msk [vmem:[#allocation5 + $0x38] sm:$0xff] %vm923, %v5634
      %5651 = vst.msk [vmem:[#allocation5 + $0x40] sm:$0xff] %vm923, %v5635
      %5652 = vst.msk [vmem:[#allocation5 + $0x48] sm:$0xff] %vm923, %v5636
      %5653 = vst.msk [vmem:[#allocation5 + $0x50] sm:$0xff] %vm923, %v5637
      %5654 = vst.msk [vmem:[#allocation5 + $0x58] sm:$0xff] %vm923, %v5638
      %5655 = vst.msk [vmem:[#allocation5 + $0x60] sm:$0xff] %vm923, %v5639
      %5656 = vst.msk [vmem:[#allocation5 + $0x68] sm:$0xff] %vm923, %v5640
      %5657 = vst.msk [vmem:[#allocation5 + $0x70] sm:$0xff] %vm923, %v5641
      %5658 = vst.msk [vmem:[#allocation5 + $0x78] sm:$0xff] %vm923, %v5642
      %v5659 = vld [vmem:[%s5476 + $0x1] sm:$0xff]
      %v5660 = vld [vmem:[%s5476 + $0x9] sm:$0xff]
      %v5661 = vld [vmem:[%s5476 + $0x19] sm:$0xff]
      %v5662 = vld [vmem:[%s5476 + $0x21] sm:$0xff]
      %v5663 = vld [vmem:[%s5476 + $0x31] sm:$0xff]
      %v5664 = vld [vmem:[%s5476 + $0x39] sm:$0xff]
      %v5665 = vld [vmem:[%s5476 + $0x49] sm:$0xff]
      %v5666 = vld [vmem:[%s5476 + $0x51] sm:$0xff]
      %v5667 = vld [vmem:[%s5476 + $0x61] sm:$0xff]
      %v5668 = vld [vmem:[%s5476 + $0x69] sm:$0xff]
      %v5669 = vld [vmem:[%s5476 + $0x79] sm:$0xff]
      %v5670 = vld [vmem:[%s5476 + $0x81] sm:$0xff]
      %v5671 = vld [vmem:[%s5476 + $0x91] sm:$0xff]
      %v5672 = vld [vmem:[%s5476 + $0x99] sm:$0xff]
      %v5673 = vld [vmem:[%s5476 + $0xa9] sm:$0xff]
      %v5674 = vld [vmem:[%s5476 + $0xb1] sm:$0xff]
      %v5675 = vld [vmem:[#allocation5] sm:$0xff]
      %v5676 = vld [vmem:[#allocation5 + $0x8] sm:$0xff]
      %v5677 = vld [vmem:[#allocation5 + $0x10] sm:$0xff]
      %v5678 = vld [vmem:[#allocation5 + $0x18] sm:$0xff]
      %v5679 = vld [vmem:[#allocation5 + $0x20] sm:$0xff]
      %v5680 = vld [vmem:[#allocation5 + $0x28] sm:$0xff]
      %v5681 = vld [vmem:[#allocation5 + $0x30] sm:$0xff]
      %v5682 = vld [vmem:[#allocation5 + $0x38] sm:$0xff]
      %v5683 = vld [vmem:[#allocation5 + $0x40] sm:$0xff]
      %v5684 = vld [vmem:[#allocation5 + $0x48] sm:$0xff]
      %v5685 = vld [vmem:[#allocation5 + $0x50] sm:$0xff]
      %v5686 = vld [vmem:[#allocation5 + $0x58] sm:$0xff]
      %v5687 = vld [vmem:[#allocation5 + $0x60] sm:$0xff]
      %v5688 = vld [vmem:[#allocation5 + $0x68] sm:$0xff]
      %v5689 = vld [vmem:[#allocation5 + $0x70] sm:$0xff]
      %v5690 = vld [vmem:[#allocation5 + $0x78] sm:$0xff]
      %s5691 = scalar_lea.vmem %s13, 28
      %v5692 = vld [vmem:[%s5691] sm:$0xf]
      %v5694 = vsel %vm923, %v5659, 0
      %v5697 = vsel %vm923, %v5660, 0
      %v5700 = vsel %vm923, %v5661, 0
      %v5703 = vsel %vm923, %v5662, 0
      %v5706 = vsel %vm923, %v5663, 0
      %v5709 = vsel %vm923, %v5664, 0
      %v5712 = vsel %vm923, %v5665, 0
      %v5715 = vsel %vm923, %v5666, 0
      %v5718 = vsel %vm923, %v5667, 0
      %v5721 = vsel %vm923, %v5668, 0
      %v5724 = vsel %vm923, %v5669, 0
      %v5727 = vsel %vm923, %v5670, 0
      %v5730 = vsel %vm923, %v5671, 0
      %v5733 = vsel %vm923, %v5672, 0
      %v5736 = vsel %vm923, %v5673, 0
      %v5739 = vsel %vm923, %v5674, 0
      %v5742 = vsel %vm996, %v5692, 0
      %5744 = vmatpush.msra.mxu0 0.0
      %5745 = vmatpush.msra.mxu0 0.0
      %5746 = vmatpush.msra.mxu0 0.0
      %5747 = vmatpush.msra.mxu0 0.0
      %5748 = vmatpush.msra.mxu0 0.0
      %5749 = vmatpush.msra.mxu0 0.0
      %5750 = vmatpush.msra.mxu0 0.0
      %5751 = vmatpush.msra.mxu0 0.0
      %5752 = vmatpush.msra.mxu0 0.0
      %5753 = vmatpush.msra.mxu0 0.0
      %5754 = vmatpush.msra.mxu0 0.0
      %5755 = vmatpush.msra.mxu0 0.0
      %5756 = vmatpush.msra.mxu0 0.0
      %5757 = vmatpush.msra.mxu0 0.0
      %5758 = vmatpush.msra.mxu0 0.0
      %5759 = vmatpush.msra.mxu0 %v5742
      %5760 = vmatmul.f32.gmra.mxu0 %v5694
      %v5761 = vpop.f32.mrf.mxu0
      %v5762 = vadd.f32 0.0, %v5761
      %5763 = vmatmul.f32.gmra.mxu0 %v5697
      %v5764 = vpop.f32.mrf.mxu0
      %v5765 = vadd.f32 0.0, %v5764
      %5766 = vmatmul.f32.gmra.mxu0 %v5700
      %v5767 = vpop.f32.mrf.mxu0
      %v5768 = vadd.f32 0.0, %v5767
      %5769 = vmatmul.f32.gmra.mxu0 %v5703
      %v5770 = vpop.f32.mrf.mxu0
      %v5771 = vadd.f32 0.0, %v5770
      %5772 = vmatmul.f32.gmra.mxu0 %v5706
      %v5773 = vpop.f32.mrf.mxu0
      %v5774 = vadd.f32 0.0, %v5773
      %5775 = vmatmul.f32.gmra.mxu0 %v5709
      %v5776 = vpop.f32.mrf.mxu0
      %v5777 = vadd.f32 0.0, %v5776
      %5778 = vmatmul.f32.gmra.mxu0 %v5712
      %v5779 = vpop.f32.mrf.mxu0
      %v5780 = vadd.f32 0.0, %v5779
      %5781 = vmatmul.f32.gmra.mxu0 %v5715
      %v5782 = vpop.f32.mrf.mxu0
      %v5783 = vadd.f32 0.0, %v5782
      %5784 = vmatmul.f32.gmra.mxu0 %v5718
      %v5785 = vpop.f32.mrf.mxu0
      %v5786 = vadd.f32 0.0, %v5785
      %5787 = vmatmul.f32.gmra.mxu0 %v5721
      %v5788 = vpop.f32.mrf.mxu0
      %v5789 = vadd.f32 0.0, %v5788
      %5790 = vmatmul.f32.gmra.mxu0 %v5724
      %v5791 = vpop.f32.mrf.mxu0
      %v5792 = vadd.f32 0.0, %v5791
      %5793 = vmatmul.f32.gmra.mxu0 %v5727
      %v5794 = vpop.f32.mrf.mxu0
      %v5795 = vadd.f32 0.0, %v5794
      %5796 = vmatmul.f32.gmra.mxu0 %v5730
      %v5797 = vpop.f32.mrf.mxu0
      %v5798 = vadd.f32 0.0, %v5797
      %5799 = vmatmul.f32.gmra.mxu0 %v5733
      %v5800 = vpop.f32.mrf.mxu0
      %v5801 = vadd.f32 0.0, %v5800
      %5802 = vmatmul.f32.gmra.mxu0 %v5736
      %v5803 = vpop.f32.mrf.mxu0
      %v5804 = vadd.f32 0.0, %v5803
      %5805 = vmatmul.f32.gmra.mxu0 %v5739
      %v5806 = vpop.f32.mrf.mxu0
      %v5807 = vadd.f32 0.0, %v5806
      %5808 = vdwg.mxu0
      %v5809 = vadd.f32 %v5675, %v5762
      %v5810 = vadd.f32 %v5676, %v5765
      %v5811 = vadd.f32 %v5677, %v5768
      %v5812 = vadd.f32 %v5678, %v5771
      %v5813 = vadd.f32 %v5679, %v5774
      %v5814 = vadd.f32 %v5680, %v5777
      %v5815 = vadd.f32 %v5681, %v5780
      %v5816 = vadd.f32 %v5682, %v5783
      %v5817 = vadd.f32 %v5683, %v5786
      %v5818 = vadd.f32 %v5684, %v5789
      %v5819 = vadd.f32 %v5685, %v5792
      %v5820 = vadd.f32 %v5686, %v5795
      %v5821 = vadd.f32 %v5687, %v5798
      %v5822 = vadd.f32 %v5688, %v5801
      %v5823 = vadd.f32 %v5689, %v5804
      %v5824 = vadd.f32 %v5690, %v5807
      %5825 = vst.msk [vmem:[#allocation5] sm:$0xff] %vm923, %v5809
      %5826 = vst.msk [vmem:[#allocation5 + $0x8] sm:$0xff] %vm923, %v5810
      %5827 = vst.msk [vmem:[#allocation5 + $0x10] sm:$0xff] %vm923, %v5811
      %5828 = vst.msk [vmem:[#allocation5 + $0x18] sm:$0xff] %vm923, %v5812
      %5829 = vst.msk [vmem:[#allocation5 + $0x20] sm:$0xff] %vm923, %v5813
      %5830 = vst.msk [vmem:[#allocation5 + $0x28] sm:$0xff] %vm923, %v5814
      %5831 = vst.msk [vmem:[#allocation5 + $0x30] sm:$0xff] %vm923, %v5815
      %5832 = vst.msk [vmem:[#allocation5 + $0x38] sm:$0xff] %vm923, %v5816
      %5833 = vst.msk [vmem:[#allocation5 + $0x40] sm:$0xff] %vm923, %v5817
      %5834 = vst.msk [vmem:[#allocation5 + $0x48] sm:$0xff] %vm923, %v5818
      %5835 = vst.msk [vmem:[#allocation5 + $0x50] sm:$0xff] %vm923, %v5819
      %5836 = vst.msk [vmem:[#allocation5 + $0x58] sm:$0xff] %vm923, %v5820
      %5837 = vst.msk [vmem:[#allocation5 + $0x60] sm:$0xff] %vm923, %v5821
      %5838 = vst.msk [vmem:[#allocation5 + $0x68] sm:$0xff] %vm923, %v5822
      %5839 = vst.msk [vmem:[#allocation5 + $0x70] sm:$0xff] %vm923, %v5823
      %5840 = vst.msk [vmem:[#allocation5 + $0x78] sm:$0xff] %vm923, %v5824
      %v5841 = vld [vmem:[%s5476 + $0x2] sm:$0xff]
      %v5842 = vld [vmem:[%s5476 + $0xa] sm:$0xff]
      %v5843 = vld [vmem:[%s5476 + $0x1a] sm:$0xff]
      %v5844 = vld [vmem:[%s5476 + $0x22] sm:$0xff]
      %v5845 = vld [vmem:[%s5476 + $0x32] sm:$0xff]
      %v5846 = vld [vmem:[%s5476 + $0x3a] sm:$0xff]
      %v5847 = vld [vmem:[%s5476 + $0x4a] sm:$0xff]
      %v5848 = vld [vmem:[%s5476 + $0x52] sm:$0xff]
      %v5849 = vld [vmem:[%s5476 + $0x62] sm:$0xff]
      %v5850 = vld [vmem:[%s5476 + $0x6a] sm:$0xff]
      %v5851 = vld [vmem:[%s5476 + $0x7a] sm:$0xff]
      %v5852 = vld [vmem:[%s5476 + $0x82] sm:$0xff]
      %v5853 = vld [vmem:[%s5476 + $0x92] sm:$0xff]
      %v5854 = vld [vmem:[%s5476 + $0x9a] sm:$0xff]
      %v5855 = vld [vmem:[%s5476 + $0xaa] sm:$0xff]
      %v5856 = vld [vmem:[%s5476 + $0xb2] sm:$0xff]
      %v5857 = vld [vmem:[#allocation5] sm:$0xff]
      %v5858 = vld [vmem:[#allocation5 + $0x8] sm:$0xff]
      %v5859 = vld [vmem:[#allocation5 + $0x10] sm:$0xff]
      %v5860 = vld [vmem:[#allocation5 + $0x18] sm:$0xff]
      %v5861 = vld [vmem:[#allocation5 + $0x20] sm:$0xff]
      %v5862 = vld [vmem:[#allocation5 + $0x28] sm:$0xff]
      %v5863 = vld [vmem:[#allocation5 + $0x30] sm:$0xff]
      %v5864 = vld [vmem:[#allocation5 + $0x38] sm:$0xff]
      %v5865 = vld [vmem:[#allocation5 + $0x40] sm:$0xff]
      %v5866 = vld [vmem:[#allocation5 + $0x48] sm:$0xff]
      %v5867 = vld [vmem:[#allocation5 + $0x50] sm:$0xff]
      %v5868 = vld [vmem:[#allocation5 + $0x58] sm:$0xff]
      %v5869 = vld [vmem:[#allocation5 + $0x60] sm:$0xff]
      %v5870 = vld [vmem:[#allocation5 + $0x68] sm:$0xff]
      %v5871 = vld [vmem:[#allocation5 + $0x70] sm:$0xff]
      %v5872 = vld [vmem:[#allocation5 + $0x78] sm:$0xff]
      %s5873 = scalar_lea.vmem %s13, 32
      %v5874 = vld [vmem:[%s5873] sm:$0xf]
      %v5876 = vsel %vm923, %v5841, 0
      %v5879 = vsel %vm923, %v5842, 0
      %v5882 = vsel %vm923, %v5843, 0
      %v5885 = vsel %vm923, %v5844, 0
      %v5888 = vsel %vm923, %v5845, 0
      %v5891 = vsel %vm923, %v5846, 0
      %v5894 = vsel %vm923, %v5847, 0
      %v5897 = vsel %vm923, %v5848, 0
      %v5900 = vsel %vm923, %v5849, 0
      %v5903 = vsel %vm923, %v5850, 0
      %v5906 = vsel %vm923, %v5851, 0
      %v5909 = vsel %vm923, %v5852, 0
      %v5912 = vsel %vm923, %v5853, 0
      %v5915 = vsel %vm923, %v5854, 0
      %v5918 = vsel %vm923, %v5855, 0
      %v5921 = vsel %vm923, %v5856, 0
      %v5924 = vsel %vm996, %v5874, 0
      %5926 = vmatpush.msra.mxu0 0.0
      %5927 = vmatpush.msra.mxu0 0.0
      %5928 = vmatpush.msra.mxu0 0.0
      %5929 = vmatpush.msra.mxu0 0.0
      %5930 = vmatpush.msra.mxu0 0.0
      %5931 = vmatpush.msra.mxu0 0.0
      %5932 = vmatpush.msra.mxu0 0.0
      %5933 = vmatpush.msra.mxu0 0.0
      %5934 = vmatpush.msra.mxu0 0.0
      %5935 = vmatpush.msra.mxu0 0.0
      %5936 = vmatpush.msra.mxu0 0.0
      %5937 = vmatpush.msra.mxu0 0.0
      %5938 = vmatpush.msra.mxu0 0.0
      %5939 = vmatpush.msra.mxu0 0.0
      %5940 = vmatpush.msra.mxu0 0.0
      %5941 = vmatpush.msra.mxu0 %v5924
      %5942 = vmatmul.f32.gmra.mxu0 %v5876
      %v5943 = vpop.f32.mrf.mxu0
      %v5944 = vadd.f32 0.0, %v5943
      %5945 = vmatmul.f32.gmra.mxu0 %v5879
      %v5946 = vpop.f32.mrf.mxu0
      %v5947 = vadd.f32 0.0, %v5946
      %5948 = vmatmul.f32.gmra.mxu0 %v5882
      %v5949 = vpop.f32.mrf.mxu0
      %v5950 = vadd.f32 0.0, %v5949
      %5951 = vmatmul.f32.gmra.mxu0 %v5885
      %v5952 = vpop.f32.mrf.mxu0
      %v5953 = vadd.f32 0.0, %v5952
      %5954 = vmatmul.f32.gmra.mxu0 %v5888
      %v5955 = vpop.f32.mrf.mxu0
      %v5956 = vadd.f32 0.0, %v5955
      %5957 = vmatmul.f32.gmra.mxu0 %v5891
      %v5958 = vpop.f32.mrf.mxu0
      %v5959 = vadd.f32 0.0, %v5958
      %5960 = vmatmul.f32.gmra.mxu0 %v5894
      %v5961 = vpop.f32.mrf.mxu0
      %v5962 = vadd.f32 0.0, %v5961
      %5963 = vmatmul.f32.gmra.mxu0 %v5897
      %v5964 = vpop.f32.mrf.mxu0
      %v5965 = vadd.f32 0.0, %v5964
      %5966 = vmatmul.f32.gmra.mxu0 %v5900
      %v5967 = vpop.f32.mrf.mxu0
      %v5968 = vadd.f32 0.0, %v5967
      %5969 = vmatmul.f32.gmra.mxu0 %v5903
      %v5970 = vpop.f32.mrf.mxu0
      %v5971 = vadd.f32 0.0, %v5970
      %5972 = vmatmul.f32.gmra.mxu0 %v5906
      %v5973 = vpop.f32.mrf.mxu0
      %v5974 = vadd.f32 0.0, %v5973
      %5975 = vmatmul.f32.gmra.mxu0 %v5909
      %v5976 = vpop.f32.mrf.mxu0
      %v5977 = vadd.f32 0.0, %v5976
      %5978 = vmatmul.f32.gmra.mxu0 %v5912
      %v5979 = vpop.f32.mrf.mxu0
      %v5980 = vadd.f32 0.0, %v5979
      %5981 = vmatmul.f32.gmra.mxu0 %v5915
      %v5982 = vpop.f32.mrf.mxu0
      %v5983 = vadd.f32 0.0, %v5982
      %5984 = vmatmul.f32.gmra.mxu0 %v5918
      %v5985 = vpop.f32.mrf.mxu0
      %v5986 = vadd.f32 0.0, %v5985
      %5987 = vmatmul.f32.gmra.mxu0 %v5921
      %v5988 = vpop.f32.mrf.mxu0
      %v5989 = vadd.f32 0.0, %v5988
      %5990 = vdwg.mxu0
      %v5991 = vadd.f32 %v5857, %v5944
      %v5992 = vadd.f32 %v5858, %v5947
      %v5993 = vadd.f32 %v5859, %v5950
      %v5994 = vadd.f32 %v5860, %v5953
      %v5995 = vadd.f32 %v5861, %v5956
      %v5996 = vadd.f32 %v5862, %v5959
      %v5997 = vadd.f32 %v5863, %v5962
      %v5998 = vadd.f32 %v5864, %v5965
      %v5999 = vadd.f32 %v5865, %v5968
      %v6000 = vadd.f32 %v5866, %v5971
      %v6001 = vadd.f32 %v5867, %v5974
      %v6002 = vadd.f32 %v5868, %v5977
      %v6003 = vadd.f32 %v5869, %v5980
      %v6004 = vadd.f32 %v5870, %v5983
      %v6005 = vadd.f32 %v5871, %v5986
      %v6006 = vadd.f32 %v5872, %v5989
      %6007 = vst.msk [vmem:[#allocation5] sm:$0xff] %vm923, %v5991
      %6008 = vst.msk [vmem:[#allocation5 + $0x8] sm:$0xff] %vm923, %v5992
      %6009 = vst.msk [vmem:[#allocation5 + $0x10] sm:$0xff] %vm923, %v5993
      %6010 = vst.msk [vmem:[#allocation5 + $0x18] sm:$0xff] %vm923, %v5994
      %6011 = vst.msk [vmem:[#allocation5 + $0x20] sm:$0xff] %vm923, %v5995
      %6012 = vst.msk [vmem:[#allocation5 + $0x28] sm:$0xff] %vm923, %v5996
      %6013 = vst.msk [vmem:[#allocation5 + $0x30] sm:$0xff] %vm923, %v5997
      %6014 = vst.msk [vmem:[#allocation5 + $0x38] sm:$0xff] %vm923, %v5998
      %6015 = vst.msk [vmem:[#allocation5 + $0x40] sm:$0xff] %vm923, %v5999
      %6016 = vst.msk [vmem:[#allocation5 + $0x48] sm:$0xff] %vm923, %v6000
      %6017 = vst.msk [vmem:[#allocation5 + $0x50] sm:$0xff] %vm923, %v6001
      %6018 = vst.msk [vmem:[#allocation5 + $0x58] sm:$0xff] %vm923, %v6002
      %6019 = vst.msk [vmem:[#allocation5 + $0x60] sm:$0xff] %vm923, %v6003
      %6020 = vst.msk [vmem:[#allocation5 + $0x68] sm:$0xff] %vm923, %v6004
      %6021 = vst.msk [vmem:[#allocation5 + $0x70] sm:$0xff] %vm923, %v6005
      %6022 = vst.msk [vmem:[#allocation5 + $0x78] sm:$0xff] %vm923, %v6006
      %v6023 = vld [vmem:[#allocation5] sm:$0xff]
      %v6024 = vld [vmem:[#allocation5 + $0x8] sm:$0xff]
      %v6025 = vld [vmem:[#allocation5 + $0x10] sm:$0xff]
      %v6026 = vld [vmem:[#allocation5 + $0x18] sm:$0xff]
      %v6027 = vld [vmem:[#allocation5 + $0x20] sm:$0xff]
      %v6028 = vld [vmem:[#allocation5 + $0x28] sm:$0xff]
      %v6029 = vld [vmem:[#allocation5 + $0x30] sm:$0xff]
      %v6030 = vld [vmem:[#allocation5 + $0x38] sm:$0xff]
      %v6031 = vld [vmem:[#allocation5 + $0x40] sm:$0xff]
      %v6032 = vld [vmem:[#allocation5 + $0x48] sm:$0xff]
      %v6033 = vld [vmem:[#allocation5 + $0x50] sm:$0xff]
      %v6034 = vld [vmem:[#allocation5 + $0x58] sm:$0xff]
      %v6035 = vld [vmem:[#allocation5 + $0x60] sm:$0xff]
      %v6036 = vld [vmem:[#allocation5 + $0x68] sm:$0xff]
      %v6037 = vld [vmem:[#allocation5 + $0x70] sm:$0xff]
      %v6038 = vld [vmem:[#allocation5 + $0x78] sm:$0xff]
      %v6039 = vmax.f32 %v6023, 0.0
      %v6040 = vmax.f32 %v6024, 0.0
      %v6041 = vmax.f32 %v6025, 0.0
      %v6042 = vmax.f32 %v6026, 0.0
      %v6043 = vmax.f32 %v6027, 0.0
      %v6044 = vmax.f32 %v6028, 0.0
      %v6045 = vmax.f32 %v6029, 0.0
      %v6046 = vmax.f32 %v6030, 0.0
      %v6047 = vmax.f32 %v6031, 0.0
      %v6048 = vmax.f32 %v6032, 0.0
      %v6049 = vmax.f32 %v6033, 0.0
      %v6050 = vmax.f32 %v6034, 0.0
      %v6051 = vmax.f32 %v6035, 0.0
      %v6052 = vmax.f32 %v6036, 0.0
      %v6053 = vmax.f32 %v6037, 0.0
      %v6054 = vmax.f32 %v6038, 0.0
      %6055 = vst.msk [vmem:[%s845] sm:$0xff] %vm923, %v6039
      %6056 = vst.msk [vmem:[%s845 + $0x8] sm:$0xff] %vm923, %v6040
      %6057 = vst.msk [vmem:[%s845 + $0x10] sm:$0xff] %vm923, %v6041
      %6058 = vst.msk [vmem:[%s845 + $0x18] sm:$0xff] %vm923, %v6042
      %6059 = vst.msk [vmem:[%s845 + $0x20] sm:$0xff] %vm923, %v6043
      %6060 = vst.msk [vmem:[%s845 + $0x28] sm:$0xff] %vm923, %v6044
      %6061 = vst.msk [vmem:[%s845 + $0x30] sm:$0xff] %vm923, %v6045
      %6062 = vst.msk [vmem:[%s845 + $0x38] sm:$0xff] %vm923, %v6046
      %6063 = vst.msk [vmem:[%s845 + $0x40] sm:$0xff] %vm923, %v6047
      %6064 = vst.msk [vmem:[%s845 + $0x48] sm:$0xff] %vm923, %v6048
      %6065 = vst.msk [vmem:[%s845 + $0x50] sm:$0xff] %vm923, %v6049
      %6066 = vst.msk [vmem:[%s845 + $0x58] sm:$0xff] %vm923, %v6050
      %6067 = vst.msk [vmem:[%s845 + $0x60] sm:$0xff] %vm923, %v6051
      %6068 = vst.msk [vmem:[%s845 + $0x68] sm:$0xff] %vm923, %v6052
      %6069 = vst.msk [vmem:[%s845 + $0x70] sm:$0xff] %vm923, %v6053
      %6070 = vst.msk [vmem:[%s845 + $0x78] sm:$0xff] %vm923, %v6054
      %s6071 = smul.u32 8, %s34
      %p6072 = scmp.lt.s32.totalorder %s33, 1
      %s6073 = scalar_select %p6072, %s33, 1
      %p6074 = scmp.lt.s32.totalorder %s6071, 15
      %s6075 = scalar_select %p6074, %s6071, 15
      %s6076 = smul.addr %s6075, 2
      %s6077 = smul.addr %s6073, 32
      %s6078 = sadd.s32 %s6076, %s6077
      %s6079 = smul.addr %s6078, 8
      %s6080 = scalar_lea.vmem %s16, %s6079
      // Predicated region
      $region93: #{upblock_forward.3} parent=83 // pred_check
        %p6081 = pneg %p463
      $region94: #{upblock_forward.3} parent=83 // pred_check_branch
        %6083 = sbr.rel (%p6081) target = $region96
      $region95: #{upblock_forward.3} parent=83 // pred_region
        %s6084 = smul.u32 8, %s34
      $region96: #{upblock_forward.3} parent=83 // pred_fallthru
        _
    $region84: #{upblock_forward.3} parent=5 // pred_fallthru
      _
    %p6085 = scmp.le.s32.totalorder 2, %s24
    // Predicated region
    $region97: #{upblock_forward.3} parent=5 // pred_check
      %p6086 = pneg %p6085
    $region98: #{upblock_forward.3} parent=5 // pred_check_branch
      %6088 = sbr.rel (%p6086) target = $region100
    $region99: #{upblock_forward.3} parent=5 // pred_region
      %s6089 = ssub.s32 %s24, 2
      // Predicated region
      $region101: #{upblock_forward.3} parent=99 // pred_check
        %p6090 = pneg %p469
      $region102: #{upblock_forward.3} parent=99 // pred_check_branch
        %6092 = sbr.rel (%p6090) target = $region104
      $region103: #{upblock_forward.3} parent=99 // pred_region
        %s6093 = smul.u32 8, %s36
        %p6094 = scmp.lt.s32.totalorder %s35, 1
        %s6095 = scalar_select %p6094, %s35, 1
        %p6096 = scmp.lt.s32.totalorder %s6093, 15
        %s6097 = scalar_select %p6096, %s6093, 15
        %s6098 = smul.addr %s6097, 2
        %s6099 = smul.addr %s6095, 32
        %s6100 = sadd.s32 %s6098, %s6099
        %s6101 = smul.addr %s6100, 8
        %s6102 = scalar_lea.vmem %s16, %s6101
      $region104: #{upblock_forward.3} parent=99 // pred_fallthru
        _
    $region100: #{upblock_forward.3} parent=5 // pred_fallthru
      _
  $region6: #{upblock_forward.3} parent=0 // loop_footer
    %s28 = sadd.s32 1, %s24
  $region7: #{upblock_forward.3} parent=0 // loop_footer_branch
    %23 = sbr.rel target = $region3
  $region8: #{upblock_forward.3} parent=0 // loop_exit
    _

</llo_original>
